<compile_context>
chip_gen: v7x
topology: tpu7x:2x2x1
jax: 0.10.0
libtpu: 0.0.40
codegen_flags: <defaults>
</compile_context>

<pallas_src>
import functools

import jax
import jax.numpy as jnp
from jax.experimental import pallas as pl
from jax.experimental.pallas import tpu as pltpu

# ----------------------------- configuration (small, consistent with module) ----------
INPUT_NC = 3          # input_nc
NDF = 8               # ndf (small for the toy run; PyTorch default 64)
N_LAYERS = 3          # n_layers
NUM_D = 3             # num_D
KW = 4                # kernel_size
PADW = 2              # int(ceil((kw - 1) / 2))
LRELU_SLOPE = 0.2
BN_EPS = 1e-5
BATCH = 2
SPATIAL = 32


# ----------------------------- fused conv-layer Pallas kernel -------------------------
def _fused_conv_layer_kernel(cols_ref, w_ref, b_ref, gamma_ref, beta_ref, o_ref,
                             *, use_bn, slope):
    """One discriminator layer: (M, K) @ (K, cout) on the MXU (bf16 in, f32 acc),
    then bias [+ BatchNorm (train-mode batch stats)] [+ LeakyReLU] fused on the VPU."""
    y = jnp.dot(cols_ref[...], w_ref[...], preferred_element_type=jnp.float32)
    y = y + b_ref[...]                                   # (1, cout) broadcast
    if use_bn:
        # M == N*OH*OW, so axis-0 stats are exactly BatchNorm2d's (N, H, W) batch stats.
        mean = jnp.mean(y, axis=0, keepdims=True)
        var = jnp.mean(jnp.square(y - mean), axis=0, keepdims=True)
        y = (y - mean) * jax.lax.rsqrt(var + BN_EPS) * gamma_ref[...] + beta_ref[...]
    if slope is not None:
        y = jnp.where(y >= 0.0, y, jnp.float32(slope) * y)
    o_ref[...] = y


# ----------------------------- conv layer wrapper (im2col glue + pallas_call) ---------
def _im2col(x, kh, kw, stride):
    """x: (N, H, W, C) already padded. Returns (N*OH*OW, kh*kw*C), (N, OH, OW)."""
    N, H, W, C = x.shape
    OH = (H - kh) // stride + 1
    OW = (W - kw) // stride + 1
    taps = []
    for i in range(kh):
        for j in range(kw):
            taps.append(x[:, i:i + stride * OH:stride, j:j + stride * OW:stride, :])
    patches = jnp.concatenate(taps, axis=-1)             # (N, OH, OW, kh*kw*C)
    return patches.reshape(N * OH * OW, kh * kw * C), (N, OH, OW)


def conv_layer(x, p):
    """x: NHWC f32. One fused Pallas call for Conv2d(4x4, pad=2) + bias [+BN] [+LReLU]."""
    cout = p["w"].shape[1]
    xp = jnp.pad(x, ((0, 0), (PADW, PADW), (PADW, PADW), (0, 0)))
    cols, (N, OH, OW) = _im2col(xp, KW, KW, p["stride"])
    cols = cols.astype(jnp.bfloat16)                     # MXU-native; acc stays f32
    M, _ = cols.shape

    kernel = functools.partial(_fused_conv_layer_kernel,
                               use_bn=p["use_bn"], slope=p["slope"])
    vmem = pl.BlockSpec(memory_space=pltpu.MemorySpace.VMEM)   # whole array in VMEM
    out = pl.pallas_call(
        kernel,
        out_shape=jax.ShapeDtypeStruct((M, cout), jnp.float32),
        in_specs=[vmem, vmem, vmem, vmem, vmem],
        out_specs=vmem,
    )(cols, p["w"], p["b"], p["gamma"], p["beta"])
    return out.reshape(N, OH, OW, cout)


# ----------------------------- inter-scale downsample (plain-JAX glue) ----------------
def avgpool3_s2_p1(x):
    """AvgPool2d(3, stride=2, padding=1, count_include_pad=False). Tiny / memory-bound
    glue, kept in plain JAX."""
    N, H, W, C = x.shape
    xp = jnp.pad(x, ((0, 0), (1, 1), (1, 1), (0, 0)))
    mp = jnp.pad(jnp.ones((1, H, W, 1), x.dtype), ((0, 0), (1, 1), (1, 1), (0, 0)))
    OH = (H - 1) // 2 + 1
    OW = (W - 1) // 2 + 1
    s = jnp.zeros((N, OH, OW, C), x.dtype)
    c = jnp.zeros((1, OH, OW, 1), x.dtype)
    for i in range(3):
        for j in range(3):
            s = s + xp[:, i:i + 2 * OH:2, j:j + 2 * OW:2, :]
            c = c + mp[:, i:i + 2 * OH:2, j:j + 2 * OW:2, :]
    return s / c


# ----------------------------- parameter init (deterministic, synthetic) --------------
def _init_layer(key, cin, cout, stride, use_bn, slope):
    k = jax.random.split(key, 4)
    w = 0.05 * jax.random.normal(k[0], (KW, KW, cin, cout), jnp.float32)   # HWIO
    return {
        "w": w.reshape(KW * KW * cin, cout).astype(jnp.bfloat16),  # pre-flattened, bf16
        "b": 0.05 * jax.random.normal(k[1], (1, cout), jnp.float32),
        "gamma": 1.0 + 0.05 * jax.random.normal(k[2], (1, cout), jnp.float32),
        "beta": 0.05 * jax.random.normal(k[3], (1, cout), jnp.float32),
        "stride": stride, "use_bn": use_bn, "slope": slope,
    }


def _init_nlayer_discriminator(key, input_nc, ndf, n_layers):
    keys = iter(jax.random.split(key, n_layers + 2))
    layers = [_init_layer(next(keys), input_nc, ndf, stride=2, use_bn=False,
                          slope=LRELU_SLOPE)]
    nf = ndf
    for _ in range(1, n_layers):
        nf_prev, nf = nf, min(nf * 2, 512)
        layers.append(_init_layer(next(keys), nf_prev, nf, stride=2, use_bn=True,
                                  slope=LRELU_SLOPE))
    nf_prev, nf = nf, min(nf * 2, 512)
    layers.append(_init_layer(next(keys), nf_prev, nf, stride=1, use_bn=True,
                              slope=LRELU_SLOPE))
    layers.append(_init_layer(next(keys), nf, 1, stride=1, use_bn=False, slope=None))
    return layers


def init_multiscale_discriminator(key):
    dkeys = jax.random.split(key, NUM_D)
    return {"D": [_init_nlayer_discriminator(dkeys[i], INPUT_NC, NDF, N_LAYERS)
                  for i in range(NUM_D)]}


# ----------------------------- forward pass --------------------------------------------
def nlayer_discriminator_forward(layers, x):
    # getIntermFeat=False (module default): only the final 1-channel map is returned.
    h = x
    for p in layers:
        h = conv_layer(h, p)
    return h


def multiscale_discriminator_forward(params, x_nchw):
    x = jnp.transpose(x_nchw, (0, 2, 3, 1))              # NCHW -> NHWC
    outs = []
    xd = x
    for i in range(NUM_D):
        layers = params["D"][NUM_D - 1 - i]              # coarse-to-fine D ordering
        y = nlayer_discriminator_forward(layers, xd)
        outs.append(jnp.transpose(y, (0, 3, 1, 2)))      # NHWC -> NCHW
        if i != NUM_D - 1:
            xd = avgpool3_s2_p1(xd)
    return tuple(outs)


# ----------------------------- main -----------------------------------------------------
if __name__ == "__main__":
    key = jax.random.PRNGKey(0)
    k_param, k_input = jax.random.split(key)
    params = init_multiscale_discriminator(k_param)

    x = jax.random.normal(k_input, (BATCH, INPUT_NC, SPATIAL, SPATIAL), jnp.float32)

    fwd = jax.jit(functools.partial(multiscale_discriminator_forward, params))
    outs = fwd(x)
    outs = jax.block_until_ready(outs)

    expected = [(BATCH, 1, 7, 7), (BATCH, 1, 5, 5), (BATCH, 1, 4, 4)]
    assert [tuple(o.shape) for o in outs] == expected, [o.shape for o in outs]
    assert all(bool(jnp.all(jnp.isfinite(o))) for o in outs)
    print("KERNEL_OK")
</pallas_src>

<mosaic_0001>
module attributes {stable_mosaic.version = 11 : i64} {
  func.func @_fused_conv_layer_kernel(%arg0: memref<50x48xbf16, #tpu.memory_space<vmem>>, %arg1: memref<48x8xbf16, #tpu.memory_space<vmem>>, %arg2: memref<1x8xf32, #tpu.memory_space<vmem>>, %arg3: memref<1x8xf32, #tpu.memory_space<vmem>>, %arg4: memref<1x8xf32, #tpu.memory_space<vmem>>, %arg5: memref<50x8xf32, #tpu.memory_space<vmem>>) attributes {dimension_semantics = [], scalar_prefetch = 0 : i64, scratch_operands = 0 : i64, tpu.core_type = #tpu.core_type<tc>} {
    %c0 = arith.constant 0 : index
    %c0_0 = arith.constant 0 : index
    %0 = vector.load %arg0[%c0, %c0_0] : memref<50x48xbf16, #tpu.memory_space<vmem>>, vector<50x48xbf16>
    %c0_1 = arith.constant 0 : index
    %c0_2 = arith.constant 0 : index
    %1 = vector.load %arg1[%c0_1, %c0_2] : memref<48x8xbf16, #tpu.memory_space<vmem>>, vector<48x8xbf16>
    %cst = arith.constant dense<0.000000e+00> : vector<50x8xf32>
    %2 = tpu.matmul %0, %1, %cst {dimension_numbers = #tpu.dot_dimension_numbers<[1], [0], [0], [1], [0, 0, 1, 1], [], []>} : vector<50x48xbf16>, vector<48x8xbf16>, vector<50x8xf32> -> vector<50x8xf32>
    %c0_3 = arith.constant 0 : index
    %c0_4 = arith.constant 0 : index
    %3 = vector.load %arg2[%c0_3, %c0_4] : memref<1x8xf32, #tpu.memory_space<vmem>>, vector<1x8xf32>
    %4 = vector.broadcast %3 : vector<1x8xf32> to vector<50x8xf32>
    %5 = arith.addf %2, %4 : vector<50x8xf32>
    %cst_5 = arith.constant 0.000000e+00 : f32
    %6 = vector.broadcast %cst_5 : f32 to vector<50x8xf32>
    %7 = arith.cmpf oge, %5, %6 : vector<50x8xf32>
    %cst_6 = arith.constant 2.000000e-01 : f32
    %8 = vector.broadcast %cst_6 : f32 to vector<50x8xf32>
    %9 = arith.mulf %8, %5 : vector<50x8xf32>
    %10 = arith.select %7, %5, %9 : vector<50x8xi1>, vector<50x8xf32>
    %c0_7 = arith.constant 0 : index
    %c0_8 = arith.constant 0 : index
    %11 = vector.load %arg5[%c0_7, %c0_8] : memref<50x8xf32, #tpu.memory_space<vmem>>, vector<50x8xf32>
    tpu.vector_store %arg5[%c0_7, %c0_8], %10 {strides = array<i32>} : memref<50x8xf32, #tpu.memory_space<vmem>>, vector<50x8xf32>,
    return
  }
}

module attributes {stable_mosaic.version = 11 : i64} {
  func.func @_fused_conv_layer_kernel(%arg0: memref<18x128xbf16, #tpu.memory_space<vmem>>, %arg1: memref<128x16xbf16, #tpu.memory_space<vmem>>, %arg2: memref<1x16xf32, #tpu.memory_space<vmem>>, %arg3: memref<1x16xf32, #tpu.memory_space<vmem>>, %arg4: memref<1x16xf32, #tpu.memory_space<vmem>>, %arg5: memref<18x16xf32, #tpu.memory_space<vmem>>) attributes {dimension_semantics = [], scalar_prefetch = 0 : i64, scratch_operands = 0 : i64, tpu.core_type = #tpu.core_type<tc>} {
    %c0 = arith.constant 0 : index
    %c0_0 = arith.constant 0 : index
    %0 = vector.load %arg0[%c0, %c0_0] : memref<18x128xbf16, #tpu.memory_space<vmem>>, vector<18x128xbf16>
    %c0_1 = arith.constant 0 : index
    %c0_2 = arith.constant 0 : index
    %1 = vector.load %arg1[%c0_1, %c0_2] : memref<128x16xbf16, #tpu.memory_space<vmem>>, vector<128x16xbf16>
    %cst = arith.constant dense<0.000000e+00> : vector<18x16xf32>
    %2 = tpu.matmul %0, %1, %cst {dimension_numbers = #tpu.dot_dimension_numbers<[1], [0], [0], [1], [0, 0, 1, 1], [], []>} : vector<18x128xbf16>, vector<128x16xbf16>, vector<18x16xf32> -> vector<18x16xf32>
    %c0_3 = arith.constant 0 : index
    %c0_4 = arith.constant 0 : index
    %3 = vector.load %arg2[%c0_3, %c0_4] : memref<1x16xf32, #tpu.memory_space<vmem>>, vector<1x16xf32>
    %4 = vector.broadcast %3 : vector<1x16xf32> to vector<18x16xf32>
    %5 = arith.addf %2, %4 : vector<18x16xf32>
    %cst_5 = arith.constant dense<0.000000e+00> : vector<16xf32>
    %6 = vector.multi_reduction <add>, %5, %cst_5 [0] : vector<18x16xf32> to vector<16xf32>
    %7 = vector.shape_cast %6 : vector<16xf32> to vector<1x16xf32>
    %cst_6 = arith.constant 1.800000e+01 : f32
    %8 = vector.broadcast %cst_6 : f32 to vector<1x16xf32>
    %9 = arith.divf %7, %8 : vector<1x16xf32>
    %10 = vector.broadcast %9 : vector<1x16xf32> to vector<18x16xf32>
    %11 = arith.subf %5, %10 : vector<18x16xf32>
    %12 = arith.mulf %11, %11 : vector<18x16xf32>
    %cst_7 = arith.constant dense<0.000000e+00> : vector<16xf32>
    %13 = vector.multi_reduction <add>, %12, %cst_7 [0] : vector<18x16xf32> to vector<16xf32>
    %14 = vector.shape_cast %13 : vector<16xf32> to vector<1x16xf32>
    %cst_8 = arith.constant 1.800000e+01 : f32
    %15 = vector.broadcast %cst_8 : f32 to vector<1x16xf32>
    %16 = arith.divf %14, %15 : vector<1x16xf32>
    %17 = vector.broadcast %9 : vector<1x16xf32> to vector<18x16xf32>
    %18 = arith.subf %5, %17 : vector<18x16xf32>
    %cst_9 = arith.constant 9.99999974E-6 : f32
    %19 = vector.broadcast %cst_9 : f32 to vector<1x16xf32>
    %20 = arith.addf %16, %19 : vector<1x16xf32>
    %21 = math.rsqrt %20 : vector<1x16xf32>
    %22 = vector.broadcast %21 : vector<1x16xf32> to vector<18x16xf32>
    %23 = arith.mulf %18, %22 : vector<18x16xf32>
    %c0_10 = arith.constant 0 : index
    %c0_11 = arith.constant 0 : index
    %24 = vector.load %arg3[%c0_10, %c0_11] : memref<1x16xf32, #tpu.memory_space<vmem>>, vector<1x16xf32>
    %25 = vector.broadcast %24 : vector<1x16xf32> to vector<18x16xf32>
    %26 = arith.mulf %23, %25 : vector<18x16xf32>
    %c0_12 = arith.constant 0 : index
    %c0_13 = arith.constant 0 : index
    %27 = vector.load %arg4[%c0_12, %c0_13] : memref<1x16xf32, #tpu.memory_space<vmem>>, vector<1x16xf32>
    %28 = vector.broadcast %27 : vector<1x16xf32> to vector<18x16xf32>
    %29 = arith.addf %26, %28 : vector<18x16xf32>
    %cst_14 = arith.constant 0.000000e+00 : f32
    %30 = vector.broadcast %cst_14 : f32 to vector<18x16xf32>
    %31 = arith.cmpf oge, %29, %30 : vector<18x16xf32>
    %cst_15 = arith.constant 2.000000e-01 : f32
    %32 = vector.broadcast %cst_15 : f32 to vector<18x16xf32>
    %33 = arith.mulf %32, %29 : vector<18x16xf32>
    %34 = arith.select %31, %29, %33 : vector<18x16xi1>, vector<18x16xf32>
    %c0_16 = arith.constant 0 : index
    %c0_17 = arith.constant 0 : index
    %35 = vector.load %arg5[%c0_16, %c0_17] : memref<18x16xf32, #tpu.memory_space<vmem>>, vector<18x16xf32>
    tpu.vector_store %arg5[%c0_16, %c0_17], %34 {strides = array<i32>} : memref<18x16xf32, #tpu.memory_space<vmem>>, vector<18x16xf32>,
    return
  }
}

module attributes {stable_mosaic.version = 11 : i64} {
  func.func @_fused_conv_layer_kernel(%arg0: memref<8x256xbf16, #tpu.memory_space<vmem>>, %arg1: memref<256x32xbf16, #tpu.memory_space<vmem>>, %arg2: memref<1x32xf32, #tpu.memory_space<vmem>>, %arg3: memref<1x32xf32, #tpu.memory_space<vmem>>, %arg4: memref<1x32xf32, #tpu.memory_space<vmem>>, %arg5: memref<8x32xf32, #tpu.memory_space<vmem>>) attributes {dimension_semantics = [], scalar_prefetch = 0 : i64, scratch_operands = 0 : i64, tpu.core_type = #tpu.core_type<tc>} {
    %c0 = arith.constant 0 : index
    %c0_0 = arith.constant 0 : index
    %0 = vector.load %arg0[%c0, %c0_0] : memref<8x256xbf16, #tpu.memory_space<vmem>>, vector<8x256xbf16>
    %c0_1 = arith.constant 0 : index
    %c0_2 = arith.constant 0 : index
    %1 = vector.load %arg1[%c0_1, %c0_2] : memref<256x32xbf16, #tpu.memory_space<vmem>>, vector<256x32xbf16>
    %cst = arith.constant dense<0.000000e+00> : vector<8x32xf32>
    %2 = tpu.matmul %0, %1, %cst {dimension_numbers = #tpu.dot_dimension_numbers<[1], [0], [0], [1], [0, 0, 1, 1], [], []>} : vector<8x256xbf16>, vector<256x32xbf16>, vector<8x32xf32> -> vector<8x32xf32>
    %c0_3 = arith.constant 0 : index
    %c0_4 = arith.constant 0 : index
    %3 = vector.load %arg2[%c0_3, %c0_4] : memref<1x32xf32, #tpu.memory_space<vmem>>, vector<1x32xf32>
    %4 = vector.broadcast %3 : vector<1x32xf32> to vector<8x32xf32>
    %5 = arith.addf %2, %4 : vector<8x32xf32>
    %cst_5 = arith.constant dense<0.000000e+00> : vector<32xf32>
    %6 = vector.multi_reduction <add>, %5, %cst_5 [0] : vector<8x32xf32> to vector<32xf32>
    %7 = vector.shape_cast %6 : vector<32xf32> to vector<1x32xf32>
    %cst_6 = arith.constant 8.000000e+00 : f32
    %8 = vector.broadcast %cst_6 : f32 to vector<1x32xf32>
    %9 = arith.divf %7, %8 : vector<1x32xf32>
    %10 = vector.broadcast %9 : vector<1x32xf32> to vector<8x32xf32>
    %11 = arith.subf %5, %10 : vector<8x32xf32>
    %12 = arith.mulf %11, %11 : vector<8x32xf32>
    %cst_7 = arith.constant dense<0.000000e+00> : vector<32xf32>
    %13 = vector.multi_reduction <add>, %12, %cst_7 [0] : vector<8x32xf32> to vector<32xf32>
    %14 = vector.shape_cast %13 : vector<32xf32> to vector<1x32xf32>
    %cst_8 = arith.constant 8.000000e+00 : f32
    %15 = vector.broadcast %cst_8 : f32 to vector<1x32xf32>
    %16 = arith.divf %14, %15 : vector<1x32xf32>
    %17 = vector.broadcast %9 : vector<1x32xf32> to vector<8x32xf32>
    %18 = arith.subf %5, %17 : vector<8x32xf32>
    %cst_9 = arith.constant 9.99999974E-6 : f32
    %19 = vector.broadcast %cst_9 : f32 to vector<1x32xf32>
    %20 = arith.addf %16, %19 : vector<1x32xf32>
    %21 = math.rsqrt %20 : vector<1x32xf32>
    %22 = vector.broadcast %21 : vector<1x32xf32> to vector<8x32xf32>
    %23 = arith.mulf %18, %22 : vector<8x32xf32>
    %c0_10 = arith.constant 0 : index
    %c0_11 = arith.constant 0 : index
    %24 = vector.load %arg3[%c0_10, %c0_11] : memref<1x32xf32, #tpu.memory_space<vmem>>, vector<1x32xf32>
    %25 = vector.broadcast %24 : vector<1x32xf32> to vector<8x32xf32>
    %26 = arith.mulf %23, %25 : vector<8x32xf32>
    %c0_12 = arith.constant 0 : index
    %c0_13 = arith.constant 0 : index
    %27 = vector.load %arg4[%c0_12, %c0_13] : memref<1x32xf32, #tpu.memory_space<vmem>>, vector<1x32xf32>
    %28 = vector.broadcast %27 : vector<1x32xf32> to vector<8x32xf32>
    %29 = arith.addf %26, %28 : vector<8x32xf32>
    %cst_14 = arith.constant 0.000000e+00 : f32
    %30 = vector.broadcast %cst_14 : f32 to vector<8x32xf32>
    %31 = arith.cmpf oge, %29, %30 : vector<8x32xf32>
    %cst_15 = arith.constant 2.000000e-01 : f32
    %32 = vector.broadcast %cst_15 : f32 to vector<8x32xf32>
    %33 = arith.mulf %32, %29 : vector<8x32xf32>
    %34 = arith.select %31, %29, %33 : vector<8x32xi1>, vector<8x32xf32>
    %c0_16 = arith.constant 0 : index
    %c0_17 = arith.constant 0 : index
    %35 = vector.load %arg5[%c0_16, %c0_17] : memref<8x32xf32, #tpu.memory_space<vmem>>, vector<8x32xf32>
    tpu.vector_store %arg5[%c0_16, %c0_17], %34 {strides = array<i32>} : memref<8x32xf32, #tpu.memory_space<vmem>>, vector<8x32xf32>,
    return
  }
}

module attributes {stable_mosaic.version = 11 : i64} {
  func.func @_fused_conv_layer_kernel(%arg0: memref<18x512xbf16, #tpu.memory_space<vmem>>, %arg1: memref<512x64xbf16, #tpu.memory_space<vmem>>, %arg2: memref<1x64xf32, #tpu.memory_space<vmem>>, %arg3: memref<1x64xf32, #tpu.memory_space<vmem>>, %arg4: memref<1x64xf32, #tpu.memory_space<vmem>>, %arg5: memref<18x64xf32, #tpu.memory_space<vmem>>) attributes {dimension_semantics = [], scalar_prefetch = 0 : i64, scratch_operands = 0 : i64, tpu.core_type = #tpu.core_type<tc>} {
    %c0 = arith.constant 0 : index
    %c0_0 = arith.constant 0 : index
    %0 = vector.load %arg0[%c0, %c0_0] : memref<18x512xbf16, #tpu.memory_space<vmem>>, vector<18x512xbf16>
    %c0_1 = arith.constant 0 : index
    %c0_2 = arith.constant 0 : index
    %1 = vector.load %arg1[%c0_1, %c0_2] : memref<512x64xbf16, #tpu.memory_space<vmem>>, vector<512x64xbf16>
    %cst = arith.constant dense<0.000000e+00> : vector<18x64xf32>
    %2 = tpu.matmul %0, %1, %cst {dimension_numbers = #tpu.dot_dimension_numbers<[1], [0], [0], [1], [0, 0, 1, 1], [], []>} : vector<18x512xbf16>, vector<512x64xbf16>, vector<18x64xf32> -> vector<18x64xf32>
    %c0_3 = arith.constant 0 : index
    %c0_4 = arith.constant 0 : index
    %3 = vector.load %arg2[%c0_3, %c0_4] : memref<1x64xf32, #tpu.memory_space<vmem>>, vector<1x64xf32>
    %4 = vector.broadcast %3 : vector<1x64xf32> to vector<18x64xf32>
    %5 = arith.addf %2, %4 : vector<18x64xf32>
    %cst_5 = arith.constant dense<0.000000e+00> : vector<64xf32>
    %6 = vector.multi_reduction <add>, %5, %cst_5 [0] : vector<18x64xf32> to vector<64xf32>
    %7 = vector.shape_cast %6 : vector<64xf32> to vector<1x64xf32>
    %cst_6 = arith.constant 1.800000e+01 : f32
    %8 = vector.broadcast %cst_6 : f32 to vector<1x64xf32>
    %9 = arith.divf %7, %8 : vector<1x64xf32>
    %10 = vector.broadcast %9 : vector<1x64xf32> to vector<18x64xf32>
    %11 = arith.subf %5, %10 : vector<18x64xf32>
    %12 = arith.mulf %11, %11 : vector<18x64xf32>
    %cst_7 = arith.constant dense<0.000000e+00> : vector<64xf32>
    %13 = vector.multi_reduction <add>, %12, %cst_7 [0] : vector<18x64xf32> to vector<64xf32>
    %14 = vector.shape_cast %13 : vector<64xf32> to vector<1x64xf32>
    %cst_8 = arith.constant 1.800000e+01 : f32
    %15 = vector.broadcast %cst_8 : f32 to vector<1x64xf32>
    %16 = arith.divf %14, %15 : vector<1x64xf32>
    %17 = vector.broadcast %9 : vector<1x64xf32> to vector<18x64xf32>
    %18 = arith.subf %5, %17 : vector<18x64xf32>
    %cst_9 = arith.constant 9.99999974E-6 : f32
    %19 = vector.broadcast %cst_9 : f32 to vector<1x64xf32>
    %20 = arith.addf %16, %19 : vector<1x64xf32>
    %21 = math.rsqrt %20 : vector<1x64xf32>
    %22 = vector.broadcast %21 : vector<1x64xf32> to vector<18x64xf32>
    %23 = arith.mulf %18, %22 : vector<18x64xf32>
    %c0_10 = arith.constant 0 : index
    %c0_11 = arith.constant 0 : index
    %24 = vector.load %arg3[%c0_10, %c0_11] : memref<1x64xf32, #tpu.memory_space<vmem>>, vector<1x64xf32>
    %25 = vector.broadcast %24 : vector<1x64xf32> to vector<18x64xf32>
    %26 = arith.mulf %23, %25 : vector<18x64xf32>
    %c0_12 = arith.constant 0 : index
    %c0_13 = arith.constant 0 : index
    %27 = vector.load %arg4[%c0_12, %c0_13] : memref<1x64xf32, #tpu.memory_space<vmem>>, vector<1x64xf32>
    %28 = vector.broadcast %27 : vector<1x64xf32> to vector<18x64xf32>
    %29 = arith.addf %26, %28 : vector<18x64xf32>
    %cst_14 = arith.constant 0.000000e+00 : f32
    %30 = vector.broadcast %cst_14 : f32 to vector<18x64xf32>
    %31 = arith.cmpf oge, %29, %30 : vector<18x64xf32>
    %cst_15 = arith.constant 2.000000e-01 : f32
    %32 = vector.broadcast %cst_15 : f32 to vector<18x64xf32>
    %33 = arith.mulf %32, %29 : vector<18x64xf32>
    %34 = arith.select %31, %29, %33 : vector<18x64xi1>, vector<18x64xf32>
    %c0_16 = arith.constant 0 : index
    %c0_17 = arith.constant 0 : index
    %35 = vector.load %arg5[%c0_16, %c0_17] : memref<18x64xf32, #tpu.memory_space<vmem>>, vector<18x64xf32>
    tpu.vector_store %arg5[%c0_16, %c0_17], %34 {strides = array<i32>} : memref<18x64xf32, #tpu.memory_space<vmem>>, vector<18x64xf32>,
    return
  }
}

module attributes {stable_mosaic.version = 11 : i64} {
  func.func @_fused_conv_layer_kernel(%arg0: memref<32x1024xbf16, #tpu.memory_space<vmem>>, %arg1: memref<1024x1xbf16, #tpu.memory_space<vmem>>, %arg2: memref<1x1xf32, #tpu.memory_space<vmem>>, %arg3: memref<1x1xf32, #tpu.memory_space<vmem>>, %arg4: memref<1x1xf32, #tpu.memory_space<vmem>>, %arg5: memref<32x1xf32, #tpu.memory_space<vmem>>) attributes {dimension_semantics = [], scalar_prefetch = 0 : i64, scratch_operands = 0 : i64, tpu.core_type = #tpu.core_type<tc>} {
    %c0 = arith.constant 0 : index
    %c0_0 = arith.constant 0 : index
    %0 = vector.load %arg0[%c0, %c0_0] : memref<32x1024xbf16, #tpu.memory_space<vmem>>, vector<32x1024xbf16>
    %c0_1 = arith.constant 0 : index
    %c0_2 = arith.constant 0 : index
    %1 = vector.load %arg1[%c0_1, %c0_2] : memref<1024x1xbf16, #tpu.memory_space<vmem>>, vector<1024x1xbf16>
    %cst = arith.constant dense<0.000000e+00> : vector<32x1xf32>
    %2 = tpu.matmul %0, %1, %cst {dimension_numbers = #tpu.dot_dimension_numbers<[1], [0], [0], [1], [0, 0, 1, 1], [], []>} : vector<32x1024xbf16>, vector<1024x1xbf16>, vector<32x1xf32> -> vector<32x1xf32>
    %c0_3 = arith.constant 0 : index
    %c0_4 = arith.constant 0 : index
    %3 = vector.load %arg2[%c0_3, %c0_4] : memref<1x1xf32, #tpu.memory_space<vmem>>, vector<1x1xf32>
    %4 = vector.broadcast %3 : vector<1x1xf32> to vector<32x1xf32>
    %5 = arith.addf %2, %4 : vector<32x1xf32>
    %c0_5 = arith.constant 0 : index
    %c0_6 = arith.constant 0 : index
    %6 = vector.load %arg5[%c0_5, %c0_6] : memref<32x1xf32, #tpu.memory_space<vmem>>, vector<32x1xf32>
    tpu.vector_store %arg5[%c0_5, %c0_6], %5 {strides = array<i32>} : memref<32x1xf32, #tpu.memory_space<vmem>>, vector<32x1xf32>,
    return
  }
}

module attributes {stable_mosaic.version = 11 : i64} {
  func.func @_fused_conv_layer_kernel(%arg0: memref<162x48xbf16, #tpu.memory_space<vmem>>, %arg1: memref<48x8xbf16, #tpu.memory_space<vmem>>, %arg2: memref<1x8xf32, #tpu.memory_space<vmem>>, %arg3: memref<1x8xf32, #tpu.memory_space<vmem>>, %arg4: memref<1x8xf32, #tpu.memory_space<vmem>>, %arg5: memref<162x8xf32, #tpu.memory_space<vmem>>) attributes {dimension_semantics = [], scalar_prefetch = 0 : i64, scratch_operands = 0 : i64, tpu.core_type = #tpu.core_type<tc>} {
    %c0 = arith.constant 0 : index
    %c0_0 = arith.constant 0 : index
    %0 = vector.load %arg0[%c0, %c0_0] : memref<162x48xbf16, #tpu.memory_space<vmem>>, vector<162x48xbf16>
    %c0_1 = arith.constant 0 : index
    %c0_2 = arith.constant 0 : index
    %1 = vector.load %arg1[%c0_1, %c0_2] : memref<48x8xbf16, #tpu.memory_space<vmem>>, vector<48x8xbf16>
    %cst = arith.constant dense<0.000000e+00> : vector<162x8xf32>
    %2 = tpu.matmul %0, %1, %cst {dimension_numbers = #tpu.dot_dimension_numbers<[1], [0], [0], [1], [0, 0, 1, 1], [], []>} : vector<162x48xbf16>, vector<48x8xbf16>, vector<162x8xf32> -> vector<162x8xf32>
    %c0_3 = arith.constant 0 : index
    %c0_4 = arith.constant 0 : index
    %3 = vector.load %arg2[%c0_3, %c0_4] : memref<1x8xf32, #tpu.memory_space<vmem>>, vector<1x8xf32>
    %4 = vector.broadcast %3 : vector<1x8xf32> to vector<162x8xf32>
    %5 = arith.addf %2, %4 : vector<162x8xf32>
    %cst_5 = arith.constant 0.000000e+00 : f32
    %6 = vector.broadcast %cst_5 : f32 to vector<162x8xf32>
    %7 = arith.cmpf oge, %5, %6 : vector<162x8xf32>
    %cst_6 = arith.constant 2.000000e-01 : f32
    %8 = vector.broadcast %cst_6 : f32 to vector<162x8xf32>
    %9 = arith.mulf %8, %5 : vector<162x8xf32>
    %10 = arith.select %7, %5, %9 : vector<162x8xi1>, vector<162x8xf32>
    %c0_7 = arith.constant 0 : index
    %c0_8 = arith.constant 0 : index
    %11 = vector.load %arg5[%c0_7, %c0_8] : memref<162x8xf32, #tpu.memory_space<vmem>>, vector<162x8xf32>
    tpu.vector_store %arg5[%c0_7, %c0_8], %10 {strides = array<i32>} : memref<162x8xf32, #tpu.memory_space<vmem>>, vector<162x8xf32>,
    return
  }
}

module attributes {stable_mosaic.version = 11 : i64} {
  func.func @_fused_conv_layer_kernel(%arg0: memref<50x128xbf16, #tpu.memory_space<vmem>>, %arg1: memref<128x16xbf16, #tpu.memory_space<vmem>>, %arg2: memref<1x16xf32, #tpu.memory_space<vmem>>, %arg3: memref<1x16xf32, #tpu.memory_space<vmem>>, %arg4: memref<1x16xf32, #tpu.memory_space<vmem>>, %arg5: memref<50x16xf32, #tpu.memory_space<vmem>>) attributes {dimension_semantics = [], scalar_prefetch = 0 : i64, scratch_operands = 0 : i64, tpu.core_type = #tpu.core_type<tc>} {
    %c0 = arith.constant 0 : index
    %c0_0 = arith.constant 0 : index
    %0 = vector.load %arg0[%c0, %c0_0] : memref<50x128xbf16, #tpu.memory_space<vmem>>, vector<50x128xbf16>
    %c0_1 = arith.constant 0 : index
    %c0_2 = arith.constant 0 : index
    %1 = vector.load %arg1[%c0_1, %c0_2] : memref<128x16xbf16, #tpu.memory_space<vmem>>, vector<128x16xbf16>
    %cst = arith.constant dense<0.000000e+00> : vector<50x16xf32>
    %2 = tpu.matmul %0, %1, %cst {dimension_numbers = #tpu.dot_dimension_numbers<[1], [0], [0], [1], [0, 0, 1, 1], [], []>} : vector<50x128xbf16>, vector<128x16xbf16>, vector<50x16xf32> -> vector<50x16xf32>
    %c0_3 = arith.constant 0 : index
    %c0_4 = arith.constant 0 : index
    %3 = vector.load %arg2[%c0_3, %c0_4] : memref<1x16xf32, #tpu.memory_space<vmem>>, vector<1x16xf32>
    %4 = vector.broadcast %3 : vector<1x16xf32> to vector<50x16xf32>
    %5 = arith.addf %2, %4 : vector<50x16xf32>
    %cst_5 = arith.constant dense<0.000000e+00> : vector<16xf32>
    %6 = vector.multi_reduction <add>, %5, %cst_5 [0] : vector<50x16xf32> to vector<16xf32>
    %7 = vector.shape_cast %6 : vector<16xf32> to vector<1x16xf32>
    %cst_6 = arith.constant 5.000000e+01 : f32
    %8 = vector.broadcast %cst_6 : f32 to vector<1x16xf32>
    %9 = arith.divf %7, %8 : vector<1x16xf32>
    %10 = vector.broadcast %9 : vector<1x16xf32> to vector<50x16xf32>
    %11 = arith.subf %5, %10 : vector<50x16xf32>
    %12 = arith.mulf %11, %11 : vector<50x16xf32>
    %cst_7 = arith.constant dense<0.000000e+00> : vector<16xf32>
    %13 = vector.multi_reduction <add>, %12, %cst_7 [0] : vector<50x16xf32> to vector<16xf32>
    %14 = vector.shape_cast %13 : vector<16xf32> to vector<1x16xf32>
    %cst_8 = arith.constant 5.000000e+01 : f32
    %15 = vector.broadcast %cst_8 : f32 to vector<1x16xf32>
    %16 = arith.divf %14, %15 : vector<1x16xf32>
    %17 = vector.broadcast %9 : vector<1x16xf32> to vector<50x16xf32>
    %18 = arith.subf %5, %17 : vector<50x16xf32>
    %cst_9 = arith.constant 9.99999974E-6 : f32
    %19 = vector.broadcast %cst_9 : f32 to vector<1x16xf32>
    %20 = arith.addf %16, %19 : vector<1x16xf32>
    %21 = math.rsqrt %20 : vector<1x16xf32>
    %22 = vector.broadcast %21 : vector<1x16xf32> to vector<50x16xf32>
    %23 = arith.mulf %18, %22 : vector<50x16xf32>
    %c0_10 = arith.constant 0 : index
    %c0_11 = arith.constant 0 : index
    %24 = vector.load %arg3[%c0_10, %c0_11] : memref<1x16xf32, #tpu.memory_space<vmem>>, vector<1x16xf32>
    %25 = vector.broadcast %24 : vector<1x16xf32> to vector<50x16xf32>
    %26 = arith.mulf %23, %25 : vector<50x16xf32>
    %c0_12 = arith.constant 0 : index
    %c0_13 = arith.constant 0 : index
    %27 = vector.load %arg4[%c0_12, %c0_13] : memref<1x16xf32, #tpu.memory_space<vmem>>, vector<1x16xf32>
    %28 = vector.broadcast %27 : vector<1x16xf32> to vector<50x16xf32>
    %29 = arith.addf %26, %28 : vector<50x16xf32>
    %cst_14 = arith.constant 0.000000e+00 : f32
    %30 = vector.broadcast %cst_14 : f32 to vector<50x16xf32>
    %31 = arith.cmpf oge, %29, %30 : vector<50x16xf32>
    %cst_15 = arith.constant 2.000000e-01 : f32
    %32 = vector.broadcast %cst_15 : f32 to vector<50x16xf32>
    %33 = arith.mulf %32, %29 : vector<50x16xf32>
    %34 = arith.select %31, %29, %33 : vector<50x16xi1>, vector<50x16xf32>
    %c0_16 = arith.constant 0 : index
    %c0_17 = arith.constant 0 : index
    %35 = vector.load %arg5[%c0_16, %c0_17] : memref<50x16xf32, #tpu.memory_space<vmem>>, vector<50x16xf32>
    tpu.vector_store %arg5[%c0_16, %c0_17], %34 {strides = array<i32>} : memref<50x16xf32, #tpu.memory_space<vmem>>, vector<50x16xf32>,
    return
  }
}

module attributes {stable_mosaic.version = 11 : i64} {
  func.func @_fused_conv_layer_kernel(%arg0: memref<18x256xbf16, #tpu.memory_space<vmem>>, %arg1: memref<256x32xbf16, #tpu.memory_space<vmem>>, %arg2: memref<1x32xf32, #tpu.memory_space<vmem>>, %arg3: memref<1x32xf32, #tpu.memory_space<vmem>>, %arg4: memref<1x32xf32, #tpu.memory_space<vmem>>, %arg5: memref<18x32xf32, #tpu.memory_space<vmem>>) attributes {dimension_semantics = [], scalar_prefetch = 0 : i64, scratch_operands = 0 : i64, tpu.core_type = #tpu.core_type<tc>} {
    %c0 = arith.constant 0 : index
    %c0_0 = arith.constant 0 : index
    %0 = vector.load %arg0[%c0, %c0_0] : memref<18x256xbf16, #tpu.memory_space<vmem>>, vector<18x256xbf16>
    %c0_1 = arith.constant 0 : index
    %c0_2 = arith.constant 0 : index
    %1 = vector.load %arg1[%c0_1, %c0_2] : memref<256x32xbf16, #tpu.memory_space<vmem>>, vector<256x32xbf16>
    %cst = arith.constant dense<0.000000e+00> : vector<18x32xf32>
    %2 = tpu.matmul %0, %1, %cst {dimension_numbers = #tpu.dot_dimension_numbers<[1], [0], [0], [1], [0, 0, 1, 1], [], []>} : vector<18x256xbf16>, vector<256x32xbf16>, vector<18x32xf32> -> vector<18x32xf32>
    %c0_3 = arith.constant 0 : index
    %c0_4 = arith.constant 0 : index
    %3 = vector.load %arg2[%c0_3, %c0_4] : memref<1x32xf32, #tpu.memory_space<vmem>>, vector<1x32xf32>
    %4 = vector.broadcast %3 : vector<1x32xf32> to vector<18x32xf32>
    %5 = arith.addf %2, %4 : vector<18x32xf32>
    %cst_5 = arith.constant dense<0.000000e+00> : vector<32xf32>
    %6 = vector.multi_reduction <add>, %5, %cst_5 [0] : vector<18x32xf32> to vector<32xf32>
    %7 = vector.shape_cast %6 : vector<32xf32> to vector<1x32xf32>
    %cst_6 = arith.constant 1.800000e+01 : f32
    %8 = vector.broadcast %cst_6 : f32 to vector<1x32xf32>
    %9 = arith.divf %7, %8 : vector<1x32xf32>
    %10 = vector.broadcast %9 : vector<1x32xf32> to vector<18x32xf32>
    %11 = arith.subf %5, %10 : vector<18x32xf32>
    %12 = arith.mulf %11, %11 : vector<18x32xf32>
    %cst_7 = arith.constant dense<0.000000e+00> : vector<32xf32>
    %13 = vector.multi_reduction <add>, %12, %cst_7 [0] : vector<18x32xf32> to vector<32xf32>
    %14 = vector.shape_cast %13 : vector<32xf32> to vector<1x32xf32>
    %cst_8 = arith.constant 1.800000e+01 : f32
    %15 = vector.broadcast %cst_8 : f32 to vector<1x32xf32>
    %16 = arith.divf %14, %15 : vector<1x32xf32>
    %17 = vector.broadcast %9 : vector<1x32xf32> to vector<18x32xf32>
    %18 = arith.subf %5, %17 : vector<18x32xf32>
    %cst_9 = arith.constant 9.99999974E-6 : f32
    %19 = vector.broadcast %cst_9 : f32 to vector<1x32xf32>
    %20 = arith.addf %16, %19 : vector<1x32xf32>
    %21 = math.rsqrt %20 : vector<1x32xf32>
    %22 = vector.broadcast %21 : vector<1x32xf32> to vector<18x32xf32>
    %23 = arith.mulf %18, %22 : vector<18x32xf32>
    %c0_10 = arith.constant 0 : index
    %c0_11 = arith.constant 0 : index
    %24 = vector.load %arg3[%c0_10, %c0_11] : memref<1x32xf32, #tpu.memory_space<vmem>>, vector<1x32xf32>
    %25 = vector.broadcast %24 : vector<1x32xf32> to vector<18x32xf32>
    %26 = arith.mulf %23, %25 : vector<18x32xf32>
    %c0_12 = arith.constant 0 : index
    %c0_13 = arith.constant 0 : index
    %27 = vector.load %arg4[%c0_12, %c0_13] : memref<1x32xf32, #tpu.memory_space<vmem>>, vector<1x32xf32>
    %28 = vector.broadcast %27 : vector<1x32xf32> to vector<18x32xf32>
    %29 = arith.addf %26, %28 : vector<18x32xf32>
    %cst_14 = arith.constant 0.000000e+00 : f32
    %30 = vector.broadcast %cst_14 : f32 to vector<18x32xf32>
    %31 = arith.cmpf oge, %29, %30 : vector<18x32xf32>
    %cst_15 = arith.constant 2.000000e-01 : f32
    %32 = vector.broadcast %cst_15 : f32 to vector<18x32xf32>
    %33 = arith.mulf %32, %29 : vector<18x32xf32>
    %34 = arith.select %31, %29, %33 : vector<18x32xi1>, vector<18x32xf32>
    %c0_16 = arith.constant 0 : index
    %c0_17 = arith.constant 0 : index
    %35 = vector.load %arg5[%c0_16, %c0_17] : memref<18x32xf32, #tpu.memory_space<vmem>>, vector<18x32xf32>
    tpu.vector_store %arg5[%c0_16, %c0_17], %34 {strides = array<i32>} : memref<18x32xf32, #tpu.memory_space<vmem>>, vector<18x32xf32>,
    return
  }
}

module attributes {stable_mosaic.version = 11 : i64} {
  func.func @_fused_conv_layer_kernel(%arg0: memref<32x512xbf16, #tpu.memory_space<vmem>>, %arg1: memref<512x64xbf16, #tpu.memory_space<vmem>>, %arg2: memref<1x64xf32, #tpu.memory_space<vmem>>, %arg3: memref<1x64xf32, #tpu.memory_space<vmem>>, %arg4: memref<1x64xf32, #tpu.memory_space<vmem>>, %arg5: memref<32x64xf32, #tpu.memory_space<vmem>>) attributes {dimension_semantics = [], scalar_prefetch = 0 : i64, scratch_operands = 0 : i64, tpu.core_type = #tpu.core_type<tc>} {
    %c0 = arith.constant 0 : index
    %c0_0 = arith.constant 0 : index
    %0 = vector.load %arg0[%c0, %c0_0] : memref<32x512xbf16, #tpu.memory_space<vmem>>, vector<32x512xbf16>
    %c0_1 = arith.constant 0 : index
    %c0_2 = arith.constant 0 : index
    %1 = vector.load %arg1[%c0_1, %c0_2] : memref<512x64xbf16, #tpu.memory_space<vmem>>, vector<512x64xbf16>
    %cst = arith.constant dense<0.000000e+00> : vector<32x64xf32>
    %2 = tpu.matmul %0, %1, %cst {dimension_numbers = #tpu.dot_dimension_numbers<[1], [0], [0], [1], [0, 0, 1, 1], [], []>} : vector<32x512xbf16>, vector<512x64xbf16>, vector<32x64xf32> -> vector<32x64xf32>
    %c0_3 = arith.constant 0 : index
    %c0_4 = arith.constant 0 : index
    %3 = vector.load %arg2[%c0_3, %c0_4] : memref<1x64xf32, #tpu.memory_space<vmem>>, vector<1x64xf32>
    %4 = vector.broadcast %3 : vector<1x64xf32> to vector<32x64xf32>
    %5 = arith.addf %2, %4 : vector<32x64xf32>
    %cst_5 = arith.constant dense<0.000000e+00> : vector<64xf32>
    %6 = vector.multi_reduction <add>, %5, %cst_5 [0] : vector<32x64xf32> to vector<64xf32>
    %7 = vector.shape_cast %6 : vector<64xf32> to vector<1x64xf32>
    %cst_6 = arith.constant 3.200000e+01 : f32
    %8 = vector.broadcast %cst_6 : f32 to vector<1x64xf32>
    %9 = arith.divf %7, %8 : vector<1x64xf32>
    %10 = vector.broadcast %9 : vector<1x64xf32> to vector<32x64xf32>
    %11 = arith.subf %5, %10 : vector<32x64xf32>
    %12 = arith.mulf %11, %11 : vector<32x64xf32>
    %cst_7 = arith.constant dense<0.000000e+00> : vector<64xf32>
    %13 = vector.multi_reduction <add>, %12, %cst_7 [0] : vector<32x64xf32> to vector<64xf32>
    %14 = vector.shape_cast %13 : vector<64xf32> to vector<1x64xf32>
    %cst_8 = arith.constant 3.200000e+01 : f32
    %15 = vector.broadcast %cst_8 : f32 to vector<1x64xf32>
    %16 = arith.divf %14, %15 : vector<1x64xf32>
    %17 = vector.broadcast %9 : vector<1x64xf32> to vector<32x64xf32>
    %18 = arith.subf %5, %17 : vector<32x64xf32>
    %cst_9 = arith.constant 9.99999974E-6 : f32
    %19 = vector.broadcast %cst_9 : f32 to vector<1x64xf32>
    %20 = arith.addf %16, %19 : vector<1x64xf32>
    %21 = math.rsqrt %20 : vector<1x64xf32>
    %22 = vector.broadcast %21 : vector<1x64xf32> to vector<32x64xf32>
    %23 = arith.mulf %18, %22 : vector<32x64xf32>
    %c0_10 = arith.constant 0 : index
    %c0_11 = arith.constant 0 : index
    %24 = vector.load %arg3[%c0_10, %c0_11] : memref<1x64xf32, #tpu.memory_space<vmem>>, vector<1x64xf32>
    %25 = vector.broadcast %24 : vector<1x64xf32> to vector<32x64xf32>
    %26 = arith.mulf %23, %25 : vector<32x64xf32>
    %c0_12 = arith.constant 0 : index
    %c0_13 = arith.constant 0 : index
    %27 = vector.load %arg4[%c0_12, %c0_13] : memref<1x64xf32, #tpu.memory_space<vmem>>, vector<1x64xf32>
    %28 = vector.broadcast %27 : vector<1x64xf32> to vector<32x64xf32>
    %29 = arith.addf %26, %28 : vector<32x64xf32>
    %cst_14 = arith.constant 0.000000e+00 : f32
    %30 = vector.broadcast %cst_14 : f32 to vector<32x64xf32>
    %31 = arith.cmpf oge, %29, %30 : vector<32x64xf32>
    %cst_15 = arith.constant 2.000000e-01 : f32
    %32 = vector.broadcast %cst_15 : f32 to vector<32x64xf32>
    %33 = arith.mulf %32, %29 : vector<32x64xf32>
    %34 = arith.select %31, %29, %33 : vector<32x64xi1>, vector<32x64xf32>
    %c0_16 = arith.constant 0 : index
    %c0_17 = arith.constant 0 : index
    %35 = vector.load %arg5[%c0_16, %c0_17] : memref<32x64xf32, #tpu.memory_space<vmem>>, vector<32x64xf32>
    tpu.vector_store %arg5[%c0_16, %c0_17], %34 {strides = array<i32>} : memref<32x64xf32, #tpu.memory_space<vmem>>, vector<32x64xf32>,
    return
  }
}

module attributes {stable_mosaic.version = 11 : i64} {
  func.func @_fused_conv_layer_kernel(%arg0: memref<50x1024xbf16, #tpu.memory_space<vmem>>, %arg1: memref<1024x1xbf16, #tpu.memory_space<vmem>>, %arg2: memref<1x1xf32, #tpu.memory_space<vmem>>, %arg3: memref<1x1xf32, #tpu.memory_space<vmem>>, %arg4: memref<1x1xf32, #tpu.memory_space<vmem>>, %arg5: memref<50x1xf32, #tpu.memory_space<vmem>>) attributes {dimension_semantics = [], scalar_prefetch = 0 : i64, scratch_operands = 0 : i64, tpu.core_type = #tpu.core_type<tc>} {
    %c0 = arith.constant 0 : index
    %c0_0 = arith.constant 0 : index
    %0 = vector.load %arg0[%c0, %c0_0] : memref<50x1024xbf16, #tpu.memory_space<vmem>>, vector<50x1024xbf16>
    %c0_1 = arith.constant 0 : index
    %c0_2 = arith.constant 0 : index
    %1 = vector.load %arg1[%c0_1, %c0_2] : memref<1024x1xbf16, #tpu.memory_space<vmem>>, vector<1024x1xbf16>
    %cst = arith.constant dense<0.000000e+00> : vector<50x1xf32>
    %2 = tpu.matmul %0, %1, %cst {dimension_numbers = #tpu.dot_dimension_numbers<[1], [0], [0], [1], [0, 0, 1, 1], [], []>} : vector<50x1024xbf16>, vector<1024x1xbf16>, vector<50x1xf32> -> vector<50x1xf32>
    %c0_3 = arith.constant 0 : index
    %c0_4 = arith.constant 0 : index
    %3 = vector.load %arg2[%c0_3, %c0_4] : memref<1x1xf32, #tpu.memory_space<vmem>>, vector<1x1xf32>
    %4 = vector.broadcast %3 : vector<1x1xf32> to vector<50x1xf32>
    %5 = arith.addf %2, %4 : vector<50x1xf32>
    %c0_5 = arith.constant 0 : index
    %c0_6 = arith.constant 0 : index
    %6 = vector.load %arg5[%c0_5, %c0_6] : memref<50x1xf32, #tpu.memory_space<vmem>>, vector<50x1xf32>
    tpu.vector_store %arg5[%c0_5, %c0_6], %5 {strides = array<i32>} : memref<50x1xf32, #tpu.memory_space<vmem>>, vector<50x1xf32>,
    return
  }
}

module attributes {stable_mosaic.version = 11 : i64} {
  func.func @_fused_conv_layer_kernel(%arg0: memref<578x48xbf16, #tpu.memory_space<vmem>>, %arg1: memref<48x8xbf16, #tpu.memory_space<vmem>>, %arg2: memref<1x8xf32, #tpu.memory_space<vmem>>, %arg3: memref<1x8xf32, #tpu.memory_space<vmem>>, %arg4: memref<1x8xf32, #tpu.memory_space<vmem>>, %arg5: memref<578x8xf32, #tpu.memory_space<vmem>>) attributes {dimension_semantics = [], scalar_prefetch = 0 : i64, scratch_operands = 0 : i64, tpu.core_type = #tpu.core_type<tc>} {
    %c0 = arith.constant 0 : index
    %c0_0 = arith.constant 0 : index
    %0 = vector.load %arg0[%c0, %c0_0] : memref<578x48xbf16, #tpu.memory_space<vmem>>, vector<578x48xbf16>
    %c0_1 = arith.constant 0 : index
    %c0_2 = arith.constant 0 : index
    %1 = vector.load %arg1[%c0_1, %c0_2] : memref<48x8xbf16, #tpu.memory_space<vmem>>, vector<48x8xbf16>
    %cst = arith.constant dense<0.000000e+00> : vector<578x8xf32>
    %2 = tpu.matmul %0, %1, %cst {dimension_numbers = #tpu.dot_dimension_numbers<[1], [0], [0], [1], [0, 0, 1, 1], [], []>} : vector<578x48xbf16>, vector<48x8xbf16>, vector<578x8xf32> -> vector<578x8xf32>
    %c0_3 = arith.constant 0 : index
    %c0_4 = arith.constant 0 : index
    %3 = vector.load %arg2[%c0_3, %c0_4] : memref<1x8xf32, #tpu.memory_space<vmem>>, vector<1x8xf32>
    %4 = vector.broadcast %3 : vector<1x8xf32> to vector<578x8xf32>
    %5 = arith.addf %2, %4 : vector<578x8xf32>
    %cst_5 = arith.constant 0.000000e+00 : f32
    %6 = vector.broadcast %cst_5 : f32 to vector<578x8xf32>
    %7 = arith.cmpf oge, %5, %6 : vector<578x8xf32>
    %cst_6 = arith.constant 2.000000e-01 : f32
    %8 = vector.broadcast %cst_6 : f32 to vector<578x8xf32>
    %9 = arith.mulf %8, %5 : vector<578x8xf32>
    %10 = arith.select %7, %5, %9 : vector<578x8xi1>, vector<578x8xf32>
    %c0_7 = arith.constant 0 : index
    %c0_8 = arith.constant 0 : index
    %11 = vector.load %arg5[%c0_7, %c0_8] : memref<578x8xf32, #tpu.memory_space<vmem>>, vector<578x8xf32>
    tpu.vector_store %arg5[%c0_7, %c0_8], %10 {strides = array<i32>} : memref<578x8xf32, #tpu.memory_space<vmem>>, vector<578x8xf32>,
    return
  }
}

module attributes {stable_mosaic.version = 11 : i64} {
  func.func @_fused_conv_layer_kernel(%arg0: memref<162x128xbf16, #tpu.memory_space<vmem>>, %arg1: memref<128x16xbf16, #tpu.memory_space<vmem>>, %arg2: memref<1x16xf32, #tpu.memory_space<vmem>>, %arg3: memref<1x16xf32, #tpu.memory_space<vmem>>, %arg4: memref<1x16xf32, #tpu.memory_space<vmem>>, %arg5: memref<162x16xf32, #tpu.memory_space<vmem>>) attributes {dimension_semantics = [], scalar_prefetch = 0 : i64, scratch_operands = 0 : i64, tpu.core_type = #tpu.core_type<tc>} {
    %c0 = arith.constant 0 : index
    %c0_0 = arith.constant 0 : index
    %0 = vector.load %arg0[%c0, %c0_0] : memref<162x128xbf16, #tpu.memory_space<vmem>>, vector<162x128xbf16>
    %c0_1 = arith.constant 0 : index
    %c0_2 = arith.constant 0 : index
    %1 = vector.load %arg1[%c0_1, %c0_2] : memref<128x16xbf16, #tpu.memory_space<vmem>>, vector<128x16xbf16>
    %cst = arith.constant dense<0.000000e+00> : vector<162x16xf32>
    %2 = tpu.matmul %0, %1, %cst {dimension_numbers = #tpu.dot_dimension_numbers<[1], [0], [0], [1], [0, 0, 1, 1], [], []>} : vector<162x128xbf16>, vector<128x16xbf16>, vector<162x16xf32> -> vector<162x16xf32>
    %c0_3 = arith.constant 0 : index
    %c0_4 = arith.constant 0 : index
    %3 = vector.load %arg2[%c0_3, %c0_4] : memref<1x16xf32, #tpu.memory_space<vmem>>, vector<1x16xf32>
    %4 = vector.broadcast %3 : vector<1x16xf32> to vector<162x16xf32>
    %5 = arith.addf %2, %4 : vector<162x16xf32>
    %cst_5 = arith.constant dense<0.000000e+00> : vector<16xf32>
    %6 = vector.multi_reduction <add>, %5, %cst_5 [0] : vector<162x16xf32> to vector<16xf32>
    %7 = vector.shape_cast %6 : vector<16xf32> to vector<1x16xf32>
    %cst_6 = arith.constant 1.620000e+02 : f32
    %8 = vector.broadcast %cst_6 : f32 to vector<1x16xf32>
    %9 = arith.divf %7, %8 : vector<1x16xf32>
    %10 = vector.broadcast %9 : vector<1x16xf32> to vector<162x16xf32>
    %11 = arith.subf %5, %10 : vector<162x16xf32>
    %12 = arith.mulf %11, %11 : vector<162x16xf32>
    %cst_7 = arith.constant dense<0.000000e+00> : vector<16xf32>
    %13 = vector.multi_reduction <add>, %12, %cst_7 [0] : vector<162x16xf32> to vector<16xf32>
    %14 = vector.shape_cast %13 : vector<16xf32> to vector<1x16xf32>
    %cst_8 = arith.constant 1.620000e+02 : f32
    %15 = vector.broadcast %cst_8 : f32 to vector<1x16xf32>
    %16 = arith.divf %14, %15 : vector<1x16xf32>
    %17 = vector.broadcast %9 : vector<1x16xf32> to vector<162x16xf32>
    %18 = arith.subf %5, %17 : vector<162x16xf32>
    %cst_9 = arith.constant 9.99999974E-6 : f32
    %19 = vector.broadcast %cst_9 : f32 to vector<1x16xf32>
    %20 = arith.addf %16, %19 : vector<1x16xf32>
    %21 = math.rsqrt %20 : vector<1x16xf32>
    %22 = vector.broadcast %21 : vector<1x16xf32> to vector<162x16xf32>
    %23 = arith.mulf %18, %22 : vector<162x16xf32>
    %c0_10 = arith.constant 0 : index
    %c0_11 = arith.constant 0 : index
    %24 = vector.load %arg3[%c0_10, %c0_11] : memref<1x16xf32, #tpu.memory_space<vmem>>, vector<1x16xf32>
    %25 = vector.broadcast %24 : vector<1x16xf32> to vector<162x16xf32>
    %26 = arith.mulf %23, %25 : vector<162x16xf32>
    %c0_12 = arith.constant 0 : index
    %c0_13 = arith.constant 0 : index
    %27 = vector.load %arg4[%c0_12, %c0_13] : memref<1x16xf32, #tpu.memory_space<vmem>>, vector<1x16xf32>
    %28 = vector.broadcast %27 : vector<1x16xf32> to vector<162x16xf32>
    %29 = arith.addf %26, %28 : vector<162x16xf32>
    %cst_14 = arith.constant 0.000000e+00 : f32
    %30 = vector.broadcast %cst_14 : f32 to vector<162x16xf32>
    %31 = arith.cmpf oge, %29, %30 : vector<162x16xf32>
    %cst_15 = arith.constant 2.000000e-01 : f32
    %32 = vector.broadcast %cst_15 : f32 to vector<162x16xf32>
    %33 = arith.mulf %32, %29 : vector<162x16xf32>
    %34 = arith.select %31, %29, %33 : vector<162x16xi1>, vector<162x16xf32>
    %c0_16 = arith.constant 0 : index
    %c0_17 = arith.constant 0 : index
    %35 = vector.load %arg5[%c0_16, %c0_17] : memref<162x16xf32, #tpu.memory_space<vmem>>, vector<162x16xf32>
    tpu.vector_store %arg5[%c0_16, %c0_17], %34 {strides = array<i32>} : memref<162x16xf32, #tpu.memory_space<vmem>>, vector<162x16xf32>,
    return
  }
}

module attributes {stable_mosaic.version = 11 : i64} {
  func.func @_fused_conv_layer_kernel(%arg0: memref<50x256xbf16, #tpu.memory_space<vmem>>, %arg1: memref<256x32xbf16, #tpu.memory_space<vmem>>, %arg2: memref<1x32xf32, #tpu.memory_space<vmem>>, %arg3: memref<1x32xf32, #tpu.memory_space<vmem>>, %arg4: memref<1x32xf32, #tpu.memory_space<vmem>>, %arg5: memref<50x32xf32, #tpu.memory_space<vmem>>) attributes {dimension_semantics = [], scalar_prefetch = 0 : i64, scratch_operands = 0 : i64, tpu.core_type = #tpu.core_type<tc>} {
    %c0 = arith.constant 0 : index
    %c0_0 = arith.constant 0 : index
    %0 = vector.load %arg0[%c0, %c0_0] : memref<50x256xbf16, #tpu.memory_space<vmem>>, vector<50x256xbf16>
    %c0_1 = arith.constant 0 : index
    %c0_2 = arith.constant 0 : index
    %1 = vector.load %arg1[%c0_1, %c0_2] : memref<256x32xbf16, #tpu.memory_space<vmem>>, vector<256x32xbf16>
    %cst = arith.constant dense<0.000000e+00> : vector<50x32xf32>
    %2 = tpu.matmul %0, %1, %cst {dimension_numbers = #tpu.dot_dimension_numbers<[1], [0], [0], [1], [0, 0, 1, 1], [], []>} : vector<50x256xbf16>, vector<256x32xbf16>, vector<50x32xf32> -> vector<50x32xf32>
    %c0_3 = arith.constant 0 : index
    %c0_4 = arith.constant 0 : index
    %3 = vector.load %arg2[%c0_3, %c0_4] : memref<1x32xf32, #tpu.memory_space<vmem>>, vector<1x32xf32>
    %4 = vector.broadcast %3 : vector<1x32xf32> to vector<50x32xf32>
    %5 = arith.addf %2, %4 : vector<50x32xf32>
    %cst_5 = arith.constant dense<0.000000e+00> : vector<32xf32>
    %6 = vector.multi_reduction <add>, %5, %cst_5 [0] : vector<50x32xf32> to vector<32xf32>
    %7 = vector.shape_cast %6 : vector<32xf32> to vector<1x32xf32>
    %cst_6 = arith.constant 5.000000e+01 : f32
    %8 = vector.broadcast %cst_6 : f32 to vector<1x32xf32>
    %9 = arith.divf %7, %8 : vector<1x32xf32>
    %10 = vector.broadcast %9 : vector<1x32xf32> to vector<50x32xf32>
    %11 = arith.subf %5, %10 : vector<50x32xf32>
    %12 = arith.mulf %11, %11 : vector<50x32xf32>
    %cst_7 = arith.constant dense<0.000000e+00> : vector<32xf32>
    %13 = vector.multi_reduction <add>, %12, %cst_7 [0] : vector<50x32xf32> to vector<32xf32>
    %14 = vector.shape_cast %13 : vector<32xf32> to vector<1x32xf32>
    %cst_8 = arith.constant 5.000000e+01 : f32
    %15 = vector.broadcast %cst_8 : f32 to vector<1x32xf32>
    %16 = arith.divf %14, %15 : vector<1x32xf32>
    %17 = vector.broadcast %9 : vector<1x32xf32> to vector<50x32xf32>
    %18 = arith.subf %5, %17 : vector<50x32xf32>
    %cst_9 = arith.constant 9.99999974E-6 : f32
    %19 = vector.broadcast %cst_9 : f32 to vector<1x32xf32>
    %20 = arith.addf %16, %19 : vector<1x32xf32>
    %21 = math.rsqrt %20 : vector<1x32xf32>
    %22 = vector.broadcast %21 : vector<1x32xf32> to vector<50x32xf32>
    %23 = arith.mulf %18, %22 : vector<50x32xf32>
    %c0_10 = arith.constant 0 : index
    %c0_11 = arith.constant 0 : index
    %24 = vector.load %arg3[%c0_10, %c0_11] : memref<1x32xf32, #tpu.memory_space<vmem>>, vector<1x32xf32>
    %25 = vector.broadcast %24 : vector<1x32xf32> to vector<50x32xf32>
    %26 = arith.mulf %23, %25 : vector<50x32xf32>
    %c0_12 = arith.constant 0 : index
    %c0_13 = arith.constant 0 : index
    %27 = vector.load %arg4[%c0_12, %c0_13] : memref<1x32xf32, #tpu.memory_space<vmem>>, vector<1x32xf32>
    %28 = vector.broadcast %27 : vector<1x32xf32> to vector<50x32xf32>
    %29 = arith.addf %26, %28 : vector<50x32xf32>
    %cst_14 = arith.constant 0.000000e+00 : f32
    %30 = vector.broadcast %cst_14 : f32 to vector<50x32xf32>
    %31 = arith.cmpf oge, %29, %30 : vector<50x32xf32>
    %cst_15 = arith.constant 2.000000e-01 : f32
    %32 = vector.broadcast %cst_15 : f32 to vector<50x32xf32>
    %33 = arith.mulf %32, %29 : vector<50x32xf32>
    %34 = arith.select %31, %29, %33 : vector<50x32xi1>, vector<50x32xf32>
    %c0_16 = arith.constant 0 : index
    %c0_17 = arith.constant 0 : index
    %35 = vector.load %arg5[%c0_16, %c0_17] : memref<50x32xf32, #tpu.memory_space<vmem>>, vector<50x32xf32>
    tpu.vector_store %arg5[%c0_16, %c0_17], %34 {strides = array<i32>} : memref<50x32xf32, #tpu.memory_space<vmem>>, vector<50x32xf32>,
    return
  }
}

module attributes {stable_mosaic.version = 11 : i64} {
  func.func @_fused_conv_layer_kernel(%arg0: memref<72x512xbf16, #tpu.memory_space<vmem>>, %arg1: memref<512x64xbf16, #tpu.memory_space<vmem>>, %arg2: memref<1x64xf32, #tpu.memory_space<vmem>>, %arg3: memref<1x64xf32, #tpu.memory_space<vmem>>, %arg4: memref<1x64xf32, #tpu.memory_space<vmem>>, %arg5: memref<72x64xf32, #tpu.memory_space<vmem>>) attributes {dimension_semantics = [], scalar_prefetch = 0 : i64, scratch_operands = 0 : i64, tpu.core_type = #tpu.core_type<tc>} {
    %c0 = arith.constant 0 : index
    %c0_0 = arith.constant 0 : index
    %0 = vector.load %arg0[%c0, %c0_0] : memref<72x512xbf16, #tpu.memory_space<vmem>>, vector<72x512xbf16>
    %c0_1 = arith.constant 0 : index
    %c0_2 = arith.constant 0 : index
    %1 = vector.load %arg1[%c0_1, %c0_2] : memref<512x64xbf16, #tpu.memory_space<vmem>>, vector<512x64xbf16>
    %cst = arith.constant dense<0.000000e+00> : vector<72x64xf32>
    %2 = tpu.matmul %0, %1, %cst {dimension_numbers = #tpu.dot_dimension_numbers<[1], [0], [0], [1], [0, 0, 1, 1], [], []>} : vector<72x512xbf16>, vector<512x64xbf16>, vector<72x64xf32> -> vector<72x64xf32>
    %c0_3 = arith.constant 0 : index
    %c0_4 = arith.constant 0 : index
    %3 = vector.load %arg2[%c0_3, %c0_4] : memref<1x64xf32, #tpu.memory_space<vmem>>, vector<1x64xf32>
    %4 = vector.broadcast %3 : vector<1x64xf32> to vector<72x64xf32>
    %5 = arith.addf %2, %4 : vector<72x64xf32>
    %cst_5 = arith.constant dense<0.000000e+00> : vector<64xf32>
    %6 = vector.multi_reduction <add>, %5, %cst_5 [0] : vector<72x64xf32> to vector<64xf32>
    %7 = vector.shape_cast %6 : vector<64xf32> to vector<1x64xf32>
    %cst_6 = arith.constant 7.200000e+01 : f32
    %8 = vector.broadcast %cst_6 : f32 to vector<1x64xf32>
    %9 = arith.divf %7, %8 : vector<1x64xf32>
    %10 = vector.broadcast %9 : vector<1x64xf32> to vector<72x64xf32>
    %11 = arith.subf %5, %10 : vector<72x64xf32>
    %12 = arith.mulf %11, %11 : vector<72x64xf32>
    %cst_7 = arith.constant dense<0.000000e+00> : vector<64xf32>
    %13 = vector.multi_reduction <add>, %12, %cst_7 [0] : vector<72x64xf32> to vector<64xf32>
    %14 = vector.shape_cast %13 : vector<64xf32> to vector<1x64xf32>
    %cst_8 = arith.constant 7.200000e+01 : f32
    %15 = vector.broadcast %cst_8 : f32 to vector<1x64xf32>
    %16 = arith.divf %14, %15 : vector<1x64xf32>
    %17 = vector.broadcast %9 : vector<1x64xf32> to vector<72x64xf32>
    %18 = arith.subf %5, %17 : vector<72x64xf32>
    %cst_9 = arith.constant 9.99999974E-6 : f32
    %19 = vector.broadcast %cst_9 : f32 to vector<1x64xf32>
    %20 = arith.addf %16, %19 : vector<1x64xf32>
    %21 = math.rsqrt %20 : vector<1x64xf32>
    %22 = vector.broadcast %21 : vector<1x64xf32> to vector<72x64xf32>
    %23 = arith.mulf %18, %22 : vector<72x64xf32>
    %c0_10 = arith.constant 0 : index
    %c0_11 = arith.constant 0 : index
    %24 = vector.load %arg3[%c0_10, %c0_11] : memref<1x64xf32, #tpu.memory_space<vmem>>, vector<1x64xf32>
    %25 = vector.broadcast %24 : vector<1x64xf32> to vector<72x64xf32>
    %26 = arith.mulf %23, %25 : vector<72x64xf32>
    %c0_12 = arith.constant 0 : index
    %c0_13 = arith.constant 0 : index
    %27 = vector.load %arg4[%c0_12, %c0_13] : memref<1x64xf32, #tpu.memory_space<vmem>>, vector<1x64xf32>
    %28 = vector.broadcast %27 : vector<1x64xf32> to vector<72x64xf32>
    %29 = arith.addf %26, %28 : vector<72x64xf32>
    %cst_14 = arith.constant 0.000000e+00 : f32
    %30 = vector.broadcast %cst_14 : f32 to vector<72x64xf32>
    %31 = arith.cmpf oge, %29, %30 : vector<72x64xf32>
    %cst_15 = arith.constant 2.000000e-01 : f32
    %32 = vector.broadcast %cst_15 : f32 to vector<72x64xf32>
    %33 = arith.mulf %32, %29 : vector<72x64xf32>
    %34 = arith.select %31, %29, %33 : vector<72x64xi1>, vector<72x64xf32>
    %c0_16 = arith.constant 0 : index
    %c0_17 = arith.constant 0 : index
    %35 = vector.load %arg5[%c0_16, %c0_17] : memref<72x64xf32, #tpu.memory_space<vmem>>, vector<72x64xf32>
    tpu.vector_store %arg5[%c0_16, %c0_17], %34 {strides = array<i32>} : memref<72x64xf32, #tpu.memory_space<vmem>>, vector<72x64xf32>,
    return
  }
}

module attributes {stable_mosaic.version = 11 : i64} {
  func.func @_fused_conv_layer_kernel(%arg0: memref<98x1024xbf16, #tpu.memory_space<vmem>>, %arg1: memref<1024x1xbf16, #tpu.memory_space<vmem>>, %arg2: memref<1x1xf32, #tpu.memory_space<vmem>>, %arg3: memref<1x1xf32, #tpu.memory_space<vmem>>, %arg4: memref<1x1xf32, #tpu.memory_space<vmem>>, %arg5: memref<98x1xf32, #tpu.memory_space<vmem>>) attributes {dimension_semantics = [], scalar_prefetch = 0 : i64, scratch_operands = 0 : i64, tpu.core_type = #tpu.core_type<tc>} {
    %c0 = arith.constant 0 : index
    %c0_0 = arith.constant 0 : index
    %0 = vector.load %arg0[%c0, %c0_0] : memref<98x1024xbf16, #tpu.memory_space<vmem>>, vector<98x1024xbf16>
    %c0_1 = arith.constant 0 : index
    %c0_2 = arith.constant 0 : index
    %1 = vector.load %arg1[%c0_1, %c0_2] : memref<1024x1xbf16, #tpu.memory_space<vmem>>, vector<1024x1xbf16>
    %cst = arith.constant dense<0.000000e+00> : vector<98x1xf32>
    %2 = tpu.matmul %0, %1, %cst {dimension_numbers = #tpu.dot_dimension_numbers<[1], [0], [0], [1], [0, 0, 1, 1], [], []>} : vector<98x1024xbf16>, vector<1024x1xbf16>, vector<98x1xf32> -> vector<98x1xf32>
    %c0_3 = arith.constant 0 : index
    %c0_4 = arith.constant 0 : index
    %3 = vector.load %arg2[%c0_3, %c0_4] : memref<1x1xf32, #tpu.memory_space<vmem>>, vector<1x1xf32>
    %4 = vector.broadcast %3 : vector<1x1xf32> to vector<98x1xf32>
    %5 = arith.addf %2, %4 : vector<98x1xf32>
    %c0_5 = arith.constant 0 : index
    %c0_6 = arith.constant 0 : index
    %6 = vector.load %arg5[%c0_5, %c0_6] : memref<98x1xf32, #tpu.memory_space<vmem>>, vector<98x1xf32>
    tpu.vector_store %arg5[%c0_5, %c0_6], %5 {strides = array<i32>} : memref<98x1xf32, #tpu.memory_space<vmem>>, vector<98x1xf32>,
    return
  }
}

</mosaic_0001>

<llo_original>
// kernel: multiscale_discriminator_forward.25
$region0: #{multiscale_discriminator_forward.25}
  #allocation0 [shape = 'u32[]', space=smem, size = 0x4, offset = 0x4, fixed_abs, tag = 'smem constant byte address 0x4 - core index']
  #allocation1 [shape = 'u32[144,128]{1,0:T(1,128)}', space=vmem, size = 0x12000, scoped, tag = 'internal scratch']
  %s0 = inlined_call_operand.vmem [shape: bf16[50,48], index: 0, kind: input, shape index: {}]
  %s1 = inlined_call_operand.vmem [shape: bf16[48,8], index: 1, kind: input, shape index: {}]
  %s2 = inlined_call_operand.vmem [shape: f32[1,8], index: 2, kind: input, shape index: {}]
  %s3 = inlined_call_operand.vmem [shape: f32[1,8], index: 3, kind: input, shape index: {}]
  %s4 = inlined_call_operand.vmem [shape: f32[1,8], index: 4, kind: input, shape index: {}]
  %s5 = inlined_call_operand.vmem [shape: f32[50,8], index: 5, kind: output, shape index: {}]
  %s6 = sld [smem:[#allocation0]]
  $region30: #{multiscale_discriminator_forward.25} parent=0
    _
  %s8 = ssub.s32 1, %s6
  %s9 = scalar_select 0, %s8, %s6
  // Predicated region
  $region2: #{multiscale_discriminator_forward.25} parent=0 // pred_check
    _
  $region3: #{multiscale_discriminator_forward.25} parent=0 // pred_check_branch
    %11 = sbr.rel (0) target = $region5
  $region4: #{multiscale_discriminator_forward.25} parent=0 // pred_region
    _
  $region5: #{multiscale_discriminator_forward.25} parent=0 // pred_fallthru
    _
  // Predicated region
  $region6: #{multiscale_discriminator_forward.25} parent=0 // pred_check
    _
  $region7: #{multiscale_discriminator_forward.25} parent=0 // pred_check_branch
    %13 = sbr.rel (0) target = $region9
  $region8: #{multiscale_discriminator_forward.25} parent=0 // pred_region
    _
  $region9: #{multiscale_discriminator_forward.25} parent=0 // pred_fallthru
    _
  // Predicated region
  $region10: #{multiscale_discriminator_forward.25} parent=0 // pred_check
    _
  $region11: #{multiscale_discriminator_forward.25} parent=0 // pred_check_branch
    %15 = sbr.rel (0) target = $region13
  $region12: #{multiscale_discriminator_forward.25} parent=0 // pred_region
    _
  $region13: #{multiscale_discriminator_forward.25} parent=0 // pred_fallthru
    _
  // Predicated region
  $region14: #{multiscale_discriminator_forward.25} parent=0 // pred_check
    _
  $region15: #{multiscale_discriminator_forward.25} parent=0 // pred_check_branch
    %17 = sbr.rel (0) target = $region17
  $region16: #{multiscale_discriminator_forward.25} parent=0 // pred_region
    _
  $region17: #{multiscale_discriminator_forward.25} parent=0 // pred_fallthru
    _
  // Predicated region
  $region18: #{multiscale_discriminator_forward.25} parent=0 // pred_check
    _
  $region19: #{multiscale_discriminator_forward.25} parent=0 // pred_check_branch
    %19 = sbr.rel (0) target = $region21
  $region20: #{multiscale_discriminator_forward.25} parent=0 // pred_region
    _
  $region21: #{multiscale_discriminator_forward.25} parent=0 // pred_fallthru
    _
  %v21 = vld [vmem:[%s0] sm:$0xf]
  %v22 = vld [vmem:[%s0 + $0x4] sm:$0xf]
  %v23 = vld [vmem:[%s0 + $0x8] sm:$0xf]
  %v24 = vld [vmem:[%s0 + $0xc] sm:$0xf]
  %v25 = vld [vmem:[%s0 + $0x10] sm:$0xf]
  %v26 = vld [vmem:[%s0 + $0x14] sm:$0xf]
  %v27 = vld [vmem:[%s0 + $0x18] sm:$0x1]
  %v28 = vld [vmem:[%s1] sm:$0xf]
  %v29 = vld [vmem:[%s1 + $0x4] sm:$0xf]
  %v30 = vld [vmem:[%s1 + $0x8] sm:$0xf]
  %v31 = vld [vmem:[%s1 + $0xc] sm:$0xf]
  %v32 = vld [vmem:[%s1 + $0x10] sm:$0xf]
  %v33 = vld [vmem:[%s1 + $0x14] sm:$0xf]
  %v34 = vld [vmem:[%s2] sm:$0x1]
  %v36 = vlaneseq
  %v37 = vshrl.u32 %v36, 7
  %v38 = vsub.s32 0, %v37
  %v39 = vrot.slane %v34, %v38
  %v48 = vunpack.c.l.b16 %v21
  %v49 = vunpack.c.l.b16 %v22
  %v50 = vunpack.c.l.b16 %v23
  %v51 = vunpack.c.l.b16 %v24
  %v52 = vunpack.c.l.b16 %v25
  %v53 = vunpack.c.l.b16 %v26
  %v54 = vunpack.c.l.b16 %v27
  %v55 = vpack.c.b16 %v49, %v48
  %v56 = vpack.c.b16 %v51, %v50
  %v57 = vpack.c.b16 %v53, %v52
  %v58 = vpack.c.b16 %v54, %v54
  %v65 = vunpack.c.l.b16 %v28
  %v66 = vunpack.c.l.b16 %v29
  %v67 = vunpack.c.l.b16 %v30
  %v68 = vunpack.c.l.b16 %v31
  %v69 = vunpack.c.l.b16 %v32
  %v70 = vunpack.c.l.b16 %v33
  %v71 = vpack.c.b16 %v66, %v65
  %v72 = vpack.c.b16 %v68, %v67
  %v73 = vpack.c.b16 %v70, %v69
  %vm77 = vcmask 392192
  %v79 = vsel %vm77, %v55, 0
  %v82 = vsel %vm77, %v56, 0
  %v85 = vsel %vm77, %v57, 0
  %v88 = vsel %vm77, %v58, 0
  %90 = vmatprep.subr.bf16.mxu0 0
  %91 = vmatpush1.bf16.msra.mxu0 %v71
  %92 = vmatprep.subr.bf16.mxu0 0
  %93 = vmatpush1.bf16.msra.mxu0 %v72
  %94 = vmatprep.subr.bf16.mxu0 0
  %95 = vmatpush1.bf16.msra.mxu0 %v73
  %96 = vmatprep.subr.bf16.mxu0 0
  %97 = vmatpush1.bf16.msra.mxu0 0
  %98 = vmatprep.subr.bf16.mxu0 0
  %99 = vmatpush1.bf16.msra.mxu0 0
  %100 = vmatprep.subr.bf16.mxu0 0
  %101 = vmatpush1.bf16.msra.mxu0 0
  %102 = vmatprep.subr.bf16.mxu0 0
  %103 = vmatpush1.bf16.msra.mxu0 0
  %104 = vmatprep.subr.bf16.mxu0 0
  %105 = vmatpush1.bf16.msra.mxu0 0
  %106 = vmatprep.subr.bf16.mxu0 0
  %107 = vmatpush1.bf16.msra.mxu0 0
  %108 = vmatprep.subr.bf16.mxu0 0
  %109 = vmatpush1.bf16.msra.mxu0 0
  %110 = vmatprep.subr.bf16.mxu0 0
  %111 = vmatpush1.bf16.msra.mxu0 0
  %112 = vmatprep.subr.bf16.mxu0 0
  %113 = vmatpush1.bf16.msra.mxu0 0
  %114 = vmatprep.subr.bf16.mxu0 0
  %115 = vmatpush1.bf16.msra.mxu0 0
  %116 = vmatprep.subr.bf16.mxu0 0
  %117 = vmatpush1.bf16.msra.mxu0 0
  %118 = vmatprep.subr.bf16.mxu0 0
  %119 = vmatpush1.bf16.msra.mxu0 0
  %120 = vmatprep.subr.bf16.mxu0 0
  %121 = vmatpush1.bf16.msra.mxu0 0
  %122 = vmatprep.mubr.bf16.mxu0 0
  %123 = vmatmul.mubr.bf16.gmra.mrb[0].mxu0 %v79
  %v124 = vpop.f32.mrb[0].mxu0
  %v125 = vadd.f32 %v39, %v124
  %v126 = vpop.f32.mrb[0].mxu0
  %v127 = vpop.f32.mrb[0].mxu0
  %v128 = vadd.f32 %v39, %v127
  %v129 = vpop.f32.mrb[0].mxu0
  %130 = vmatprep.mubr.bf16.mxu0 0
  %131 = vmatmul.mubr.bf16.gmra.mrb[0].mxu0 %v82
  %v132 = vpop.f32.mrb[0].mxu0
  %v133 = vadd.f32 %v39, %v132
  %v134 = vpop.f32.mrb[0].mxu0
  %v135 = vpop.f32.mrb[0].mxu0
  %v136 = vadd.f32 %v39, %v135
  %v137 = vpop.f32.mrb[0].mxu0
  %138 = vmatprep.mubr.bf16.mxu0 0
  %139 = vmatmul.mubr.bf16.gmra.mrb[0].mxu0 %v85
  %v140 = vpop.f32.mrb[0].mxu0
  %v141 = vadd.f32 %v39, %v140
  %v142 = vpop.f32.mrb[0].mxu0
  %v143 = vpop.f32.mrb[0].mxu0
  %v144 = vadd.f32 %v39, %v143
  %v145 = vpop.f32.mrb[0].mxu0
  %146 = vmatprep.mubr.bf16.mxu0 0
  %147 = vmatmul.mubr.bf16.gmra.mrb[0].mxu0 %v88
  %v148 = vpop.f32.mrb[0].mxu0
  %v149 = vadd.f32 %v39, %v148
  %v150 = vpop.f32.mrb[0].mxu0
  %v151 = vpop.f32.mrb[0].mxu0
  %v152 = vpop.f32.mrb[0].mxu0
  %153 = vdwg.mxu0
  %vm154 = vcmp.ge.f32.partialorder %v125, 0.0
  %vm155 = vcmp.ge.f32.partialorder %v128, 0.0
  %vm156 = vcmp.ge.f32.partialorder %v133, 0.0
  %vm157 = vcmp.ge.f32.partialorder %v136, 0.0
  %vm158 = vcmp.ge.f32.partialorder %v141, 0.0
  %vm159 = vcmp.ge.f32.partialorder %v144, 0.0
  %vm160 = vcmp.ge.f32.partialorder %v149, 0.0
  %v161 = vmul.f32 %v125, 0.2
  %v162 = vmul.f32 %v128, 0.2
  %v163 = vmul.f32 %v133, 0.2
  %v164 = vmul.f32 %v136, 0.2
  %v165 = vmul.f32 %v141, 0.2
  %v166 = vmul.f32 %v144, 0.2
  %v167 = vmul.f32 %v149, 0.2
  %v168 = vsel %vm154, %v125, %v161
  %v169 = vsel %vm155, %v128, %v162
  %v170 = vsel %vm156, %v133, %v163
  %v171 = vsel %vm157, %v136, %v164
  %v172 = vsel %vm158, %v141, %v165
  %v173 = vsel %vm159, %v144, %v166
  %v174 = vsel %vm160, %v149, %v167
  %vm175 = vcmask 64512
  %176 = vst.msk [vmem:[%s5] sm:$0xff] %vm175, %v168
  %177 = vst.msk [vmem:[%s5 + $0x8] sm:$0xff] %vm175, %v169
  %178 = vst.msk [vmem:[%s5 + $0x10] sm:$0xff] %vm175, %v170
  %179 = vst.msk [vmem:[%s5 + $0x18] sm:$0xff] %vm175, %v171
  %180 = vst.msk [vmem:[%s5 + $0x20] sm:$0xff] %vm175, %v172
  %181 = vst.msk [vmem:[%s5 + $0x28] sm:$0xff] %vm175, %v173
  %vm182 = vcmask 58368
  %183 = vst.msk [vmem:[%s5 + $0x30] sm:$0x3] %vm182, %v174
  // Predicated region
  $region22: #{multiscale_discriminator_forward.25} parent=0 // pred_check
    _
  $region23: #{multiscale_discriminator_forward.25} parent=0 // pred_check_branch
    %185 = sbr.rel (0) target = $region25
  $region24: #{multiscale_discriminator_forward.25} parent=0 // pred_region
    _
  $region25: #{multiscale_discriminator_forward.25} parent=0 // pred_fallthru
    _
  // Predicated region
  $region26: #{multiscale_discriminator_forward.25} parent=0 // pred_check
    _
  $region27: #{multiscale_discriminator_forward.25} parent=0 // pred_check_branch
    %187 = sbr.rel (0) target = $region29
  $region28: #{multiscale_discriminator_forward.25} parent=0 // pred_region
    _
  $region29: #{multiscale_discriminator_forward.25} parent=0 // pred_fallthru
    _

// kernel: multiscale_discriminator_forward.26
$region0: #{multiscale_discriminator_forward.26}
  #allocation0 [shape = 'u32[]', space=smem, size = 0x4, offset = 0x4, fixed_abs, tag = 'smem constant byte address 0x4 - core index']
  #allocation1 [shape = 'u32[144,128]{1,0:T(1,128)}', space=vmem, size = 0x12000, scoped, tag = 'internal scratch']
  %s0 = inlined_call_operand.vmem [shape: bf16[18,128], index: 0, kind: input, shape index: {}]
  %s1 = inlined_call_operand.vmem [shape: bf16[128,16], index: 1, kind: input, shape index: {}]
  %s2 = inlined_call_operand.vmem [shape: f32[1,16], index: 2, kind: input, shape index: {}]
  %s3 = inlined_call_operand.vmem [shape: f32[1,16], index: 3, kind: input, shape index: {}]
  %s4 = inlined_call_operand.vmem [shape: f32[1,16], index: 4, kind: input, shape index: {}]
  %s5 = inlined_call_operand.vmem [shape: f32[18,16], index: 5, kind: output, shape index: {}]
  %s6 = sld [smem:[#allocation0]]
  $region30: #{multiscale_discriminator_forward.26} parent=0
    _
  %s8 = ssub.s32 1, %s6
  %s9 = scalar_select 0, %s8, %s6
  // Predicated region
  $region2: #{multiscale_discriminator_forward.26} parent=0 // pred_check
    _
  $region3: #{multiscale_discriminator_forward.26} parent=0 // pred_check_branch
    %11 = sbr.rel (0) target = $region5
  $region4: #{multiscale_discriminator_forward.26} parent=0 // pred_region
    _
  $region5: #{multiscale_discriminator_forward.26} parent=0 // pred_fallthru
    _
  // Predicated region
  $region6: #{multiscale_discriminator_forward.26} parent=0 // pred_check
    _
  $region7: #{multiscale_discriminator_forward.26} parent=0 // pred_check_branch
    %13 = sbr.rel (0) target = $region9
  $region8: #{multiscale_discriminator_forward.26} parent=0 // pred_region
    _
  $region9: #{multiscale_discriminator_forward.26} parent=0 // pred_fallthru
    _
  // Predicated region
  $region10: #{multiscale_discriminator_forward.26} parent=0 // pred_check
    _
  $region11: #{multiscale_discriminator_forward.26} parent=0 // pred_check_branch
    %15 = sbr.rel (0) target = $region13
  $region12: #{multiscale_discriminator_forward.26} parent=0 // pred_region
    _
  $region13: #{multiscale_discriminator_forward.26} parent=0 // pred_fallthru
    _
  // Predicated region
  $region14: #{multiscale_discriminator_forward.26} parent=0 // pred_check
    _
  $region15: #{multiscale_discriminator_forward.26} parent=0 // pred_check_branch
    %17 = sbr.rel (0) target = $region17
  $region16: #{multiscale_discriminator_forward.26} parent=0 // pred_region
    _
  $region17: #{multiscale_discriminator_forward.26} parent=0 // pred_fallthru
    _
  // Predicated region
  $region18: #{multiscale_discriminator_forward.26} parent=0 // pred_check
    _
  $region19: #{multiscale_discriminator_forward.26} parent=0 // pred_check_branch
    %19 = sbr.rel (0) target = $region21
  $region20: #{multiscale_discriminator_forward.26} parent=0 // pred_region
    _
  $region21: #{multiscale_discriminator_forward.26} parent=0 // pred_fallthru
    _
  %v21 = vld [vmem:[%s0] sm:$0xf]
  %v22 = vld [vmem:[%s0 + $0x4] sm:$0xf]
  %v23 = vld [vmem:[%s0 + $0x8] sm:$0x1]
  %v24 = vld [vmem:[%s1] sm:$0xf]
  %v25 = vld [vmem:[%s1 + $0x4] sm:$0xf]
  %v26 = vld [vmem:[%s1 + $0x8] sm:$0xf]
  %v27 = vld [vmem:[%s1 + $0xc] sm:$0xf]
  %v28 = vld [vmem:[%s1 + $0x10] sm:$0xf]
  %v29 = vld [vmem:[%s1 + $0x14] sm:$0xf]
  %v30 = vld [vmem:[%s1 + $0x18] sm:$0xf]
  %v31 = vld [vmem:[%s1 + $0x1c] sm:$0xf]
  %v32 = vld [vmem:[%s1 + $0x20] sm:$0xf]
  %v33 = vld [vmem:[%s1 + $0x24] sm:$0xf]
  %v34 = vld [vmem:[%s1 + $0x28] sm:$0xf]
  %v35 = vld [vmem:[%s1 + $0x2c] sm:$0xf]
  %v36 = vld [vmem:[%s1 + $0x30] sm:$0xf]
  %v37 = vld [vmem:[%s1 + $0x34] sm:$0xf]
  %v38 = vld [vmem:[%s1 + $0x38] sm:$0xf]
  %v39 = vld [vmem:[%s1 + $0x3c] sm:$0xf]
  %v40 = vld [vmem:[%s2] sm:$0x1]
  %v42 = vlaneseq
  %v43 = vshrl.u32 %v42, 7
  %v44 = vsub.s32 0, %v43
  %v45 = vrot.slane %v40, %v44
  %v50 = vunpack.c.l.b16 %v21
  %v51 = vunpack.c.l.b16 %v22
  %v52 = vunpack.c.l.b16 %v23
  %v53 = vpack.c.b16 %v51, %v50
  %v54 = vpack.c.b16 %v52, %v52
  %v73 = vunpack.c.l.b16 %v24
  %v74 = vunpack.c.l.b16 %v25
  %v75 = vunpack.c.l.b16 %v26
  %v76 = vunpack.c.l.b16 %v27
  %v77 = vunpack.c.l.b16 %v28
  %v78 = vunpack.c.l.b16 %v29
  %v79 = vunpack.c.l.b16 %v30
  %v80 = vunpack.c.l.b16 %v31
  %v81 = vunpack.c.l.b16 %v32
  %v82 = vunpack.c.l.b16 %v33
  %v83 = vunpack.c.l.b16 %v34
  %v84 = vunpack.c.l.b16 %v35
  %v85 = vunpack.c.l.b16 %v36
  %v86 = vunpack.c.l.b16 %v37
  %v87 = vunpack.c.l.b16 %v38
  %v88 = vunpack.c.l.b16 %v39
  %v89 = vpack.c.b16 %v74, %v73
  %v90 = vpack.c.b16 %v76, %v75
  %v91 = vpack.c.b16 %v78, %v77
  %v92 = vpack.c.b16 %v80, %v79
  %v93 = vpack.c.b16 %v82, %v81
  %v94 = vpack.c.b16 %v84, %v83
  %v95 = vpack.c.b16 %v86, %v85
  %v96 = vpack.c.b16 %v88, %v87
  %105 = vmatprep.subr.bf16.mxu0 0
  %106 = vmatpush1.bf16.msra.mxu0 %v89
  %107 = vmatprep.subr.bf16.mxu0 0
  %108 = vmatpush1.bf16.msra.mxu0 %v90
  %109 = vmatprep.subr.bf16.mxu0 0
  %110 = vmatpush1.bf16.msra.mxu0 %v91
  %111 = vmatprep.subr.bf16.mxu0 0
  %112 = vmatpush1.bf16.msra.mxu0 %v92
  %113 = vmatprep.subr.bf16.mxu0 0
  %114 = vmatpush1.bf16.msra.mxu0 %v93
  %115 = vmatprep.subr.bf16.mxu0 0
  %116 = vmatpush1.bf16.msra.mxu0 %v94
  %117 = vmatprep.subr.bf16.mxu0 0
  %118 = vmatpush1.bf16.msra.mxu0 %v95
  %119 = vmatprep.subr.bf16.mxu0 0
  %120 = vmatpush1.bf16.msra.mxu0 %v96
  %121 = vmatprep.subr.bf16.mxu0 0
  %122 = vmatpush1.bf16.msra.mxu0 0
  %123 = vmatprep.subr.bf16.mxu0 0
  %124 = vmatpush1.bf16.msra.mxu0 0
  %125 = vmatprep.subr.bf16.mxu0 0
  %126 = vmatpush1.bf16.msra.mxu0 0
  %127 = vmatprep.subr.bf16.mxu0 0
  %128 = vmatpush1.bf16.msra.mxu0 0
  %129 = vmatprep.subr.bf16.mxu0 0
  %130 = vmatpush1.bf16.msra.mxu0 0
  %131 = vmatprep.subr.bf16.mxu0 0
  %132 = vmatpush1.bf16.msra.mxu0 0
  %133 = vmatprep.subr.bf16.mxu0 0
  %134 = vmatpush1.bf16.msra.mxu0 0
  %135 = vmatprep.subr.bf16.mxu0 0
  %136 = vmatpush1.bf16.msra.mxu0 0
  %137 = vmatprep.mubr.bf16.mxu0 0
  %138 = vmatmul.mubr.bf16.gmra.mrb[0].mxu0 %v53
  %v139 = vpop.f32.mrb[0].mxu0
  %v140 = vadd.f32 %v45, %v139
  %v141 = vpop.f32.mrb[0].mxu0
  %v142 = vpop.f32.mrb[0].mxu0
  %v143 = vadd.f32 %v45, %v142
  %v144 = vpop.f32.mrb[0].mxu0
  %145 = vmatprep.mubr.bf16.mxu0 0
  %146 = vmatmul.mubr.bf16.gmra.mrb[0].mxu0 %v54
  %v147 = vpop.f32.mrb[0].mxu0
  %v148 = vadd.f32 %v45, %v147
  %v149 = vpop.f32.mrb[0].mxu0
  %v150 = vpop.f32.mrb[0].mxu0
  %v151 = vpop.f32.mrb[0].mxu0
  %152 = vdwg.mxu0
  %vm153 = vcmask 130048
  %v154 = vsel %vm153, %v140, 0.0
  %v155 = vsel %vm153, %v143, 0.0
  %v156 = vadd.f32 %v154, %v155
  %vm157 = vcmask 123904
  %v158 = vsel %vm157, %v148, 0.0
  %v159 = vadd.f32 %v156, %v158
  %v160 = vrot.slane %v159, 4
  %v161 = vadd.f32 %v159, %v160
  %v162 = vrot.slane %v161, 2
  %v163 = vadd.f32 %v161, %v162
  %v164 = vrot.slane %v163, 1
  %v165 = vadd.f32 %v163, %v164
  %v166 = vrcp.pop 18.0
  %v167 = vmul.f32 %v165, %v166
  %v168 = vsub.f32 %v140, %v167
  %v169 = vsub.f32 %v143, %v167
  %v170 = vsub.f32 %v148, %v167
  %v171 = vmul.f32 %v168, %v168
  %v172 = vmul.f32 %v169, %v169
  %v173 = vmul.f32 %v170, %v170
  %v174 = vsel %vm153, %v171, 0.0
  %v175 = vsel %vm153, %v172, 0.0
  %v176 = vadd.f32 %v174, %v175
  %v177 = vsel %vm157, %v173, 0.0
  %v178 = vadd.f32 %v176, %v177
  %v179 = vrot.slane %v178, 4
  %v180 = vadd.f32 %v178, %v179
  %v181 = vrot.slane %v180, 2
  %v182 = vadd.f32 %v180, %v181
  %v183 = vrot.slane %v182, 1
  %v184 = vadd.f32 %v182, %v183
  %v185 = vmul.f32 %v184, %v166
  %v186 = vadd.f32 %v185, 1e-05
  %v187 = vrsqrt.pop %v186
  %v188 = vmul.f32 %v168, %v187
  %v189 = vmul.f32 %v169, %v187
  %v190 = vmul.f32 %v170, %v187
  %v191 = vld [vmem:[%s3] sm:$0x1]
  %v193 = vlaneseq
  %v194 = vshrl.u32 %v193, 7
  %v195 = vsub.s32 0, %v194
  %v196 = vrot.slane %v191, %v195
  %v198 = vmul.f32 %v188, %v196
  %v199 = vmul.f32 %v189, %v196
  %v200 = vmul.f32 %v190, %v196
  %v201 = vld [vmem:[%s4] sm:$0x1]
  %v203 = vlaneseq
  %v204 = vshrl.u32 %v203, 7
  %v205 = vsub.s32 0, %v204
  %v206 = vrot.slane %v201, %v205
  %v208 = vadd.f32 %v198, %v206
  %v209 = vadd.f32 %v199, %v206
  %v210 = vadd.f32 %v200, %v206
  %vm211 = vcmp.ge.f32.partialorder %v208, 0.0
  %vm212 = vcmp.ge.f32.partialorder %v209, 0.0
  %vm213 = vcmp.ge.f32.partialorder %v210, 0.0
  %v214 = vmul.f32 %v208, 0.2
  %v215 = vmul.f32 %v209, 0.2
  %v216 = vmul.f32 %v210, 0.2
  %v217 = vsel %vm211, %v208, %v214
  %v218 = vsel %vm212, %v209, %v215
  %v219 = vsel %vm213, %v210, %v216
  %220 = vst.msk [vmem:[%s5] sm:$0xff] %vm153, %v217
  %221 = vst.msk [vmem:[%s5 + $0x8] sm:$0xff] %vm153, %v218
  %222 = vst.msk [vmem:[%s5 + $0x10] sm:$0x3] %vm157, %v219
  // Predicated region
  $region22: #{multiscale_discriminator_forward.26} parent=0 // pred_check
    _
  $region23: #{multiscale_discriminator_forward.26} parent=0 // pred_check_branch
    %224 = sbr.rel (0) target = $region25
  $region24: #{multiscale_discriminator_forward.26} parent=0 // pred_region
    _
  $region25: #{multiscale_discriminator_forward.26} parent=0 // pred_fallthru
    _
  // Predicated region
  $region26: #{multiscale_discriminator_forward.26} parent=0 // pred_check
    _
  $region27: #{multiscale_discriminator_forward.26} parent=0 // pred_check_branch
    %226 = sbr.rel (0) target = $region29
  $region28: #{multiscale_discriminator_forward.26} parent=0 // pred_region
    _
  $region29: #{multiscale_discriminator_forward.26} parent=0 // pred_fallthru
    _

// kernel: multiscale_discriminator_forward.27
$region0: #{multiscale_discriminator_forward.27}
  #allocation0 [shape = 'u32[]', space=smem, size = 0x4, offset = 0x4, fixed_abs, tag = 'smem constant byte address 0x4 - core index']
  #allocation1 [shape = 'u32[144,128]{1,0:T(1,128)}', space=vmem, size = 0x12000, scoped, tag = 'internal scratch']
  %s0 = inlined_call_operand.vmem [shape: bf16[8,256], index: 0, kind: input, shape index: {}]
  %s1 = inlined_call_operand.vmem [shape: bf16[256,32], index: 1, kind: input, shape index: {}]
  %s2 = inlined_call_operand.vmem [shape: f32[1,32], index: 2, kind: input, shape index: {}]
  %s3 = inlined_call_operand.vmem [shape: f32[1,32], index: 3, kind: input, shape index: {}]
  %s4 = inlined_call_operand.vmem [shape: f32[1,32], index: 4, kind: input, shape index: {}]
  %s5 = inlined_call_operand.vmem [shape: f32[8,32], index: 5, kind: output, shape index: {}]
  %s6 = sld [smem:[#allocation0]]
  $region30: #{multiscale_discriminator_forward.27} parent=0
    _
  %s8 = ssub.s32 1, %s6
  %s9 = scalar_select 0, %s8, %s6
  // Predicated region
  $region2: #{multiscale_discriminator_forward.27} parent=0 // pred_check
    _
  $region3: #{multiscale_discriminator_forward.27} parent=0 // pred_check_branch
    %11 = sbr.rel (0) target = $region5
  $region4: #{multiscale_discriminator_forward.27} parent=0 // pred_region
    _
  $region5: #{multiscale_discriminator_forward.27} parent=0 // pred_fallthru
    _
  // Predicated region
  $region6: #{multiscale_discriminator_forward.27} parent=0 // pred_check
    _
  $region7: #{multiscale_discriminator_forward.27} parent=0 // pred_check_branch
    %13 = sbr.rel (0) target = $region9
  $region8: #{multiscale_discriminator_forward.27} parent=0 // pred_region
    _
  $region9: #{multiscale_discriminator_forward.27} parent=0 // pred_fallthru
    _
  // Predicated region
  $region10: #{multiscale_discriminator_forward.27} parent=0 // pred_check
    _
  $region11: #{multiscale_discriminator_forward.27} parent=0 // pred_check_branch
    %15 = sbr.rel (0) target = $region13
  $region12: #{multiscale_discriminator_forward.27} parent=0 // pred_region
    _
  $region13: #{multiscale_discriminator_forward.27} parent=0 // pred_fallthru
    _
  // Predicated region
  $region14: #{multiscale_discriminator_forward.27} parent=0 // pred_check
    _
  $region15: #{multiscale_discriminator_forward.27} parent=0 // pred_check_branch
    %17 = sbr.rel (0) target = $region17
  $region16: #{multiscale_discriminator_forward.27} parent=0 // pred_region
    _
  $region17: #{multiscale_discriminator_forward.27} parent=0 // pred_fallthru
    _
  // Predicated region
  $region18: #{multiscale_discriminator_forward.27} parent=0 // pred_check
    _
  $region19: #{multiscale_discriminator_forward.27} parent=0 // pred_check_branch
    %19 = sbr.rel (0) target = $region21
  $region20: #{multiscale_discriminator_forward.27} parent=0 // pred_region
    _
  $region21: #{multiscale_discriminator_forward.27} parent=0 // pred_fallthru
    _
  %v21 = vld [vmem:[%s0] sm:$0xff]
  %v22 = vld [vmem:[%s1] sm:$0xf]
  %v23 = vld [vmem:[%s1 + $0x4] sm:$0xf]
  %v24 = vld [vmem:[%s1 + $0x8] sm:$0xf]
  %v25 = vld [vmem:[%s1 + $0xc] sm:$0xf]
  %v26 = vld [vmem:[%s1 + $0x10] sm:$0xf]
  %v27 = vld [vmem:[%s1 + $0x14] sm:$0xf]
  %v28 = vld [vmem:[%s1 + $0x18] sm:$0xf]
  %v29 = vld [vmem:[%s1 + $0x1c] sm:$0xf]
  %v30 = vld [vmem:[%s1 + $0x20] sm:$0xf]
  %v31 = vld [vmem:[%s1 + $0x24] sm:$0xf]
  %v32 = vld [vmem:[%s1 + $0x28] sm:$0xf]
  %v33 = vld [vmem:[%s1 + $0x2c] sm:$0xf]
  %v34 = vld [vmem:[%s1 + $0x30] sm:$0xf]
  %v35 = vld [vmem:[%s1 + $0x34] sm:$0xf]
  %v36 = vld [vmem:[%s1 + $0x38] sm:$0xf]
  %v37 = vld [vmem:[%s1 + $0x3c] sm:$0xf]
  %v38 = vld [vmem:[%s1 + $0x40] sm:$0xf]
  %v39 = vld [vmem:[%s1 + $0x44] sm:$0xf]
  %v40 = vld [vmem:[%s1 + $0x48] sm:$0xf]
  %v41 = vld [vmem:[%s1 + $0x4c] sm:$0xf]
  %v42 = vld [vmem:[%s1 + $0x50] sm:$0xf]
  %v43 = vld [vmem:[%s1 + $0x54] sm:$0xf]
  %v44 = vld [vmem:[%s1 + $0x58] sm:$0xf]
  %v45 = vld [vmem:[%s1 + $0x5c] sm:$0xf]
  %v46 = vld [vmem:[%s1 + $0x60] sm:$0xf]
  %v47 = vld [vmem:[%s1 + $0x64] sm:$0xf]
  %v48 = vld [vmem:[%s1 + $0x68] sm:$0xf]
  %v49 = vld [vmem:[%s1 + $0x6c] sm:$0xf]
  %v50 = vld [vmem:[%s1 + $0x70] sm:$0xf]
  %v51 = vld [vmem:[%s1 + $0x74] sm:$0xf]
  %v52 = vld [vmem:[%s1 + $0x78] sm:$0xf]
  %v53 = vld [vmem:[%s1 + $0x7c] sm:$0xf]
  %v54 = vld [vmem:[%s2] sm:$0x1]
  %v56 = vlaneseq
  %v57 = vshrl.u32 %v56, 7
  %v58 = vsub.s32 0, %v57
  %v59 = vrot.slane %v54, %v58
  %v62 = vunpack.c.l.b16 %v21
  %v63 = vunpack.c.h.b16 %v21
  %v64 = vpack.c.b16 %v62, %v62
  %v65 = vpack.c.b16 %v63, %v63
  %v100 = vunpack.c.l.b16 %v22
  %v101 = vunpack.c.l.b16 %v23
  %v102 = vunpack.c.l.b16 %v24
  %v103 = vunpack.c.l.b16 %v25
  %v104 = vunpack.c.l.b16 %v26
  %v105 = vunpack.c.l.b16 %v27
  %v106 = vunpack.c.l.b16 %v28
  %v107 = vunpack.c.l.b16 %v29
  %v108 = vunpack.c.l.b16 %v30
  %v109 = vunpack.c.l.b16 %v31
  %v110 = vunpack.c.l.b16 %v32
  %v111 = vunpack.c.l.b16 %v33
  %v112 = vunpack.c.l.b16 %v34
  %v113 = vunpack.c.l.b16 %v35
  %v114 = vunpack.c.l.b16 %v36
  %v115 = vunpack.c.l.b16 %v37
  %v116 = vunpack.c.l.b16 %v38
  %v117 = vunpack.c.l.b16 %v39
  %v118 = vunpack.c.l.b16 %v40
  %v119 = vunpack.c.l.b16 %v41
  %v120 = vunpack.c.l.b16 %v42
  %v121 = vunpack.c.l.b16 %v43
  %v122 = vunpack.c.l.b16 %v44
  %v123 = vunpack.c.l.b16 %v45
  %v124 = vunpack.c.l.b16 %v46
  %v125 = vunpack.c.l.b16 %v47
  %v126 = vunpack.c.l.b16 %v48
  %v127 = vunpack.c.l.b16 %v49
  %v128 = vunpack.c.l.b16 %v50
  %v129 = vunpack.c.l.b16 %v51
  %v130 = vunpack.c.l.b16 %v52
  %v131 = vunpack.c.l.b16 %v53
  %v132 = vpack.c.b16 %v101, %v100
  %v133 = vpack.c.b16 %v103, %v102
  %v134 = vpack.c.b16 %v105, %v104
  %v135 = vpack.c.b16 %v107, %v106
  %v136 = vpack.c.b16 %v109, %v108
  %v137 = vpack.c.b16 %v111, %v110
  %v138 = vpack.c.b16 %v113, %v112
  %v139 = vpack.c.b16 %v115, %v114
  %v140 = vpack.c.b16 %v117, %v116
  %v141 = vpack.c.b16 %v119, %v118
  %v142 = vpack.c.b16 %v121, %v120
  %v143 = vpack.c.b16 %v123, %v122
  %v144 = vpack.c.b16 %v125, %v124
  %v145 = vpack.c.b16 %v127, %v126
  %v146 = vpack.c.b16 %v129, %v128
  %v147 = vpack.c.b16 %v131, %v130
  %164 = vmatprep.subr.bf16.mxu0 0
  %165 = vmatpush1.bf16.msra.mxu0 %v132
  %166 = vmatprep.subr.bf16.mxu0 0
  %167 = vmatpush1.bf16.msra.mxu0 %v133
  %168 = vmatprep.subr.bf16.mxu0 0
  %169 = vmatpush1.bf16.msra.mxu0 %v134
  %170 = vmatprep.subr.bf16.mxu0 0
  %171 = vmatpush1.bf16.msra.mxu0 %v135
  %172 = vmatprep.subr.bf16.mxu0 0
  %173 = vmatpush1.bf16.msra.mxu0 %v136
  %174 = vmatprep.subr.bf16.mxu0 0
  %175 = vmatpush1.bf16.msra.mxu0 %v137
  %176 = vmatprep.subr.bf16.mxu0 0
  %177 = vmatpush1.bf16.msra.mxu0 %v138
  %178 = vmatprep.subr.bf16.mxu0 0
  %179 = vmatpush1.bf16.msra.mxu0 %v139
  %180 = vmatprep.subr.bf16.mxu0 0
  %181 = vmatpush1.bf16.msra.mxu0 %v140
  %182 = vmatprep.subr.bf16.mxu0 0
  %183 = vmatpush1.bf16.msra.mxu0 %v141
  %184 = vmatprep.subr.bf16.mxu0 0
  %185 = vmatpush1.bf16.msra.mxu0 %v142
  %186 = vmatprep.subr.bf16.mxu0 0
  %187 = vmatpush1.bf16.msra.mxu0 %v143
  %188 = vmatprep.subr.bf16.mxu0 0
  %189 = vmatpush1.bf16.msra.mxu0 %v144
  %190 = vmatprep.subr.bf16.mxu0 0
  %191 = vmatpush1.bf16.msra.mxu0 %v145
  %192 = vmatprep.subr.bf16.mxu0 0
  %193 = vmatpush1.bf16.msra.mxu0 %v146
  %194 = vmatprep.subr.bf16.mxu0 0
  %195 = vmatpush1.bf16.msra.mxu0 %v147
  %196 = vmatprep.mubr.bf16.mxu0 %v65
  %197 = vmatmul.mubr.bf16.gmra.mrb[0].mxu0 %v64
  %v198 = vpop.f32.mrb[0].mxu0
  %v199 = vadd.f32 %v59, %v198
  %v200 = vpop.f32.mrb[0].mxu0
  %v201 = vpop.f32.mrb[0].mxu0
  %v202 = vpop.f32.mrb[0].mxu0
  %203 = vdwg.mxu0
  %vm204 = vcmask 261120
  %v205 = vsel %vm204, %v199, 0.0
  %v206 = vrot.slane %v205, 4
  %v207 = vadd.f32 %v205, %v206
  %v208 = vrot.slane %v207, 2
  %v209 = vadd.f32 %v207, %v208
  %v210 = vrot.slane %v209, 1
  %v211 = vadd.f32 %v209, %v210
  %v212 = vrcp.pop 8.0
  %v213 = vmul.f32 %v211, %v212
  %v214 = vsub.f32 %v199, %v213
  %v215 = vmul.f32 %v214, %v214
  %v216 = vsel %vm204, %v215, 0.0
  %v217 = vrot.slane %v216, 4
  %v218 = vadd.f32 %v216, %v217
  %v219 = vrot.slane %v218, 2
  %v220 = vadd.f32 %v218, %v219
  %v221 = vrot.slane %v220, 1
  %v222 = vadd.f32 %v220, %v221
  %v223 = vmul.f32 %v222, %v212
  %v224 = vadd.f32 %v223, 1e-05
  %v225 = vrsqrt.pop %v224
  %v226 = vmul.f32 %v214, %v225
  %v227 = vld [vmem:[%s3] sm:$0x1]
  %v229 = vlaneseq
  %v230 = vshrl.u32 %v229, 7
  %v231 = vsub.s32 0, %v230
  %v232 = vrot.slane %v227, %v231
  %v234 = vmul.f32 %v226, %v232
  %v235 = vld [vmem:[%s4] sm:$0x1]
  %v237 = vlaneseq
  %v238 = vshrl.u32 %v237, 7
  %v239 = vsub.s32 0, %v238
  %v240 = vrot.slane %v235, %v239
  %v242 = vadd.f32 %v234, %v240
  %vm243 = vcmp.ge.f32.partialorder %v242, 0.0
  %v244 = vmul.f32 %v242, 0.2
  %v245 = vsel %vm243, %v242, %v244
  %246 = vst.msk [vmem:[%s5] sm:$0xff] %vm204, %v245
  // Predicated region
  $region22: #{multiscale_discriminator_forward.27} parent=0 // pred_check
    _
  $region23: #{multiscale_discriminator_forward.27} parent=0 // pred_check_branch
    %248 = sbr.rel (0) target = $region25
  $region24: #{multiscale_discriminator_forward.27} parent=0 // pred_region
    _
  $region25: #{multiscale_discriminator_forward.27} parent=0 // pred_fallthru
    _
  // Predicated region
  $region26: #{multiscale_discriminator_forward.27} parent=0 // pred_check
    _
  $region27: #{multiscale_discriminator_forward.27} parent=0 // pred_check_branch
    %250 = sbr.rel (0) target = $region29
  $region28: #{multiscale_discriminator_forward.27} parent=0 // pred_region
    _
  $region29: #{multiscale_discriminator_forward.27} parent=0 // pred_fallthru
    _

// kernel: multiscale_discriminator_forward.28
$region0: #{multiscale_discriminator_forward.28}
  #allocation0 [shape = 'u32[]', space=smem, size = 0x4, offset = 0x4, fixed_abs, tag = 'smem constant byte address 0x4 - core index']
  #allocation1 [shape = 'u32[144,128]{1,0:T(1,128)}', space=vmem, size = 0x12000, scoped, tag = 'internal scratch']
  %s0 = inlined_call_operand.vmem [shape: bf16[18,512], index: 0, kind: input, shape index: {}]
  %s1 = inlined_call_operand.vmem [shape: bf16[512,64], index: 1, kind: input, shape index: {}]
  %s2 = inlined_call_operand.vmem [shape: f32[1,64], index: 2, kind: input, shape index: {}]
  %s3 = inlined_call_operand.vmem [shape: f32[1,64], index: 3, kind: input, shape index: {}]
  %s4 = inlined_call_operand.vmem [shape: f32[1,64], index: 4, kind: input, shape index: {}]
  %s5 = inlined_call_operand.vmem [shape: f32[18,64], index: 5, kind: output, shape index: {}]
  %s6 = sld [smem:[#allocation0]]
  $region30: #{multiscale_discriminator_forward.28} parent=0
    _
  %s8 = ssub.s32 1, %s6
  %s9 = scalar_select 0, %s8, %s6
  // Predicated region
  $region2: #{multiscale_discriminator_forward.28} parent=0 // pred_check
    _
  $region3: #{multiscale_discriminator_forward.28} parent=0 // pred_check_branch
    %11 = sbr.rel (0) target = $region5
  $region4: #{multiscale_discriminator_forward.28} parent=0 // pred_region
    _
  $region5: #{multiscale_discriminator_forward.28} parent=0 // pred_fallthru
    _
  // Predicated region
  $region6: #{multiscale_discriminator_forward.28} parent=0 // pred_check
    _
  $region7: #{multiscale_discriminator_forward.28} parent=0 // pred_check_branch
    %13 = sbr.rel (0) target = $region9
  $region8: #{multiscale_discriminator_forward.28} parent=0 // pred_region
    _
  $region9: #{multiscale_discriminator_forward.28} parent=0 // pred_fallthru
    _
  // Predicated region
  $region10: #{multiscale_discriminator_forward.28} parent=0 // pred_check
    _
  $region11: #{multiscale_discriminator_forward.28} parent=0 // pred_check_branch
    %15 = sbr.rel (0) target = $region13
  $region12: #{multiscale_discriminator_forward.28} parent=0 // pred_region
    _
  $region13: #{multiscale_discriminator_forward.28} parent=0 // pred_fallthru
    _
  // Predicated region
  $region14: #{multiscale_discriminator_forward.28} parent=0 // pred_check
    _
  $region15: #{multiscale_discriminator_forward.28} parent=0 // pred_check_branch
    %17 = sbr.rel (0) target = $region17
  $region16: #{multiscale_discriminator_forward.28} parent=0 // pred_region
    _
  $region17: #{multiscale_discriminator_forward.28} parent=0 // pred_fallthru
    _
  // Predicated region
  $region18: #{multiscale_discriminator_forward.28} parent=0 // pred_check
    _
  $region19: #{multiscale_discriminator_forward.28} parent=0 // pred_check_branch
    %19 = sbr.rel (0) target = $region21
  $region20: #{multiscale_discriminator_forward.28} parent=0 // pred_region
    _
  $region21: #{multiscale_discriminator_forward.28} parent=0 // pred_fallthru
    _
  %v21 = vld [vmem:[%s0] sm:$0xff]
  %v22 = vld [vmem:[%s0 + $0x8] sm:$0xff]
  %v23 = vld [vmem:[%s0 + $0x10] sm:$0xff]
  %v24 = vld [vmem:[%s0 + $0x18] sm:$0xff]
  %v25 = vld [vmem:[%s0 + $0x20] sm:$0x11]
  %v26 = vld [vmem:[%s0 + $0x28] sm:$0x11]
  %v27 = vld [vmem:[%s1] sm:$0xf]
  %v28 = vld [vmem:[%s1 + $0x4] sm:$0xf]
  %v29 = vld [vmem:[%s1 + $0x8] sm:$0xf]
  %v30 = vld [vmem:[%s1 + $0xc] sm:$0xf]
  %v31 = vld [vmem:[%s1 + $0x10] sm:$0xf]
  %v32 = vld [vmem:[%s1 + $0x14] sm:$0xf]
  %v33 = vld [vmem:[%s1 + $0x18] sm:$0xf]
  %v34 = vld [vmem:[%s1 + $0x1c] sm:$0xf]
  %v35 = vld [vmem:[%s1 + $0x20] sm:$0xf]
  %v36 = vld [vmem:[%s1 + $0x24] sm:$0xf]
  %v37 = vld [vmem:[%s1 + $0x28] sm:$0xf]
  %v38 = vld [vmem:[%s1 + $0x2c] sm:$0xf]
  %v39 = vld [vmem:[%s1 + $0x30] sm:$0xf]
  %v40 = vld [vmem:[%s1 + $0x34] sm:$0xf]
  %v41 = vld [vmem:[%s1 + $0x38] sm:$0xf]
  %v42 = vld [vmem:[%s1 + $0x3c] sm:$0xf]
  %v43 = vld [vmem:[%s1 + $0x40] sm:$0xf]
  %v44 = vld [vmem:[%s1 + $0x44] sm:$0xf]
  %v45 = vld [vmem:[%s1 + $0x48] sm:$0xf]
  %v46 = vld [vmem:[%s1 + $0x4c] sm:$0xf]
  %v47 = vld [vmem:[%s1 + $0x50] sm:$0xf]
  %v48 = vld [vmem:[%s1 + $0x54] sm:$0xf]
  %v49 = vld [vmem:[%s1 + $0x58] sm:$0xf]
  %v50 = vld [vmem:[%s1 + $0x5c] sm:$0xf]
  %v51 = vld [vmem:[%s1 + $0x60] sm:$0xf]
  %v52 = vld [vmem:[%s1 + $0x64] sm:$0xf]
  %v53 = vld [vmem:[%s1 + $0x68] sm:$0xf]
  %v54 = vld [vmem:[%s1 + $0x6c] sm:$0xf]
  %v55 = vld [vmem:[%s1 + $0x70] sm:$0xf]
  %v56 = vld [vmem:[%s1 + $0x74] sm:$0xf]
  %v57 = vld [vmem:[%s1 + $0x78] sm:$0xf]
  %v58 = vld [vmem:[%s1 + $0x7c] sm:$0xf]
  %v59 = vld [vmem:[%s1 + $0x80] sm:$0xf]
  %v60 = vld [vmem:[%s1 + $0x84] sm:$0xf]
  %v61 = vld [vmem:[%s1 + $0x88] sm:$0xf]
  %v62 = vld [vmem:[%s1 + $0x8c] sm:$0xf]
  %v63 = vld [vmem:[%s1 + $0x90] sm:$0xf]
  %v64 = vld [vmem:[%s1 + $0x94] sm:$0xf]
  %v65 = vld [vmem:[%s1 + $0x98] sm:$0xf]
  %v66 = vld [vmem:[%s1 + $0x9c] sm:$0xf]
  %v67 = vld [vmem:[%s1 + $0xa0] sm:$0xf]
  %v68 = vld [vmem:[%s1 + $0xa4] sm:$0xf]
  %v69 = vld [vmem:[%s1 + $0xa8] sm:$0xf]
  %v70 = vld [vmem:[%s1 + $0xac] sm:$0xf]
  %v71 = vld [vmem:[%s1 + $0xb0] sm:$0xf]
  %v72 = vld [vmem:[%s1 + $0xb4] sm:$0xf]
  %v73 = vld [vmem:[%s1 + $0xb8] sm:$0xf]
  %v74 = vld [vmem:[%s1 + $0xbc] sm:$0xf]
  %v75 = vld [vmem:[%s1 + $0xc0] sm:$0xf]
  %v76 = vld [vmem:[%s1 + $0xc4] sm:$0xf]
  %v77 = vld [vmem:[%s1 + $0xc8] sm:$0xf]
  %v78 = vld [vmem:[%s1 + $0xcc] sm:$0xf]
  %v79 = vld [vmem:[%s1 + $0xd0] sm:$0xf]
  %v80 = vld [vmem:[%s1 + $0xd4] sm:$0xf]
  %v81 = vld [vmem:[%s1 + $0xd8] sm:$0xf]
  %v82 = vld [vmem:[%s1 + $0xdc] sm:$0xf]
  %v83 = vld [vmem:[%s1 + $0xe0] sm:$0xf]
  %v84 = vld [vmem:[%s1 + $0xe4] sm:$0xf]
  %v85 = vld [vmem:[%s1 + $0xe8] sm:$0xf]
  %v86 = vld [vmem:[%s1 + $0xec] sm:$0xf]
  %v87 = vld [vmem:[%s1 + $0xf0] sm:$0xf]
  %v88 = vld [vmem:[%s1 + $0xf4] sm:$0xf]
  %v89 = vld [vmem:[%s1 + $0xf8] sm:$0xf]
  %v90 = vld [vmem:[%s1 + $0xfc] sm:$0xf]
  %v91 = vld [vmem:[%s2] sm:$0x1]
  %v93 = vlaneseq
  %v94 = vshrl.u32 %v93, 7
  %v95 = vsub.s32 0, %v94
  %v96 = vrot.slane %v91, %v95
  %v104 = vunpack.c.l.b16 %v21
  %v105 = vunpack.c.h.b16 %v21
  %v106 = vunpack.c.l.b16 %v22
  %v107 = vunpack.c.h.b16 %v22
  %v108 = vunpack.c.l.b16 %v23
  %v109 = vunpack.c.h.b16 %v23
  %v110 = vunpack.c.l.b16 %v24
  %v111 = vunpack.c.h.b16 %v24
  %v112 = vunpack.c.l.b16 %v25
  %v113 = vunpack.c.h.b16 %v25
  %v114 = vunpack.c.l.b16 %v26
  %v115 = vunpack.c.h.b16 %v26
  %v116 = vpack.c.b16 %v108, %v104
  %v117 = vpack.c.b16 %v109, %v105
  %v118 = vpack.c.b16 %v110, %v106
  %v119 = vpack.c.b16 %v111, %v107
  %v120 = vpack.c.b16 %v112, %v112
  %v121 = vpack.c.b16 %v113, %v113
  %v122 = vpack.c.b16 %v114, %v114
  %v123 = vpack.c.b16 %v115, %v115
  %v196 = vunpack.c.l.b16 %v27
  %v197 = vunpack.c.l.b16 %v28
  %v198 = vunpack.c.l.b16 %v29
  %v199 = vunpack.c.l.b16 %v30
  %v200 = vunpack.c.l.b16 %v31
  %v201 = vunpack.c.l.b16 %v32
  %v202 = vunpack.c.l.b16 %v33
  %v203 = vunpack.c.l.b16 %v34
  %v204 = vunpack.c.l.b16 %v35
  %v205 = vunpack.c.l.b16 %v36
  %v206 = vunpack.c.l.b16 %v37
  %v207 = vunpack.c.l.b16 %v38
  %v208 = vunpack.c.l.b16 %v39
  %v209 = vunpack.c.l.b16 %v40
  %v210 = vunpack.c.l.b16 %v41
  %v211 = vunpack.c.l.b16 %v42
  %v212 = vunpack.c.l.b16 %v43
  %v213 = vunpack.c.l.b16 %v44
  %v214 = vunpack.c.l.b16 %v45
  %v215 = vunpack.c.l.b16 %v46
  %v216 = vunpack.c.l.b16 %v47
  %v217 = vunpack.c.l.b16 %v48
  %v218 = vunpack.c.l.b16 %v49
  %v219 = vunpack.c.l.b16 %v50
  %v220 = vunpack.c.l.b16 %v51
  %v221 = vunpack.c.l.b16 %v52
  %v222 = vunpack.c.l.b16 %v53
  %v223 = vunpack.c.l.b16 %v54
  %v224 = vunpack.c.l.b16 %v55
  %v225 = vunpack.c.l.b16 %v56
  %v226 = vunpack.c.l.b16 %v57
  %v227 = vunpack.c.l.b16 %v58
  %v228 = vunpack.c.l.b16 %v59
  %v229 = vunpack.c.l.b16 %v60
  %v230 = vunpack.c.l.b16 %v61
  %v231 = vunpack.c.l.b16 %v62
  %v232 = vunpack.c.l.b16 %v63
  %v233 = vunpack.c.l.b16 %v64
  %v234 = vunpack.c.l.b16 %v65
  %v235 = vunpack.c.l.b16 %v66
  %v236 = vunpack.c.l.b16 %v67
  %v237 = vunpack.c.l.b16 %v68
  %v238 = vunpack.c.l.b16 %v69
  %v239 = vunpack.c.l.b16 %v70
  %v240 = vunpack.c.l.b16 %v71
  %v241 = vunpack.c.l.b16 %v72
  %v242 = vunpack.c.l.b16 %v73
  %v243 = vunpack.c.l.b16 %v74
  %v244 = vunpack.c.l.b16 %v75
  %v245 = vunpack.c.l.b16 %v76
  %v246 = vunpack.c.l.b16 %v77
  %v247 = vunpack.c.l.b16 %v78
  %v248 = vunpack.c.l.b16 %v79
  %v249 = vunpack.c.l.b16 %v80
  %v250 = vunpack.c.l.b16 %v81
  %v251 = vunpack.c.l.b16 %v82
  %v252 = vunpack.c.l.b16 %v83
  %v253 = vunpack.c.l.b16 %v84
  %v254 = vunpack.c.l.b16 %v85
  %v255 = vunpack.c.l.b16 %v86
  %v256 = vunpack.c.l.b16 %v87
  %v257 = vunpack.c.l.b16 %v88
  %v258 = vunpack.c.l.b16 %v89
  %v259 = vunpack.c.l.b16 %v90
  %v260 = vpack.c.b16 %v197, %v196
  %v261 = vpack.c.b16 %v199, %v198
  %v262 = vpack.c.b16 %v201, %v200
  %v263 = vpack.c.b16 %v203, %v202
  %v264 = vpack.c.b16 %v205, %v204
  %v265 = vpack.c.b16 %v207, %v206
  %v266 = vpack.c.b16 %v209, %v208
  %v267 = vpack.c.b16 %v211, %v210
  %v268 = vpack.c.b16 %v213, %v212
  %v269 = vpack.c.b16 %v215, %v214
  %v270 = vpack.c.b16 %v217, %v216
  %v271 = vpack.c.b16 %v219, %v218
  %v272 = vpack.c.b16 %v221, %v220
  %v273 = vpack.c.b16 %v223, %v222
  %v274 = vpack.c.b16 %v225, %v224
  %v275 = vpack.c.b16 %v227, %v226
  %v276 = vpack.c.b16 %v229, %v228
  %v277 = vpack.c.b16 %v231, %v230
  %v278 = vpack.c.b16 %v233, %v232
  %v279 = vpack.c.b16 %v235, %v234
  %v280 = vpack.c.b16 %v237, %v236
  %v281 = vpack.c.b16 %v239, %v238
  %v282 = vpack.c.b16 %v241, %v240
  %v283 = vpack.c.b16 %v243, %v242
  %v284 = vpack.c.b16 %v245, %v244
  %v285 = vpack.c.b16 %v247, %v246
  %v286 = vpack.c.b16 %v249, %v248
  %v287 = vpack.c.b16 %v251, %v250
  %v288 = vpack.c.b16 %v253, %v252
  %v289 = vpack.c.b16 %v255, %v254
  %v290 = vpack.c.b16 %v257, %v256
  %v291 = vpack.c.b16 %v259, %v258
  %324 = vmatprep.subr.bf16.mxu0 0
  %325 = vmatpush1.bf16.msra.mxu0 %v260
  %326 = vmatprep.subr.bf16.mxu0 0
  %327 = vmatpush1.bf16.msra.mxu0 %v261
  %328 = vmatprep.subr.bf16.mxu0 0
  %329 = vmatpush1.bf16.msra.mxu0 %v262
  %330 = vmatprep.subr.bf16.mxu0 0
  %331 = vmatpush1.bf16.msra.mxu0 %v263
  %332 = vmatprep.subr.bf16.mxu0 0
  %333 = vmatpush1.bf16.msra.mxu0 %v264
  %334 = vmatprep.subr.bf16.mxu0 0
  %335 = vmatpush1.bf16.msra.mxu0 %v265
  %336 = vmatprep.subr.bf16.mxu0 0
  %337 = vmatpush1.bf16.msra.mxu0 %v266
  %338 = vmatprep.subr.bf16.mxu0 0
  %339 = vmatpush1.bf16.msra.mxu0 %v267
  %340 = vmatprep.subr.bf16.mxu0 0
  %341 = vmatpush1.bf16.msra.mxu0 %v268
  %342 = vmatprep.subr.bf16.mxu0 0
  %343 = vmatpush1.bf16.msra.mxu0 %v269
  %344 = vmatprep.subr.bf16.mxu0 0
  %345 = vmatpush1.bf16.msra.mxu0 %v270
  %346 = vmatprep.subr.bf16.mxu0 0
  %347 = vmatpush1.bf16.msra.mxu0 %v271
  %348 = vmatprep.subr.bf16.mxu0 0
  %349 = vmatpush1.bf16.msra.mxu0 %v272
  %350 = vmatprep.subr.bf16.mxu0 0
  %351 = vmatpush1.bf16.msra.mxu0 %v273
  %352 = vmatprep.subr.bf16.mxu0 0
  %353 = vmatpush1.bf16.msra.mxu0 %v274
  %354 = vmatprep.subr.bf16.mxu0 0
  %355 = vmatpush1.bf16.msra.mxu0 %v275
  %356 = vmatprep.mubr.bf16.mxu0 %v117
  %357 = vmatmul.mubr.bf16.gmra.mrb[0].mxu0 %v116
  %v358 = vpop.f32.mrb[0].mxu0
  %v359 = vadd.f32 %v96, %v358
  %v360 = vpop.f32.mrb[0].mxu0
  %v361 = vpop.f32.mrb[0].mxu0
  %v362 = vadd.f32 %v96, %v361
  %v363 = vpop.f32.mrb[0].mxu0
  %364 = vmatprep.mubr.bf16.mxu0 %v121
  %365 = vmatmul.mubr.bf16.gmra.mrb[0].mxu0 %v120
  %v366 = vpop.f32.mrb[0].mxu0
  %v367 = vadd.f32 %v96, %v366
  %v368 = vpop.f32.mrb[0].mxu0
  %v369 = vpop.f32.mrb[0].mxu0
  %v370 = vpop.f32.mrb[0].mxu0
  %371 = vdwg.mxu0
  %372 = vmatprep.subr.bf16.mxu0 0
  %373 = vmatpush1.bf16.msra.mxu0 %v276
  %374 = vmatprep.subr.bf16.mxu0 0
  %375 = vmatpush1.bf16.msra.mxu0 %v277
  %376 = vmatprep.subr.bf16.mxu0 0
  %377 = vmatpush1.bf16.msra.mxu0 %v278
  %378 = vmatprep.subr.bf16.mxu0 0
  %379 = vmatpush1.bf16.msra.mxu0 %v279
  %380 = vmatprep.subr.bf16.mxu0 0
  %381 = vmatpush1.bf16.msra.mxu0 %v280
  %382 = vmatprep.subr.bf16.mxu0 0
  %383 = vmatpush1.bf16.msra.mxu0 %v281
  %384 = vmatprep.subr.bf16.mxu0 0
  %385 = vmatpush1.bf16.msra.mxu0 %v282
  %386 = vmatprep.subr.bf16.mxu0 0
  %387 = vmatpush1.bf16.msra.mxu0 %v283
  %388 = vmatprep.subr.bf16.mxu0 0
  %389 = vmatpush1.bf16.msra.mxu0 %v284
  %390 = vmatprep.subr.bf16.mxu0 0
  %391 = vmatpush1.bf16.msra.mxu0 %v285
  %392 = vmatprep.subr.bf16.mxu0 0
  %393 = vmatpush1.bf16.msra.mxu0 %v286
  %394 = vmatprep.subr.bf16.mxu0 0
  %395 = vmatpush1.bf16.msra.mxu0 %v287
  %396 = vmatprep.subr.bf16.mxu0 0
  %397 = vmatpush1.bf16.msra.mxu0 %v288
  %398 = vmatprep.subr.bf16.mxu0 0
  %399 = vmatpush1.bf16.msra.mxu0 %v289
  %400 = vmatprep.subr.bf16.mxu0 0
  %401 = vmatpush1.bf16.msra.mxu0 %v290
  %402 = vmatprep.subr.bf16.mxu0 0
  %403 = vmatpush1.bf16.msra.mxu0 %v291
  %404 = vmatprep.mubr.bf16.mxu0 %v119
  %405 = vmatmul.mubr.bf16.gmra.mrb[0].mxu0 %v118
  %v406 = vpop.f32.mrb[0].mxu0
  %v407 = vadd.f32 %v359, %v406
  %v408 = vpop.f32.mrb[0].mxu0
  %v409 = vpop.f32.mrb[0].mxu0
  %v410 = vadd.f32 %v362, %v409
  %v411 = vpop.f32.mrb[0].mxu0
  %412 = vmatprep.mubr.bf16.mxu0 %v123
  %413 = vmatmul.mubr.bf16.gmra.mrb[0].mxu0 %v122
  %v414 = vpop.f32.mrb[0].mxu0
  %v415 = vadd.f32 %v367, %v414
  %v416 = vpop.f32.mrb[0].mxu0
  %v417 = vpop.f32.mrb[0].mxu0
  %v418 = vpop.f32.mrb[0].mxu0
  %419 = vdwg.mxu0
  %vm420 = vcmask 523264
  %v421 = vsel %vm420, %v407, 0.0
  %v422 = vsel %vm420, %v410, 0.0
  %v423 = vadd.f32 %v421, %v422
  %vm424 = vcmask 517120
  %v425 = vsel %vm424, %v415, 0.0
  %v426 = vadd.f32 %v423, %v425
  %v427 = vrot.slane %v426, 4
  %v428 = vadd.f32 %v426, %v427
  %v429 = vrot.slane %v428, 2
  %v430 = vadd.f32 %v428, %v429
  %v431 = vrot.slane %v430, 1
  %v432 = vadd.f32 %v430, %v431
  %v433 = vrcp.pop 18.0
  %v434 = vmul.f32 %v432, %v433
  %v435 = vsub.f32 %v407, %v434
  %v436 = vsub.f32 %v410, %v434
  %v437 = vsub.f32 %v415, %v434
  %v438 = vmul.f32 %v435, %v435
  %v439 = vmul.f32 %v436, %v436
  %v440 = vmul.f32 %v437, %v437
  %v441 = vsel %vm420, %v438, 0.0
  %v442 = vsel %vm420, %v439, 0.0
  %v443 = vadd.f32 %v441, %v442
  %v444 = vsel %vm424, %v440, 0.0
  %v445 = vadd.f32 %v443, %v444
  %v446 = vrot.slane %v445, 4
  %v447 = vadd.f32 %v445, %v446
  %v448 = vrot.slane %v447, 2
  %v449 = vadd.f32 %v447, %v448
  %v450 = vrot.slane %v449, 1
  %v451 = vadd.f32 %v449, %v450
  %v452 = vmul.f32 %v451, %v433
  %v453 = vadd.f32 %v452, 1e-05
  %v454 = vrsqrt.pop %v453
  %v455 = vmul.f32 %v435, %v454
  %v456 = vmul.f32 %v436, %v454
  %v457 = vmul.f32 %v437, %v454
  %v458 = vld [vmem:[%s3] sm:$0x1]
  %v460 = vlaneseq
  %v461 = vshrl.u32 %v460, 7
  %v462 = vsub.s32 0, %v461
  %v463 = vrot.slane %v458, %v462
  %v465 = vmul.f32 %v455, %v463
  %v466 = vmul.f32 %v456, %v463
  %v467 = vmul.f32 %v457, %v463
  %v468 = vld [vmem:[%s4] sm:$0x1]
  %v470 = vlaneseq
  %v471 = vshrl.u32 %v470, 7
  %v472 = vsub.s32 0, %v471
  %v473 = vrot.slane %v468, %v472
  %v475 = vadd.f32 %v465, %v473
  %v476 = vadd.f32 %v466, %v473
  %v477 = vadd.f32 %v467, %v473
  %vm478 = vcmp.ge.f32.partialorder %v475, 0.0
  %vm479 = vcmp.ge.f32.partialorder %v476, 0.0
  %vm480 = vcmp.ge.f32.partialorder %v477, 0.0
  %v481 = vmul.f32 %v475, 0.2
  %v482 = vmul.f32 %v476, 0.2
  %v483 = vmul.f32 %v477, 0.2
  %v484 = vsel %vm478, %v475, %v481
  %v485 = vsel %vm479, %v476, %v482
  %v486 = vsel %vm480, %v477, %v483
  %487 = vst.msk [vmem:[%s5] sm:$0xff] %vm420, %v484
  %488 = vst.msk [vmem:[%s5 + $0x8] sm:$0xff] %vm420, %v485
  %489 = vst.msk [vmem:[%s5 + $0x10] sm:$0x3] %vm424, %v486
  // Predicated region
  $region22: #{multiscale_discriminator_forward.28} parent=0 // pred_check
    _
  $region23: #{multiscale_discriminator_forward.28} parent=0 // pred_check_branch
    %491 = sbr.rel (0) target = $region25
  $region24: #{multiscale_discriminator_forward.28} parent=0 // pred_region
    _
  $region25: #{multiscale_discriminator_forward.28} parent=0 // pred_fallthru
    _
  // Predicated region
  $region26: #{multiscale_discriminator_forward.28} parent=0 // pred_check
    _
  $region27: #{multiscale_discriminator_forward.28} parent=0 // pred_check_branch
    %493 = sbr.rel (0) target = $region29
  $region28: #{multiscale_discriminator_forward.28} parent=0 // pred_region
    _
  $region29: #{multiscale_discriminator_forward.28} parent=0 // pred_fallthru
    _

// kernel: multiscale_discriminator_forward.29
$region0: #{multiscale_discriminator_forward.29}
  #allocation0 [shape = 'u32[]', space=smem, size = 0x4, offset = 0x4, fixed_abs, tag = 'smem constant byte address 0x4 - core index']
  #allocation1 [shape = 'u32[144,128]{1,0:T(1,128)}', space=vmem, size = 0x12000, scoped, tag = 'internal scratch']
  #allocation2 [shape = 'f32[1,1]{1,0:T(1,128)S(1)}', space=vmem, size = 0x200, scoped, tag = 'scoped memory for multiscale_discriminator_forward.29']
  #allocation3 [shape = 'f32[1,1]{1,0:T(1,128)S(1)}', space=vmem, size = 0x200, scoped, tag = 'scoped memory for multiscale_discriminator_forward.29']
  #allocation4 [shape = 'f32[1,1]{1,0:T(1,128)S(1)}', space=vmem, size = 0x200, scoped, tag = 'scoped memory for multiscale_discriminator_forward.29']
  %s0 = inlined_call_operand.vmem [shape: bf16[32,1024], index: 0, kind: input, shape index: {}]
  %s1 = inlined_call_operand.vmem [shape: bf16[1024,1], index: 1, kind: input, shape index: {}]
  %s2 = inlined_call_operand.<no memory space> [shape: f32[1,1], index: 2, kind: input, shape index: {}]
  %s3 = inlined_call_operand.<no memory space> [shape: f32[1,1], index: 3, kind: input, shape index: {}]
  %s4 = inlined_call_operand.<no memory space> [shape: f32[1,1], index: 4, kind: input, shape index: {}]
  %s5 = inlined_call_operand.vmem [shape: f32[32,1], index: 5, kind: output, shape index: {}]
  %s6 = sld [smem:[#allocation0]]
  $region30: #{multiscale_discriminator_forward.29} parent=0
    _
  %s8 = ssub.s32 1, %s6
  %s9 = scalar_select 0, %s8, %s6
  %v10 = vstv %s2
  %11 = vst [vmem:[#allocation2] sm:$0x1] %v10
  %v12 = vstv %s3
  %13 = vst [vmem:[#allocation3] sm:$0x1] %v12
  %v14 = vstv %s4
  %15 = vst [vmem:[#allocation4] sm:$0x1] %v14
  // Predicated region
  $region2: #{multiscale_discriminator_forward.29} parent=0 // pred_check
    _
  $region3: #{multiscale_discriminator_forward.29} parent=0 // pred_check_branch
    %17 = sbr.rel (0) target = $region5
  $region4: #{multiscale_discriminator_forward.29} parent=0 // pred_region
    _
  $region5: #{multiscale_discriminator_forward.29} parent=0 // pred_fallthru
    _
  // Predicated region
  $region6: #{multiscale_discriminator_forward.29} parent=0 // pred_check
    _
  $region7: #{multiscale_discriminator_forward.29} parent=0 // pred_check_branch
    %19 = sbr.rel (0) target = $region9
  $region8: #{multiscale_discriminator_forward.29} parent=0 // pred_region
    _
  $region9: #{multiscale_discriminator_forward.29} parent=0 // pred_fallthru
    _
  // Predicated region
  $region10: #{multiscale_discriminator_forward.29} parent=0 // pred_check
    _
  $region11: #{multiscale_discriminator_forward.29} parent=0 // pred_check_branch
    %21 = sbr.rel (0) target = $region13
  $region12: #{multiscale_discriminator_forward.29} parent=0 // pred_region
    _
  $region13: #{multiscale_discriminator_forward.29} parent=0 // pred_fallthru
    _
  // Predicated region
  $region14: #{multiscale_discriminator_forward.29} parent=0 // pred_check
    _
  $region15: #{multiscale_discriminator_forward.29} parent=0 // pred_check_branch
    %23 = sbr.rel (0) target = $region17
  $region16: #{multiscale_discriminator_forward.29} parent=0 // pred_region
    _
  $region17: #{multiscale_discriminator_forward.29} parent=0 // pred_fallthru
    _
  // Predicated region
  $region18: #{multiscale_discriminator_forward.29} parent=0 // pred_check
    _
  $region19: #{multiscale_discriminator_forward.29} parent=0 // pred_check_branch
    %25 = sbr.rel (0) target = $region21
  $region20: #{multiscale_discriminator_forward.29} parent=0 // pred_region
    _
  $region21: #{multiscale_discriminator_forward.29} parent=0 // pred_fallthru
    _
  %v27 = vld [vmem:[%s0] sm:$0xff]
  %v28 = vld [vmem:[%s0 + $0x8] sm:$0xff]
  %v29 = vld [vmem:[%s0 + $0x10] sm:$0xff]
  %v30 = vld [vmem:[%s0 + $0x18] sm:$0xff]
  %v31 = vld [vmem:[%s0 + $0x20] sm:$0xff]
  %v32 = vld [vmem:[%s0 + $0x28] sm:$0xff]
  %v33 = vld [vmem:[%s0 + $0x30] sm:$0xff]
  %v34 = vld [vmem:[%s0 + $0x38] sm:$0xff]
  %v35 = vld [vmem:[%s0 + $0x40] sm:$0xff]
  %v36 = vld [vmem:[%s0 + $0x48] sm:$0xff]
  %v37 = vld [vmem:[%s0 + $0x50] sm:$0xff]
  %v38 = vld [vmem:[%s0 + $0x58] sm:$0xff]
  %v39 = vld [vmem:[%s0 + $0x60] sm:$0xff]
  %v40 = vld [vmem:[%s0 + $0x68] sm:$0xff]
  %v41 = vld [vmem:[%s0 + $0x70] sm:$0xff]
  %v42 = vld [vmem:[%s0 + $0x78] sm:$0xff]
  %v43 = vld [vmem:[%s1] sm:$0xf]
  %v44 = vld [vmem:[%s1 + $0x4] sm:$0xf]
  %v45 = vld [vmem:[%s1 + $0x8] sm:$0xf]
  %v46 = vld [vmem:[%s1 + $0xc] sm:$0xf]
  %v47 = vld [vmem:[%s1 + $0x10] sm:$0xf]
  %v48 = vld [vmem:[%s1 + $0x14] sm:$0xf]
  %v49 = vld [vmem:[%s1 + $0x18] sm:$0xf]
  %v50 = vld [vmem:[%s1 + $0x1c] sm:$0xf]
  %v51 = vld [vmem:[%s1 + $0x20] sm:$0xf]
  %v52 = vld [vmem:[%s1 + $0x24] sm:$0xf]
  %v53 = vld [vmem:[%s1 + $0x28] sm:$0xf]
  %v54 = vld [vmem:[%s1 + $0x2c] sm:$0xf]
  %v55 = vld [vmem:[%s1 + $0x30] sm:$0xf]
  %v56 = vld [vmem:[%s1 + $0x34] sm:$0xf]
  %v57 = vld [vmem:[%s1 + $0x38] sm:$0xf]
  %v58 = vld [vmem:[%s1 + $0x3c] sm:$0xf]
  %v59 = vld [vmem:[%s1 + $0x40] sm:$0xf]
  %v60 = vld [vmem:[%s1 + $0x44] sm:$0xf]
  %v61 = vld [vmem:[%s1 + $0x48] sm:$0xf]
  %v62 = vld [vmem:[%s1 + $0x4c] sm:$0xf]
  %v63 = vld [vmem:[%s1 + $0x50] sm:$0xf]
  %v64 = vld [vmem:[%s1 + $0x54] sm:$0xf]
  %v65 = vld [vmem:[%s1 + $0x58] sm:$0xf]
  %v66 = vld [vmem:[%s1 + $0x5c] sm:$0xf]
  %v67 = vld [vmem:[%s1 + $0x60] sm:$0xf]
  %v68 = vld [vmem:[%s1 + $0x64] sm:$0xf]
  %v69 = vld [vmem:[%s1 + $0x68] sm:$0xf]
  %v70 = vld [vmem:[%s1 + $0x6c] sm:$0xf]
  %v71 = vld [vmem:[%s1 + $0x70] sm:$0xf]
  %v72 = vld [vmem:[%s1 + $0x74] sm:$0xf]
  %v73 = vld [vmem:[%s1 + $0x78] sm:$0xf]
  %v74 = vld [vmem:[%s1 + $0x7c] sm:$0xf]
  %v75 = vld [vmem:[%s1 + $0x80] sm:$0xf]
  %v76 = vld [vmem:[%s1 + $0x84] sm:$0xf]
  %v77 = vld [vmem:[%s1 + $0x88] sm:$0xf]
  %v78 = vld [vmem:[%s1 + $0x8c] sm:$0xf]
  %v79 = vld [vmem:[%s1 + $0x90] sm:$0xf]
  %v80 = vld [vmem:[%s1 + $0x94] sm:$0xf]
  %v81 = vld [vmem:[%s1 + $0x98] sm:$0xf]
  %v82 = vld [vmem:[%s1 + $0x9c] sm:$0xf]
  %v83 = vld [vmem:[%s1 + $0xa0] sm:$0xf]
  %v84 = vld [vmem:[%s1 + $0xa4] sm:$0xf]
  %v85 = vld [vmem:[%s1 + $0xa8] sm:$0xf]
  %v86 = vld [vmem:[%s1 + $0xac] sm:$0xf]
  %v87 = vld [vmem:[%s1 + $0xb0] sm:$0xf]
  %v88 = vld [vmem:[%s1 + $0xb4] sm:$0xf]
  %v89 = vld [vmem:[%s1 + $0xb8] sm:$0xf]
  %v90 = vld [vmem:[%s1 + $0xbc] sm:$0xf]
  %v91 = vld [vmem:[%s1 + $0xc0] sm:$0xf]
  %v92 = vld [vmem:[%s1 + $0xc4] sm:$0xf]
  %v93 = vld [vmem:[%s1 + $0xc8] sm:$0xf]
  %v94 = vld [vmem:[%s1 + $0xcc] sm:$0xf]
  %v95 = vld [vmem:[%s1 + $0xd0] sm:$0xf]
  %v96 = vld [vmem:[%s1 + $0xd4] sm:$0xf]
  %v97 = vld [vmem:[%s1 + $0xd8] sm:$0xf]
  %v98 = vld [vmem:[%s1 + $0xdc] sm:$0xf]
  %v99 = vld [vmem:[%s1 + $0xe0] sm:$0xf]
  %v100 = vld [vmem:[%s1 + $0xe4] sm:$0xf]
  %v101 = vld [vmem:[%s1 + $0xe8] sm:$0xf]
  %v102 = vld [vmem:[%s1 + $0xec] sm:$0xf]
  %v103 = vld [vmem:[%s1 + $0xf0] sm:$0xf]
  %v104 = vld [vmem:[%s1 + $0xf4] sm:$0xf]
  %v105 = vld [vmem:[%s1 + $0xf8] sm:$0xf]
  %v106 = vld [vmem:[%s1 + $0xfc] sm:$0xf]
  %v107 = vld [vmem:[%s1 + $0x100] sm:$0xf]
  %v108 = vld [vmem:[%s1 + $0x104] sm:$0xf]
  %v109 = vld [vmem:[%s1 + $0x108] sm:$0xf]
  %v110 = vld [vmem:[%s1 + $0x10c] sm:$0xf]
  %v111 = vld [vmem:[%s1 + $0x110] sm:$0xf]
  %v112 = vld [vmem:[%s1 + $0x114] sm:$0xf]
  %v113 = vld [vmem:[%s1 + $0x118] sm:$0xf]
  %v114 = vld [vmem:[%s1 + $0x11c] sm:$0xf]
  %v115 = vld [vmem:[%s1 + $0x120] sm:$0xf]
  %v116 = vld [vmem:[%s1 + $0x124] sm:$0xf]
  %v117 = vld [vmem:[%s1 + $0x128] sm:$0xf]
  %v118 = vld [vmem:[%s1 + $0x12c] sm:$0xf]
  %v119 = vld [vmem:[%s1 + $0x130] sm:$0xf]
  %v120 = vld [vmem:[%s1 + $0x134] sm:$0xf]
  %v121 = vld [vmem:[%s1 + $0x138] sm:$0xf]
  %v122 = vld [vmem:[%s1 + $0x13c] sm:$0xf]
  %v123 = vld [vmem:[%s1 + $0x140] sm:$0xf]
  %v124 = vld [vmem:[%s1 + $0x144] sm:$0xf]
  %v125 = vld [vmem:[%s1 + $0x148] sm:$0xf]
  %v126 = vld [vmem:[%s1 + $0x14c] sm:$0xf]
  %v127 = vld [vmem:[%s1 + $0x150] sm:$0xf]
  %v128 = vld [vmem:[%s1 + $0x154] sm:$0xf]
  %v129 = vld [vmem:[%s1 + $0x158] sm:$0xf]
  %v130 = vld [vmem:[%s1 + $0x15c] sm:$0xf]
  %v131 = vld [vmem:[%s1 + $0x160] sm:$0xf]
  %v132 = vld [vmem:[%s1 + $0x164] sm:$0xf]
  %v133 = vld [vmem:[%s1 + $0x168] sm:$0xf]
  %v134 = vld [vmem:[%s1 + $0x16c] sm:$0xf]
  %v135 = vld [vmem:[%s1 + $0x170] sm:$0xf]
  %v136 = vld [vmem:[%s1 + $0x174] sm:$0xf]
  %v137 = vld [vmem:[%s1 + $0x178] sm:$0xf]
  %v138 = vld [vmem:[%s1 + $0x17c] sm:$0xf]
  %v139 = vld [vmem:[%s1 + $0x180] sm:$0xf]
  %v140 = vld [vmem:[%s1 + $0x184] sm:$0xf]
  %v141 = vld [vmem:[%s1 + $0x188] sm:$0xf]
  %v142 = vld [vmem:[%s1 + $0x18c] sm:$0xf]
  %v143 = vld [vmem:[%s1 + $0x190] sm:$0xf]
  %v144 = vld [vmem:[%s1 + $0x194] sm:$0xf]
  %v145 = vld [vmem:[%s1 + $0x198] sm:$0xf]
  %v146 = vld [vmem:[%s1 + $0x19c] sm:$0xf]
  %v147 = vld [vmem:[%s1 + $0x1a0] sm:$0xf]
  %v148 = vld [vmem:[%s1 + $0x1a4] sm:$0xf]
  %v149 = vld [vmem:[%s1 + $0x1a8] sm:$0xf]
  %v150 = vld [vmem:[%s1 + $0x1ac] sm:$0xf]
  %v151 = vld [vmem:[%s1 + $0x1b0] sm:$0xf]
  %v152 = vld [vmem:[%s1 + $0x1b4] sm:$0xf]
  %v153 = vld [vmem:[%s1 + $0x1b8] sm:$0xf]
  %v154 = vld [vmem:[%s1 + $0x1bc] sm:$0xf]
  %v155 = vld [vmem:[%s1 + $0x1c0] sm:$0xf]
  %v156 = vld [vmem:[%s1 + $0x1c4] sm:$0xf]
  %v157 = vld [vmem:[%s1 + $0x1c8] sm:$0xf]
  %v158 = vld [vmem:[%s1 + $0x1cc] sm:$0xf]
  %v159 = vld [vmem:[%s1 + $0x1d0] sm:$0xf]
  %v160 = vld [vmem:[%s1 + $0x1d4] sm:$0xf]
  %v161 = vld [vmem:[%s1 + $0x1d8] sm:$0xf]
  %v162 = vld [vmem:[%s1 + $0x1dc] sm:$0xf]
  %v163 = vld [vmem:[%s1 + $0x1e0] sm:$0xf]
  %v164 = vld [vmem:[%s1 + $0x1e4] sm:$0xf]
  %v165 = vld [vmem:[%s1 + $0x1e8] sm:$0xf]
  %v166 = vld [vmem:[%s1 + $0x1ec] sm:$0xf]
  %v167 = vld [vmem:[%s1 + $0x1f0] sm:$0xf]
  %v168 = vld [vmem:[%s1 + $0x1f4] sm:$0xf]
  %v169 = vld [vmem:[%s1 + $0x1f8] sm:$0xf]
  %v170 = vld [vmem:[%s1 + $0x1fc] sm:$0xf]
  %v171 = vld [vmem:[#allocation2] sm:$0x1]
  %v173 = vlaneseq
  %v174 = vshrl.u32 %v173, 7
  %v175 = vsub.s32 0, %v174
  %v176 = vrot.slane %v171, %v175
  %v194 = vunpack.c.l.b16 %v27
  %v195 = vunpack.c.h.b16 %v27
  %v196 = vunpack.c.l.b16 %v28
  %v197 = vunpack.c.h.b16 %v28
  %v198 = vunpack.c.l.b16 %v29
  %v199 = vunpack.c.h.b16 %v29
  %v200 = vunpack.c.l.b16 %v30
  %v201 = vunpack.c.h.b16 %v30
  %v202 = vunpack.c.l.b16 %v31
  %v203 = vunpack.c.h.b16 %v31
  %v204 = vunpack.c.l.b16 %v32
  %v205 = vunpack.c.h.b16 %v32
  %v206 = vunpack.c.l.b16 %v33
  %v207 = vunpack.c.h.b16 %v33
  %v208 = vunpack.c.l.b16 %v34
  %v209 = vunpack.c.h.b16 %v34
  %v210 = vunpack.c.l.b16 %v35
  %v211 = vunpack.c.h.b16 %v35
  %v212 = vunpack.c.l.b16 %v36
  %v213 = vunpack.c.h.b16 %v36
  %v214 = vunpack.c.l.b16 %v37
  %v215 = vunpack.c.h.b16 %v37
  %v216 = vunpack.c.l.b16 %v38
  %v217 = vunpack.c.h.b16 %v38
  %v218 = vunpack.c.l.b16 %v39
  %v219 = vunpack.c.h.b16 %v39
  %v220 = vunpack.c.l.b16 %v40
  %v221 = vunpack.c.h.b16 %v40
  %v222 = vunpack.c.l.b16 %v41
  %v223 = vunpack.c.h.b16 %v41
  %v224 = vunpack.c.l.b16 %v42
  %v225 = vunpack.c.h.b16 %v42
  %v226 = vpack.c.b16 %v202, %v194
  %v227 = vpack.c.b16 %v203, %v195
  %v228 = vpack.c.b16 %v204, %v196
  %v229 = vpack.c.b16 %v205, %v197
  %v230 = vpack.c.b16 %v206, %v198
  %v231 = vpack.c.b16 %v207, %v199
  %v232 = vpack.c.b16 %v208, %v200
  %v233 = vpack.c.b16 %v209, %v201
  %v234 = vpack.c.b16 %v218, %v210
  %v235 = vpack.c.b16 %v219, %v211
  %v236 = vpack.c.b16 %v220, %v212
  %v237 = vpack.c.b16 %v221, %v213
  %v238 = vpack.c.b16 %v222, %v214
  %v239 = vpack.c.b16 %v223, %v215
  %v240 = vpack.c.b16 %v224, %v216
  %v241 = vpack.c.b16 %v225, %v217
  %v386 = vunpack.c.l.b16 %v43
  %v387 = vunpack.c.l.b16 %v44
  %v388 = vunpack.c.l.b16 %v45
  %v389 = vunpack.c.l.b16 %v46
  %v390 = vunpack.c.l.b16 %v47
  %v391 = vunpack.c.l.b16 %v48
  %v392 = vunpack.c.l.b16 %v49
  %v393 = vunpack.c.l.b16 %v50
  %v394 = vunpack.c.l.b16 %v51
  %v395 = vunpack.c.l.b16 %v52
  %v396 = vunpack.c.l.b16 %v53
  %v397 = vunpack.c.l.b16 %v54
  %v398 = vunpack.c.l.b16 %v55
  %v399 = vunpack.c.l.b16 %v56
  %v400 = vunpack.c.l.b16 %v57
  %v401 = vunpack.c.l.b16 %v58
  %v402 = vunpack.c.l.b16 %v59
  %v403 = vunpack.c.l.b16 %v60
  %v404 = vunpack.c.l.b16 %v61
  %v405 = vunpack.c.l.b16 %v62
  %v406 = vunpack.c.l.b16 %v63
  %v407 = vunpack.c.l.b16 %v64
  %v408 = vunpack.c.l.b16 %v65
  %v409 = vunpack.c.l.b16 %v66
  %v410 = vunpack.c.l.b16 %v67
  %v411 = vunpack.c.l.b16 %v68
  %v412 = vunpack.c.l.b16 %v69
  %v413 = vunpack.c.l.b16 %v70
  %v414 = vunpack.c.l.b16 %v71
  %v415 = vunpack.c.l.b16 %v72
  %v416 = vunpack.c.l.b16 %v73
  %v417 = vunpack.c.l.b16 %v74
  %v418 = vunpack.c.l.b16 %v75
  %v419 = vunpack.c.l.b16 %v76
  %v420 = vunpack.c.l.b16 %v77
  %v421 = vunpack.c.l.b16 %v78
  %v422 = vunpack.c.l.b16 %v79
  %v423 = vunpack.c.l.b16 %v80
  %v424 = vunpack.c.l.b16 %v81
  %v425 = vunpack.c.l.b16 %v82
  %v426 = vunpack.c.l.b16 %v83
  %v427 = vunpack.c.l.b16 %v84
  %v428 = vunpack.c.l.b16 %v85
  %v429 = vunpack.c.l.b16 %v86
  %v430 = vunpack.c.l.b16 %v87
  %v431 = vunpack.c.l.b16 %v88
  %v432 = vunpack.c.l.b16 %v89
  %v433 = vunpack.c.l.b16 %v90
  %v434 = vunpack.c.l.b16 %v91
  %v435 = vunpack.c.l.b16 %v92
  %v436 = vunpack.c.l.b16 %v93
  %v437 = vunpack.c.l.b16 %v94
  %v438 = vunpack.c.l.b16 %v95
  %v439 = vunpack.c.l.b16 %v96
  %v440 = vunpack.c.l.b16 %v97
  %v441 = vunpack.c.l.b16 %v98
  %v442 = vunpack.c.l.b16 %v99
  %v443 = vunpack.c.l.b16 %v100
  %v444 = vunpack.c.l.b16 %v101
  %v445 = vunpack.c.l.b16 %v102
  %v446 = vunpack.c.l.b16 %v103
  %v447 = vunpack.c.l.b16 %v104
  %v448 = vunpack.c.l.b16 %v105
  %v449 = vunpack.c.l.b16 %v106
  %v450 = vunpack.c.l.b16 %v107
  %v451 = vunpack.c.l.b16 %v108
  %v452 = vunpack.c.l.b16 %v109
  %v453 = vunpack.c.l.b16 %v110
  %v454 = vunpack.c.l.b16 %v111
  %v455 = vunpack.c.l.b16 %v112
  %v456 = vunpack.c.l.b16 %v113
  %v457 = vunpack.c.l.b16 %v114
  %v458 = vunpack.c.l.b16 %v115
  %v459 = vunpack.c.l.b16 %v116
  %v460 = vunpack.c.l.b16 %v117
  %v461 = vunpack.c.l.b16 %v118
  %v462 = vunpack.c.l.b16 %v119
  %v463 = vunpack.c.l.b16 %v120
  %v464 = vunpack.c.l.b16 %v121
  %v465 = vunpack.c.l.b16 %v122
  %v466 = vunpack.c.l.b16 %v123
  %v467 = vunpack.c.l.b16 %v124
  %v468 = vunpack.c.l.b16 %v125
  %v469 = vunpack.c.l.b16 %v126
  %v470 = vunpack.c.l.b16 %v127
  %v471 = vunpack.c.l.b16 %v128
  %v472 = vunpack.c.l.b16 %v129
  %v473 = vunpack.c.l.b16 %v130
  %v474 = vunpack.c.l.b16 %v131
  %v475 = vunpack.c.l.b16 %v132
  %v476 = vunpack.c.l.b16 %v133
  %v477 = vunpack.c.l.b16 %v134
  %v478 = vunpack.c.l.b16 %v135
  %v479 = vunpack.c.l.b16 %v136
  %v480 = vunpack.c.l.b16 %v137
  %v481 = vunpack.c.l.b16 %v138
  %v482 = vunpack.c.l.b16 %v139
  %v483 = vunpack.c.l.b16 %v140
  %v484 = vunpack.c.l.b16 %v141
  %v485 = vunpack.c.l.b16 %v142
  %v486 = vunpack.c.l.b16 %v143
  %v487 = vunpack.c.l.b16 %v144
  %v488 = vunpack.c.l.b16 %v145
  %v489 = vunpack.c.l.b16 %v146
  %v490 = vunpack.c.l.b16 %v147
  %v491 = vunpack.c.l.b16 %v148
  %v492 = vunpack.c.l.b16 %v149
  %v493 = vunpack.c.l.b16 %v150
  %v494 = vunpack.c.l.b16 %v151
  %v495 = vunpack.c.l.b16 %v152
  %v496 = vunpack.c.l.b16 %v153
  %v497 = vunpack.c.l.b16 %v154
  %v498 = vunpack.c.l.b16 %v155
  %v499 = vunpack.c.l.b16 %v156
  %v500 = vunpack.c.l.b16 %v157
  %v501 = vunpack.c.l.b16 %v158
  %v502 = vunpack.c.l.b16 %v159
  %v503 = vunpack.c.l.b16 %v160
  %v504 = vunpack.c.l.b16 %v161
  %v505 = vunpack.c.l.b16 %v162
  %v506 = vunpack.c.l.b16 %v163
  %v507 = vunpack.c.l.b16 %v164
  %v508 = vunpack.c.l.b16 %v165
  %v509 = vunpack.c.l.b16 %v166
  %v510 = vunpack.c.l.b16 %v167
  %v511 = vunpack.c.l.b16 %v168
  %v512 = vunpack.c.l.b16 %v169
  %v513 = vunpack.c.l.b16 %v170
  %v514 = vpack.c.b16 %v387, %v386
  %v515 = vpack.c.b16 %v389, %v388
  %v516 = vpack.c.b16 %v391, %v390
  %v517 = vpack.c.b16 %v393, %v392
  %v518 = vpack.c.b16 %v395, %v394
  %v519 = vpack.c.b16 %v397, %v396
  %v520 = vpack.c.b16 %v399, %v398
  %v521 = vpack.c.b16 %v401, %v400
  %v522 = vpack.c.b16 %v403, %v402
  %v523 = vpack.c.b16 %v405, %v404
  %v524 = vpack.c.b16 %v407, %v406
  %v525 = vpack.c.b16 %v409, %v408
  %v526 = vpack.c.b16 %v411, %v410
  %v527 = vpack.c.b16 %v413, %v412
  %v528 = vpack.c.b16 %v415, %v414
  %v529 = vpack.c.b16 %v417, %v416
  %v530 = vpack.c.b16 %v419, %v418
  %v531 = vpack.c.b16 %v421, %v420
  %v532 = vpack.c.b16 %v423, %v422
  %v533 = vpack.c.b16 %v425, %v424
  %v534 = vpack.c.b16 %v427, %v426
  %v535 = vpack.c.b16 %v429, %v428
  %v536 = vpack.c.b16 %v431, %v430
  %v537 = vpack.c.b16 %v433, %v432
  %v538 = vpack.c.b16 %v435, %v434
  %v539 = vpack.c.b16 %v437, %v436
  %v540 = vpack.c.b16 %v439, %v438
  %v541 = vpack.c.b16 %v441, %v440
  %v542 = vpack.c.b16 %v443, %v442
  %v543 = vpack.c.b16 %v445, %v444
  %v544 = vpack.c.b16 %v447, %v446
  %v545 = vpack.c.b16 %v449, %v448
  %v546 = vpack.c.b16 %v451, %v450
  %v547 = vpack.c.b16 %v453, %v452
  %v548 = vpack.c.b16 %v455, %v454
  %v549 = vpack.c.b16 %v457, %v456
  %v550 = vpack.c.b16 %v459, %v458
  %v551 = vpack.c.b16 %v461, %v460
  %v552 = vpack.c.b16 %v463, %v462
  %v553 = vpack.c.b16 %v465, %v464
  %v554 = vpack.c.b16 %v467, %v466
  %v555 = vpack.c.b16 %v469, %v468
  %v556 = vpack.c.b16 %v471, %v470
  %v557 = vpack.c.b16 %v473, %v472
  %v558 = vpack.c.b16 %v475, %v474
  %v559 = vpack.c.b16 %v477, %v476
  %v560 = vpack.c.b16 %v479, %v478
  %v561 = vpack.c.b16 %v481, %v480
  %v562 = vpack.c.b16 %v483, %v482
  %v563 = vpack.c.b16 %v485, %v484
  %v564 = vpack.c.b16 %v487, %v486
  %v565 = vpack.c.b16 %v489, %v488
  %v566 = vpack.c.b16 %v491, %v490
  %v567 = vpack.c.b16 %v493, %v492
  %v568 = vpack.c.b16 %v495, %v494
  %v569 = vpack.c.b16 %v497, %v496
  %v570 = vpack.c.b16 %v499, %v498
  %v571 = vpack.c.b16 %v501, %v500
  %v572 = vpack.c.b16 %v503, %v502
  %v573 = vpack.c.b16 %v505, %v504
  %v574 = vpack.c.b16 %v507, %v506
  %v575 = vpack.c.b16 %v509, %v508
  %v576 = vpack.c.b16 %v511, %v510
  %v577 = vpack.c.b16 %v513, %v512
  %642 = vmatprep.subr.bf16.mxu0 0
  %643 = vmatpush1.bf16.msra.mxu0 %v514
  %644 = vmatprep.subr.bf16.mxu0 0
  %645 = vmatpush1.bf16.msra.mxu0 %v515
  %646 = vmatprep.subr.bf16.mxu0 0
  %647 = vmatpush1.bf16.msra.mxu0 %v516
  %648 = vmatprep.subr.bf16.mxu0 0
  %649 = vmatpush1.bf16.msra.mxu0 %v517
  %650 = vmatprep.subr.bf16.mxu0 0
  %651 = vmatpush1.bf16.msra.mxu0 %v518
  %652 = vmatprep.subr.bf16.mxu0 0
  %653 = vmatpush1.bf16.msra.mxu0 %v519
  %654 = vmatprep.subr.bf16.mxu0 0
  %655 = vmatpush1.bf16.msra.mxu0 %v520
  %656 = vmatprep.subr.bf16.mxu0 0
  %657 = vmatpush1.bf16.msra.mxu0 %v521
  %658 = vmatprep.subr.bf16.mxu0 0
  %659 = vmatpush1.bf16.msra.mxu0 %v522
  %660 = vmatprep.subr.bf16.mxu0 0
  %661 = vmatpush1.bf16.msra.mxu0 %v523
  %662 = vmatprep.subr.bf16.mxu0 0
  %663 = vmatpush1.bf16.msra.mxu0 %v524
  %664 = vmatprep.subr.bf16.mxu0 0
  %665 = vmatpush1.bf16.msra.mxu0 %v525
  %666 = vmatprep.subr.bf16.mxu0 0
  %667 = vmatpush1.bf16.msra.mxu0 %v526
  %668 = vmatprep.subr.bf16.mxu0 0
  %669 = vmatpush1.bf16.msra.mxu0 %v527
  %670 = vmatprep.subr.bf16.mxu0 0
  %671 = vmatpush1.bf16.msra.mxu0 %v528
  %672 = vmatprep.subr.bf16.mxu0 0
  %673 = vmatpush1.bf16.msra.mxu0 %v529
  %674 = vmatprep.mubr.bf16.mxu0 %v227
  %675 = vmatmul.mubr.bf16.gmra.mrb[0].mxu0 %v226
  %v676 = vpop.f32.mrb[0].mxu0
  %v677 = vadd.f32 %v176, %v676
  %v678 = vpop.f32.mrb[0].mxu0
  %v679 = vpop.f32.mrb[0].mxu0
  %v680 = vadd.f32 %v176, %v679
  %v681 = vpop.f32.mrb[0].mxu0
  %682 = vmatprep.mubr.bf16.mxu0 %v235
  %683 = vmatmul.mubr.bf16.gmra.mrb[0].mxu0 %v234
  %v684 = vpop.f32.mrb[0].mxu0
  %v685 = vadd.f32 %v176, %v684
  %v686 = vpop.f32.mrb[0].mxu0
  %v687 = vpop.f32.mrb[0].mxu0
  %v688 = vadd.f32 %v176, %v687
  %v689 = vpop.f32.mrb[0].mxu0
  %690 = vdwg.mxu0
  %691 = vmatprep.subr.bf16.mxu0 0
  %692 = vmatpush1.bf16.msra.mxu0 %v530
  %693 = vmatprep.subr.bf16.mxu0 0
  %694 = vmatpush1.bf16.msra.mxu0 %v531
  %695 = vmatprep.subr.bf16.mxu0 0
  %696 = vmatpush1.bf16.msra.mxu0 %v532
  %697 = vmatprep.subr.bf16.mxu0 0
  %698 = vmatpush1.bf16.msra.mxu0 %v533
  %699 = vmatprep.subr.bf16.mxu0 0
  %700 = vmatpush1.bf16.msra.mxu0 %v534
  %701 = vmatprep.subr.bf16.mxu0 0
  %702 = vmatpush1.bf16.msra.mxu0 %v535
  %703 = vmatprep.subr.bf16.mxu0 0
  %704 = vmatpush1.bf16.msra.mxu0 %v536
  %705 = vmatprep.subr.bf16.mxu0 0
  %706 = vmatpush1.bf16.msra.mxu0 %v537
  %707 = vmatprep.subr.bf16.mxu0 0
  %708 = vmatpush1.bf16.msra.mxu0 %v538
  %709 = vmatprep.subr.bf16.mxu0 0
  %710 = vmatpush1.bf16.msra.mxu0 %v539
  %711 = vmatprep.subr.bf16.mxu0 0
  %712 = vmatpush1.bf16.msra.mxu0 %v540
  %713 = vmatprep.subr.bf16.mxu0 0
  %714 = vmatpush1.bf16.msra.mxu0 %v541
  %715 = vmatprep.subr.bf16.mxu0 0
  %716 = vmatpush1.bf16.msra.mxu0 %v542
  %717 = vmatprep.subr.bf16.mxu0 0
  %718 = vmatpush1.bf16.msra.mxu0 %v543
  %719 = vmatprep.subr.bf16.mxu0 0
  %720 = vmatpush1.bf16.msra.mxu0 %v544
  %721 = vmatprep.subr.bf16.mxu0 0
  %722 = vmatpush1.bf16.msra.mxu0 %v545
  %723 = vmatprep.mubr.bf16.mxu0 %v229
  %724 = vmatmul.mubr.bf16.gmra.mrb[0].mxu0 %v228
  %v725 = vpop.f32.mrb[0].mxu0
  %v726 = vadd.f32 %v677, %v725
  %v727 = vpop.f32.mrb[0].mxu0
  %v728 = vpop.f32.mrb[0].mxu0
  %v729 = vadd.f32 %v680, %v728
  %v730 = vpop.f32.mrb[0].mxu0
  %731 = vmatprep.mubr.bf16.mxu0 %v237
  %732 = vmatmul.mubr.bf16.gmra.mrb[0].mxu0 %v236
  %v733 = vpop.f32.mrb[0].mxu0
  %v734 = vadd.f32 %v685, %v733
  %v735 = vpop.f32.mrb[0].mxu0
  %v736 = vpop.f32.mrb[0].mxu0
  %v737 = vadd.f32 %v688, %v736
  %v738 = vpop.f32.mrb[0].mxu0
  %739 = vdwg.mxu0
  %740 = vmatprep.subr.bf16.mxu0 0
  %741 = vmatpush1.bf16.msra.mxu0 %v546
  %742 = vmatprep.subr.bf16.mxu0 0
  %743 = vmatpush1.bf16.msra.mxu0 %v547
  %744 = vmatprep.subr.bf16.mxu0 0
  %745 = vmatpush1.bf16.msra.mxu0 %v548
  %746 = vmatprep.subr.bf16.mxu0 0
  %747 = vmatpush1.bf16.msra.mxu0 %v549
  %748 = vmatprep.subr.bf16.mxu0 0
  %749 = vmatpush1.bf16.msra.mxu0 %v550
  %750 = vmatprep.subr.bf16.mxu0 0
  %751 = vmatpush1.bf16.msra.mxu0 %v551
  %752 = vmatprep.subr.bf16.mxu0 0
  %753 = vmatpush1.bf16.msra.mxu0 %v552
  %754 = vmatprep.subr.bf16.mxu0 0
  %755 = vmatpush1.bf16.msra.mxu0 %v553
  %756 = vmatprep.subr.bf16.mxu0 0
  %757 = vmatpush1.bf16.msra.mxu0 %v554
  %758 = vmatprep.subr.bf16.mxu0 0
  %759 = vmatpush1.bf16.msra.mxu0 %v555
  %760 = vmatprep.subr.bf16.mxu0 0
  %761 = vmatpush1.bf16.msra.mxu0 %v556
  %762 = vmatprep.subr.bf16.mxu0 0
  %763 = vmatpush1.bf16.msra.mxu0 %v557
  %764 = vmatprep.subr.bf16.mxu0 0
  %765 = vmatpush1.bf16.msra.mxu0 %v558
  %766 = vmatprep.subr.bf16.mxu0 0
  %767 = vmatpush1.bf16.msra.mxu0 %v559
  %768 = vmatprep.subr.bf16.mxu0 0
  %769 = vmatpush1.bf16.msra.mxu0 %v560
  %770 = vmatprep.subr.bf16.mxu0 0
  %771 = vmatpush1.bf16.msra.mxu0 %v561
  %772 = vmatprep.mubr.bf16.mxu0 %v231
  %773 = vmatmul.mubr.bf16.gmra.mrb[0].mxu0 %v230
  %v774 = vpop.f32.mrb[0].mxu0
  %v775 = vadd.f32 %v726, %v774
  %v776 = vpop.f32.mrb[0].mxu0
  %v777 = vpop.f32.mrb[0].mxu0
  %v778 = vadd.f32 %v729, %v777
  %v779 = vpop.f32.mrb[0].mxu0
  %780 = vmatprep.mubr.bf16.mxu0 %v239
  %781 = vmatmul.mubr.bf16.gmra.mrb[0].mxu0 %v238
  %v782 = vpop.f32.mrb[0].mxu0
  %v783 = vadd.f32 %v734, %v782
  %v784 = vpop.f32.mrb[0].mxu0
  %v785 = vpop.f32.mrb[0].mxu0
  %v786 = vadd.f32 %v737, %v785
  %v787 = vpop.f32.mrb[0].mxu0
  %788 = vdwg.mxu0
  %789 = vmatprep.subr.bf16.mxu0 0
  %790 = vmatpush1.bf16.msra.mxu0 %v562
  %791 = vmatprep.subr.bf16.mxu0 0
  %792 = vmatpush1.bf16.msra.mxu0 %v563
  %793 = vmatprep.subr.bf16.mxu0 0
  %794 = vmatpush1.bf16.msra.mxu0 %v564
  %795 = vmatprep.subr.bf16.mxu0 0
  %796 = vmatpush1.bf16.msra.mxu0 %v565
  %797 = vmatprep.subr.bf16.mxu0 0
  %798 = vmatpush1.bf16.msra.mxu0 %v566
  %799 = vmatprep.subr.bf16.mxu0 0
  %800 = vmatpush1.bf16.msra.mxu0 %v567
  %801 = vmatprep.subr.bf16.mxu0 0
  %802 = vmatpush1.bf16.msra.mxu0 %v568
  %803 = vmatprep.subr.bf16.mxu0 0
  %804 = vmatpush1.bf16.msra.mxu0 %v569
  %805 = vmatprep.subr.bf16.mxu0 0
  %806 = vmatpush1.bf16.msra.mxu0 %v570
  %807 = vmatprep.subr.bf16.mxu0 0
  %808 = vmatpush1.bf16.msra.mxu0 %v571
  %809 = vmatprep.subr.bf16.mxu0 0
  %810 = vmatpush1.bf16.msra.mxu0 %v572
  %811 = vmatprep.subr.bf16.mxu0 0
  %812 = vmatpush1.bf16.msra.mxu0 %v573
  %813 = vmatprep.subr.bf16.mxu0 0
  %814 = vmatpush1.bf16.msra.mxu0 %v574
  %815 = vmatprep.subr.bf16.mxu0 0
  %816 = vmatpush1.bf16.msra.mxu0 %v575
  %817 = vmatprep.subr.bf16.mxu0 0
  %818 = vmatpush1.bf16.msra.mxu0 %v576
  %819 = vmatprep.subr.bf16.mxu0 0
  %820 = vmatpush1.bf16.msra.mxu0 %v577
  %821 = vmatprep.mubr.bf16.mxu0 %v233
  %822 = vmatmul.mubr.bf16.gmra.mrb[0].mxu0 %v232
  %v823 = vpop.f32.mrb[0].mxu0
  %v824 = vadd.f32 %v775, %v823
  %v825 = vpop.f32.mrb[0].mxu0
  %v826 = vpop.f32.mrb[0].mxu0
  %v827 = vadd.f32 %v778, %v826
  %v828 = vpop.f32.mrb[0].mxu0
  %829 = vmatprep.mubr.bf16.mxu0 %v241
  %830 = vmatmul.mubr.bf16.gmra.mrb[0].mxu0 %v240
  %v831 = vpop.f32.mrb[0].mxu0
  %v832 = vadd.f32 %v783, %v831
  %v833 = vpop.f32.mrb[0].mxu0
  %v834 = vpop.f32.mrb[0].mxu0
  %v835 = vadd.f32 %v786, %v834
  %v836 = vpop.f32.mrb[0].mxu0
  %837 = vdwg.mxu0
  %vm838 = vcmask 7168
  %839 = vst.msk [vmem:[%s5] sm:$0xff] %vm838, %v824
  %840 = vst.msk [vmem:[%s5 + $0x8] sm:$0xff] %vm838, %v827
  %841 = vst.msk [vmem:[%s5 + $0x10] sm:$0xff] %vm838, %v832
  %842 = vst.msk [vmem:[%s5 + $0x18] sm:$0xff] %vm838, %v835
  // Predicated region
  $region22: #{multiscale_discriminator_forward.29} parent=0 // pred_check
    _
  $region23: #{multiscale_discriminator_forward.29} parent=0 // pred_check_branch
    %844 = sbr.rel (0) target = $region25
  $region24: #{multiscale_discriminator_forward.29} parent=0 // pred_region
    _
  $region25: #{multiscale_discriminator_forward.29} parent=0 // pred_fallthru
    _
  // Predicated region
  $region26: #{multiscale_discriminator_forward.29} parent=0 // pred_check
    _
  $region27: #{multiscale_discriminator_forward.29} parent=0 // pred_check_branch
    %846 = sbr.rel (0) target = $region29
  $region28: #{multiscale_discriminator_forward.29} parent=0 // pred_region
    _
  $region29: #{multiscale_discriminator_forward.29} parent=0 // pred_fallthru
    _

// kernel: multiscale_discriminator_forward.20
$region0: #{multiscale_discriminator_forward.20}
  #allocation0 [shape = 'u32[]', space=smem, size = 0x4, offset = 0x4, fixed_abs, tag = 'smem constant byte address 0x4 - core index']
  #allocation1 [shape = 'u32[144,128]{1,0:T(1,128)}', space=vmem, size = 0x12000, scoped, tag = 'internal scratch']
  %s0 = inlined_call_operand.vmem [shape: bf16[162,48], index: 0, kind: input, shape index: {}]
  %s1 = inlined_call_operand.vmem [shape: bf16[48,8], index: 1, kind: input, shape index: {}]
  %s2 = inlined_call_operand.vmem [shape: f32[1,8], index: 2, kind: input, shape index: {}]
  %s3 = inlined_call_operand.vmem [shape: f32[1,8], index: 3, kind: input, shape index: {}]
  %s4 = inlined_call_operand.vmem [shape: f32[1,8], index: 4, kind: input, shape index: {}]
  %s5 = inlined_call_operand.vmem [shape: f32[162,8], index: 5, kind: output, shape index: {}]
  %s6 = sld [smem:[#allocation0]]
  $region30: #{multiscale_discriminator_forward.20} parent=0
    _
  %s8 = ssub.s32 1, %s6
  %s9 = scalar_select 0, %s8, %s6
  // Predicated region
  $region2: #{multiscale_discriminator_forward.20} parent=0 // pred_check
    _
  $region3: #{multiscale_discriminator_forward.20} parent=0 // pred_check_branch
    %11 = sbr.rel (0) target = $region5
  $region4: #{multiscale_discriminator_forward.20} parent=0 // pred_region
    _
  $region5: #{multiscale_discriminator_forward.20} parent=0 // pred_fallthru
    _
  // Predicated region
  $region6: #{multiscale_discriminator_forward.20} parent=0 // pred_check
    _
  $region7: #{multiscale_discriminator_forward.20} parent=0 // pred_check_branch
    %13 = sbr.rel (0) target = $region9
  $region8: #{multiscale_discriminator_forward.20} parent=0 // pred_region
    _
  $region9: #{multiscale_discriminator_forward.20} parent=0 // pred_fallthru
    _
  // Predicated region
  $region10: #{multiscale_discriminator_forward.20} parent=0 // pred_check
    _
  $region11: #{multiscale_discriminator_forward.20} parent=0 // pred_check_branch
    %15 = sbr.rel (0) target = $region13
  $region12: #{multiscale_discriminator_forward.20} parent=0 // pred_region
    _
  $region13: #{multiscale_discriminator_forward.20} parent=0 // pred_fallthru
    _
  // Predicated region
  $region14: #{multiscale_discriminator_forward.20} parent=0 // pred_check
    _
  $region15: #{multiscale_discriminator_forward.20} parent=0 // pred_check_branch
    %17 = sbr.rel (0) target = $region17
  $region16: #{multiscale_discriminator_forward.20} parent=0 // pred_region
    _
  $region17: #{multiscale_discriminator_forward.20} parent=0 // pred_fallthru
    _
  // Predicated region
  $region18: #{multiscale_discriminator_forward.20} parent=0 // pred_check
    _
  $region19: #{multiscale_discriminator_forward.20} parent=0 // pred_check_branch
    %19 = sbr.rel (0) target = $region21
  $region20: #{multiscale_discriminator_forward.20} parent=0 // pred_region
    _
  $region21: #{multiscale_discriminator_forward.20} parent=0 // pred_fallthru
    _
  %v21 = vld [vmem:[%s0] sm:$0xf]
  %v22 = vld [vmem:[%s0 + $0x4] sm:$0xf]
  %v23 = vld [vmem:[%s0 + $0x8] sm:$0xf]
  %v24 = vld [vmem:[%s0 + $0xc] sm:$0xf]
  %v25 = vld [vmem:[%s0 + $0x10] sm:$0xf]
  %v26 = vld [vmem:[%s0 + $0x14] sm:$0xf]
  %v27 = vld [vmem:[%s0 + $0x18] sm:$0xf]
  %v28 = vld [vmem:[%s0 + $0x1c] sm:$0xf]
  %v29 = vld [vmem:[%s0 + $0x20] sm:$0xf]
  %v30 = vld [vmem:[%s0 + $0x24] sm:$0xf]
  %v31 = vld [vmem:[%s0 + $0x28] sm:$0xf]
  %v32 = vld [vmem:[%s0 + $0x2c] sm:$0xf]
  %v33 = vld [vmem:[%s0 + $0x30] sm:$0xf]
  %v34 = vld [vmem:[%s0 + $0x34] sm:$0xf]
  %v35 = vld [vmem:[%s0 + $0x38] sm:$0xf]
  %v36 = vld [vmem:[%s0 + $0x3c] sm:$0xf]
  %v37 = vld [vmem:[%s0 + $0x40] sm:$0xf]
  %v38 = vld [vmem:[%s0 + $0x44] sm:$0xf]
  %v39 = vld [vmem:[%s0 + $0x48] sm:$0xf]
  %v40 = vld [vmem:[%s0 + $0x4c] sm:$0xf]
  %v41 = vld [vmem:[%s0 + $0x50] sm:$0x1]
  %v42 = vld [vmem:[%s1] sm:$0xf]
  %v43 = vld [vmem:[%s1 + $0x4] sm:$0xf]
  %v44 = vld [vmem:[%s1 + $0x8] sm:$0xf]
  %v45 = vld [vmem:[%s1 + $0xc] sm:$0xf]
  %v46 = vld [vmem:[%s1 + $0x10] sm:$0xf]
  %v47 = vld [vmem:[%s1 + $0x14] sm:$0xf]
  %v48 = vld [vmem:[%s2] sm:$0x1]
  %v50 = vlaneseq
  %v51 = vshrl.u32 %v50, 7
  %v52 = vsub.s32 0, %v51
  %v53 = vrot.slane %v48, %v52
  %v76 = vunpack.c.l.b16 %v21
  %v77 = vunpack.c.l.b16 %v22
  %v78 = vunpack.c.l.b16 %v23
  %v79 = vunpack.c.l.b16 %v24
  %v80 = vunpack.c.l.b16 %v25
  %v81 = vunpack.c.l.b16 %v26
  %v82 = vunpack.c.l.b16 %v27
  %v83 = vunpack.c.l.b16 %v28
  %v84 = vunpack.c.l.b16 %v29
  %v85 = vunpack.c.l.b16 %v30
  %v86 = vunpack.c.l.b16 %v31
  %v87 = vunpack.c.l.b16 %v32
  %v88 = vunpack.c.l.b16 %v33
  %v89 = vunpack.c.l.b16 %v34
  %v90 = vunpack.c.l.b16 %v35
  %v91 = vunpack.c.l.b16 %v36
  %v92 = vunpack.c.l.b16 %v37
  %v93 = vunpack.c.l.b16 %v38
  %v94 = vunpack.c.l.b16 %v39
  %v95 = vunpack.c.l.b16 %v40
  %v96 = vunpack.c.l.b16 %v41
  %v97 = vpack.c.b16 %v77, %v76
  %v98 = vpack.c.b16 %v79, %v78
  %v99 = vpack.c.b16 %v81, %v80
  %v100 = vpack.c.b16 %v83, %v82
  %v101 = vpack.c.b16 %v85, %v84
  %v102 = vpack.c.b16 %v87, %v86
  %v103 = vpack.c.b16 %v89, %v88
  %v104 = vpack.c.b16 %v91, %v90
  %v105 = vpack.c.b16 %v93, %v92
  %v106 = vpack.c.b16 %v95, %v94
  %v107 = vpack.c.b16 %v96, %v96
  %v114 = vunpack.c.l.b16 %v42
  %v115 = vunpack.c.l.b16 %v43
  %v116 = vunpack.c.l.b16 %v44
  %v117 = vunpack.c.l.b16 %v45
  %v118 = vunpack.c.l.b16 %v46
  %v119 = vunpack.c.l.b16 %v47
  %v120 = vpack.c.b16 %v115, %v114
  %v121 = vpack.c.b16 %v117, %v116
  %v122 = vpack.c.b16 %v119, %v118
  %vm126 = vcmask 392192
  %v128 = vsel %vm126, %v97, 0
  %v131 = vsel %vm126, %v98, 0
  %v134 = vsel %vm126, %v99, 0
  %v137 = vsel %vm126, %v100, 0
  %v140 = vsel %vm126, %v101, 0
  %v143 = vsel %vm126, %v102, 0
  %v146 = vsel %vm126, %v103, 0
  %v149 = vsel %vm126, %v104, 0
  %v152 = vsel %vm126, %v105, 0
  %v155 = vsel %vm126, %v106, 0
  %v158 = vsel %vm126, %v107, 0
  %160 = vmatprep.subr.bf16.mxu0 0
  %161 = vmatpush1.bf16.msra.mxu0 %v120
  %162 = vmatprep.subr.bf16.mxu0 0
  %163 = vmatpush1.bf16.msra.mxu0 %v121
  %164 = vmatprep.subr.bf16.mxu0 0
  %165 = vmatpush1.bf16.msra.mxu0 %v122
  %166 = vmatprep.subr.bf16.mxu0 0
  %167 = vmatpush1.bf16.msra.mxu0 0
  %168 = vmatprep.subr.bf16.mxu0 0
  %169 = vmatpush1.bf16.msra.mxu0 0
  %170 = vmatprep.subr.bf16.mxu0 0
  %171 = vmatpush1.bf16.msra.mxu0 0
  %172 = vmatprep.subr.bf16.mxu0 0
  %173 = vmatpush1.bf16.msra.mxu0 0
  %174 = vmatprep.subr.bf16.mxu0 0
  %175 = vmatpush1.bf16.msra.mxu0 0
  %176 = vmatprep.subr.bf16.mxu0 0
  %177 = vmatpush1.bf16.msra.mxu0 0
  %178 = vmatprep.subr.bf16.mxu0 0
  %179 = vmatpush1.bf16.msra.mxu0 0
  %180 = vmatprep.subr.bf16.mxu0 0
  %181 = vmatpush1.bf16.msra.mxu0 0
  %182 = vmatprep.subr.bf16.mxu0 0
  %183 = vmatpush1.bf16.msra.mxu0 0
  %184 = vmatprep.subr.bf16.mxu0 0
  %185 = vmatpush1.bf16.msra.mxu0 0
  %186 = vmatprep.subr.bf16.mxu0 0
  %187 = vmatpush1.bf16.msra.mxu0 0
  %188 = vmatprep.subr.bf16.mxu0 0
  %189 = vmatpush1.bf16.msra.mxu0 0
  %190 = vmatprep.subr.bf16.mxu0 0
  %191 = vmatpush1.bf16.msra.mxu0 0
  %192 = vmatprep.mubr.bf16.mxu0 0
  %193 = vmatmul.mubr.bf16.gmra.mrb[0].mxu0 %v128
  %v194 = vpop.f32.mrb[0].mxu0
  %v195 = vadd.f32 %v53, %v194
  %v196 = vpop.f32.mrb[0].mxu0
  %v197 = vpop.f32.mrb[0].mxu0
  %v198 = vadd.f32 %v53, %v197
  %v199 = vpop.f32.mrb[0].mxu0
  %200 = vmatprep.mubr.bf16.mxu0 0
  %201 = vmatmul.mubr.bf16.gmra.mrb[0].mxu0 %v131
  %v202 = vpop.f32.mrb[0].mxu0
  %v203 = vadd.f32 %v53, %v202
  %v204 = vpop.f32.mrb[0].mxu0
  %v205 = vpop.f32.mrb[0].mxu0
  %v206 = vadd.f32 %v53, %v205
  %v207 = vpop.f32.mrb[0].mxu0
  %208 = vmatprep.mubr.bf16.mxu0 0
  %209 = vmatmul.mubr.bf16.gmra.mrb[0].mxu0 %v134
  %v210 = vpop.f32.mrb[0].mxu0
  %v211 = vadd.f32 %v53, %v210
  %v212 = vpop.f32.mrb[0].mxu0
  %v213 = vpop.f32.mrb[0].mxu0
  %v214 = vadd.f32 %v53, %v213
  %v215 = vpop.f32.mrb[0].mxu0
  %216 = vmatprep.mubr.bf16.mxu0 0
  %217 = vmatmul.mubr.bf16.gmra.mrb[0].mxu0 %v137
  %v218 = vpop.f32.mrb[0].mxu0
  %v219 = vadd.f32 %v53, %v218
  %v220 = vpop.f32.mrb[0].mxu0
  %v221 = vpop.f32.mrb[0].mxu0
  %v222 = vadd.f32 %v53, %v221
  %v223 = vpop.f32.mrb[0].mxu0
  %224 = vmatprep.mubr.bf16.mxu0 0
  %225 = vmatmul.mubr.bf16.gmra.mrb[0].mxu0 %v140
  %v226 = vpop.f32.mrb[0].mxu0
  %v227 = vadd.f32 %v53, %v226
  %v228 = vpop.f32.mrb[0].mxu0
  %v229 = vpop.f32.mrb[0].mxu0
  %v230 = vadd.f32 %v53, %v229
  %v231 = vpop.f32.mrb[0].mxu0
  %232 = vmatprep.mubr.bf16.mxu0 0
  %233 = vmatmul.mubr.bf16.gmra.mrb[0].mxu0 %v143
  %v234 = vpop.f32.mrb[0].mxu0
  %v235 = vadd.f32 %v53, %v234
  %v236 = vpop.f32.mrb[0].mxu0
  %v237 = vpop.f32.mrb[0].mxu0
  %v238 = vadd.f32 %v53, %v237
  %v239 = vpop.f32.mrb[0].mxu0
  %240 = vmatprep.mubr.bf16.mxu0 0
  %241 = vmatmul.mubr.bf16.gmra.mrb[0].mxu0 %v146
  %v242 = vpop.f32.mrb[0].mxu0
  %v243 = vadd.f32 %v53, %v242
  %v244 = vpop.f32.mrb[0].mxu0
  %v245 = vpop.f32.mrb[0].mxu0
  %v246 = vadd.f32 %v53, %v245
  %v247 = vpop.f32.mrb[0].mxu0
  %248 = vmatprep.mubr.bf16.mxu0 0
  %249 = vmatmul.mubr.bf16.gmra.mrb[0].mxu0 %v149
  %v250 = vpop.f32.mrb[0].mxu0
  %v251 = vadd.f32 %v53, %v250
  %v252 = vpop.f32.mrb[0].mxu0
  %v253 = vpop.f32.mrb[0].mxu0
  %v254 = vadd.f32 %v53, %v253
  %v255 = vpop.f32.mrb[0].mxu0
  %256 = vmatprep.mubr.bf16.mxu0 0
  %257 = vmatmul.mubr.bf16.gmra.mrb[0].mxu0 %v152
  %v258 = vpop.f32.mrb[0].mxu0
  %v259 = vadd.f32 %v53, %v258
  %v260 = vpop.f32.mrb[0].mxu0
  %v261 = vpop.f32.mrb[0].mxu0
  %v262 = vadd.f32 %v53, %v261
  %v263 = vpop.f32.mrb[0].mxu0
  %264 = vmatprep.mubr.bf16.mxu0 0
  %265 = vmatmul.mubr.bf16.gmra.mrb[0].mxu0 %v155
  %v266 = vpop.f32.mrb[0].mxu0
  %v267 = vadd.f32 %v53, %v266
  %v268 = vpop.f32.mrb[0].mxu0
  %v269 = vpop.f32.mrb[0].mxu0
  %v270 = vadd.f32 %v53, %v269
  %v271 = vpop.f32.mrb[0].mxu0
  %272 = vmatprep.mubr.bf16.mxu0 0
  %273 = vmatmul.mubr.bf16.gmra.mrb[0].mxu0 %v158
  %v274 = vpop.f32.mrb[0].mxu0
  %v275 = vadd.f32 %v53, %v274
  %v276 = vpop.f32.mrb[0].mxu0
  %v277 = vpop.f32.mrb[0].mxu0
  %v278 = vpop.f32.mrb[0].mxu0
  %279 = vdwg.mxu0
  %vm280 = vcmp.ge.f32.partialorder %v195, 0.0
  %vm281 = vcmp.ge.f32.partialorder %v198, 0.0
  %vm282 = vcmp.ge.f32.partialorder %v203, 0.0
  %vm283 = vcmp.ge.f32.partialorder %v206, 0.0
  %vm284 = vcmp.ge.f32.partialorder %v211, 0.0
  %vm285 = vcmp.ge.f32.partialorder %v214, 0.0
  %vm286 = vcmp.ge.f32.partialorder %v219, 0.0
  %vm287 = vcmp.ge.f32.partialorder %v222, 0.0
  %vm288 = vcmp.ge.f32.partialorder %v227, 0.0
  %vm289 = vcmp.ge.f32.partialorder %v230, 0.0
  %vm290 = vcmp.ge.f32.partialorder %v235, 0.0
  %vm291 = vcmp.ge.f32.partialorder %v238, 0.0
  %vm292 = vcmp.ge.f32.partialorder %v243, 0.0
  %vm293 = vcmp.ge.f32.partialorder %v246, 0.0
  %vm294 = vcmp.ge.f32.partialorder %v251, 0.0
  %vm295 = vcmp.ge.f32.partialorder %v254, 0.0
  %vm296 = vcmp.ge.f32.partialorder %v259, 0.0
  %vm297 = vcmp.ge.f32.partialorder %v262, 0.0
  %vm298 = vcmp.ge.f32.partialorder %v267, 0.0
  %vm299 = vcmp.ge.f32.partialorder %v270, 0.0
  %vm300 = vcmp.ge.f32.partialorder %v275, 0.0
  %v301 = vmul.f32 %v195, 0.2
  %v302 = vmul.f32 %v198, 0.2
  %v303 = vmul.f32 %v203, 0.2
  %v304 = vmul.f32 %v206, 0.2
  %v305 = vmul.f32 %v211, 0.2
  %v306 = vmul.f32 %v214, 0.2
  %v307 = vmul.f32 %v219, 0.2
  %v308 = vmul.f32 %v222, 0.2
  %v309 = vmul.f32 %v227, 0.2
  %v310 = vmul.f32 %v230, 0.2
  %v311 = vmul.f32 %v235, 0.2
  %v312 = vmul.f32 %v238, 0.2
  %v313 = vmul.f32 %v243, 0.2
  %v314 = vmul.f32 %v246, 0.2
  %v315 = vmul.f32 %v251, 0.2
  %v316 = vmul.f32 %v254, 0.2
  %v317 = vmul.f32 %v259, 0.2
  %v318 = vmul.f32 %v262, 0.2
  %v319 = vmul.f32 %v267, 0.2
  %v320 = vmul.f32 %v270, 0.2
  %v321 = vmul.f32 %v275, 0.2
  %v322 = vsel %vm280, %v195, %v301
  %v323 = vsel %vm281, %v198, %v302
  %v324 = vsel %vm282, %v203, %v303
  %v325 = vsel %vm283, %v206, %v304
  %v326 = vsel %vm284, %v211, %v305
  %v327 = vsel %vm285, %v214, %v306
  %v328 = vsel %vm286, %v219, %v307
  %v329 = vsel %vm287, %v222, %v308
  %v330 = vsel %vm288, %v227, %v309
  %v331 = vsel %vm289, %v230, %v310
  %v332 = vsel %vm290, %v235, %v311
  %v333 = vsel %vm291, %v238, %v312
  %v334 = vsel %vm292, %v243, %v313
  %v335 = vsel %vm293, %v246, %v314
  %v336 = vsel %vm294, %v251, %v315
  %v337 = vsel %vm295, %v254, %v316
  %v338 = vsel %vm296, %v259, %v317
  %v339 = vsel %vm297, %v262, %v318
  %v340 = vsel %vm298, %v267, %v319
  %v341 = vsel %vm299, %v270, %v320
  %v342 = vsel %vm300, %v275, %v321
  %vm343 = vcmask 64512
  %344 = vst.msk [vmem:[%s5] sm:$0xff] %vm343, %v322
  %345 = vst.msk [vmem:[%s5 + $0x8] sm:$0xff] %vm343, %v323
  %346 = vst.msk [vmem:[%s5 + $0x10] sm:$0xff] %vm343, %v324
  %347 = vst.msk [vmem:[%s5 + $0x18] sm:$0xff] %vm343, %v325
  %348 = vst.msk [vmem:[%s5 + $0x20] sm:$0xff] %vm343, %v326
  %349 = vst.msk [vmem:[%s5 + $0x28] sm:$0xff] %vm343, %v327
  %350 = vst.msk [vmem:[%s5 + $0x30] sm:$0xff] %vm343, %v328
  %351 = vst.msk [vmem:[%s5 + $0x38] sm:$0xff] %vm343, %v329
  %352 = vst.msk [vmem:[%s5 + $0x40] sm:$0xff] %vm343, %v330
  %353 = vst.msk [vmem:[%s5 + $0x48] sm:$0xff] %vm343, %v331
  %354 = vst.msk [vmem:[%s5 + $0x50] sm:$0xff] %vm343, %v332
  %355 = vst.msk [vmem:[%s5 + $0x58] sm:$0xff] %vm343, %v333
  %356 = vst.msk [vmem:[%s5 + $0x60] sm:$0xff] %vm343, %v334
  %357 = vst.msk [vmem:[%s5 + $0x68] sm:$0xff] %vm343, %v335
  %358 = vst.msk [vmem:[%s5 + $0x70] sm:$0xff] %vm343, %v336
  %359 = vst.msk [vmem:[%s5 + $0x78] sm:$0xff] %vm343, %v337
  %360 = vst.msk [vmem:[%s5 + $0x80] sm:$0xff] %vm343, %v338
  %361 = vst.msk [vmem:[%s5 + $0x88] sm:$0xff] %vm343, %v339
  %362 = vst.msk [vmem:[%s5 + $0x90] sm:$0xff] %vm343, %v340
  %363 = vst.msk [vmem:[%s5 + $0x98] sm:$0xff] %vm343, %v341
  %vm364 = vcmask 58368
  %365 = vst.msk [vmem:[%s5 + $0xa0] sm:$0x3] %vm364, %v342
  // Predicated region
  $region22: #{multiscale_discriminator_forward.20} parent=0 // pred_check
    _
  $region23: #{multiscale_discriminator_forward.20} parent=0 // pred_check_branch
    %367 = sbr.rel (0) target = $region25
  $region24: #{multiscale_discriminator_forward.20} parent=0 // pred_region
    _
  $region25: #{multiscale_discriminator_forward.20} parent=0 // pred_fallthru
    _
  // Predicated region
  $region26: #{multiscale_discriminator_forward.20} parent=0 // pred_check
    _
  $region27: #{multiscale_discriminator_forward.20} parent=0 // pred_check_branch
    %369 = sbr.rel (0) target = $region29
  $region28: #{multiscale_discriminator_forward.20} parent=0 // pred_region
    _
  $region29: #{multiscale_discriminator_forward.20} parent=0 // pred_fallthru
    _

// kernel: multiscale_discriminator_forward.21
$region0: #{multiscale_discriminator_forward.21}
  #allocation0 [shape = 'u32[]', space=smem, size = 0x4, offset = 0x4, fixed_abs, tag = 'smem constant byte address 0x4 - core index']
  #allocation1 [shape = 'u32[144,128]{1,0:T(1,128)}', space=vmem, size = 0x12000, scoped, tag = 'internal scratch']
  %s0 = inlined_call_operand.vmem [shape: bf16[50,128], index: 0, kind: input, shape index: {}]
  %s1 = inlined_call_operand.vmem [shape: bf16[128,16], index: 1, kind: input, shape index: {}]
  %s2 = inlined_call_operand.vmem [shape: f32[1,16], index: 2, kind: input, shape index: {}]
  %s3 = inlined_call_operand.vmem [shape: f32[1,16], index: 3, kind: input, shape index: {}]
  %s4 = inlined_call_operand.vmem [shape: f32[1,16], index: 4, kind: input, shape index: {}]
  %s5 = inlined_call_operand.vmem [shape: f32[50,16], index: 5, kind: output, shape index: {}]
  %s6 = sld [smem:[#allocation0]]
  $region30: #{multiscale_discriminator_forward.21} parent=0
    _
  %s8 = ssub.s32 1, %s6
  %s9 = scalar_select 0, %s8, %s6
  // Predicated region
  $region2: #{multiscale_discriminator_forward.21} parent=0 // pred_check
    _
  $region3: #{multiscale_discriminator_forward.21} parent=0 // pred_check_branch
    %11 = sbr.rel (0) target = $region5
  $region4: #{multiscale_discriminator_forward.21} parent=0 // pred_region
    _
  $region5: #{multiscale_discriminator_forward.21} parent=0 // pred_fallthru
    _
  // Predicated region
  $region6: #{multiscale_discriminator_forward.21} parent=0 // pred_check
    _
  $region7: #{multiscale_discriminator_forward.21} parent=0 // pred_check_branch
    %13 = sbr.rel (0) target = $region9
  $region8: #{multiscale_discriminator_forward.21} parent=0 // pred_region
    _
  $region9: #{multiscale_discriminator_forward.21} parent=0 // pred_fallthru
    _
  // Predicated region
  $region10: #{multiscale_discriminator_forward.21} parent=0 // pred_check
    _
  $region11: #{multiscale_discriminator_forward.21} parent=0 // pred_check_branch
    %15 = sbr.rel (0) target = $region13
  $region12: #{multiscale_discriminator_forward.21} parent=0 // pred_region
    _
  $region13: #{multiscale_discriminator_forward.21} parent=0 // pred_fallthru
    _
  // Predicated region
  $region14: #{multiscale_discriminator_forward.21} parent=0 // pred_check
    _
  $region15: #{multiscale_discriminator_forward.21} parent=0 // pred_check_branch
    %17 = sbr.rel (0) target = $region17
  $region16: #{multiscale_discriminator_forward.21} parent=0 // pred_region
    _
  $region17: #{multiscale_discriminator_forward.21} parent=0 // pred_fallthru
    _
  // Predicated region
  $region18: #{multiscale_discriminator_forward.21} parent=0 // pred_check
    _
  $region19: #{multiscale_discriminator_forward.21} parent=0 // pred_check_branch
    %19 = sbr.rel (0) target = $region21
  $region20: #{multiscale_discriminator_forward.21} parent=0 // pred_region
    _
  $region21: #{multiscale_discriminator_forward.21} parent=0 // pred_fallthru
    _
  %v21 = vld [vmem:[%s0] sm:$0xf]
  %v22 = vld [vmem:[%s0 + $0x4] sm:$0xf]
  %v23 = vld [vmem:[%s0 + $0x8] sm:$0xf]
  %v24 = vld [vmem:[%s0 + $0xc] sm:$0xf]
  %v25 = vld [vmem:[%s0 + $0x10] sm:$0xf]
  %v26 = vld [vmem:[%s0 + $0x14] sm:$0xf]
  %v27 = vld [vmem:[%s0 + $0x18] sm:$0x1]
  %v28 = vld [vmem:[%s1] sm:$0xf]
  %v29 = vld [vmem:[%s1 + $0x4] sm:$0xf]
  %v30 = vld [vmem:[%s1 + $0x8] sm:$0xf]
  %v31 = vld [vmem:[%s1 + $0xc] sm:$0xf]
  %v32 = vld [vmem:[%s1 + $0x10] sm:$0xf]
  %v33 = vld [vmem:[%s1 + $0x14] sm:$0xf]
  %v34 = vld [vmem:[%s1 + $0x18] sm:$0xf]
  %v35 = vld [vmem:[%s1 + $0x1c] sm:$0xf]
  %v36 = vld [vmem:[%s1 + $0x20] sm:$0xf]
  %v37 = vld [vmem:[%s1 + $0x24] sm:$0xf]
  %v38 = vld [vmem:[%s1 + $0x28] sm:$0xf]
  %v39 = vld [vmem:[%s1 + $0x2c] sm:$0xf]
  %v40 = vld [vmem:[%s1 + $0x30] sm:$0xf]
  %v41 = vld [vmem:[%s1 + $0x34] sm:$0xf]
  %v42 = vld [vmem:[%s1 + $0x38] sm:$0xf]
  %v43 = vld [vmem:[%s1 + $0x3c] sm:$0xf]
  %v44 = vld [vmem:[%s2] sm:$0x1]
  %v46 = vlaneseq
  %v47 = vshrl.u32 %v46, 7
  %v48 = vsub.s32 0, %v47
  %v49 = vrot.slane %v44, %v48
  %v58 = vunpack.c.l.b16 %v21
  %v59 = vunpack.c.l.b16 %v22
  %v60 = vunpack.c.l.b16 %v23
  %v61 = vunpack.c.l.b16 %v24
  %v62 = vunpack.c.l.b16 %v25
  %v63 = vunpack.c.l.b16 %v26
  %v64 = vunpack.c.l.b16 %v27
  %v65 = vpack.c.b16 %v59, %v58
  %v66 = vpack.c.b16 %v61, %v60
  %v67 = vpack.c.b16 %v63, %v62
  %v68 = vpack.c.b16 %v64, %v64
  %v89 = vunpack.c.l.b16 %v28
  %v90 = vunpack.c.l.b16 %v29
  %v91 = vunpack.c.l.b16 %v30
  %v92 = vunpack.c.l.b16 %v31
  %v93 = vunpack.c.l.b16 %v32
  %v94 = vunpack.c.l.b16 %v33
  %v95 = vunpack.c.l.b16 %v34
  %v96 = vunpack.c.l.b16 %v35
  %v97 = vunpack.c.l.b16 %v36
  %v98 = vunpack.c.l.b16 %v37
  %v99 = vunpack.c.l.b16 %v38
  %v100 = vunpack.c.l.b16 %v39
  %v101 = vunpack.c.l.b16 %v40
  %v102 = vunpack.c.l.b16 %v41
  %v103 = vunpack.c.l.b16 %v42
  %v104 = vunpack.c.l.b16 %v43
  %v105 = vpack.c.b16 %v90, %v89
  %v106 = vpack.c.b16 %v92, %v91
  %v107 = vpack.c.b16 %v94, %v93
  %v108 = vpack.c.b16 %v96, %v95
  %v109 = vpack.c.b16 %v98, %v97
  %v110 = vpack.c.b16 %v100, %v99
  %v111 = vpack.c.b16 %v102, %v101
  %v112 = vpack.c.b16 %v104, %v103
  %121 = vmatprep.subr.bf16.mxu0 0
  %122 = vmatpush1.bf16.msra.mxu0 %v105
  %123 = vmatprep.subr.bf16.mxu0 0
  %124 = vmatpush1.bf16.msra.mxu0 %v106
  %125 = vmatprep.subr.bf16.mxu0 0
  %126 = vmatpush1.bf16.msra.mxu0 %v107
  %127 = vmatprep.subr.bf16.mxu0 0
  %128 = vmatpush1.bf16.msra.mxu0 %v108
  %129 = vmatprep.subr.bf16.mxu0 0
  %130 = vmatpush1.bf16.msra.mxu0 %v109
  %131 = vmatprep.subr.bf16.mxu0 0
  %132 = vmatpush1.bf16.msra.mxu0 %v110
  %133 = vmatprep.subr.bf16.mxu0 0
  %134 = vmatpush1.bf16.msra.mxu0 %v111
  %135 = vmatprep.subr.bf16.mxu0 0
  %136 = vmatpush1.bf16.msra.mxu0 %v112
  %137 = vmatprep.subr.bf16.mxu0 0
  %138 = vmatpush1.bf16.msra.mxu0 0
  %139 = vmatprep.subr.bf16.mxu0 0
  %140 = vmatpush1.bf16.msra.mxu0 0
  %141 = vmatprep.subr.bf16.mxu0 0
  %142 = vmatpush1.bf16.msra.mxu0 0
  %143 = vmatprep.subr.bf16.mxu0 0
  %144 = vmatpush1.bf16.msra.mxu0 0
  %145 = vmatprep.subr.bf16.mxu0 0
  %146 = vmatpush1.bf16.msra.mxu0 0
  %147 = vmatprep.subr.bf16.mxu0 0
  %148 = vmatpush1.bf16.msra.mxu0 0
  %149 = vmatprep.subr.bf16.mxu0 0
  %150 = vmatpush1.bf16.msra.mxu0 0
  %151 = vmatprep.subr.bf16.mxu0 0
  %152 = vmatpush1.bf16.msra.mxu0 0
  %153 = vmatprep.mubr.bf16.mxu0 0
  %154 = vmatmul.mubr.bf16.gmra.mrb[0].mxu0 %v65
  %v155 = vpop.f32.mrb[0].mxu0
  %v156 = vadd.f32 %v49, %v155
  %v157 = vpop.f32.mrb[0].mxu0
  %v158 = vpop.f32.mrb[0].mxu0
  %v159 = vadd.f32 %v49, %v158
  %v160 = vpop.f32.mrb[0].mxu0
  %161 = vmatprep.mubr.bf16.mxu0 0
  %162 = vmatmul.mubr.bf16.gmra.mrb[0].mxu0 %v66
  %v163 = vpop.f32.mrb[0].mxu0
  %v164 = vadd.f32 %v49, %v163
  %v165 = vpop.f32.mrb[0].mxu0
  %v166 = vpop.f32.mrb[0].mxu0
  %v167 = vadd.f32 %v49, %v166
  %v168 = vpop.f32.mrb[0].mxu0
  %169 = vmatprep.mubr.bf16.mxu0 0
  %170 = vmatmul.mubr.bf16.gmra.mrb[0].mxu0 %v67
  %v171 = vpop.f32.mrb[0].mxu0
  %v172 = vadd.f32 %v49, %v171
  %v173 = vpop.f32.mrb[0].mxu0
  %v174 = vpop.f32.mrb[0].mxu0
  %v175 = vadd.f32 %v49, %v174
  %v176 = vpop.f32.mrb[0].mxu0
  %177 = vmatprep.mubr.bf16.mxu0 0
  %178 = vmatmul.mubr.bf16.gmra.mrb[0].mxu0 %v68
  %v179 = vpop.f32.mrb[0].mxu0
  %v180 = vadd.f32 %v49, %v179
  %v181 = vpop.f32.mrb[0].mxu0
  %v182 = vpop.f32.mrb[0].mxu0
  %v183 = vpop.f32.mrb[0].mxu0
  %184 = vdwg.mxu0
  %vm185 = vcmask 130048
  %v186 = vsel %vm185, %v156, 0.0
  %v187 = vsel %vm185, %v159, 0.0
  %v188 = vadd.f32 %v186, %v187
  %v189 = vsel %vm185, %v164, 0.0
  %v190 = vadd.f32 %v188, %v189
  %v191 = vsel %vm185, %v167, 0.0
  %v192 = vadd.f32 %v190, %v191
  %v193 = vsel %vm185, %v172, 0.0
  %v194 = vadd.f32 %v192, %v193
  %v195 = vsel %vm185, %v175, 0.0
  %v196 = vadd.f32 %v194, %v195
  %vm197 = vcmask 123904
  %v198 = vsel %vm197, %v180, 0.0
  %v199 = vadd.f32 %v196, %v198
  %v200 = vrot.slane %v199, 4
  %v201 = vadd.f32 %v199, %v200
  %v202 = vrot.slane %v201, 2
  %v203 = vadd.f32 %v201, %v202
  %v204 = vrot.slane %v203, 1
  %v205 = vadd.f32 %v203, %v204
  %v206 = vrcp.pop 50.0
  %v207 = vmul.f32 %v205, %v206
  %v208 = vsub.f32 %v156, %v207
  %v209 = vsub.f32 %v159, %v207
  %v210 = vsub.f32 %v164, %v207
  %v211 = vsub.f32 %v167, %v207
  %v212 = vsub.f32 %v172, %v207
  %v213 = vsub.f32 %v175, %v207
  %v214 = vsub.f32 %v180, %v207
  %v215 = vmul.f32 %v208, %v208
  %v216 = vmul.f32 %v209, %v209
  %v217 = vmul.f32 %v210, %v210
  %v218 = vmul.f32 %v211, %v211
  %v219 = vmul.f32 %v212, %v212
  %v220 = vmul.f32 %v213, %v213
  %v221 = vmul.f32 %v214, %v214
  %v222 = vsel %vm185, %v215, 0.0
  %v223 = vsel %vm185, %v216, 0.0
  %v224 = vadd.f32 %v222, %v223
  %v225 = vsel %vm185, %v217, 0.0
  %v226 = vadd.f32 %v224, %v225
  %v227 = vsel %vm185, %v218, 0.0
  %v228 = vadd.f32 %v226, %v227
  %v229 = vsel %vm185, %v219, 0.0
  %v230 = vadd.f32 %v228, %v229
  %v231 = vsel %vm185, %v220, 0.0
  %v232 = vadd.f32 %v230, %v231
  %v233 = vsel %vm197, %v221, 0.0
  %v234 = vadd.f32 %v232, %v233
  %v235 = vrot.slane %v234, 4
  %v236 = vadd.f32 %v234, %v235
  %v237 = vrot.slane %v236, 2
  %v238 = vadd.f32 %v236, %v237
  %v239 = vrot.slane %v238, 1
  %v240 = vadd.f32 %v238, %v239
  %v241 = vmul.f32 %v240, %v206
  %v242 = vadd.f32 %v241, 1e-05
  %v243 = vrsqrt.pop %v242
  %v244 = vmul.f32 %v208, %v243
  %v245 = vmul.f32 %v209, %v243
  %v246 = vmul.f32 %v210, %v243
  %v247 = vmul.f32 %v211, %v243
  %v248 = vmul.f32 %v212, %v243
  %v249 = vmul.f32 %v213, %v243
  %v250 = vmul.f32 %v214, %v243
  %v251 = vld [vmem:[%s3] sm:$0x1]
  %v253 = vlaneseq
  %v254 = vshrl.u32 %v253, 7
  %v255 = vsub.s32 0, %v254
  %v256 = vrot.slane %v251, %v255
  %v258 = vmul.f32 %v244, %v256
  %v259 = vmul.f32 %v245, %v256
  %v260 = vmul.f32 %v246, %v256
  %v261 = vmul.f32 %v247, %v256
  %v262 = vmul.f32 %v248, %v256
  %v263 = vmul.f32 %v249, %v256
  %v264 = vmul.f32 %v250, %v256
  %v265 = vld [vmem:[%s4] sm:$0x1]
  %v267 = vlaneseq
  %v268 = vshrl.u32 %v267, 7
  %v269 = vsub.s32 0, %v268
  %v270 = vrot.slane %v265, %v269
  %v272 = vadd.f32 %v258, %v270
  %v273 = vadd.f32 %v259, %v270
  %v274 = vadd.f32 %v260, %v270
  %v275 = vadd.f32 %v261, %v270
  %v276 = vadd.f32 %v262, %v270
  %v277 = vadd.f32 %v263, %v270
  %v278 = vadd.f32 %v264, %v270
  %vm279 = vcmp.ge.f32.partialorder %v272, 0.0
  %vm280 = vcmp.ge.f32.partialorder %v273, 0.0
  %vm281 = vcmp.ge.f32.partialorder %v274, 0.0
  %vm282 = vcmp.ge.f32.partialorder %v275, 0.0
  %vm283 = vcmp.ge.f32.partialorder %v276, 0.0
  %vm284 = vcmp.ge.f32.partialorder %v277, 0.0
  %vm285 = vcmp.ge.f32.partialorder %v278, 0.0
  %v286 = vmul.f32 %v272, 0.2
  %v287 = vmul.f32 %v273, 0.2
  %v288 = vmul.f32 %v274, 0.2
  %v289 = vmul.f32 %v275, 0.2
  %v290 = vmul.f32 %v276, 0.2
  %v291 = vmul.f32 %v277, 0.2
  %v292 = vmul.f32 %v278, 0.2
  %v293 = vsel %vm279, %v272, %v286
  %v294 = vsel %vm280, %v273, %v287
  %v295 = vsel %vm281, %v274, %v288
  %v296 = vsel %vm282, %v275, %v289
  %v297 = vsel %vm283, %v276, %v290
  %v298 = vsel %vm284, %v277, %v291
  %v299 = vsel %vm285, %v278, %v292
  %300 = vst.msk [vmem:[%s5] sm:$0xff] %vm185, %v293
  %301 = vst.msk [vmem:[%s5 + $0x8] sm:$0xff] %vm185, %v294
  %302 = vst.msk [vmem:[%s5 + $0x10] sm:$0xff] %vm185, %v295
  %303 = vst.msk [vmem:[%s5 + $0x18] sm:$0xff] %vm185, %v296
  %304 = vst.msk [vmem:[%s5 + $0x20] sm:$0xff] %vm185, %v297
  %305 = vst.msk [vmem:[%s5 + $0x28] sm:$0xff] %vm185, %v298
  %306 = vst.msk [vmem:[%s5 + $0x30] sm:$0x3] %vm197, %v299
  // Predicated region
  $region22: #{multiscale_discriminator_forward.21} parent=0 // pred_check
    _
  $region23: #{multiscale_discriminator_forward.21} parent=0 // pred_check_branch
    %308 = sbr.rel (0) target = $region25
  $region24: #{multiscale_discriminator_forward.21} parent=0 // pred_region
    _
  $region25: #{multiscale_discriminator_forward.21} parent=0 // pred_fallthru
    _
  // Predicated region
  $region26: #{multiscale_discriminator_forward.21} parent=0 // pred_check
    _
  $region27: #{multiscale_discriminator_forward.21} parent=0 // pred_check_branch
    %310 = sbr.rel (0) target = $region29
  $region28: #{multiscale_discriminator_forward.21} parent=0 // pred_region
    _
  $region29: #{multiscale_discriminator_forward.21} parent=0 // pred_fallthru
    _

// kernel: multiscale_discriminator_forward.22
$region0: #{multiscale_discriminator_forward.22}
  #allocation0 [shape = 'u32[]', space=smem, size = 0x4, offset = 0x4, fixed_abs, tag = 'smem constant byte address 0x4 - core index']
  #allocation1 [shape = 'u32[144,128]{1,0:T(1,128)}', space=vmem, size = 0x12000, scoped, tag = 'internal scratch']
  %s0 = inlined_call_operand.vmem [shape: bf16[18,256], index: 0, kind: input, shape index: {}]
  %s1 = inlined_call_operand.vmem [shape: bf16[256,32], index: 1, kind: input, shape index: {}]
  %s2 = inlined_call_operand.vmem [shape: f32[1,32], index: 2, kind: input, shape index: {}]
  %s3 = inlined_call_operand.vmem [shape: f32[1,32], index: 3, kind: input, shape index: {}]
  %s4 = inlined_call_operand.vmem [shape: f32[1,32], index: 4, kind: input, shape index: {}]
  %s5 = inlined_call_operand.vmem [shape: f32[18,32], index: 5, kind: output, shape index: {}]
  %s6 = sld [smem:[#allocation0]]
  $region30: #{multiscale_discriminator_forward.22} parent=0
    _
  %s8 = ssub.s32 1, %s6
  %s9 = scalar_select 0, %s8, %s6
  // Predicated region
  $region2: #{multiscale_discriminator_forward.22} parent=0 // pred_check
    _
  $region3: #{multiscale_discriminator_forward.22} parent=0 // pred_check_branch
    %11 = sbr.rel (0) target = $region5
  $region4: #{multiscale_discriminator_forward.22} parent=0 // pred_region
    _
  $region5: #{multiscale_discriminator_forward.22} parent=0 // pred_fallthru
    _
  // Predicated region
  $region6: #{multiscale_discriminator_forward.22} parent=0 // pred_check
    _
  $region7: #{multiscale_discriminator_forward.22} parent=0 // pred_check_branch
    %13 = sbr.rel (0) target = $region9
  $region8: #{multiscale_discriminator_forward.22} parent=0 // pred_region
    _
  $region9: #{multiscale_discriminator_forward.22} parent=0 // pred_fallthru
    _
  // Predicated region
  $region10: #{multiscale_discriminator_forward.22} parent=0 // pred_check
    _
  $region11: #{multiscale_discriminator_forward.22} parent=0 // pred_check_branch
    %15 = sbr.rel (0) target = $region13
  $region12: #{multiscale_discriminator_forward.22} parent=0 // pred_region
    _
  $region13: #{multiscale_discriminator_forward.22} parent=0 // pred_fallthru
    _
  // Predicated region
  $region14: #{multiscale_discriminator_forward.22} parent=0 // pred_check
    _
  $region15: #{multiscale_discriminator_forward.22} parent=0 // pred_check_branch
    %17 = sbr.rel (0) target = $region17
  $region16: #{multiscale_discriminator_forward.22} parent=0 // pred_region
    _
  $region17: #{multiscale_discriminator_forward.22} parent=0 // pred_fallthru
    _
  // Predicated region
  $region18: #{multiscale_discriminator_forward.22} parent=0 // pred_check
    _
  $region19: #{multiscale_discriminator_forward.22} parent=0 // pred_check_branch
    %19 = sbr.rel (0) target = $region21
  $region20: #{multiscale_discriminator_forward.22} parent=0 // pred_region
    _
  $region21: #{multiscale_discriminator_forward.22} parent=0 // pred_fallthru
    _
  %v21 = vld [vmem:[%s0] sm:$0xff]
  %v22 = vld [vmem:[%s0 + $0x8] sm:$0xff]
  %v23 = vld [vmem:[%s0 + $0x10] sm:$0x11]
  %v24 = vld [vmem:[%s1] sm:$0xf]
  %v25 = vld [vmem:[%s1 + $0x4] sm:$0xf]
  %v26 = vld [vmem:[%s1 + $0x8] sm:$0xf]
  %v27 = vld [vmem:[%s1 + $0xc] sm:$0xf]
  %v28 = vld [vmem:[%s1 + $0x10] sm:$0xf]
  %v29 = vld [vmem:[%s1 + $0x14] sm:$0xf]
  %v30 = vld [vmem:[%s1 + $0x18] sm:$0xf]
  %v31 = vld [vmem:[%s1 + $0x1c] sm:$0xf]
  %v32 = vld [vmem:[%s1 + $0x20] sm:$0xf]
  %v33 = vld [vmem:[%s1 + $0x24] sm:$0xf]
  %v34 = vld [vmem:[%s1 + $0x28] sm:$0xf]
  %v35 = vld [vmem:[%s1 + $0x2c] sm:$0xf]
  %v36 = vld [vmem:[%s1 + $0x30] sm:$0xf]
  %v37 = vld [vmem:[%s1 + $0x34] sm:$0xf]
  %v38 = vld [vmem:[%s1 + $0x38] sm:$0xf]
  %v39 = vld [vmem:[%s1 + $0x3c] sm:$0xf]
  %v40 = vld [vmem:[%s1 + $0x40] sm:$0xf]
  %v41 = vld [vmem:[%s1 + $0x44] sm:$0xf]
  %v42 = vld [vmem:[%s1 + $0x48] sm:$0xf]
  %v43 = vld [vmem:[%s1 + $0x4c] sm:$0xf]
  %v44 = vld [vmem:[%s1 + $0x50] sm:$0xf]
  %v45 = vld [vmem:[%s1 + $0x54] sm:$0xf]
  %v46 = vld [vmem:[%s1 + $0x58] sm:$0xf]
  %v47 = vld [vmem:[%s1 + $0x5c] sm:$0xf]
  %v48 = vld [vmem:[%s1 + $0x60] sm:$0xf]
  %v49 = vld [vmem:[%s1 + $0x64] sm:$0xf]
  %v50 = vld [vmem:[%s1 + $0x68] sm:$0xf]
  %v51 = vld [vmem:[%s1 + $0x6c] sm:$0xf]
  %v52 = vld [vmem:[%s1 + $0x70] sm:$0xf]
  %v53 = vld [vmem:[%s1 + $0x74] sm:$0xf]
  %v54 = vld [vmem:[%s1 + $0x78] sm:$0xf]
  %v55 = vld [vmem:[%s1 + $0x7c] sm:$0xf]
  %v56 = vld [vmem:[%s2] sm:$0x1]
  %v58 = vlaneseq
  %v59 = vshrl.u32 %v58, 7
  %v60 = vsub.s32 0, %v59
  %v61 = vrot.slane %v56, %v60
  %v66 = vunpack.c.l.b16 %v21
  %v67 = vunpack.c.h.b16 %v21
  %v68 = vunpack.c.l.b16 %v22
  %v69 = vunpack.c.h.b16 %v22
  %v70 = vunpack.c.l.b16 %v23
  %v71 = vunpack.c.h.b16 %v23
  %v72 = vpack.c.b16 %v68, %v66
  %v73 = vpack.c.b16 %v69, %v67
  %v74 = vpack.c.b16 %v70, %v70
  %v75 = vpack.c.b16 %v71, %v71
  %v112 = vunpack.c.l.b16 %v24
  %v113 = vunpack.c.l.b16 %v25
  %v114 = vunpack.c.l.b16 %v26
  %v115 = vunpack.c.l.b16 %v27
  %v116 = vunpack.c.l.b16 %v28
  %v117 = vunpack.c.l.b16 %v29
  %v118 = vunpack.c.l.b16 %v30
  %v119 = vunpack.c.l.b16 %v31
  %v120 = vunpack.c.l.b16 %v32
  %v121 = vunpack.c.l.b16 %v33
  %v122 = vunpack.c.l.b16 %v34
  %v123 = vunpack.c.l.b16 %v35
  %v124 = vunpack.c.l.b16 %v36
  %v125 = vunpack.c.l.b16 %v37
  %v126 = vunpack.c.l.b16 %v38
  %v127 = vunpack.c.l.b16 %v39
  %v128 = vunpack.c.l.b16 %v40
  %v129 = vunpack.c.l.b16 %v41
  %v130 = vunpack.c.l.b16 %v42
  %v131 = vunpack.c.l.b16 %v43
  %v132 = vunpack.c.l.b16 %v44
  %v133 = vunpack.c.l.b16 %v45
  %v134 = vunpack.c.l.b16 %v46
  %v135 = vunpack.c.l.b16 %v47
  %v136 = vunpack.c.l.b16 %v48
  %v137 = vunpack.c.l.b16 %v49
  %v138 = vunpack.c.l.b16 %v50
  %v139 = vunpack.c.l.b16 %v51
  %v140 = vunpack.c.l.b16 %v52
  %v141 = vunpack.c.l.b16 %v53
  %v142 = vunpack.c.l.b16 %v54
  %v143 = vunpack.c.l.b16 %v55
  %v144 = vpack.c.b16 %v113, %v112
  %v145 = vpack.c.b16 %v115, %v114
  %v146 = vpack.c.b16 %v117, %v116
  %v147 = vpack.c.b16 %v119, %v118
  %v148 = vpack.c.b16 %v121, %v120
  %v149 = vpack.c.b16 %v123, %v122
  %v150 = vpack.c.b16 %v125, %v124
  %v151 = vpack.c.b16 %v127, %v126
  %v152 = vpack.c.b16 %v129, %v128
  %v153 = vpack.c.b16 %v131, %v130
  %v154 = vpack.c.b16 %v133, %v132
  %v155 = vpack.c.b16 %v135, %v134
  %v156 = vpack.c.b16 %v137, %v136
  %v157 = vpack.c.b16 %v139, %v138
  %v158 = vpack.c.b16 %v141, %v140
  %v159 = vpack.c.b16 %v143, %v142
  %176 = vmatprep.subr.bf16.mxu0 0
  %177 = vmatpush1.bf16.msra.mxu0 %v144
  %178 = vmatprep.subr.bf16.mxu0 0
  %179 = vmatpush1.bf16.msra.mxu0 %v145
  %180 = vmatprep.subr.bf16.mxu0 0
  %181 = vmatpush1.bf16.msra.mxu0 %v146
  %182 = vmatprep.subr.bf16.mxu0 0
  %183 = vmatpush1.bf16.msra.mxu0 %v147
  %184 = vmatprep.subr.bf16.mxu0 0
  %185 = vmatpush1.bf16.msra.mxu0 %v148
  %186 = vmatprep.subr.bf16.mxu0 0
  %187 = vmatpush1.bf16.msra.mxu0 %v149
  %188 = vmatprep.subr.bf16.mxu0 0
  %189 = vmatpush1.bf16.msra.mxu0 %v150
  %190 = vmatprep.subr.bf16.mxu0 0
  %191 = vmatpush1.bf16.msra.mxu0 %v151
  %192 = vmatprep.subr.bf16.mxu0 0
  %193 = vmatpush1.bf16.msra.mxu0 %v152
  %194 = vmatprep.subr.bf16.mxu0 0
  %195 = vmatpush1.bf16.msra.mxu0 %v153
  %196 = vmatprep.subr.bf16.mxu0 0
  %197 = vmatpush1.bf16.msra.mxu0 %v154
  %198 = vmatprep.subr.bf16.mxu0 0
  %199 = vmatpush1.bf16.msra.mxu0 %v155
  %200 = vmatprep.subr.bf16.mxu0 0
  %201 = vmatpush1.bf16.msra.mxu0 %v156
  %202 = vmatprep.subr.bf16.mxu0 0
  %203 = vmatpush1.bf16.msra.mxu0 %v157
  %204 = vmatprep.subr.bf16.mxu0 0
  %205 = vmatpush1.bf16.msra.mxu0 %v158
  %206 = vmatprep.subr.bf16.mxu0 0
  %207 = vmatpush1.bf16.msra.mxu0 %v159
  %208 = vmatprep.mubr.bf16.mxu0 %v73
  %209 = vmatmul.mubr.bf16.gmra.mrb[0].mxu0 %v72
  %v210 = vpop.f32.mrb[0].mxu0
  %v211 = vadd.f32 %v61, %v210
  %v212 = vpop.f32.mrb[0].mxu0
  %v213 = vpop.f32.mrb[0].mxu0
  %v214 = vadd.f32 %v61, %v213
  %v215 = vpop.f32.mrb[0].mxu0
  %216 = vmatprep.mubr.bf16.mxu0 %v75
  %217 = vmatmul.mubr.bf16.gmra.mrb[0].mxu0 %v74
  %v218 = vpop.f32.mrb[0].mxu0
  %v219 = vadd.f32 %v61, %v218
  %v220 = vpop.f32.mrb[0].mxu0
  %v221 = vpop.f32.mrb[0].mxu0
  %v222 = vpop.f32.mrb[0].mxu0
  %223 = vdwg.mxu0
  %vm224 = vcmask 261120
  %v225 = vsel %vm224, %v211, 0.0
  %v226 = vsel %vm224, %v214, 0.0
  %v227 = vadd.f32 %v225, %v226
  %vm228 = vcmask 254976
  %v229 = vsel %vm228, %v219, 0.0
  %v230 = vadd.f32 %v227, %v229
  %v231 = vrot.slane %v230, 4
  %v232 = vadd.f32 %v230, %v231
  %v233 = vrot.slane %v232, 2
  %v234 = vadd.f32 %v232, %v233
  %v235 = vrot.slane %v234, 1
  %v236 = vadd.f32 %v234, %v235
  %v237 = vrcp.pop 18.0
  %v238 = vmul.f32 %v236, %v237
  %v239 = vsub.f32 %v211, %v238
  %v240 = vsub.f32 %v214, %v238
  %v241 = vsub.f32 %v219, %v238
  %v242 = vmul.f32 %v239, %v239
  %v243 = vmul.f32 %v240, %v240
  %v244 = vmul.f32 %v241, %v241
  %v245 = vsel %vm224, %v242, 0.0
  %v246 = vsel %vm224, %v243, 0.0
  %v247 = vadd.f32 %v245, %v246
  %v248 = vsel %vm228, %v244, 0.0
  %v249 = vadd.f32 %v247, %v248
  %v250 = vrot.slane %v249, 4
  %v251 = vadd.f32 %v249, %v250
  %v252 = vrot.slane %v251, 2
  %v253 = vadd.f32 %v251, %v252
  %v254 = vrot.slane %v253, 1
  %v255 = vadd.f32 %v253, %v254
  %v256 = vmul.f32 %v255, %v237
  %v257 = vadd.f32 %v256, 1e-05
  %v258 = vrsqrt.pop %v257
  %v259 = vmul.f32 %v239, %v258
  %v260 = vmul.f32 %v240, %v258
  %v261 = vmul.f32 %v241, %v258
  %v262 = vld [vmem:[%s3] sm:$0x1]
  %v264 = vlaneseq
  %v265 = vshrl.u32 %v264, 7
  %v266 = vsub.s32 0, %v265
  %v267 = vrot.slane %v262, %v266
  %v269 = vmul.f32 %v259, %v267
  %v270 = vmul.f32 %v260, %v267
  %v271 = vmul.f32 %v261, %v267
  %v272 = vld [vmem:[%s4] sm:$0x1]
  %v274 = vlaneseq
  %v275 = vshrl.u32 %v274, 7
  %v276 = vsub.s32 0, %v275
  %v277 = vrot.slane %v272, %v276
  %v279 = vadd.f32 %v269, %v277
  %v280 = vadd.f32 %v270, %v277
  %v281 = vadd.f32 %v271, %v277
  %vm282 = vcmp.ge.f32.partialorder %v279, 0.0
  %vm283 = vcmp.ge.f32.partialorder %v280, 0.0
  %vm284 = vcmp.ge.f32.partialorder %v281, 0.0
  %v285 = vmul.f32 %v279, 0.2
  %v286 = vmul.f32 %v280, 0.2
  %v287 = vmul.f32 %v281, 0.2
  %v288 = vsel %vm282, %v279, %v285
  %v289 = vsel %vm283, %v280, %v286
  %v290 = vsel %vm284, %v281, %v287
  %291 = vst.msk [vmem:[%s5] sm:$0xff] %vm224, %v288
  %292 = vst.msk [vmem:[%s5 + $0x8] sm:$0xff] %vm224, %v289
  %293 = vst.msk [vmem:[%s5 + $0x10] sm:$0x3] %vm228, %v290
  // Predicated region
  $region22: #{multiscale_discriminator_forward.22} parent=0 // pred_check
    _
  $region23: #{multiscale_discriminator_forward.22} parent=0 // pred_check_branch
    %295 = sbr.rel (0) target = $region25
  $region24: #{multiscale_discriminator_forward.22} parent=0 // pred_region
    _
  $region25: #{multiscale_discriminator_forward.22} parent=0 // pred_fallthru
    _
  // Predicated region
  $region26: #{multiscale_discriminator_forward.22} parent=0 // pred_check
    _
  $region27: #{multiscale_discriminator_forward.22} parent=0 // pred_check_branch
    %297 = sbr.rel (0) target = $region29
  $region28: #{multiscale_discriminator_forward.22} parent=0 // pred_region
    _
  $region29: #{multiscale_discriminator_forward.22} parent=0 // pred_fallthru
    _

// kernel: multiscale_discriminator_forward.23
$region0: #{multiscale_discriminator_forward.23}
  #allocation0 [shape = 'u32[]', space=smem, size = 0x4, offset = 0x4, fixed_abs, tag = 'smem constant byte address 0x4 - core index']
  #allocation1 [shape = 'u32[144,128]{1,0:T(1,128)}', space=vmem, size = 0x12000, scoped, tag = 'internal scratch']
  %s0 = inlined_call_operand.vmem [shape: bf16[32,512], index: 0, kind: input, shape index: {}]
  %s1 = inlined_call_operand.vmem [shape: bf16[512,64], index: 1, kind: input, shape index: {}]
  %s2 = inlined_call_operand.vmem [shape: f32[1,64], index: 2, kind: input, shape index: {}]
  %s3 = inlined_call_operand.vmem [shape: f32[1,64], index: 3, kind: input, shape index: {}]
  %s4 = inlined_call_operand.vmem [shape: f32[1,64], index: 4, kind: input, shape index: {}]
  %s5 = inlined_call_operand.vmem [shape: f32[32,64], index: 5, kind: output, shape index: {}]
  %s6 = sld [smem:[#allocation0]]
  $region30: #{multiscale_discriminator_forward.23} parent=0
    _
  %s8 = ssub.s32 1, %s6
  %s9 = scalar_select 0, %s8, %s6
  // Predicated region
  $region2: #{multiscale_discriminator_forward.23} parent=0 // pred_check
    _
  $region3: #{multiscale_discriminator_forward.23} parent=0 // pred_check_branch
    %11 = sbr.rel (0) target = $region5
  $region4: #{multiscale_discriminator_forward.23} parent=0 // pred_region
    _
  $region5: #{multiscale_discriminator_forward.23} parent=0 // pred_fallthru
    _
  // Predicated region
  $region6: #{multiscale_discriminator_forward.23} parent=0 // pred_check
    _
  $region7: #{multiscale_discriminator_forward.23} parent=0 // pred_check_branch
    %13 = sbr.rel (0) target = $region9
  $region8: #{multiscale_discriminator_forward.23} parent=0 // pred_region
    _
  $region9: #{multiscale_discriminator_forward.23} parent=0 // pred_fallthru
    _
  // Predicated region
  $region10: #{multiscale_discriminator_forward.23} parent=0 // pred_check
    _
  $region11: #{multiscale_discriminator_forward.23} parent=0 // pred_check_branch
    %15 = sbr.rel (0) target = $region13
  $region12: #{multiscale_discriminator_forward.23} parent=0 // pred_region
    _
  $region13: #{multiscale_discriminator_forward.23} parent=0 // pred_fallthru
    _
  // Predicated region
  $region14: #{multiscale_discriminator_forward.23} parent=0 // pred_check
    _
  $region15: #{multiscale_discriminator_forward.23} parent=0 // pred_check_branch
    %17 = sbr.rel (0) target = $region17
  $region16: #{multiscale_discriminator_forward.23} parent=0 // pred_region
    _
  $region17: #{multiscale_discriminator_forward.23} parent=0 // pred_fallthru
    _
  // Predicated region
  $region18: #{multiscale_discriminator_forward.23} parent=0 // pred_check
    _
  $region19: #{multiscale_discriminator_forward.23} parent=0 // pred_check_branch
    %19 = sbr.rel (0) target = $region21
  $region20: #{multiscale_discriminator_forward.23} parent=0 // pred_region
    _
  $region21: #{multiscale_discriminator_forward.23} parent=0 // pred_fallthru
    _
  %v21 = vld [vmem:[%s0] sm:$0xff]
  %v22 = vld [vmem:[%s0 + $0x8] sm:$0xff]
  %v23 = vld [vmem:[%s0 + $0x10] sm:$0xff]
  %v24 = vld [vmem:[%s0 + $0x18] sm:$0xff]
  %v25 = vld [vmem:[%s0 + $0x20] sm:$0xff]
  %v26 = vld [vmem:[%s0 + $0x28] sm:$0xff]
  %v27 = vld [vmem:[%s0 + $0x30] sm:$0xff]
  %v28 = vld [vmem:[%s0 + $0x38] sm:$0xff]
  %v29 = vld [vmem:[%s1] sm:$0xf]
  %v30 = vld [vmem:[%s1 + $0x4] sm:$0xf]
  %v31 = vld [vmem:[%s1 + $0x8] sm:$0xf]
  %v32 = vld [vmem:[%s1 + $0xc] sm:$0xf]
  %v33 = vld [vmem:[%s1 + $0x10] sm:$0xf]
  %v34 = vld [vmem:[%s1 + $0x14] sm:$0xf]
  %v35 = vld [vmem:[%s1 + $0x18] sm:$0xf]
  %v36 = vld [vmem:[%s1 + $0x1c] sm:$0xf]
  %v37 = vld [vmem:[%s1 + $0x20] sm:$0xf]
  %v38 = vld [vmem:[%s1 + $0x24] sm:$0xf]
  %v39 = vld [vmem:[%s1 + $0x28] sm:$0xf]
  %v40 = vld [vmem:[%s1 + $0x2c] sm:$0xf]
  %v41 = vld [vmem:[%s1 + $0x30] sm:$0xf]
  %v42 = vld [vmem:[%s1 + $0x34] sm:$0xf]
  %v43 = vld [vmem:[%s1 + $0x38] sm:$0xf]
  %v44 = vld [vmem:[%s1 + $0x3c] sm:$0xf]
  %v45 = vld [vmem:[%s1 + $0x40] sm:$0xf]
  %v46 = vld [vmem:[%s1 + $0x44] sm:$0xf]
  %v47 = vld [vmem:[%s1 + $0x48] sm:$0xf]
  %v48 = vld [vmem:[%s1 + $0x4c] sm:$0xf]
  %v49 = vld [vmem:[%s1 + $0x50] sm:$0xf]
  %v50 = vld [vmem:[%s1 + $0x54] sm:$0xf]
  %v51 = vld [vmem:[%s1 + $0x58] sm:$0xf]
  %v52 = vld [vmem:[%s1 + $0x5c] sm:$0xf]
  %v53 = vld [vmem:[%s1 + $0x60] sm:$0xf]
  %v54 = vld [vmem:[%s1 + $0x64] sm:$0xf]
  %v55 = vld [vmem:[%s1 + $0x68] sm:$0xf]
  %v56 = vld [vmem:[%s1 + $0x6c] sm:$0xf]
  %v57 = vld [vmem:[%s1 + $0x70] sm:$0xf]
  %v58 = vld [vmem:[%s1 + $0x74] sm:$0xf]
  %v59 = vld [vmem:[%s1 + $0x78] sm:$0xf]
  %v60 = vld [vmem:[%s1 + $0x7c] sm:$0xf]
  %v61 = vld [vmem:[%s1 + $0x80] sm:$0xf]
  %v62 = vld [vmem:[%s1 + $0x84] sm:$0xf]
  %v63 = vld [vmem:[%s1 + $0x88] sm:$0xf]
  %v64 = vld [vmem:[%s1 + $0x8c] sm:$0xf]
  %v65 = vld [vmem:[%s1 + $0x90] sm:$0xf]
  %v66 = vld [vmem:[%s1 + $0x94] sm:$0xf]
  %v67 = vld [vmem:[%s1 + $0x98] sm:$0xf]
  %v68 = vld [vmem:[%s1 + $0x9c] sm:$0xf]
  %v69 = vld [vmem:[%s1 + $0xa0] sm:$0xf]
  %v70 = vld [vmem:[%s1 + $0xa4] sm:$0xf]
  %v71 = vld [vmem:[%s1 + $0xa8] sm:$0xf]
  %v72 = vld [vmem:[%s1 + $0xac] sm:$0xf]
  %v73 = vld [vmem:[%s1 + $0xb0] sm:$0xf]
  %v74 = vld [vmem:[%s1 + $0xb4] sm:$0xf]
  %v75 = vld [vmem:[%s1 + $0xb8] sm:$0xf]
  %v76 = vld [vmem:[%s1 + $0xbc] sm:$0xf]
  %v77 = vld [vmem:[%s1 + $0xc0] sm:$0xf]
  %v78 = vld [vmem:[%s1 + $0xc4] sm:$0xf]
  %v79 = vld [vmem:[%s1 + $0xc8] sm:$0xf]
  %v80 = vld [vmem:[%s1 + $0xcc] sm:$0xf]
  %v81 = vld [vmem:[%s1 + $0xd0] sm:$0xf]
  %v82 = vld [vmem:[%s1 + $0xd4] sm:$0xf]
  %v83 = vld [vmem:[%s1 + $0xd8] sm:$0xf]
  %v84 = vld [vmem:[%s1 + $0xdc] sm:$0xf]
  %v85 = vld [vmem:[%s1 + $0xe0] sm:$0xf]
  %v86 = vld [vmem:[%s1 + $0xe4] sm:$0xf]
  %v87 = vld [vmem:[%s1 + $0xe8] sm:$0xf]
  %v88 = vld [vmem:[%s1 + $0xec] sm:$0xf]
  %v89 = vld [vmem:[%s1 + $0xf0] sm:$0xf]
  %v90 = vld [vmem:[%s1 + $0xf4] sm:$0xf]
  %v91 = vld [vmem:[%s1 + $0xf8] sm:$0xf]
  %v92 = vld [vmem:[%s1 + $0xfc] sm:$0xf]
  %v93 = vld [vmem:[%s2] sm:$0x1]
  %v95 = vlaneseq
  %v96 = vshrl.u32 %v95, 7
  %v97 = vsub.s32 0, %v96
  %v98 = vrot.slane %v93, %v97
  %v108 = vunpack.c.l.b16 %v21
  %v109 = vunpack.c.h.b16 %v21
  %v110 = vunpack.c.l.b16 %v22
  %v111 = vunpack.c.h.b16 %v22
  %v112 = vunpack.c.l.b16 %v23
  %v113 = vunpack.c.h.b16 %v23
  %v114 = vunpack.c.l.b16 %v24
  %v115 = vunpack.c.h.b16 %v24
  %v116 = vunpack.c.l.b16 %v25
  %v117 = vunpack.c.h.b16 %v25
  %v118 = vunpack.c.l.b16 %v26
  %v119 = vunpack.c.h.b16 %v26
  %v120 = vunpack.c.l.b16 %v27
  %v121 = vunpack.c.h.b16 %v27
  %v122 = vunpack.c.l.b16 %v28
  %v123 = vunpack.c.h.b16 %v28
  %v124 = vpack.c.b16 %v112, %v108
  %v125 = vpack.c.b16 %v113, %v109
  %v126 = vpack.c.b16 %v114, %v110
  %v127 = vpack.c.b16 %v115, %v111
  %v128 = vpack.c.b16 %v120, %v116
  %v129 = vpack.c.b16 %v121, %v117
  %v130 = vpack.c.b16 %v122, %v118
  %v131 = vpack.c.b16 %v123, %v119
  %v204 = vunpack.c.l.b16 %v29
  %v205 = vunpack.c.l.b16 %v30
  %v206 = vunpack.c.l.b16 %v31
  %v207 = vunpack.c.l.b16 %v32
  %v208 = vunpack.c.l.b16 %v33
  %v209 = vunpack.c.l.b16 %v34
  %v210 = vunpack.c.l.b16 %v35
  %v211 = vunpack.c.l.b16 %v36
  %v212 = vunpack.c.l.b16 %v37
  %v213 = vunpack.c.l.b16 %v38
  %v214 = vunpack.c.l.b16 %v39
  %v215 = vunpack.c.l.b16 %v40
  %v216 = vunpack.c.l.b16 %v41
  %v217 = vunpack.c.l.b16 %v42
  %v218 = vunpack.c.l.b16 %v43
  %v219 = vunpack.c.l.b16 %v44
  %v220 = vunpack.c.l.b16 %v45
  %v221 = vunpack.c.l.b16 %v46
  %v222 = vunpack.c.l.b16 %v47
  %v223 = vunpack.c.l.b16 %v48
  %v224 = vunpack.c.l.b16 %v49
  %v225 = vunpack.c.l.b16 %v50
  %v226 = vunpack.c.l.b16 %v51
  %v227 = vunpack.c.l.b16 %v52
  %v228 = vunpack.c.l.b16 %v53
  %v229 = vunpack.c.l.b16 %v54
  %v230 = vunpack.c.l.b16 %v55
  %v231 = vunpack.c.l.b16 %v56
  %v232 = vunpack.c.l.b16 %v57
  %v233 = vunpack.c.l.b16 %v58
  %v234 = vunpack.c.l.b16 %v59
  %v235 = vunpack.c.l.b16 %v60
  %v236 = vunpack.c.l.b16 %v61
  %v237 = vunpack.c.l.b16 %v62
  %v238 = vunpack.c.l.b16 %v63
  %v239 = vunpack.c.l.b16 %v64
  %v240 = vunpack.c.l.b16 %v65
  %v241 = vunpack.c.l.b16 %v66
  %v242 = vunpack.c.l.b16 %v67
  %v243 = vunpack.c.l.b16 %v68
  %v244 = vunpack.c.l.b16 %v69
  %v245 = vunpack.c.l.b16 %v70
  %v246 = vunpack.c.l.b16 %v71
  %v247 = vunpack.c.l.b16 %v72
  %v248 = vunpack.c.l.b16 %v73
  %v249 = vunpack.c.l.b16 %v74
  %v250 = vunpack.c.l.b16 %v75
  %v251 = vunpack.c.l.b16 %v76
  %v252 = vunpack.c.l.b16 %v77
  %v253 = vunpack.c.l.b16 %v78
  %v254 = vunpack.c.l.b16 %v79
  %v255 = vunpack.c.l.b16 %v80
  %v256 = vunpack.c.l.b16 %v81
  %v257 = vunpack.c.l.b16 %v82
  %v258 = vunpack.c.l.b16 %v83
  %v259 = vunpack.c.l.b16 %v84
  %v260 = vunpack.c.l.b16 %v85
  %v261 = vunpack.c.l.b16 %v86
  %v262 = vunpack.c.l.b16 %v87
  %v263 = vunpack.c.l.b16 %v88
  %v264 = vunpack.c.l.b16 %v89
  %v265 = vunpack.c.l.b16 %v90
  %v266 = vunpack.c.l.b16 %v91
  %v267 = vunpack.c.l.b16 %v92
  %v268 = vpack.c.b16 %v205, %v204
  %v269 = vpack.c.b16 %v207, %v206
  %v270 = vpack.c.b16 %v209, %v208
  %v271 = vpack.c.b16 %v211, %v210
  %v272 = vpack.c.b16 %v213, %v212
  %v273 = vpack.c.b16 %v215, %v214
  %v274 = vpack.c.b16 %v217, %v216
  %v275 = vpack.c.b16 %v219, %v218
  %v276 = vpack.c.b16 %v221, %v220
  %v277 = vpack.c.b16 %v223, %v222
  %v278 = vpack.c.b16 %v225, %v224
  %v279 = vpack.c.b16 %v227, %v226
  %v280 = vpack.c.b16 %v229, %v228
  %v281 = vpack.c.b16 %v231, %v230
  %v282 = vpack.c.b16 %v233, %v232
  %v283 = vpack.c.b16 %v235, %v234
  %v284 = vpack.c.b16 %v237, %v236
  %v285 = vpack.c.b16 %v239, %v238
  %v286 = vpack.c.b16 %v241, %v240
  %v287 = vpack.c.b16 %v243, %v242
  %v288 = vpack.c.b16 %v245, %v244
  %v289 = vpack.c.b16 %v247, %v246
  %v290 = vpack.c.b16 %v249, %v248
  %v291 = vpack.c.b16 %v251, %v250
  %v292 = vpack.c.b16 %v253, %v252
  %v293 = vpack.c.b16 %v255, %v254
  %v294 = vpack.c.b16 %v257, %v256
  %v295 = vpack.c.b16 %v259, %v258
  %v296 = vpack.c.b16 %v261, %v260
  %v297 = vpack.c.b16 %v263, %v262
  %v298 = vpack.c.b16 %v265, %v264
  %v299 = vpack.c.b16 %v267, %v266
  %332 = vmatprep.subr.bf16.mxu0 0
  %333 = vmatpush1.bf16.msra.mxu0 %v268
  %334 = vmatprep.subr.bf16.mxu0 0
  %335 = vmatpush1.bf16.msra.mxu0 %v269
  %336 = vmatprep.subr.bf16.mxu0 0
  %337 = vmatpush1.bf16.msra.mxu0 %v270
  %338 = vmatprep.subr.bf16.mxu0 0
  %339 = vmatpush1.bf16.msra.mxu0 %v271
  %340 = vmatprep.subr.bf16.mxu0 0
  %341 = vmatpush1.bf16.msra.mxu0 %v272
  %342 = vmatprep.subr.bf16.mxu0 0
  %343 = vmatpush1.bf16.msra.mxu0 %v273
  %344 = vmatprep.subr.bf16.mxu0 0
  %345 = vmatpush1.bf16.msra.mxu0 %v274
  %346 = vmatprep.subr.bf16.mxu0 0
  %347 = vmatpush1.bf16.msra.mxu0 %v275
  %348 = vmatprep.subr.bf16.mxu0 0
  %349 = vmatpush1.bf16.msra.mxu0 %v276
  %350 = vmatprep.subr.bf16.mxu0 0
  %351 = vmatpush1.bf16.msra.mxu0 %v277
  %352 = vmatprep.subr.bf16.mxu0 0
  %353 = vmatpush1.bf16.msra.mxu0 %v278
  %354 = vmatprep.subr.bf16.mxu0 0
  %355 = vmatpush1.bf16.msra.mxu0 %v279
  %356 = vmatprep.subr.bf16.mxu0 0
  %357 = vmatpush1.bf16.msra.mxu0 %v280
  %358 = vmatprep.subr.bf16.mxu0 0
  %359 = vmatpush1.bf16.msra.mxu0 %v281
  %360 = vmatprep.subr.bf16.mxu0 0
  %361 = vmatpush1.bf16.msra.mxu0 %v282
  %362 = vmatprep.subr.bf16.mxu0 0
  %363 = vmatpush1.bf16.msra.mxu0 %v283
  %364 = vmatprep.mubr.bf16.mxu0 %v125
  %365 = vmatmul.mubr.bf16.gmra.mrb[0].mxu0 %v124
  %v366 = vpop.f32.mrb[0].mxu0
  %v367 = vadd.f32 %v98, %v366
  %v368 = vpop.f32.mrb[0].mxu0
  %v369 = vpop.f32.mrb[0].mxu0
  %v370 = vadd.f32 %v98, %v369
  %v371 = vpop.f32.mrb[0].mxu0
  %372 = vmatprep.mubr.bf16.mxu0 %v129
  %373 = vmatmul.mubr.bf16.gmra.mrb[0].mxu0 %v128
  %v374 = vpop.f32.mrb[0].mxu0
  %v375 = vadd.f32 %v98, %v374
  %v376 = vpop.f32.mrb[0].mxu0
  %v377 = vpop.f32.mrb[0].mxu0
  %v378 = vadd.f32 %v98, %v377
  %v379 = vpop.f32.mrb[0].mxu0
  %380 = vdwg.mxu0
  %381 = vmatprep.subr.bf16.mxu0 0
  %382 = vmatpush1.bf16.msra.mxu0 %v284
  %383 = vmatprep.subr.bf16.mxu0 0
  %384 = vmatpush1.bf16.msra.mxu0 %v285
  %385 = vmatprep.subr.bf16.mxu0 0
  %386 = vmatpush1.bf16.msra.mxu0 %v286
  %387 = vmatprep.subr.bf16.mxu0 0
  %388 = vmatpush1.bf16.msra.mxu0 %v287
  %389 = vmatprep.subr.bf16.mxu0 0
  %390 = vmatpush1.bf16.msra.mxu0 %v288
  %391 = vmatprep.subr.bf16.mxu0 0
  %392 = vmatpush1.bf16.msra.mxu0 %v289
  %393 = vmatprep.subr.bf16.mxu0 0
  %394 = vmatpush1.bf16.msra.mxu0 %v290
  %395 = vmatprep.subr.bf16.mxu0 0
  %396 = vmatpush1.bf16.msra.mxu0 %v291
  %397 = vmatprep.subr.bf16.mxu0 0
  %398 = vmatpush1.bf16.msra.mxu0 %v292
  %399 = vmatprep.subr.bf16.mxu0 0
  %400 = vmatpush1.bf16.msra.mxu0 %v293
  %401 = vmatprep.subr.bf16.mxu0 0
  %402 = vmatpush1.bf16.msra.mxu0 %v294
  %403 = vmatprep.subr.bf16.mxu0 0
  %404 = vmatpush1.bf16.msra.mxu0 %v295
  %405 = vmatprep.subr.bf16.mxu0 0
  %406 = vmatpush1.bf16.msra.mxu0 %v296
  %407 = vmatprep.subr.bf16.mxu0 0
  %408 = vmatpush1.bf16.msra.mxu0 %v297
  %409 = vmatprep.subr.bf16.mxu0 0
  %410 = vmatpush1.bf16.msra.mxu0 %v298
  %411 = vmatprep.subr.bf16.mxu0 0
  %412 = vmatpush1.bf16.msra.mxu0 %v299
  %413 = vmatprep.mubr.bf16.mxu0 %v127
  %414 = vmatmul.mubr.bf16.gmra.mrb[0].mxu0 %v126
  %v415 = vpop.f32.mrb[0].mxu0
  %v416 = vadd.f32 %v367, %v415
  %v417 = vpop.f32.mrb[0].mxu0
  %v418 = vpop.f32.mrb[0].mxu0
  %v419 = vadd.f32 %v370, %v418
  %v420 = vpop.f32.mrb[0].mxu0
  %421 = vmatprep.mubr.bf16.mxu0 %v131
  %422 = vmatmul.mubr.bf16.gmra.mrb[0].mxu0 %v130
  %v423 = vpop.f32.mrb[0].mxu0
  %v424 = vadd.f32 %v375, %v423
  %v425 = vpop.f32.mrb[0].mxu0
  %v426 = vpop.f32.mrb[0].mxu0
  %v427 = vadd.f32 %v378, %v426
  %v428 = vpop.f32.mrb[0].mxu0
  %429 = vdwg.mxu0
  %vm430 = vcmask 523264
  %v431 = vsel %vm430, %v416, 0.0
  %v432 = vsel %vm430, %v419, 0.0
  %v433 = vadd.f32 %v431, %v432
  %v434 = vsel %vm430, %v424, 0.0
  %v435 = vadd.f32 %v433, %v434
  %v436 = vsel %vm430, %v427, 0.0
  %v437 = vadd.f32 %v435, %v436
  %v438 = vrot.slane %v437, 4
  %v439 = vadd.f32 %v437, %v438
  %v440 = vrot.slane %v439, 2
  %v441 = vadd.f32 %v439, %v440
  %v442 = vrot.slane %v441, 1
  %v443 = vadd.f32 %v441, %v442
  %v444 = vrcp.pop 32.0
  %v445 = vmul.f32 %v443, %v444
  %v446 = vsub.f32 %v416, %v445
  %v447 = vsub.f32 %v419, %v445
  %v448 = vsub.f32 %v424, %v445
  %v449 = vsub.f32 %v427, %v445
  %v450 = vmul.f32 %v446, %v446
  %v451 = vmul.f32 %v447, %v447
  %v452 = vmul.f32 %v448, %v448
  %v453 = vmul.f32 %v449, %v449
  %v454 = vsel %vm430, %v450, 0.0
  %v455 = vsel %vm430, %v451, 0.0
  %v456 = vadd.f32 %v454, %v455
  %v457 = vsel %vm430, %v452, 0.0
  %v458 = vadd.f32 %v456, %v457
  %v459 = vsel %vm430, %v453, 0.0
  %v460 = vadd.f32 %v458, %v459
  %v461 = vrot.slane %v460, 4
  %v462 = vadd.f32 %v460, %v461
  %v463 = vrot.slane %v462, 2
  %v464 = vadd.f32 %v462, %v463
  %v465 = vrot.slane %v464, 1
  %v466 = vadd.f32 %v464, %v465
  %v467 = vmul.f32 %v466, %v444
  %v468 = vadd.f32 %v467, 1e-05
  %v469 = vrsqrt.pop %v468
  %v470 = vmul.f32 %v446, %v469
  %v471 = vmul.f32 %v447, %v469
  %v472 = vmul.f32 %v448, %v469
  %v473 = vmul.f32 %v449, %v469
  %v474 = vld [vmem:[%s3] sm:$0x1]
  %v476 = vlaneseq
  %v477 = vshrl.u32 %v476, 7
  %v478 = vsub.s32 0, %v477
  %v479 = vrot.slane %v474, %v478
  %v481 = vmul.f32 %v470, %v479
  %v482 = vmul.f32 %v471, %v479
  %v483 = vmul.f32 %v472, %v479
  %v484 = vmul.f32 %v473, %v479
  %v485 = vld [vmem:[%s4] sm:$0x1]
  %v487 = vlaneseq
  %v488 = vshrl.u32 %v487, 7
  %v489 = vsub.s32 0, %v488
  %v490 = vrot.slane %v485, %v489
  %v492 = vadd.f32 %v481, %v490
  %v493 = vadd.f32 %v482, %v490
  %v494 = vadd.f32 %v483, %v490
  %v495 = vadd.f32 %v484, %v490
  %vm496 = vcmp.ge.f32.partialorder %v492, 0.0
  %vm497 = vcmp.ge.f32.partialorder %v493, 0.0
  %vm498 = vcmp.ge.f32.partialorder %v494, 0.0
  %vm499 = vcmp.ge.f32.partialorder %v495, 0.0
  %v500 = vmul.f32 %v492, 0.2
  %v501 = vmul.f32 %v493, 0.2
  %v502 = vmul.f32 %v494, 0.2
  %v503 = vmul.f32 %v495, 0.2
  %v504 = vsel %vm496, %v492, %v500
  %v505 = vsel %vm497, %v493, %v501
  %v506 = vsel %vm498, %v494, %v502
  %v507 = vsel %vm499, %v495, %v503
  %508 = vst.msk [vmem:[%s5] sm:$0xff] %vm430, %v504
  %509 = vst.msk [vmem:[%s5 + $0x8] sm:$0xff] %vm430, %v505
  %510 = vst.msk [vmem:[%s5 + $0x10] sm:$0xff] %vm430, %v506
  %511 = vst.msk [vmem:[%s5 + $0x18] sm:$0xff] %vm430, %v507
  // Predicated region
  $region22: #{multiscale_discriminator_forward.23} parent=0 // pred_check
    _
  $region23: #{multiscale_discriminator_forward.23} parent=0 // pred_check_branch
    %513 = sbr.rel (0) target = $region25
  $region24: #{multiscale_discriminator_forward.23} parent=0 // pred_region
    _
  $region25: #{multiscale_discriminator_forward.23} parent=0 // pred_fallthru
    _
  // Predicated region
  $region26: #{multiscale_discriminator_forward.23} parent=0 // pred_check
    _
  $region27: #{multiscale_discriminator_forward.23} parent=0 // pred_check_branch
    %515 = sbr.rel (0) target = $region29
  $region28: #{multiscale_discriminator_forward.23} parent=0 // pred_region
    _
  $region29: #{multiscale_discriminator_forward.23} parent=0 // pred_fallthru
    _

// kernel: multiscale_discriminator_forward.24
$region0: #{multiscale_discriminator_forward.24}
  #allocation0 [shape = 'u32[]', space=smem, size = 0x4, offset = 0x4, fixed_abs, tag = 'smem constant byte address 0x4 - core index']
  #allocation1 [shape = 'u32[144,128]{1,0:T(1,128)}', space=vmem, size = 0x12000, scoped, tag = 'internal scratch']
  #allocation2 [shape = 'f32[1,1]{1,0:T(1,128)S(1)}', space=vmem, size = 0x200, scoped, tag = 'scoped memory for multiscale_discriminator_forward.24']
  #allocation3 [shape = 'f32[1,1]{1,0:T(1,128)S(1)}', space=vmem, size = 0x200, scoped, tag = 'scoped memory for multiscale_discriminator_forward.24']
  #allocation4 [shape = 'f32[1,1]{1,0:T(1,128)S(1)}', space=vmem, size = 0x200, scoped, tag = 'scoped memory for multiscale_discriminator_forward.24']
  %s0 = inlined_call_operand.vmem [shape: bf16[50,1024], index: 0, kind: input, shape index: {}]
  %s1 = inlined_call_operand.vmem [shape: bf16[1024,1], index: 1, kind: input, shape index: {}]
  %s2 = inlined_call_operand.<no memory space> [shape: f32[1,1], index: 2, kind: input, shape index: {}]
  %s3 = inlined_call_operand.<no memory space> [shape: f32[1,1], index: 3, kind: input, shape index: {}]
  %s4 = inlined_call_operand.<no memory space> [shape: f32[1,1], index: 4, kind: input, shape index: {}]
  %s5 = inlined_call_operand.vmem [shape: f32[50,1], index: 5, kind: output, shape index: {}]
  %s6 = sld [smem:[#allocation0]]
  $region30: #{multiscale_discriminator_forward.24} parent=0
    _
  %s8 = ssub.s32 1, %s6
  %s9 = scalar_select 0, %s8, %s6
  %v10 = vstv %s2
  %11 = vst [vmem:[#allocation2] sm:$0x1] %v10
  %v12 = vstv %s3
  %13 = vst [vmem:[#allocation3] sm:$0x1] %v12
  %v14 = vstv %s4
  %15 = vst [vmem:[#allocation4] sm:$0x1] %v14
  // Predicated region
  $region2: #{multiscale_discriminator_forward.24} parent=0 // pred_check
    _
  $region3: #{multiscale_discriminator_forward.24} parent=0 // pred_check_branch
    %17 = sbr.rel (0) target = $region5
  $region4: #{multiscale_discriminator_forward.24} parent=0 // pred_region
    _
  $region5: #{multiscale_discriminator_forward.24} parent=0 // pred_fallthru
    _
  // Predicated region
  $region6: #{multiscale_discriminator_forward.24} parent=0 // pred_check
    _
  $region7: #{multiscale_discriminator_forward.24} parent=0 // pred_check_branch
    %19 = sbr.rel (0) target = $region9
  $region8: #{multiscale_discriminator_forward.24} parent=0 // pred_region
    _
  $region9: #{multiscale_discriminator_forward.24} parent=0 // pred_fallthru
    _
  // Predicated region
  $region10: #{multiscale_discriminator_forward.24} parent=0 // pred_check
    _
  $region11: #{multiscale_discriminator_forward.24} parent=0 // pred_check_branch
    %21 = sbr.rel (0) target = $region13
  $region12: #{multiscale_discriminator_forward.24} parent=0 // pred_region
    _
  $region13: #{multiscale_discriminator_forward.24} parent=0 // pred_fallthru
    _
  // Predicated region
  $region14: #{multiscale_discriminator_forward.24} parent=0 // pred_check
    _
  $region15: #{multiscale_discriminator_forward.24} parent=0 // pred_check_branch
    %23 = sbr.rel (0) target = $region17
  $region16: #{multiscale_discriminator_forward.24} parent=0 // pred_region
    _
  $region17: #{multiscale_discriminator_forward.24} parent=0 // pred_fallthru
    _
  // Predicated region
  $region18: #{multiscale_discriminator_forward.24} parent=0 // pred_check
    _
  $region19: #{multiscale_discriminator_forward.24} parent=0 // pred_check_branch
    %25 = sbr.rel (0) target = $region21
  $region20: #{multiscale_discriminator_forward.24} parent=0 // pred_region
    _
  $region21: #{multiscale_discriminator_forward.24} parent=0 // pred_fallthru
    _
  %v27 = vld [vmem:[%s0] sm:$0xff]
  %v28 = vld [vmem:[%s0 + $0x8] sm:$0xff]
  %v29 = vld [vmem:[%s0 + $0x10] sm:$0xff]
  %v30 = vld [vmem:[%s0 + $0x18] sm:$0xff]
  %v31 = vld [vmem:[%s0 + $0x20] sm:$0xff]
  %v32 = vld [vmem:[%s0 + $0x28] sm:$0xff]
  %v33 = vld [vmem:[%s0 + $0x30] sm:$0xff]
  %v34 = vld [vmem:[%s0 + $0x38] sm:$0xff]
  %v35 = vld [vmem:[%s0 + $0x40] sm:$0xff]
  %v36 = vld [vmem:[%s0 + $0x48] sm:$0xff]
  %v37 = vld [vmem:[%s0 + $0x50] sm:$0xff]
  %v38 = vld [vmem:[%s0 + $0x58] sm:$0xff]
  %v39 = vld [vmem:[%s0 + $0x60] sm:$0xff]
  %v40 = vld [vmem:[%s0 + $0x68] sm:$0xff]
  %v41 = vld [vmem:[%s0 + $0x70] sm:$0xff]
  %v42 = vld [vmem:[%s0 + $0x78] sm:$0xff]
  %v43 = vld [vmem:[%s0 + $0x80] sm:$0xff]
  %v44 = vld [vmem:[%s0 + $0x88] sm:$0xff]
  %v45 = vld [vmem:[%s0 + $0x90] sm:$0xff]
  %v46 = vld [vmem:[%s0 + $0x98] sm:$0xff]
  %v47 = vld [vmem:[%s0 + $0xa0] sm:$0xff]
  %v48 = vld [vmem:[%s0 + $0xa8] sm:$0xff]
  %v49 = vld [vmem:[%s0 + $0xb0] sm:$0xff]
  %v50 = vld [vmem:[%s0 + $0xb8] sm:$0xff]
  %v51 = vld [vmem:[%s0 + $0xc0] sm:$0x11]
  %v52 = vld [vmem:[%s0 + $0xc8] sm:$0x11]
  %v53 = vld [vmem:[%s0 + $0xd0] sm:$0x11]
  %v54 = vld [vmem:[%s0 + $0xd8] sm:$0x11]
  %v55 = vld [vmem:[%s1] sm:$0xf]
  %v56 = vld [vmem:[%s1 + $0x4] sm:$0xf]
  %v57 = vld [vmem:[%s1 + $0x8] sm:$0xf]
  %v58 = vld [vmem:[%s1 + $0xc] sm:$0xf]
  %v59 = vld [vmem:[%s1 + $0x10] sm:$0xf]
  %v60 = vld [vmem:[%s1 + $0x14] sm:$0xf]
  %v61 = vld [vmem:[%s1 + $0x18] sm:$0xf]
  %v62 = vld [vmem:[%s1 + $0x1c] sm:$0xf]
  %v63 = vld [vmem:[%s1 + $0x20] sm:$0xf]
  %v64 = vld [vmem:[%s1 + $0x24] sm:$0xf]
  %v65 = vld [vmem:[%s1 + $0x28] sm:$0xf]
  %v66 = vld [vmem:[%s1 + $0x2c] sm:$0xf]
  %v67 = vld [vmem:[%s1 + $0x30] sm:$0xf]
  %v68 = vld [vmem:[%s1 + $0x34] sm:$0xf]
  %v69 = vld [vmem:[%s1 + $0x38] sm:$0xf]
  %v70 = vld [vmem:[%s1 + $0x3c] sm:$0xf]
  %v71 = vld [vmem:[%s1 + $0x40] sm:$0xf]
  %v72 = vld [vmem:[%s1 + $0x44] sm:$0xf]
  %v73 = vld [vmem:[%s1 + $0x48] sm:$0xf]
  %v74 = vld [vmem:[%s1 + $0x4c] sm:$0xf]
  %v75 = vld [vmem:[%s1 + $0x50] sm:$0xf]
  %v76 = vld [vmem:[%s1 + $0x54] sm:$0xf]
  %v77 = vld [vmem:[%s1 + $0x58] sm:$0xf]
  %v78 = vld [vmem:[%s1 + $0x5c] sm:$0xf]
  %v79 = vld [vmem:[%s1 + $0x60] sm:$0xf]
  %v80 = vld [vmem:[%s1 + $0x64] sm:$0xf]
  %v81 = vld [vmem:[%s1 + $0x68] sm:$0xf]
  %v82 = vld [vmem:[%s1 + $0x6c] sm:$0xf]
  %v83 = vld [vmem:[%s1 + $0x70] sm:$0xf]
  %v84 = vld [vmem:[%s1 + $0x74] sm:$0xf]
  %v85 = vld [vmem:[%s1 + $0x78] sm:$0xf]
  %v86 = vld [vmem:[%s1 + $0x7c] sm:$0xf]
  %v87 = vld [vmem:[%s1 + $0x80] sm:$0xf]
  %v88 = vld [vmem:[%s1 + $0x84] sm:$0xf]
  %v89 = vld [vmem:[%s1 + $0x88] sm:$0xf]
  %v90 = vld [vmem:[%s1 + $0x8c] sm:$0xf]
  %v91 = vld [vmem:[%s1 + $0x90] sm:$0xf]
  %v92 = vld [vmem:[%s1 + $0x94] sm:$0xf]
  %v93 = vld [vmem:[%s1 + $0x98] sm:$0xf]
  %v94 = vld [vmem:[%s1 + $0x9c] sm:$0xf]
  %v95 = vld [vmem:[%s1 + $0xa0] sm:$0xf]
  %v96 = vld [vmem:[%s1 + $0xa4] sm:$0xf]
  %v97 = vld [vmem:[%s1 + $0xa8] sm:$0xf]
  %v98 = vld [vmem:[%s1 + $0xac] sm:$0xf]
  %v99 = vld [vmem:[%s1 + $0xb0] sm:$0xf]
  %v100 = vld [vmem:[%s1 + $0xb4] sm:$0xf]
  %v101 = vld [vmem:[%s1 + $0xb8] sm:$0xf]
  %v102 = vld [vmem:[%s1 + $0xbc] sm:$0xf]
  %v103 = vld [vmem:[%s1 + $0xc0] sm:$0xf]
  %v104 = vld [vmem:[%s1 + $0xc4] sm:$0xf]
  %v105 = vld [vmem:[%s1 + $0xc8] sm:$0xf]
  %v106 = vld [vmem:[%s1 + $0xcc] sm:$0xf]
  %v107 = vld [vmem:[%s1 + $0xd0] sm:$0xf]
  %v108 = vld [vmem:[%s1 + $0xd4] sm:$0xf]
  %v109 = vld [vmem:[%s1 + $0xd8] sm:$0xf]
  %v110 = vld [vmem:[%s1 + $0xdc] sm:$0xf]
  %v111 = vld [vmem:[%s1 + $0xe0] sm:$0xf]
  %v112 = vld [vmem:[%s1 + $0xe4] sm:$0xf]
  %v113 = vld [vmem:[%s1 + $0xe8] sm:$0xf]
  %v114 = vld [vmem:[%s1 + $0xec] sm:$0xf]
  %v115 = vld [vmem:[%s1 + $0xf0] sm:$0xf]
  %v116 = vld [vmem:[%s1 + $0xf4] sm:$0xf]
  %v117 = vld [vmem:[%s1 + $0xf8] sm:$0xf]
  %v118 = vld [vmem:[%s1 + $0xfc] sm:$0xf]
  %v119 = vld [vmem:[%s1 + $0x100] sm:$0xf]
  %v120 = vld [vmem:[%s1 + $0x104] sm:$0xf]
  %v121 = vld [vmem:[%s1 + $0x108] sm:$0xf]
  %v122 = vld [vmem:[%s1 + $0x10c] sm:$0xf]
  %v123 = vld [vmem:[%s1 + $0x110] sm:$0xf]
  %v124 = vld [vmem:[%s1 + $0x114] sm:$0xf]
  %v125 = vld [vmem:[%s1 + $0x118] sm:$0xf]
  %v126 = vld [vmem:[%s1 + $0x11c] sm:$0xf]
  %v127 = vld [vmem:[%s1 + $0x120] sm:$0xf]
  %v128 = vld [vmem:[%s1 + $0x124] sm:$0xf]
  %v129 = vld [vmem:[%s1 + $0x128] sm:$0xf]
  %v130 = vld [vmem:[%s1 + $0x12c] sm:$0xf]
  %v131 = vld [vmem:[%s1 + $0x130] sm:$0xf]
  %v132 = vld [vmem:[%s1 + $0x134] sm:$0xf]
  %v133 = vld [vmem:[%s1 + $0x138] sm:$0xf]
  %v134 = vld [vmem:[%s1 + $0x13c] sm:$0xf]
  %v135 = vld [vmem:[%s1 + $0x140] sm:$0xf]
  %v136 = vld [vmem:[%s1 + $0x144] sm:$0xf]
  %v137 = vld [vmem:[%s1 + $0x148] sm:$0xf]
  %v138 = vld [vmem:[%s1 + $0x14c] sm:$0xf]
  %v139 = vld [vmem:[%s1 + $0x150] sm:$0xf]
  %v140 = vld [vmem:[%s1 + $0x154] sm:$0xf]
  %v141 = vld [vmem:[%s1 + $0x158] sm:$0xf]
  %v142 = vld [vmem:[%s1 + $0x15c] sm:$0xf]
  %v143 = vld [vmem:[%s1 + $0x160] sm:$0xf]
  %v144 = vld [vmem:[%s1 + $0x164] sm:$0xf]
  %v145 = vld [vmem:[%s1 + $0x168] sm:$0xf]
  %v146 = vld [vmem:[%s1 + $0x16c] sm:$0xf]
  %v147 = vld [vmem:[%s1 + $0x170] sm:$0xf]
  %v148 = vld [vmem:[%s1 + $0x174] sm:$0xf]
  %v149 = vld [vmem:[%s1 + $0x178] sm:$0xf]
  %v150 = vld [vmem:[%s1 + $0x17c] sm:$0xf]
  %v151 = vld [vmem:[%s1 + $0x180] sm:$0xf]
  %v152 = vld [vmem:[%s1 + $0x184] sm:$0xf]
  %v153 = vld [vmem:[%s1 + $0x188] sm:$0xf]
  %v154 = vld [vmem:[%s1 + $0x18c] sm:$0xf]
  %v155 = vld [vmem:[%s1 + $0x190] sm:$0xf]
  %v156 = vld [vmem:[%s1 + $0x194] sm:$0xf]
  %v157 = vld [vmem:[%s1 + $0x198] sm:$0xf]
  %v158 = vld [vmem:[%s1 + $0x19c] sm:$0xf]
  %v159 = vld [vmem:[%s1 + $0x1a0] sm:$0xf]
  %v160 = vld [vmem:[%s1 + $0x1a4] sm:$0xf]
  %v161 = vld [vmem:[%s1 + $0x1a8] sm:$0xf]
  %v162 = vld [vmem:[%s1 + $0x1ac] sm:$0xf]
  %v163 = vld [vmem:[%s1 + $0x1b0] sm:$0xf]
  %v164 = vld [vmem:[%s1 + $0x1b4] sm:$0xf]
  %v165 = vld [vmem:[%s1 + $0x1b8] sm:$0xf]
  %v166 = vld [vmem:[%s1 + $0x1bc] sm:$0xf]
  %v167 = vld [vmem:[%s1 + $0x1c0] sm:$0xf]
  %v168 = vld [vmem:[%s1 + $0x1c4] sm:$0xf]
  %v169 = vld [vmem:[%s1 + $0x1c8] sm:$0xf]
  %v170 = vld [vmem:[%s1 + $0x1cc] sm:$0xf]
  %v171 = vld [vmem:[%s1 + $0x1d0] sm:$0xf]
  %v172 = vld [vmem:[%s1 + $0x1d4] sm:$0xf]
  %v173 = vld [vmem:[%s1 + $0x1d8] sm:$0xf]
  %v174 = vld [vmem:[%s1 + $0x1dc] sm:$0xf]
  %v175 = vld [vmem:[%s1 + $0x1e0] sm:$0xf]
  %v176 = vld [vmem:[%s1 + $0x1e4] sm:$0xf]
  %v177 = vld [vmem:[%s1 + $0x1e8] sm:$0xf]
  %v178 = vld [vmem:[%s1 + $0x1ec] sm:$0xf]
  %v179 = vld [vmem:[%s1 + $0x1f0] sm:$0xf]
  %v180 = vld [vmem:[%s1 + $0x1f4] sm:$0xf]
  %v181 = vld [vmem:[%s1 + $0x1f8] sm:$0xf]
  %v182 = vld [vmem:[%s1 + $0x1fc] sm:$0xf]
  %v183 = vld [vmem:[#allocation2] sm:$0x1]
  %v185 = vlaneseq
  %v186 = vshrl.u32 %v185, 7
  %v187 = vsub.s32 0, %v186
  %v188 = vrot.slane %v183, %v187
  %v218 = vunpack.c.l.b16 %v27
  %v219 = vunpack.c.h.b16 %v27
  %v220 = vunpack.c.l.b16 %v28
  %v221 = vunpack.c.h.b16 %v28
  %v222 = vunpack.c.l.b16 %v29
  %v223 = vunpack.c.h.b16 %v29
  %v224 = vunpack.c.l.b16 %v30
  %v225 = vunpack.c.h.b16 %v30
  %v226 = vunpack.c.l.b16 %v31
  %v227 = vunpack.c.h.b16 %v31
  %v228 = vunpack.c.l.b16 %v32
  %v229 = vunpack.c.h.b16 %v32
  %v230 = vunpack.c.l.b16 %v33
  %v231 = vunpack.c.h.b16 %v33
  %v232 = vunpack.c.l.b16 %v34
  %v233 = vunpack.c.h.b16 %v34
  %v234 = vunpack.c.l.b16 %v35
  %v235 = vunpack.c.h.b16 %v35
  %v236 = vunpack.c.l.b16 %v36
  %v237 = vunpack.c.h.b16 %v36
  %v238 = vunpack.c.l.b16 %v37
  %v239 = vunpack.c.h.b16 %v37
  %v240 = vunpack.c.l.b16 %v38
  %v241 = vunpack.c.h.b16 %v38
  %v242 = vunpack.c.l.b16 %v39
  %v243 = vunpack.c.h.b16 %v39
  %v244 = vunpack.c.l.b16 %v40
  %v245 = vunpack.c.h.b16 %v40
  %v246 = vunpack.c.l.b16 %v41
  %v247 = vunpack.c.h.b16 %v41
  %v248 = vunpack.c.l.b16 %v42
  %v249 = vunpack.c.h.b16 %v42
  %v250 = vunpack.c.l.b16 %v43
  %v251 = vunpack.c.h.b16 %v43
  %v252 = vunpack.c.l.b16 %v44
  %v253 = vunpack.c.h.b16 %v44
  %v254 = vunpack.c.l.b16 %v45
  %v255 = vunpack.c.h.b16 %v45
  %v256 = vunpack.c.l.b16 %v46
  %v257 = vunpack.c.h.b16 %v46
  %v258 = vunpack.c.l.b16 %v47
  %v259 = vunpack.c.h.b16 %v47
  %v260 = vunpack.c.l.b16 %v48
  %v261 = vunpack.c.h.b16 %v48
  %v262 = vunpack.c.l.b16 %v49
  %v263 = vunpack.c.h.b16 %v49
  %v264 = vunpack.c.l.b16 %v50
  %v265 = vunpack.c.h.b16 %v50
  %v266 = vunpack.c.l.b16 %v51
  %v267 = vunpack.c.h.b16 %v51
  %v268 = vunpack.c.l.b16 %v52
  %v269 = vunpack.c.h.b16 %v52
  %v270 = vunpack.c.l.b16 %v53
  %v271 = vunpack.c.h.b16 %v53
  %v272 = vunpack.c.l.b16 %v54
  %v273 = vunpack.c.h.b16 %v54
  %v274 = vpack.c.b16 %v226, %v218
  %v275 = vpack.c.b16 %v227, %v219
  %v276 = vpack.c.b16 %v228, %v220
  %v277 = vpack.c.b16 %v229, %v221
  %v278 = vpack.c.b16 %v230, %v222
  %v279 = vpack.c.b16 %v231, %v223
  %v280 = vpack.c.b16 %v232, %v224
  %v281 = vpack.c.b16 %v233, %v225
  %v282 = vpack.c.b16 %v242, %v234
  %v283 = vpack.c.b16 %v243, %v235
  %v284 = vpack.c.b16 %v244, %v236
  %v285 = vpack.c.b16 %v245, %v237
  %v286 = vpack.c.b16 %v246, %v238
  %v287 = vpack.c.b16 %v247, %v239
  %v288 = vpack.c.b16 %v248, %v240
  %v289 = vpack.c.b16 %v249, %v241
  %v290 = vpack.c.b16 %v258, %v250
  %v291 = vpack.c.b16 %v259, %v251
  %v292 = vpack.c.b16 %v260, %v252
  %v293 = vpack.c.b16 %v261, %v253
  %v294 = vpack.c.b16 %v262, %v254
  %v295 = vpack.c.b16 %v263, %v255
  %v296 = vpack.c.b16 %v264, %v256
  %v297 = vpack.c.b16 %v265, %v257
  %v298 = vpack.c.b16 %v266, %v266
  %v299 = vpack.c.b16 %v267, %v267
  %v300 = vpack.c.b16 %v268, %v268
  %v301 = vpack.c.b16 %v269, %v269
  %v302 = vpack.c.b16 %v270, %v270
  %v303 = vpack.c.b16 %v271, %v271
  %v304 = vpack.c.b16 %v272, %v272
  %v305 = vpack.c.b16 %v273, %v273
  %v466 = vunpack.c.l.b16 %v55
  %v467 = vunpack.c.l.b16 %v56
  %v468 = vunpack.c.l.b16 %v57
  %v469 = vunpack.c.l.b16 %v58
  %v470 = vunpack.c.l.b16 %v59
  %v471 = vunpack.c.l.b16 %v60
  %v472 = vunpack.c.l.b16 %v61
  %v473 = vunpack.c.l.b16 %v62
  %v474 = vunpack.c.l.b16 %v63
  %v475 = vunpack.c.l.b16 %v64
  %v476 = vunpack.c.l.b16 %v65
  %v477 = vunpack.c.l.b16 %v66
  %v478 = vunpack.c.l.b16 %v67
  %v479 = vunpack.c.l.b16 %v68
  %v480 = vunpack.c.l.b16 %v69
  %v481 = vunpack.c.l.b16 %v70
  %v482 = vunpack.c.l.b16 %v71
  %v483 = vunpack.c.l.b16 %v72
  %v484 = vunpack.c.l.b16 %v73
  %v485 = vunpack.c.l.b16 %v74
  %v486 = vunpack.c.l.b16 %v75
  %v487 = vunpack.c.l.b16 %v76
  %v488 = vunpack.c.l.b16 %v77
  %v489 = vunpack.c.l.b16 %v78
  %v490 = vunpack.c.l.b16 %v79
  %v491 = vunpack.c.l.b16 %v80
  %v492 = vunpack.c.l.b16 %v81
  %v493 = vunpack.c.l.b16 %v82
  %v494 = vunpack.c.l.b16 %v83
  %v495 = vunpack.c.l.b16 %v84
  %v496 = vunpack.c.l.b16 %v85
  %v497 = vunpack.c.l.b16 %v86
  %v498 = vunpack.c.l.b16 %v87
  %v499 = vunpack.c.l.b16 %v88
  %v500 = vunpack.c.l.b16 %v89
  %v501 = vunpack.c.l.b16 %v90
  %v502 = vunpack.c.l.b16 %v91
  %v503 = vunpack.c.l.b16 %v92
  %v504 = vunpack.c.l.b16 %v93
  %v505 = vunpack.c.l.b16 %v94
  %v506 = vunpack.c.l.b16 %v95
  %v507 = vunpack.c.l.b16 %v96
  %v508 = vunpack.c.l.b16 %v97
  %v509 = vunpack.c.l.b16 %v98
  %v510 = vunpack.c.l.b16 %v99
  %v511 = vunpack.c.l.b16 %v100
  %v512 = vunpack.c.l.b16 %v101
  %v513 = vunpack.c.l.b16 %v102
  %v514 = vunpack.c.l.b16 %v103
  %v515 = vunpack.c.l.b16 %v104
  %v516 = vunpack.c.l.b16 %v105
  %v517 = vunpack.c.l.b16 %v106
  %v518 = vunpack.c.l.b16 %v107
  %v519 = vunpack.c.l.b16 %v108
  %v520 = vunpack.c.l.b16 %v109
  %v521 = vunpack.c.l.b16 %v110
  %v522 = vunpack.c.l.b16 %v111
  %v523 = vunpack.c.l.b16 %v112
  %v524 = vunpack.c.l.b16 %v113
  %v525 = vunpack.c.l.b16 %v114
  %v526 = vunpack.c.l.b16 %v115
  %v527 = vunpack.c.l.b16 %v116
  %v528 = vunpack.c.l.b16 %v117
  %v529 = vunpack.c.l.b16 %v118
  %v530 = vunpack.c.l.b16 %v119
  %v531 = vunpack.c.l.b16 %v120
  %v532 = vunpack.c.l.b16 %v121
  %v533 = vunpack.c.l.b16 %v122
  %v534 = vunpack.c.l.b16 %v123
  %v535 = vunpack.c.l.b16 %v124
  %v536 = vunpack.c.l.b16 %v125
  %v537 = vunpack.c.l.b16 %v126
  %v538 = vunpack.c.l.b16 %v127
  %v539 = vunpack.c.l.b16 %v128
  %v540 = vunpack.c.l.b16 %v129
  %v541 = vunpack.c.l.b16 %v130
  %v542 = vunpack.c.l.b16 %v131
  %v543 = vunpack.c.l.b16 %v132
  %v544 = vunpack.c.l.b16 %v133
  %v545 = vunpack.c.l.b16 %v134
  %v546 = vunpack.c.l.b16 %v135
  %v547 = vunpack.c.l.b16 %v136
  %v548 = vunpack.c.l.b16 %v137
  %v549 = vunpack.c.l.b16 %v138
  %v550 = vunpack.c.l.b16 %v139
  %v551 = vunpack.c.l.b16 %v140
  %v552 = vunpack.c.l.b16 %v141
  %v553 = vunpack.c.l.b16 %v142
  %v554 = vunpack.c.l.b16 %v143
  %v555 = vunpack.c.l.b16 %v144
  %v556 = vunpack.c.l.b16 %v145
  %v557 = vunpack.c.l.b16 %v146
  %v558 = vunpack.c.l.b16 %v147
  %v559 = vunpack.c.l.b16 %v148
  %v560 = vunpack.c.l.b16 %v149
  %v561 = vunpack.c.l.b16 %v150
  %v562 = vunpack.c.l.b16 %v151
  %v563 = vunpack.c.l.b16 %v152
  %v564 = vunpack.c.l.b16 %v153
  %v565 = vunpack.c.l.b16 %v154
  %v566 = vunpack.c.l.b16 %v155
  %v567 = vunpack.c.l.b16 %v156
  %v568 = vunpack.c.l.b16 %v157
  %v569 = vunpack.c.l.b16 %v158
  %v570 = vunpack.c.l.b16 %v159
  %v571 = vunpack.c.l.b16 %v160
  %v572 = vunpack.c.l.b16 %v161
  %v573 = vunpack.c.l.b16 %v162
  %v574 = vunpack.c.l.b16 %v163
  %v575 = vunpack.c.l.b16 %v164
  %v576 = vunpack.c.l.b16 %v165
  %v577 = vunpack.c.l.b16 %v166
  %v578 = vunpack.c.l.b16 %v167
  %v579 = vunpack.c.l.b16 %v168
  %v580 = vunpack.c.l.b16 %v169
  %v581 = vunpack.c.l.b16 %v170
  %v582 = vunpack.c.l.b16 %v171
  %v583 = vunpack.c.l.b16 %v172
  %v584 = vunpack.c.l.b16 %v173
  %v585 = vunpack.c.l.b16 %v174
  %v586 = vunpack.c.l.b16 %v175
  %v587 = vunpack.c.l.b16 %v176
  %v588 = vunpack.c.l.b16 %v177
  %v589 = vunpack.c.l.b16 %v178
  %v590 = vunpack.c.l.b16 %v179
  %v591 = vunpack.c.l.b16 %v180
  %v592 = vunpack.c.l.b16 %v181
  %v593 = vunpack.c.l.b16 %v182
  %v594 = vpack.c.b16 %v467, %v466
  %v595 = vpack.c.b16 %v469, %v468
  %v596 = vpack.c.b16 %v471, %v470
  %v597 = vpack.c.b16 %v473, %v472
  %v598 = vpack.c.b16 %v475, %v474
  %v599 = vpack.c.b16 %v477, %v476
  %v600 = vpack.c.b16 %v479, %v478
  %v601 = vpack.c.b16 %v481, %v480
  %v602 = vpack.c.b16 %v483, %v482
  %v603 = vpack.c.b16 %v485, %v484
  %v604 = vpack.c.b16 %v487, %v486
  %v605 = vpack.c.b16 %v489, %v488
  %v606 = vpack.c.b16 %v491, %v490
  %v607 = vpack.c.b16 %v493, %v492
  %v608 = vpack.c.b16 %v495, %v494
  %v609 = vpack.c.b16 %v497, %v496
  %v610 = vpack.c.b16 %v499, %v498
  %v611 = vpack.c.b16 %v501, %v500
  %v612 = vpack.c.b16 %v503, %v502
  %v613 = vpack.c.b16 %v505, %v504
  %v614 = vpack.c.b16 %v507, %v506
  %v615 = vpack.c.b16 %v509, %v508
  %v616 = vpack.c.b16 %v511, %v510
  %v617 = vpack.c.b16 %v513, %v512
  %v618 = vpack.c.b16 %v515, %v514
  %v619 = vpack.c.b16 %v517, %v516
  %v620 = vpack.c.b16 %v519, %v518
  %v621 = vpack.c.b16 %v521, %v520
  %v622 = vpack.c.b16 %v523, %v522
  %v623 = vpack.c.b16 %v525, %v524
  %v624 = vpack.c.b16 %v527, %v526
  %v625 = vpack.c.b16 %v529, %v528
  %v626 = vpack.c.b16 %v531, %v530
  %v627 = vpack.c.b16 %v533, %v532
  %v628 = vpack.c.b16 %v535, %v534
  %v629 = vpack.c.b16 %v537, %v536
  %v630 = vpack.c.b16 %v539, %v538
  %v631 = vpack.c.b16 %v541, %v540
  %v632 = vpack.c.b16 %v543, %v542
  %v633 = vpack.c.b16 %v545, %v544
  %v634 = vpack.c.b16 %v547, %v546
  %v635 = vpack.c.b16 %v549, %v548
  %v636 = vpack.c.b16 %v551, %v550
  %v637 = vpack.c.b16 %v553, %v552
  %v638 = vpack.c.b16 %v555, %v554
  %v639 = vpack.c.b16 %v557, %v556
  %v640 = vpack.c.b16 %v559, %v558
  %v641 = vpack.c.b16 %v561, %v560
  %v642 = vpack.c.b16 %v563, %v562
  %v643 = vpack.c.b16 %v565, %v564
  %v644 = vpack.c.b16 %v567, %v566
  %v645 = vpack.c.b16 %v569, %v568
  %v646 = vpack.c.b16 %v571, %v570
  %v647 = vpack.c.b16 %v573, %v572
  %v648 = vpack.c.b16 %v575, %v574
  %v649 = vpack.c.b16 %v577, %v576
  %v650 = vpack.c.b16 %v579, %v578
  %v651 = vpack.c.b16 %v581, %v580
  %v652 = vpack.c.b16 %v583, %v582
  %v653 = vpack.c.b16 %v585, %v584
  %v654 = vpack.c.b16 %v587, %v586
  %v655 = vpack.c.b16 %v589, %v588
  %v656 = vpack.c.b16 %v591, %v590
  %v657 = vpack.c.b16 %v593, %v592
  %722 = vmatprep.subr.bf16.mxu0 0
  %723 = vmatpush1.bf16.msra.mxu0 %v594
  %724 = vmatprep.subr.bf16.mxu0 0
  %725 = vmatpush1.bf16.msra.mxu0 %v595
  %726 = vmatprep.subr.bf16.mxu0 0
  %727 = vmatpush1.bf16.msra.mxu0 %v596
  %728 = vmatprep.subr.bf16.mxu0 0
  %729 = vmatpush1.bf16.msra.mxu0 %v597
  %730 = vmatprep.subr.bf16.mxu0 0
  %731 = vmatpush1.bf16.msra.mxu0 %v598
  %732 = vmatprep.subr.bf16.mxu0 0
  %733 = vmatpush1.bf16.msra.mxu0 %v599
  %734 = vmatprep.subr.bf16.mxu0 0
  %735 = vmatpush1.bf16.msra.mxu0 %v600
  %736 = vmatprep.subr.bf16.mxu0 0
  %737 = vmatpush1.bf16.msra.mxu0 %v601
  %738 = vmatprep.subr.bf16.mxu0 0
  %739 = vmatpush1.bf16.msra.mxu0 %v602
  %740 = vmatprep.subr.bf16.mxu0 0
  %741 = vmatpush1.bf16.msra.mxu0 %v603
  %742 = vmatprep.subr.bf16.mxu0 0
  %743 = vmatpush1.bf16.msra.mxu0 %v604
  %744 = vmatprep.subr.bf16.mxu0 0
  %745 = vmatpush1.bf16.msra.mxu0 %v605
  %746 = vmatprep.subr.bf16.mxu0 0
  %747 = vmatpush1.bf16.msra.mxu0 %v606
  %748 = vmatprep.subr.bf16.mxu0 0
  %749 = vmatpush1.bf16.msra.mxu0 %v607
  %750 = vmatprep.subr.bf16.mxu0 0
  %751 = vmatpush1.bf16.msra.mxu0 %v608
  %752 = vmatprep.subr.bf16.mxu0 0
  %753 = vmatpush1.bf16.msra.mxu0 %v609
  %754 = vmatprep.mubr.bf16.mxu0 %v275
  %755 = vmatmul.mubr.bf16.gmra.mrb[0].mxu0 %v274
  %v756 = vpop.f32.mrb[0].mxu0
  %v757 = vadd.f32 %v188, %v756
  %v758 = vpop.f32.mrb[0].mxu0
  %v759 = vpop.f32.mrb[0].mxu0
  %v760 = vadd.f32 %v188, %v759
  %v761 = vpop.f32.mrb[0].mxu0
  %762 = vmatprep.mubr.bf16.mxu0 %v283
  %763 = vmatmul.mubr.bf16.gmra.mrb[0].mxu0 %v282
  %v764 = vpop.f32.mrb[0].mxu0
  %v765 = vadd.f32 %v188, %v764
  %v766 = vpop.f32.mrb[0].mxu0
  %v767 = vpop.f32.mrb[0].mxu0
  %v768 = vadd.f32 %v188, %v767
  %v769 = vpop.f32.mrb[0].mxu0
  %770 = vmatprep.mubr.bf16.mxu0 %v291
  %771 = vmatmul.mubr.bf16.gmra.mrb[0].mxu0 %v290
  %v772 = vpop.f32.mrb[0].mxu0
  %v773 = vadd.f32 %v188, %v772
  %v774 = vpop.f32.mrb[0].mxu0
  %v775 = vpop.f32.mrb[0].mxu0
  %v776 = vadd.f32 %v188, %v775
  %v777 = vpop.f32.mrb[0].mxu0
  %778 = vmatprep.mubr.bf16.mxu0 %v299
  %779 = vmatmul.mubr.bf16.gmra.mrb[0].mxu0 %v298
  %v780 = vpop.f32.mrb[0].mxu0
  %v781 = vadd.f32 %v188, %v780
  %v782 = vpop.f32.mrb[0].mxu0
  %v783 = vpop.f32.mrb[0].mxu0
  %v784 = vpop.f32.mrb[0].mxu0
  %785 = vdwg.mxu0
  %786 = vmatprep.subr.bf16.mxu0 0
  %787 = vmatpush1.bf16.msra.mxu0 %v610
  %788 = vmatprep.subr.bf16.mxu0 0
  %789 = vmatpush1.bf16.msra.mxu0 %v611
  %790 = vmatprep.subr.bf16.mxu0 0
  %791 = vmatpush1.bf16.msra.mxu0 %v612
  %792 = vmatprep.subr.bf16.mxu0 0
  %793 = vmatpush1.bf16.msra.mxu0 %v613
  %794 = vmatprep.subr.bf16.mxu0 0
  %795 = vmatpush1.bf16.msra.mxu0 %v614
  %796 = vmatprep.subr.bf16.mxu0 0
  %797 = vmatpush1.bf16.msra.mxu0 %v615
  %798 = vmatprep.subr.bf16.mxu0 0
  %799 = vmatpush1.bf16.msra.mxu0 %v616
  %800 = vmatprep.subr.bf16.mxu0 0
  %801 = vmatpush1.bf16.msra.mxu0 %v617
  %802 = vmatprep.subr.bf16.mxu0 0
  %803 = vmatpush1.bf16.msra.mxu0 %v618
  %804 = vmatprep.subr.bf16.mxu0 0
  %805 = vmatpush1.bf16.msra.mxu0 %v619
  %806 = vmatprep.subr.bf16.mxu0 0
  %807 = vmatpush1.bf16.msra.mxu0 %v620
  %808 = vmatprep.subr.bf16.mxu0 0
  %809 = vmatpush1.bf16.msra.mxu0 %v621
  %810 = vmatprep.subr.bf16.mxu0 0
  %811 = vmatpush1.bf16.msra.mxu0 %v622
  %812 = vmatprep.subr.bf16.mxu0 0
  %813 = vmatpush1.bf16.msra.mxu0 %v623
  %814 = vmatprep.subr.bf16.mxu0 0
  %815 = vmatpush1.bf16.msra.mxu0 %v624
  %816 = vmatprep.subr.bf16.mxu0 0
  %817 = vmatpush1.bf16.msra.mxu0 %v625
  %818 = vmatprep.mubr.bf16.mxu0 %v277
  %819 = vmatmul.mubr.bf16.gmra.mrb[0].mxu0 %v276
  %v820 = vpop.f32.mrb[0].mxu0
  %v821 = vadd.f32 %v757, %v820
  %v822 = vpop.f32.mrb[0].mxu0
  %v823 = vpop.f32.mrb[0].mxu0
  %v824 = vadd.f32 %v760, %v823
  %v825 = vpop.f32.mrb[0].mxu0
  %826 = vmatprep.mubr.bf16.mxu0 %v285
  %827 = vmatmul.mubr.bf16.gmra.mrb[0].mxu0 %v284
  %v828 = vpop.f32.mrb[0].mxu0
  %v829 = vadd.f32 %v765, %v828
  %v830 = vpop.f32.mrb[0].mxu0
  %v831 = vpop.f32.mrb[0].mxu0
  %v832 = vadd.f32 %v768, %v831
  %v833 = vpop.f32.mrb[0].mxu0
  %834 = vmatprep.mubr.bf16.mxu0 %v293
  %835 = vmatmul.mubr.bf16.gmra.mrb[0].mxu0 %v292
  %v836 = vpop.f32.mrb[0].mxu0
  %v837 = vadd.f32 %v773, %v836
  %v838 = vpop.f32.mrb[0].mxu0
  %v839 = vpop.f32.mrb[0].mxu0
  %v840 = vadd.f32 %v776, %v839
  %v841 = vpop.f32.mrb[0].mxu0
  %842 = vmatprep.mubr.bf16.mxu0 %v301
  %843 = vmatmul.mubr.bf16.gmra.mrb[0].mxu0 %v300
  %v844 = vpop.f32.mrb[0].mxu0
  %v845 = vadd.f32 %v781, %v844
  %v846 = vpop.f32.mrb[0].mxu0
  %v847 = vpop.f32.mrb[0].mxu0
  %v848 = vpop.f32.mrb[0].mxu0
  %849 = vdwg.mxu0
  %850 = vmatprep.subr.bf16.mxu0 0
  %851 = vmatpush1.bf16.msra.mxu0 %v626
  %852 = vmatprep.subr.bf16.mxu0 0
  %853 = vmatpush1.bf16.msra.mxu0 %v627
  %854 = vmatprep.subr.bf16.mxu0 0
  %855 = vmatpush1.bf16.msra.mxu0 %v628
  %856 = vmatprep.subr.bf16.mxu0 0
  %857 = vmatpush1.bf16.msra.mxu0 %v629
  %858 = vmatprep.subr.bf16.mxu0 0
  %859 = vmatpush1.bf16.msra.mxu0 %v630
  %860 = vmatprep.subr.bf16.mxu0 0
  %861 = vmatpush1.bf16.msra.mxu0 %v631
  %862 = vmatprep.subr.bf16.mxu0 0
  %863 = vmatpush1.bf16.msra.mxu0 %v632
  %864 = vmatprep.subr.bf16.mxu0 0
  %865 = vmatpush1.bf16.msra.mxu0 %v633
  %866 = vmatprep.subr.bf16.mxu0 0
  %867 = vmatpush1.bf16.msra.mxu0 %v634
  %868 = vmatprep.subr.bf16.mxu0 0
  %869 = vmatpush1.bf16.msra.mxu0 %v635
  %870 = vmatprep.subr.bf16.mxu0 0
  %871 = vmatpush1.bf16.msra.mxu0 %v636
  %872 = vmatprep.subr.bf16.mxu0 0
  %873 = vmatpush1.bf16.msra.mxu0 %v637
  %874 = vmatprep.subr.bf16.mxu0 0
  %875 = vmatpush1.bf16.msra.mxu0 %v638
  %876 = vmatprep.subr.bf16.mxu0 0
  %877 = vmatpush1.bf16.msra.mxu0 %v639
  %878 = vmatprep.subr.bf16.mxu0 0
  %879 = vmatpush1.bf16.msra.mxu0 %v640
  %880 = vmatprep.subr.bf16.mxu0 0
  %881 = vmatpush1.bf16.msra.mxu0 %v641
  %882 = vmatprep.mubr.bf16.mxu0 %v279
  %883 = vmatmul.mubr.bf16.gmra.mrb[0].mxu0 %v278
  %v884 = vpop.f32.mrb[0].mxu0
  %v885 = vadd.f32 %v821, %v884
  %v886 = vpop.f32.mrb[0].mxu0
  %v887 = vpop.f32.mrb[0].mxu0
  %v888 = vadd.f32 %v824, %v887
  %v889 = vpop.f32.mrb[0].mxu0
  %890 = vmatprep.mubr.bf16.mxu0 %v287
  %891 = vmatmul.mubr.bf16.gmra.mrb[0].mxu0 %v286
  %v892 = vpop.f32.mrb[0].mxu0
  %v893 = vadd.f32 %v829, %v892
  %v894 = vpop.f32.mrb[0].mxu0
  %v895 = vpop.f32.mrb[0].mxu0
  %v896 = vadd.f32 %v832, %v895
  %v897 = vpop.f32.mrb[0].mxu0
  %898 = vmatprep.mubr.bf16.mxu0 %v295
  %899 = vmatmul.mubr.bf16.gmra.mrb[0].mxu0 %v294
  %v900 = vpop.f32.mrb[0].mxu0
  %v901 = vadd.f32 %v837, %v900
  %v902 = vpop.f32.mrb[0].mxu0
  %v903 = vpop.f32.mrb[0].mxu0
  %v904 = vadd.f32 %v840, %v903
  %v905 = vpop.f32.mrb[0].mxu0
  %906 = vmatprep.mubr.bf16.mxu0 %v303
  %907 = vmatmul.mubr.bf16.gmra.mrb[0].mxu0 %v302
  %v908 = vpop.f32.mrb[0].mxu0
  %v909 = vadd.f32 %v845, %v908
  %v910 = vpop.f32.mrb[0].mxu0
  %v911 = vpop.f32.mrb[0].mxu0
  %v912 = vpop.f32.mrb[0].mxu0
  %913 = vdwg.mxu0
  %914 = vmatprep.subr.bf16.mxu0 0
  %915 = vmatpush1.bf16.msra.mxu0 %v642
  %916 = vmatprep.subr.bf16.mxu0 0
  %917 = vmatpush1.bf16.msra.mxu0 %v643
  %918 = vmatprep.subr.bf16.mxu0 0
  %919 = vmatpush1.bf16.msra.mxu0 %v644
  %920 = vmatprep.subr.bf16.mxu0 0
  %921 = vmatpush1.bf16.msra.mxu0 %v645
  %922 = vmatprep.subr.bf16.mxu0 0
  %923 = vmatpush1.bf16.msra.mxu0 %v646
  %924 = vmatprep.subr.bf16.mxu0 0
  %925 = vmatpush1.bf16.msra.mxu0 %v647
  %926 = vmatprep.subr.bf16.mxu0 0
  %927 = vmatpush1.bf16.msra.mxu0 %v648
  %928 = vmatprep.subr.bf16.mxu0 0
  %929 = vmatpush1.bf16.msra.mxu0 %v649
  %930 = vmatprep.subr.bf16.mxu0 0
  %931 = vmatpush1.bf16.msra.mxu0 %v650
  %932 = vmatprep.subr.bf16.mxu0 0
  %933 = vmatpush1.bf16.msra.mxu0 %v651
  %934 = vmatprep.subr.bf16.mxu0 0
  %935 = vmatpush1.bf16.msra.mxu0 %v652
  %936 = vmatprep.subr.bf16.mxu0 0
  %937 = vmatpush1.bf16.msra.mxu0 %v653
  %938 = vmatprep.subr.bf16.mxu0 0
  %939 = vmatpush1.bf16.msra.mxu0 %v654
  %940 = vmatprep.subr.bf16.mxu0 0
  %941 = vmatpush1.bf16.msra.mxu0 %v655
  %942 = vmatprep.subr.bf16.mxu0 0
  %943 = vmatpush1.bf16.msra.mxu0 %v656
  %944 = vmatprep.subr.bf16.mxu0 0
  %945 = vmatpush1.bf16.msra.mxu0 %v657
  %946 = vmatprep.mubr.bf16.mxu0 %v281
  %947 = vmatmul.mubr.bf16.gmra.mrb[0].mxu0 %v280
  %v948 = vpop.f32.mrb[0].mxu0
  %v949 = vadd.f32 %v885, %v948
  %v950 = vpop.f32.mrb[0].mxu0
  %v951 = vpop.f32.mrb[0].mxu0
  %v952 = vadd.f32 %v888, %v951
  %v953 = vpop.f32.mrb[0].mxu0
  %954 = vmatprep.mubr.bf16.mxu0 %v289
  %955 = vmatmul.mubr.bf16.gmra.mrb[0].mxu0 %v288
  %v956 = vpop.f32.mrb[0].mxu0
  %v957 = vadd.f32 %v893, %v956
  %v958 = vpop.f32.mrb[0].mxu0
  %v959 = vpop.f32.mrb[0].mxu0
  %v960 = vadd.f32 %v896, %v959
  %v961 = vpop.f32.mrb[0].mxu0
  %962 = vmatprep.mubr.bf16.mxu0 %v297
  %963 = vmatmul.mubr.bf16.gmra.mrb[0].mxu0 %v296
  %v964 = vpop.f32.mrb[0].mxu0
  %v965 = vadd.f32 %v901, %v964
  %v966 = vpop.f32.mrb[0].mxu0
  %v967 = vpop.f32.mrb[0].mxu0
  %v968 = vadd.f32 %v904, %v967
  %v969 = vpop.f32.mrb[0].mxu0
  %970 = vmatprep.mubr.bf16.mxu0 %v305
  %971 = vmatmul.mubr.bf16.gmra.mrb[0].mxu0 %v304
  %v972 = vpop.f32.mrb[0].mxu0
  %v973 = vadd.f32 %v909, %v972
  %v974 = vpop.f32.mrb[0].mxu0
  %v975 = vpop.f32.mrb[0].mxu0
  %v976 = vpop.f32.mrb[0].mxu0
  %977 = vdwg.mxu0
  %vm978 = vcmask 7168
  %979 = vst.msk [vmem:[%s5] sm:$0xff] %vm978, %v949
  %980 = vst.msk [vmem:[%s5 + $0x8] sm:$0xff] %vm978, %v952
  %981 = vst.msk [vmem:[%s5 + $0x10] sm:$0xff] %vm978, %v957
  %982 = vst.msk [vmem:[%s5 + $0x18] sm:$0xff] %vm978, %v960
  %983 = vst.msk [vmem:[%s5 + $0x20] sm:$0xff] %vm978, %v965
  %984 = vst.msk [vmem:[%s5 + $0x28] sm:$0xff] %vm978, %v968
  %vm985 = vcmask 1024
  %986 = vst.msk [vmem:[%s5 + $0x30] sm:$0x3] %vm985, %v973
  // Predicated region
  $region22: #{multiscale_discriminator_forward.24} parent=0 // pred_check
    _
  $region23: #{multiscale_discriminator_forward.24} parent=0 // pred_check_branch
    %988 = sbr.rel (0) target = $region25
  $region24: #{multiscale_discriminator_forward.24} parent=0 // pred_region
    _
  $region25: #{multiscale_discriminator_forward.24} parent=0 // pred_fallthru
    _
  // Predicated region
  $region26: #{multiscale_discriminator_forward.24} parent=0 // pred_check
    _
  $region27: #{multiscale_discriminator_forward.24} parent=0 // pred_check_branch
    %990 = sbr.rel (0) target = $region29
  $region28: #{multiscale_discriminator_forward.24} parent=0 // pred_region
    _
  $region29: #{multiscale_discriminator_forward.24} parent=0 // pred_fallthru
    _

// kernel: multiscale_discriminator_forward.15
$region0: #{multiscale_discriminator_forward.15}
  #allocation0 [shape = 'u32[]', space=smem, size = 0x4, offset = 0x4, fixed_abs, tag = 'smem constant byte address 0x4 - core index']
  #allocation1 [shape = 'u32[144,128]{1,0:T(1,128)}', space=vmem, size = 0x12000, scoped, tag = 'internal scratch']
  %s0 = inlined_call_operand.vmem [shape: bf16[578,48], index: 0, kind: input, shape index: {}]
  %s1 = inlined_call_operand.vmem [shape: bf16[48,8], index: 1, kind: input, shape index: {}]
  %s2 = inlined_call_operand.vmem [shape: f32[1,8], index: 2, kind: input, shape index: {}]
  %s3 = inlined_call_operand.vmem [shape: f32[1,8], index: 3, kind: input, shape index: {}]
  %s4 = inlined_call_operand.vmem [shape: f32[1,8], index: 4, kind: input, shape index: {}]
  %s5 = inlined_call_operand.vmem [shape: f32[578,8], index: 5, kind: output, shape index: {}]
  %s6 = sld [smem:[#allocation0]]
  $region30: #{multiscale_discriminator_forward.15} parent=0
    _
  %s8 = ssub.s32 1, %s6
  %s9 = scalar_select 0, %s8, %s6
  // Predicated region
  $region2: #{multiscale_discriminator_forward.15} parent=0 // pred_check
    _
  $region3: #{multiscale_discriminator_forward.15} parent=0 // pred_check_branch
    %11 = sbr.rel (0) target = $region5
  $region4: #{multiscale_discriminator_forward.15} parent=0 // pred_region
    _
  $region5: #{multiscale_discriminator_forward.15} parent=0 // pred_fallthru
    _
  // Predicated region
  $region6: #{multiscale_discriminator_forward.15} parent=0 // pred_check
    _
  $region7: #{multiscale_discriminator_forward.15} parent=0 // pred_check_branch
    %13 = sbr.rel (0) target = $region9
  $region8: #{multiscale_discriminator_forward.15} parent=0 // pred_region
    _
  $region9: #{multiscale_discriminator_forward.15} parent=0 // pred_fallthru
    _
  // Predicated region
  $region10: #{multiscale_discriminator_forward.15} parent=0 // pred_check
    _
  $region11: #{multiscale_discriminator_forward.15} parent=0 // pred_check_branch
    %15 = sbr.rel (0) target = $region13
  $region12: #{multiscale_discriminator_forward.15} parent=0 // pred_region
    _
  $region13: #{multiscale_discriminator_forward.15} parent=0 // pred_fallthru
    _
  // Predicated region
  $region14: #{multiscale_discriminator_forward.15} parent=0 // pred_check
    _
  $region15: #{multiscale_discriminator_forward.15} parent=0 // pred_check_branch
    %17 = sbr.rel (0) target = $region17
  $region16: #{multiscale_discriminator_forward.15} parent=0 // pred_region
    _
  $region17: #{multiscale_discriminator_forward.15} parent=0 // pred_fallthru
    _
  // Predicated region
  $region18: #{multiscale_discriminator_forward.15} parent=0 // pred_check
    _
  $region19: #{multiscale_discriminator_forward.15} parent=0 // pred_check_branch
    %19 = sbr.rel (0) target = $region21
  $region20: #{multiscale_discriminator_forward.15} parent=0 // pred_region
    _
  $region21: #{multiscale_discriminator_forward.15} parent=0 // pred_fallthru
    _
  %v21 = vld [vmem:[%s0] sm:$0xf]
  %v22 = vld [vmem:[%s0 + $0x4] sm:$0xf]
  %v23 = vld [vmem:[%s0 + $0x8] sm:$0xf]
  %v24 = vld [vmem:[%s0 + $0xc] sm:$0xf]
  %v25 = vld [vmem:[%s0 + $0x10] sm:$0xf]
  %v26 = vld [vmem:[%s0 + $0x14] sm:$0xf]
  %v27 = vld [vmem:[%s0 + $0x18] sm:$0xf]
  %v28 = vld [vmem:[%s0 + $0x1c] sm:$0xf]
  %v29 = vld [vmem:[%s0 + $0x20] sm:$0xf]
  %v30 = vld [vmem:[%s0 + $0x24] sm:$0xf]
  %v31 = vld [vmem:[%s0 + $0x28] sm:$0xf]
  %v32 = vld [vmem:[%s0 + $0x2c] sm:$0xf]
  %v33 = vld [vmem:[%s0 + $0x30] sm:$0xf]
  %v34 = vld [vmem:[%s0 + $0x34] sm:$0xf]
  %v35 = vld [vmem:[%s0 + $0x38] sm:$0xf]
  %v36 = vld [vmem:[%s0 + $0x3c] sm:$0xf]
  %v37 = vld [vmem:[%s0 + $0x40] sm:$0xf]
  %v38 = vld [vmem:[%s0 + $0x44] sm:$0xf]
  %v39 = vld [vmem:[%s0 + $0x48] sm:$0xf]
  %v40 = vld [vmem:[%s0 + $0x4c] sm:$0xf]
  %v41 = vld [vmem:[%s0 + $0x50] sm:$0xf]
  %v42 = vld [vmem:[%s0 + $0x54] sm:$0xf]
  %v43 = vld [vmem:[%s0 + $0x58] sm:$0xf]
  %v44 = vld [vmem:[%s0 + $0x5c] sm:$0xf]
  %v45 = vld [vmem:[%s0 + $0x60] sm:$0xf]
  %v46 = vld [vmem:[%s0 + $0x64] sm:$0xf]
  %v47 = vld [vmem:[%s0 + $0x68] sm:$0xf]
  %v48 = vld [vmem:[%s0 + $0x6c] sm:$0xf]
  %v49 = vld [vmem:[%s0 + $0x70] sm:$0xf]
  %v50 = vld [vmem:[%s0 + $0x74] sm:$0xf]
  %v51 = vld [vmem:[%s0 + $0x78] sm:$0xf]
  %v52 = vld [vmem:[%s0 + $0x7c] sm:$0xf]
  %v53 = vld [vmem:[%s0 + $0x80] sm:$0xf]
  %v54 = vld [vmem:[%s0 + $0x84] sm:$0xf]
  %v55 = vld [vmem:[%s0 + $0x88] sm:$0xf]
  %v56 = vld [vmem:[%s0 + $0x8c] sm:$0xf]
  %v57 = vld [vmem:[%s0 + $0x90] sm:$0xf]
  %v58 = vld [vmem:[%s0 + $0x94] sm:$0xf]
  %v59 = vld [vmem:[%s0 + $0x98] sm:$0xf]
  %v60 = vld [vmem:[%s0 + $0x9c] sm:$0xf]
  %v61 = vld [vmem:[%s0 + $0xa0] sm:$0xf]
  %v62 = vld [vmem:[%s0 + $0xa4] sm:$0xf]
  %v63 = vld [vmem:[%s0 + $0xa8] sm:$0xf]
  %v64 = vld [vmem:[%s0 + $0xac] sm:$0xf]
  %v65 = vld [vmem:[%s0 + $0xb0] sm:$0xf]
  %v66 = vld [vmem:[%s0 + $0xb4] sm:$0xf]
  %v67 = vld [vmem:[%s0 + $0xb8] sm:$0xf]
  %v68 = vld [vmem:[%s0 + $0xbc] sm:$0xf]
  %v69 = vld [vmem:[%s0 + $0xc0] sm:$0xf]
  %v70 = vld [vmem:[%s0 + $0xc4] sm:$0xf]
  %v71 = vld [vmem:[%s0 + $0xc8] sm:$0xf]
  %v72 = vld [vmem:[%s0 + $0xcc] sm:$0xf]
  %v73 = vld [vmem:[%s0 + $0xd0] sm:$0xf]
  %v74 = vld [vmem:[%s0 + $0xd4] sm:$0xf]
  %v75 = vld [vmem:[%s0 + $0xd8] sm:$0xf]
  %v76 = vld [vmem:[%s0 + $0xdc] sm:$0xf]
  %v77 = vld [vmem:[%s0 + $0xe0] sm:$0xf]
  %v78 = vld [vmem:[%s0 + $0xe4] sm:$0xf]
  %v79 = vld [vmem:[%s0 + $0xe8] sm:$0xf]
  %v80 = vld [vmem:[%s0 + $0xec] sm:$0xf]
  %v81 = vld [vmem:[%s0 + $0xf0] sm:$0xf]
  %v82 = vld [vmem:[%s0 + $0xf4] sm:$0xf]
  %v83 = vld [vmem:[%s0 + $0xf8] sm:$0xf]
  %v84 = vld [vmem:[%s0 + $0xfc] sm:$0xf]
  %v85 = vld [vmem:[%s0 + $0x100] sm:$0xf]
  %v86 = vld [vmem:[%s0 + $0x104] sm:$0xf]
  %v87 = vld [vmem:[%s0 + $0x108] sm:$0xf]
  %v88 = vld [vmem:[%s0 + $0x10c] sm:$0xf]
  %v89 = vld [vmem:[%s0 + $0x110] sm:$0xf]
  %v90 = vld [vmem:[%s0 + $0x114] sm:$0xf]
  %v91 = vld [vmem:[%s0 + $0x118] sm:$0xf]
  %v92 = vld [vmem:[%s0 + $0x11c] sm:$0xf]
  %v93 = vld [vmem:[%s0 + $0x120] sm:$0x1]
  %v94 = vld [vmem:[%s1] sm:$0xf]
  %v95 = vld [vmem:[%s1 + $0x4] sm:$0xf]
  %v96 = vld [vmem:[%s1 + $0x8] sm:$0xf]
  %v97 = vld [vmem:[%s1 + $0xc] sm:$0xf]
  %v98 = vld [vmem:[%s1 + $0x10] sm:$0xf]
  %v99 = vld [vmem:[%s1 + $0x14] sm:$0xf]
  %v100 = vld [vmem:[%s2] sm:$0x1]
  %v102 = vlaneseq
  %v103 = vshrl.u32 %v102, 7
  %v104 = vsub.s32 0, %v103
  %v105 = vrot.slane %v100, %v104
  %v180 = vunpack.c.l.b16 %v21
  %v181 = vunpack.c.l.b16 %v22
  %v182 = vunpack.c.l.b16 %v23
  %v183 = vunpack.c.l.b16 %v24
  %v184 = vunpack.c.l.b16 %v25
  %v185 = vunpack.c.l.b16 %v26
  %v186 = vunpack.c.l.b16 %v27
  %v187 = vunpack.c.l.b16 %v28
  %v188 = vunpack.c.l.b16 %v29
  %v189 = vunpack.c.l.b16 %v30
  %v190 = vunpack.c.l.b16 %v31
  %v191 = vunpack.c.l.b16 %v32
  %v192 = vunpack.c.l.b16 %v33
  %v193 = vunpack.c.l.b16 %v34
  %v194 = vunpack.c.l.b16 %v35
  %v195 = vunpack.c.l.b16 %v36
  %v196 = vunpack.c.l.b16 %v37
  %v197 = vunpack.c.l.b16 %v38
  %v198 = vunpack.c.l.b16 %v39
  %v199 = vunpack.c.l.b16 %v40
  %v200 = vunpack.c.l.b16 %v41
  %v201 = vunpack.c.l.b16 %v42
  %v202 = vunpack.c.l.b16 %v43
  %v203 = vunpack.c.l.b16 %v44
  %v204 = vunpack.c.l.b16 %v45
  %v205 = vunpack.c.l.b16 %v46
  %v206 = vunpack.c.l.b16 %v47
  %v207 = vunpack.c.l.b16 %v48
  %v208 = vunpack.c.l.b16 %v49
  %v209 = vunpack.c.l.b16 %v50
  %v210 = vunpack.c.l.b16 %v51
  %v211 = vunpack.c.l.b16 %v52
  %v212 = vunpack.c.l.b16 %v53
  %v213 = vunpack.c.l.b16 %v54
  %v214 = vunpack.c.l.b16 %v55
  %v215 = vunpack.c.l.b16 %v56
  %v216 = vunpack.c.l.b16 %v57
  %v217 = vunpack.c.l.b16 %v58
  %v218 = vunpack.c.l.b16 %v59
  %v219 = vunpack.c.l.b16 %v60
  %v220 = vunpack.c.l.b16 %v61
  %v221 = vunpack.c.l.b16 %v62
  %v222 = vunpack.c.l.b16 %v63
  %v223 = vunpack.c.l.b16 %v64
  %v224 = vunpack.c.l.b16 %v65
  %v225 = vunpack.c.l.b16 %v66
  %v226 = vunpack.c.l.b16 %v67
  %v227 = vunpack.c.l.b16 %v68
  %v228 = vunpack.c.l.b16 %v69
  %v229 = vunpack.c.l.b16 %v70
  %v230 = vunpack.c.l.b16 %v71
  %v231 = vunpack.c.l.b16 %v72
  %v232 = vunpack.c.l.b16 %v73
  %v233 = vunpack.c.l.b16 %v74
  %v234 = vunpack.c.l.b16 %v75
  %v235 = vunpack.c.l.b16 %v76
  %v236 = vunpack.c.l.b16 %v77
  %v237 = vunpack.c.l.b16 %v78
  %v238 = vunpack.c.l.b16 %v79
  %v239 = vunpack.c.l.b16 %v80
  %v240 = vunpack.c.l.b16 %v81
  %v241 = vunpack.c.l.b16 %v82
  %v242 = vunpack.c.l.b16 %v83
  %v243 = vunpack.c.l.b16 %v84
  %v244 = vunpack.c.l.b16 %v85
  %v245 = vunpack.c.l.b16 %v86
  %v246 = vunpack.c.l.b16 %v87
  %v247 = vunpack.c.l.b16 %v88
  %v248 = vunpack.c.l.b16 %v89
  %v249 = vunpack.c.l.b16 %v90
  %v250 = vunpack.c.l.b16 %v91
  %v251 = vunpack.c.l.b16 %v92
  %v252 = vunpack.c.l.b16 %v93
  %v253 = vpack.c.b16 %v181, %v180
  %v254 = vpack.c.b16 %v183, %v182
  %v255 = vpack.c.b16 %v185, %v184
  %v256 = vpack.c.b16 %v187, %v186
  %v257 = vpack.c.b16 %v189, %v188
  %v258 = vpack.c.b16 %v191, %v190
  %v259 = vpack.c.b16 %v193, %v192
  %v260 = vpack.c.b16 %v195, %v194
  %v261 = vpack.c.b16 %v197, %v196
  %v262 = vpack.c.b16 %v199, %v198
  %v263 = vpack.c.b16 %v201, %v200
  %v264 = vpack.c.b16 %v203, %v202
  %v265 = vpack.c.b16 %v205, %v204
  %v266 = vpack.c.b16 %v207, %v206
  %v267 = vpack.c.b16 %v209, %v208
  %v268 = vpack.c.b16 %v211, %v210
  %v269 = vpack.c.b16 %v213, %v212
  %v270 = vpack.c.b16 %v215, %v214
  %v271 = vpack.c.b16 %v217, %v216
  %v272 = vpack.c.b16 %v219, %v218
  %v273 = vpack.c.b16 %v221, %v220
  %v274 = vpack.c.b16 %v223, %v222
  %v275 = vpack.c.b16 %v225, %v224
  %v276 = vpack.c.b16 %v227, %v226
  %v277 = vpack.c.b16 %v229, %v228
  %v278 = vpack.c.b16 %v231, %v230
  %v279 = vpack.c.b16 %v233, %v232
  %v280 = vpack.c.b16 %v235, %v234
  %v281 = vpack.c.b16 %v237, %v236
  %v282 = vpack.c.b16 %v239, %v238
  %v283 = vpack.c.b16 %v241, %v240
  %v284 = vpack.c.b16 %v243, %v242
  %v285 = vpack.c.b16 %v245, %v244
  %v286 = vpack.c.b16 %v247, %v246
  %v287 = vpack.c.b16 %v249, %v248
  %v288 = vpack.c.b16 %v251, %v250
  %v289 = vpack.c.b16 %v252, %v252
  %v296 = vunpack.c.l.b16 %v94
  %v297 = vunpack.c.l.b16 %v95
  %v298 = vunpack.c.l.b16 %v96
  %v299 = vunpack.c.l.b16 %v97
  %v300 = vunpack.c.l.b16 %v98
  %v301 = vunpack.c.l.b16 %v99
  %v302 = vpack.c.b16 %v297, %v296
  %v303 = vpack.c.b16 %v299, %v298
  %v304 = vpack.c.b16 %v301, %v300
  %vm308 = vcmask 392192
  %v310 = vsel %vm308, %v253, 0
  %v313 = vsel %vm308, %v254, 0
  %v316 = vsel %vm308, %v255, 0
  %v319 = vsel %vm308, %v256, 0
  %v322 = vsel %vm308, %v257, 0
  %v325 = vsel %vm308, %v258, 0
  %v328 = vsel %vm308, %v259, 0
  %v331 = vsel %vm308, %v260, 0
  %v334 = vsel %vm308, %v261, 0
  %v337 = vsel %vm308, %v262, 0
  %v340 = vsel %vm308, %v263, 0
  %v343 = vsel %vm308, %v264, 0
  %v346 = vsel %vm308, %v265, 0
  %v349 = vsel %vm308, %v266, 0
  %v352 = vsel %vm308, %v267, 0
  %v355 = vsel %vm308, %v268, 0
  %v358 = vsel %vm308, %v269, 0
  %v361 = vsel %vm308, %v270, 0
  %v364 = vsel %vm308, %v271, 0
  %v367 = vsel %vm308, %v272, 0
  %v370 = vsel %vm308, %v273, 0
  %v373 = vsel %vm308, %v274, 0
  %v376 = vsel %vm308, %v275, 0
  %v379 = vsel %vm308, %v276, 0
  %v382 = vsel %vm308, %v277, 0
  %v385 = vsel %vm308, %v278, 0
  %v388 = vsel %vm308, %v279, 0
  %v391 = vsel %vm308, %v280, 0
  %v394 = vsel %vm308, %v281, 0
  %v397 = vsel %vm308, %v282, 0
  %v400 = vsel %vm308, %v283, 0
  %v403 = vsel %vm308, %v284, 0
  %v406 = vsel %vm308, %v285, 0
  %v409 = vsel %vm308, %v286, 0
  %v412 = vsel %vm308, %v287, 0
  %v415 = vsel %vm308, %v288, 0
  %v418 = vsel %vm308, %v289, 0
  %420 = vmatprep.subr.bf16.mxu0 0
  %421 = vmatpush1.bf16.msra.mxu0 %v302
  %422 = vmatprep.subr.bf16.mxu0 0
  %423 = vmatpush1.bf16.msra.mxu0 %v303
  %424 = vmatprep.subr.bf16.mxu0 0
  %425 = vmatpush1.bf16.msra.mxu0 %v304
  %426 = vmatprep.subr.bf16.mxu0 0
  %427 = vmatpush1.bf16.msra.mxu0 0
  %428 = vmatprep.subr.bf16.mxu0 0
  %429 = vmatpush1.bf16.msra.mxu0 0
  %430 = vmatprep.subr.bf16.mxu0 0
  %431 = vmatpush1.bf16.msra.mxu0 0
  %432 = vmatprep.subr.bf16.mxu0 0
  %433 = vmatpush1.bf16.msra.mxu0 0
  %434 = vmatprep.subr.bf16.mxu0 0
  %435 = vmatpush1.bf16.msra.mxu0 0
  %436 = vmatprep.subr.bf16.mxu0 0
  %437 = vmatpush1.bf16.msra.mxu0 0
  %438 = vmatprep.subr.bf16.mxu0 0
  %439 = vmatpush1.bf16.msra.mxu0 0
  %440 = vmatprep.subr.bf16.mxu0 0
  %441 = vmatpush1.bf16.msra.mxu0 0
  %442 = vmatprep.subr.bf16.mxu0 0
  %443 = vmatpush1.bf16.msra.mxu0 0
  %444 = vmatprep.subr.bf16.mxu0 0
  %445 = vmatpush1.bf16.msra.mxu0 0
  %446 = vmatprep.subr.bf16.mxu0 0
  %447 = vmatpush1.bf16.msra.mxu0 0
  %448 = vmatprep.subr.bf16.mxu0 0
  %449 = vmatpush1.bf16.msra.mxu0 0
  %450 = vmatprep.subr.bf16.mxu0 0
  %451 = vmatpush1.bf16.msra.mxu0 0
  %452 = vmatprep.mubr.bf16.mxu0 0
  %453 = vmatmul.mubr.bf16.gmra.mrb[0].mxu0 %v310
  %v454 = vpop.f32.mrb[0].mxu0
  %v455 = vadd.f32 %v105, %v454
  %v456 = vpop.f32.mrb[0].mxu0
  %v457 = vpop.f32.mrb[0].mxu0
  %v458 = vadd.f32 %v105, %v457
  %v459 = vpop.f32.mrb[0].mxu0
  %460 = vmatprep.mubr.bf16.mxu0 0
  %461 = vmatmul.mubr.bf16.gmra.mrb[0].mxu0 %v313
  %v462 = vpop.f32.mrb[0].mxu0
  %v463 = vadd.f32 %v105, %v462
  %v464 = vpop.f32.mrb[0].mxu0
  %v465 = vpop.f32.mrb[0].mxu0
  %v466 = vadd.f32 %v105, %v465
  %v467 = vpop.f32.mrb[0].mxu0
  %468 = vmatprep.mubr.bf16.mxu0 0
  %469 = vmatmul.mubr.bf16.gmra.mrb[0].mxu0 %v316
  %v470 = vpop.f32.mrb[0].mxu0
  %v471 = vadd.f32 %v105, %v470
  %v472 = vpop.f32.mrb[0].mxu0
  %v473 = vpop.f32.mrb[0].mxu0
  %v474 = vadd.f32 %v105, %v473
  %v475 = vpop.f32.mrb[0].mxu0
  %476 = vmatprep.mubr.bf16.mxu0 0
  %477 = vmatmul.mubr.bf16.gmra.mrb[0].mxu0 %v319
  %v478 = vpop.f32.mrb[0].mxu0
  %v479 = vadd.f32 %v105, %v478
  %v480 = vpop.f32.mrb[0].mxu0
  %v481 = vpop.f32.mrb[0].mxu0
  %v482 = vadd.f32 %v105, %v481
  %v483 = vpop.f32.mrb[0].mxu0
  %484 = vmatprep.mubr.bf16.mxu0 0
  %485 = vmatmul.mubr.bf16.gmra.mrb[0].mxu0 %v322
  %v486 = vpop.f32.mrb[0].mxu0
  %v487 = vadd.f32 %v105, %v486
  %v488 = vpop.f32.mrb[0].mxu0
  %v489 = vpop.f32.mrb[0].mxu0
  %v490 = vadd.f32 %v105, %v489
  %v491 = vpop.f32.mrb[0].mxu0
  %492 = vmatprep.mubr.bf16.mxu0 0
  %493 = vmatmul.mubr.bf16.gmra.mrb[0].mxu0 %v325
  %v494 = vpop.f32.mrb[0].mxu0
  %v495 = vadd.f32 %v105, %v494
  %v496 = vpop.f32.mrb[0].mxu0
  %v497 = vpop.f32.mrb[0].mxu0
  %v498 = vadd.f32 %v105, %v497
  %v499 = vpop.f32.mrb[0].mxu0
  %500 = vmatprep.mubr.bf16.mxu0 0
  %501 = vmatmul.mubr.bf16.gmra.mrb[0].mxu0 %v328
  %v502 = vpop.f32.mrb[0].mxu0
  %v503 = vadd.f32 %v105, %v502
  %v504 = vpop.f32.mrb[0].mxu0
  %v505 = vpop.f32.mrb[0].mxu0
  %v506 = vadd.f32 %v105, %v505
  %v507 = vpop.f32.mrb[0].mxu0
  %508 = vmatprep.mubr.bf16.mxu0 0
  %509 = vmatmul.mubr.bf16.gmra.mrb[0].mxu0 %v331
  %v510 = vpop.f32.mrb[0].mxu0
  %v511 = vadd.f32 %v105, %v510
  %v512 = vpop.f32.mrb[0].mxu0
  %v513 = vpop.f32.mrb[0].mxu0
  %v514 = vadd.f32 %v105, %v513
  %v515 = vpop.f32.mrb[0].mxu0
  %516 = vmatprep.mubr.bf16.mxu0 0
  %517 = vmatmul.mubr.bf16.gmra.mrb[0].mxu0 %v334
  %v518 = vpop.f32.mrb[0].mxu0
  %v519 = vadd.f32 %v105, %v518
  %v520 = vpop.f32.mrb[0].mxu0
  %v521 = vpop.f32.mrb[0].mxu0
  %v522 = vadd.f32 %v105, %v521
  %v523 = vpop.f32.mrb[0].mxu0
  %524 = vmatprep.mubr.bf16.mxu0 0
  %525 = vmatmul.mubr.bf16.gmra.mrb[0].mxu0 %v337
  %v526 = vpop.f32.mrb[0].mxu0
  %v527 = vadd.f32 %v105, %v526
  %v528 = vpop.f32.mrb[0].mxu0
  %v529 = vpop.f32.mrb[0].mxu0
  %v530 = vadd.f32 %v105, %v529
  %v531 = vpop.f32.mrb[0].mxu0
  %532 = vmatprep.mubr.bf16.mxu0 0
  %533 = vmatmul.mubr.bf16.gmra.mrb[0].mxu0 %v340
  %v534 = vpop.f32.mrb[0].mxu0
  %v535 = vadd.f32 %v105, %v534
  %v536 = vpop.f32.mrb[0].mxu0
  %v537 = vpop.f32.mrb[0].mxu0
  %v538 = vadd.f32 %v105, %v537
  %v539 = vpop.f32.mrb[0].mxu0
  %540 = vmatprep.mubr.bf16.mxu0 0
  %541 = vmatmul.mubr.bf16.gmra.mrb[0].mxu0 %v343
  %v542 = vpop.f32.mrb[0].mxu0
  %v543 = vadd.f32 %v105, %v542
  %v544 = vpop.f32.mrb[0].mxu0
  %v545 = vpop.f32.mrb[0].mxu0
  %v546 = vadd.f32 %v105, %v545
  %v547 = vpop.f32.mrb[0].mxu0
  %548 = vmatprep.mubr.bf16.mxu0 0
  %549 = vmatmul.mubr.bf16.gmra.mrb[0].mxu0 %v346
  %v550 = vpop.f32.mrb[0].mxu0
  %v551 = vadd.f32 %v105, %v550
  %v552 = vpop.f32.mrb[0].mxu0
  %v553 = vpop.f32.mrb[0].mxu0
  %v554 = vadd.f32 %v105, %v553
  %v555 = vpop.f32.mrb[0].mxu0
  %556 = vmatprep.mubr.bf16.mxu0 0
  %557 = vmatmul.mubr.bf16.gmra.mrb[0].mxu0 %v349
  %v558 = vpop.f32.mrb[0].mxu0
  %v559 = vadd.f32 %v105, %v558
  %v560 = vpop.f32.mrb[0].mxu0
  %v561 = vpop.f32.mrb[0].mxu0
  %v562 = vadd.f32 %v105, %v561
  %v563 = vpop.f32.mrb[0].mxu0
  %564 = vmatprep.mubr.bf16.mxu0 0
  %565 = vmatmul.mubr.bf16.gmra.mrb[0].mxu0 %v352
  %v566 = vpop.f32.mrb[0].mxu0
  %v567 = vadd.f32 %v105, %v566
  %v568 = vpop.f32.mrb[0].mxu0
  %v569 = vpop.f32.mrb[0].mxu0
  %v570 = vadd.f32 %v105, %v569
  %v571 = vpop.f32.mrb[0].mxu0
  %572 = vmatprep.mubr.bf16.mxu0 0
  %573 = vmatmul.mubr.bf16.gmra.mrb[0].mxu0 %v355
  %v574 = vpop.f32.mrb[0].mxu0
  %v575 = vadd.f32 %v105, %v574
  %v576 = vpop.f32.mrb[0].mxu0
  %v577 = vpop.f32.mrb[0].mxu0
  %v578 = vadd.f32 %v105, %v577
  %v579 = vpop.f32.mrb[0].mxu0
  %580 = vmatprep.mubr.bf16.mxu0 0
  %581 = vmatmul.mubr.bf16.gmra.mrb[0].mxu0 %v358
  %v582 = vpop.f32.mrb[0].mxu0
  %v583 = vadd.f32 %v105, %v582
  %v584 = vpop.f32.mrb[0].mxu0
  %v585 = vpop.f32.mrb[0].mxu0
  %v586 = vadd.f32 %v105, %v585
  %v587 = vpop.f32.mrb[0].mxu0
  %588 = vmatprep.mubr.bf16.mxu0 0
  %589 = vmatmul.mubr.bf16.gmra.mrb[0].mxu0 %v361
  %v590 = vpop.f32.mrb[0].mxu0
  %v591 = vadd.f32 %v105, %v590
  %v592 = vpop.f32.mrb[0].mxu0
  %v593 = vpop.f32.mrb[0].mxu0
  %v594 = vadd.f32 %v105, %v593
  %v595 = vpop.f32.mrb[0].mxu0
  %596 = vmatprep.mubr.bf16.mxu0 0
  %597 = vmatmul.mubr.bf16.gmra.mrb[0].mxu0 %v364
  %v598 = vpop.f32.mrb[0].mxu0
  %v599 = vadd.f32 %v105, %v598
  %v600 = vpop.f32.mrb[0].mxu0
  %v601 = vpop.f32.mrb[0].mxu0
  %v602 = vadd.f32 %v105, %v601
  %v603 = vpop.f32.mrb[0].mxu0
  %604 = vmatprep.mubr.bf16.mxu0 0
  %605 = vmatmul.mubr.bf16.gmra.mrb[0].mxu0 %v367
  %v606 = vpop.f32.mrb[0].mxu0
  %v607 = vadd.f32 %v105, %v606
  %v608 = vpop.f32.mrb[0].mxu0
  %v609 = vpop.f32.mrb[0].mxu0
  %v610 = vadd.f32 %v105, %v609
  %v611 = vpop.f32.mrb[0].mxu0
  %612 = vmatprep.mubr.bf16.mxu0 0
  %613 = vmatmul.mubr.bf16.gmra.mrb[0].mxu0 %v370
  %v614 = vpop.f32.mrb[0].mxu0
  %v615 = vadd.f32 %v105, %v614
  %v616 = vpop.f32.mrb[0].mxu0
  %v617 = vpop.f32.mrb[0].mxu0
  %v618 = vadd.f32 %v105, %v617
  %v619 = vpop.f32.mrb[0].mxu0
  %620 = vmatprep.mubr.bf16.mxu0 0
  %621 = vmatmul.mubr.bf16.gmra.mrb[0].mxu0 %v373
  %v622 = vpop.f32.mrb[0].mxu0
  %v623 = vadd.f32 %v105, %v622
  %v624 = vpop.f32.mrb[0].mxu0
  %v625 = vpop.f32.mrb[0].mxu0
  %v626 = vadd.f32 %v105, %v625
  %v627 = vpop.f32.mrb[0].mxu0
  %628 = vmatprep.mubr.bf16.mxu0 0
  %629 = vmatmul.mubr.bf16.gmra.mrb[0].mxu0 %v376
  %v630 = vpop.f32.mrb[0].mxu0
  %v631 = vadd.f32 %v105, %v630
  %v632 = vpop.f32.mrb[0].mxu0
  %v633 = vpop.f32.mrb[0].mxu0
  %v634 = vadd.f32 %v105, %v633
  %v635 = vpop.f32.mrb[0].mxu0
  %636 = vmatprep.mubr.bf16.mxu0 0
  %637 = vmatmul.mubr.bf16.gmra.mrb[0].mxu0 %v379
  %v638 = vpop.f32.mrb[0].mxu0
  %v639 = vadd.f32 %v105, %v638
  %v640 = vpop.f32.mrb[0].mxu0
  %v641 = vpop.f32.mrb[0].mxu0
  %v642 = vadd.f32 %v105, %v641
  %v643 = vpop.f32.mrb[0].mxu0
  %644 = vmatprep.mubr.bf16.mxu0 0
  %645 = vmatmul.mubr.bf16.gmra.mrb[0].mxu0 %v382
  %v646 = vpop.f32.mrb[0].mxu0
  %v647 = vadd.f32 %v105, %v646
  %v648 = vpop.f32.mrb[0].mxu0
  %v649 = vpop.f32.mrb[0].mxu0
  %v650 = vadd.f32 %v105, %v649
  %v651 = vpop.f32.mrb[0].mxu0
  %652 = vmatprep.mubr.bf16.mxu0 0
  %653 = vmatmul.mubr.bf16.gmra.mrb[0].mxu0 %v385
  %v654 = vpop.f32.mrb[0].mxu0
  %v655 = vadd.f32 %v105, %v654
  %v656 = vpop.f32.mrb[0].mxu0
  %v657 = vpop.f32.mrb[0].mxu0
  %v658 = vadd.f32 %v105, %v657
  %v659 = vpop.f32.mrb[0].mxu0
  %660 = vmatprep.mubr.bf16.mxu0 0
  %661 = vmatmul.mubr.bf16.gmra.mrb[0].mxu0 %v388
  %v662 = vpop.f32.mrb[0].mxu0
  %v663 = vadd.f32 %v105, %v662
  %v664 = vpop.f32.mrb[0].mxu0
  %v665 = vpop.f32.mrb[0].mxu0
  %v666 = vadd.f32 %v105, %v665
  %v667 = vpop.f32.mrb[0].mxu0
  %668 = vmatprep.mubr.bf16.mxu0 0
  %669 = vmatmul.mubr.bf16.gmra.mrb[0].mxu0 %v391
  %v670 = vpop.f32.mrb[0].mxu0
  %v671 = vadd.f32 %v105, %v670
  %v672 = vpop.f32.mrb[0].mxu0
  %v673 = vpop.f32.mrb[0].mxu0
  %v674 = vadd.f32 %v105, %v673
  %v675 = vpop.f32.mrb[0].mxu0
  %676 = vmatprep.mubr.bf16.mxu0 0
  %677 = vmatmul.mubr.bf16.gmra.mrb[0].mxu0 %v394
  %v678 = vpop.f32.mrb[0].mxu0
  %v679 = vadd.f32 %v105, %v678
  %v680 = vpop.f32.mrb[0].mxu0
  %v681 = vpop.f32.mrb[0].mxu0
  %v682 = vadd.f32 %v105, %v681
  %v683 = vpop.f32.mrb[0].mxu0
  %684 = vmatprep.mubr.bf16.mxu0 0
  %685 = vmatmul.mubr.bf16.gmra.mrb[0].mxu0 %v397
  %v686 = vpop.f32.mrb[0].mxu0
  %v687 = vadd.f32 %v105, %v686
  %v688 = vpop.f32.mrb[0].mxu0
  %v689 = vpop.f32.mrb[0].mxu0
  %v690 = vadd.f32 %v105, %v689
  %v691 = vpop.f32.mrb[0].mxu0
  %692 = vmatprep.mubr.bf16.mxu0 0
  %693 = vmatmul.mubr.bf16.gmra.mrb[0].mxu0 %v400
  %v694 = vpop.f32.mrb[0].mxu0
  %v695 = vadd.f32 %v105, %v694
  %v696 = vpop.f32.mrb[0].mxu0
  %v697 = vpop.f32.mrb[0].mxu0
  %v698 = vadd.f32 %v105, %v697
  %v699 = vpop.f32.mrb[0].mxu0
  %700 = vmatprep.mubr.bf16.mxu0 0
  %701 = vmatmul.mubr.bf16.gmra.mrb[0].mxu0 %v403
  %v702 = vpop.f32.mrb[0].mxu0
  %v703 = vadd.f32 %v105, %v702
  %v704 = vpop.f32.mrb[0].mxu0
  %v705 = vpop.f32.mrb[0].mxu0
  %v706 = vadd.f32 %v105, %v705
  %v707 = vpop.f32.mrb[0].mxu0
  %708 = vmatprep.mubr.bf16.mxu0 0
  %709 = vmatmul.mubr.bf16.gmra.mrb[0].mxu0 %v406
  %v710 = vpop.f32.mrb[0].mxu0
  %v711 = vadd.f32 %v105, %v710
  %v712 = vpop.f32.mrb[0].mxu0
  %v713 = vpop.f32.mrb[0].mxu0
  %v714 = vadd.f32 %v105, %v713
  %v715 = vpop.f32.mrb[0].mxu0
  %716 = vmatprep.mubr.bf16.mxu0 0
  %717 = vmatmul.mubr.bf16.gmra.mrb[0].mxu0 %v409
  %v718 = vpop.f32.mrb[0].mxu0
  %v719 = vadd.f32 %v105, %v718
  %v720 = vpop.f32.mrb[0].mxu0
  %v721 = vpop.f32.mrb[0].mxu0
  %v722 = vadd.f32 %v105, %v721
  %v723 = vpop.f32.mrb[0].mxu0
  %724 = vmatprep.mubr.bf16.mxu0 0
  %725 = vmatmul.mubr.bf16.gmra.mrb[0].mxu0 %v412
  %v726 = vpop.f32.mrb[0].mxu0
  %v727 = vadd.f32 %v105, %v726
  %v728 = vpop.f32.mrb[0].mxu0
  %v729 = vpop.f32.mrb[0].mxu0
  %v730 = vadd.f32 %v105, %v729
  %v731 = vpop.f32.mrb[0].mxu0
  %732 = vmatprep.mubr.bf16.mxu0 0
  %733 = vmatmul.mubr.bf16.gmra.mrb[0].mxu0 %v415
  %v734 = vpop.f32.mrb[0].mxu0
  %v735 = vadd.f32 %v105, %v734
  %v736 = vpop.f32.mrb[0].mxu0
  %v737 = vpop.f32.mrb[0].mxu0
  %v738 = vadd.f32 %v105, %v737
  %v739 = vpop.f32.mrb[0].mxu0
  %740 = vmatprep.mubr.bf16.mxu0 0
  %741 = vmatmul.mubr.bf16.gmra.mrb[0].mxu0 %v418
  %v742 = vpop.f32.mrb[0].mxu0
  %v743 = vadd.f32 %v105, %v742
  %v744 = vpop.f32.mrb[0].mxu0
  %v745 = vpop.f32.mrb[0].mxu0
  %v746 = vpop.f32.mrb[0].mxu0
  %747 = vdwg.mxu0
  %vm748 = vcmp.ge.f32.partialorder %v455, 0.0
  %vm749 = vcmp.ge.f32.partialorder %v458, 0.0
  %vm750 = vcmp.ge.f32.partialorder %v463, 0.0
  %vm751 = vcmp.ge.f32.partialorder %v466, 0.0
  %vm752 = vcmp.ge.f32.partialorder %v471, 0.0
  %vm753 = vcmp.ge.f32.partialorder %v474, 0.0
  %vm754 = vcmp.ge.f32.partialorder %v479, 0.0
  %vm755 = vcmp.ge.f32.partialorder %v482, 0.0
  %vm756 = vcmp.ge.f32.partialorder %v487, 0.0
  %vm757 = vcmp.ge.f32.partialorder %v490, 0.0
  %vm758 = vcmp.ge.f32.partialorder %v495, 0.0
  %vm759 = vcmp.ge.f32.partialorder %v498, 0.0
  %vm760 = vcmp.ge.f32.partialorder %v503, 0.0
  %vm761 = vcmp.ge.f32.partialorder %v506, 0.0
  %vm762 = vcmp.ge.f32.partialorder %v511, 0.0
  %vm763 = vcmp.ge.f32.partialorder %v514, 0.0
  %vm764 = vcmp.ge.f32.partialorder %v519, 0.0
  %vm765 = vcmp.ge.f32.partialorder %v522, 0.0
  %vm766 = vcmp.ge.f32.partialorder %v527, 0.0
  %vm767 = vcmp.ge.f32.partialorder %v530, 0.0
  %vm768 = vcmp.ge.f32.partialorder %v535, 0.0
  %vm769 = vcmp.ge.f32.partialorder %v538, 0.0
  %vm770 = vcmp.ge.f32.partialorder %v543, 0.0
  %vm771 = vcmp.ge.f32.partialorder %v546, 0.0
  %vm772 = vcmp.ge.f32.partialorder %v551, 0.0
  %vm773 = vcmp.ge.f32.partialorder %v554, 0.0
  %vm774 = vcmp.ge.f32.partialorder %v559, 0.0
  %vm775 = vcmp.ge.f32.partialorder %v562, 0.0
  %vm776 = vcmp.ge.f32.partialorder %v567, 0.0
  %vm777 = vcmp.ge.f32.partialorder %v570, 0.0
  %vm778 = vcmp.ge.f32.partialorder %v575, 0.0
  %vm779 = vcmp.ge.f32.partialorder %v578, 0.0
  %vm780 = vcmp.ge.f32.partialorder %v583, 0.0
  %vm781 = vcmp.ge.f32.partialorder %v586, 0.0
  %vm782 = vcmp.ge.f32.partialorder %v591, 0.0
  %vm783 = vcmp.ge.f32.partialorder %v594, 0.0
  %vm784 = vcmp.ge.f32.partialorder %v599, 0.0
  %vm785 = vcmp.ge.f32.partialorder %v602, 0.0
  %vm786 = vcmp.ge.f32.partialorder %v607, 0.0
  %vm787 = vcmp.ge.f32.partialorder %v610, 0.0
  %vm788 = vcmp.ge.f32.partialorder %v615, 0.0
  %vm789 = vcmp.ge.f32.partialorder %v618, 0.0
  %vm790 = vcmp.ge.f32.partialorder %v623, 0.0
  %vm791 = vcmp.ge.f32.partialorder %v626, 0.0
  %vm792 = vcmp.ge.f32.partialorder %v631, 0.0
  %vm793 = vcmp.ge.f32.partialorder %v634, 0.0
  %vm794 = vcmp.ge.f32.partialorder %v639, 0.0
  %vm795 = vcmp.ge.f32.partialorder %v642, 0.0
  %vm796 = vcmp.ge.f32.partialorder %v647, 0.0
  %vm797 = vcmp.ge.f32.partialorder %v650, 0.0
  %vm798 = vcmp.ge.f32.partialorder %v655, 0.0
  %vm799 = vcmp.ge.f32.partialorder %v658, 0.0
  %vm800 = vcmp.ge.f32.partialorder %v663, 0.0
  %vm801 = vcmp.ge.f32.partialorder %v666, 0.0
  %vm802 = vcmp.ge.f32.partialorder %v671, 0.0
  %vm803 = vcmp.ge.f32.partialorder %v674, 0.0
  %vm804 = vcmp.ge.f32.partialorder %v679, 0.0
  %vm805 = vcmp.ge.f32.partialorder %v682, 0.0
  %vm806 = vcmp.ge.f32.partialorder %v687, 0.0
  %vm807 = vcmp.ge.f32.partialorder %v690, 0.0
  %vm808 = vcmp.ge.f32.partialorder %v695, 0.0
  %vm809 = vcmp.ge.f32.partialorder %v698, 0.0
  %vm810 = vcmp.ge.f32.partialorder %v703, 0.0
  %vm811 = vcmp.ge.f32.partialorder %v706, 0.0
  %vm812 = vcmp.ge.f32.partialorder %v711, 0.0
  %vm813 = vcmp.ge.f32.partialorder %v714, 0.0
  %vm814 = vcmp.ge.f32.partialorder %v719, 0.0
  %vm815 = vcmp.ge.f32.partialorder %v722, 0.0
  %vm816 = vcmp.ge.f32.partialorder %v727, 0.0
  %vm817 = vcmp.ge.f32.partialorder %v730, 0.0
  %vm818 = vcmp.ge.f32.partialorder %v735, 0.0
  %vm819 = vcmp.ge.f32.partialorder %v738, 0.0
  %vm820 = vcmp.ge.f32.partialorder %v743, 0.0
  %v821 = vmul.f32 %v455, 0.2
  %v822 = vmul.f32 %v458, 0.2
  %v823 = vmul.f32 %v463, 0.2
  %v824 = vmul.f32 %v466, 0.2
  %v825 = vmul.f32 %v471, 0.2
  %v826 = vmul.f32 %v474, 0.2
  %v827 = vmul.f32 %v479, 0.2
  %v828 = vmul.f32 %v482, 0.2
  %v829 = vmul.f32 %v487, 0.2
  %v830 = vmul.f32 %v490, 0.2
  %v831 = vmul.f32 %v495, 0.2
  %v832 = vmul.f32 %v498, 0.2
  %v833 = vmul.f32 %v503, 0.2
  %v834 = vmul.f32 %v506, 0.2
  %v835 = vmul.f32 %v511, 0.2
  %v836 = vmul.f32 %v514, 0.2
  %v837 = vmul.f32 %v519, 0.2
  %v838 = vmul.f32 %v522, 0.2
  %v839 = vmul.f32 %v527, 0.2
  %v840 = vmul.f32 %v530, 0.2
  %v841 = vmul.f32 %v535, 0.2
  %v842 = vmul.f32 %v538, 0.2
  %v843 = vmul.f32 %v543, 0.2
  %v844 = vmul.f32 %v546, 0.2
  %v845 = vmul.f32 %v551, 0.2
  %v846 = vmul.f32 %v554, 0.2
  %v847 = vmul.f32 %v559, 0.2
  %v848 = vmul.f32 %v562, 0.2
  %v849 = vmul.f32 %v567, 0.2
  %v850 = vmul.f32 %v570, 0.2
  %v851 = vmul.f32 %v575, 0.2
  %v852 = vmul.f32 %v578, 0.2
  %v853 = vmul.f32 %v583, 0.2
  %v854 = vmul.f32 %v586, 0.2
  %v855 = vmul.f32 %v591, 0.2
  %v856 = vmul.f32 %v594, 0.2
  %v857 = vmul.f32 %v599, 0.2
  %v858 = vmul.f32 %v602, 0.2
  %v859 = vmul.f32 %v607, 0.2
  %v860 = vmul.f32 %v610, 0.2
  %v861 = vmul.f32 %v615, 0.2
  %v862 = vmul.f32 %v618, 0.2
  %v863 = vmul.f32 %v623, 0.2
  %v864 = vmul.f32 %v626, 0.2
  %v865 = vmul.f32 %v631, 0.2
  %v866 = vmul.f32 %v634, 0.2
  %v867 = vmul.f32 %v639, 0.2
  %v868 = vmul.f32 %v642, 0.2
  %v869 = vmul.f32 %v647, 0.2
  %v870 = vmul.f32 %v650, 0.2
  %v871 = vmul.f32 %v655, 0.2
  %v872 = vmul.f32 %v658, 0.2
  %v873 = vmul.f32 %v663, 0.2
  %v874 = vmul.f32 %v666, 0.2
  %v875 = vmul.f32 %v671, 0.2
  %v876 = vmul.f32 %v674, 0.2
  %v877 = vmul.f32 %v679, 0.2
  %v878 = vmul.f32 %v682, 0.2
  %v879 = vmul.f32 %v687, 0.2
  %v880 = vmul.f32 %v690, 0.2
  %v881 = vmul.f32 %v695, 0.2
  %v882 = vmul.f32 %v698, 0.2
  %v883 = vmul.f32 %v703, 0.2
  %v884 = vmul.f32 %v706, 0.2
  %v885 = vmul.f32 %v711, 0.2
  %v886 = vmul.f32 %v714, 0.2
  %v887 = vmul.f32 %v719, 0.2
  %v888 = vmul.f32 %v722, 0.2
  %v889 = vmul.f32 %v727, 0.2
  %v890 = vmul.f32 %v730, 0.2
  %v891 = vmul.f32 %v735, 0.2
  %v892 = vmul.f32 %v738, 0.2
  %v893 = vmul.f32 %v743, 0.2
  %v894 = vsel %vm748, %v455, %v821
  %v895 = vsel %vm749, %v458, %v822
  %v896 = vsel %vm750, %v463, %v823
  %v897 = vsel %vm751, %v466, %v824
  %v898 = vsel %vm752, %v471, %v825
  %v899 = vsel %vm753, %v474, %v826
  %v900 = vsel %vm754, %v479, %v827
  %v901 = vsel %vm755, %v482, %v828
  %v902 = vsel %vm756, %v487, %v829
  %v903 = vsel %vm757, %v490, %v830
  %v904 = vsel %vm758, %v495, %v831
  %v905 = vsel %vm759, %v498, %v832
  %v906 = vsel %vm760, %v503, %v833
  %v907 = vsel %vm761, %v506, %v834
  %v908 = vsel %vm762, %v511, %v835
  %v909 = vsel %vm763, %v514, %v836
  %v910 = vsel %vm764, %v519, %v837
  %v911 = vsel %vm765, %v522, %v838
  %v912 = vsel %vm766, %v527, %v839
  %v913 = vsel %vm767, %v530, %v840
  %v914 = vsel %vm768, %v535, %v841
  %v915 = vsel %vm769, %v538, %v842
  %v916 = vsel %vm770, %v543, %v843
  %v917 = vsel %vm771, %v546, %v844
  %v918 = vsel %vm772, %v551, %v845
  %v919 = vsel %vm773, %v554, %v846
  %v920 = vsel %vm774, %v559, %v847
  %v921 = vsel %vm775, %v562, %v848
  %v922 = vsel %vm776, %v567, %v849
  %v923 = vsel %vm777, %v570, %v850
  %v924 = vsel %vm778, %v575, %v851
  %v925 = vsel %vm779, %v578, %v852
  %v926 = vsel %vm780, %v583, %v853
  %v927 = vsel %vm781, %v586, %v854
  %v928 = vsel %vm782, %v591, %v855
  %v929 = vsel %vm783, %v594, %v856
  %v930 = vsel %vm784, %v599, %v857
  %v931 = vsel %vm785, %v602, %v858
  %v932 = vsel %vm786, %v607, %v859
  %v933 = vsel %vm787, %v610, %v860
  %v934 = vsel %vm788, %v615, %v861
  %v935 = vsel %vm789, %v618, %v862
  %v936 = vsel %vm790, %v623, %v863
  %v937 = vsel %vm791, %v626, %v864
  %v938 = vsel %vm792, %v631, %v865
  %v939 = vsel %vm793, %v634, %v866
  %v940 = vsel %vm794, %v639, %v867
  %v941 = vsel %vm795, %v642, %v868
  %v942 = vsel %vm796, %v647, %v869
  %v943 = vsel %vm797, %v650, %v870
  %v944 = vsel %vm798, %v655, %v871
  %v945 = vsel %vm799, %v658, %v872
  %v946 = vsel %vm800, %v663, %v873
  %v947 = vsel %vm801, %v666, %v874
  %v948 = vsel %vm802, %v671, %v875
  %v949 = vsel %vm803, %v674, %v876
  %v950 = vsel %vm804, %v679, %v877
  %v951 = vsel %vm805, %v682, %v878
  %v952 = vsel %vm806, %v687, %v879
  %v953 = vsel %vm807, %v690, %v880
  %v954 = vsel %vm808, %v695, %v881
  %v955 = vsel %vm809, %v698, %v882
  %v956 = vsel %vm810, %v703, %v883
  %v957 = vsel %vm811, %v706, %v884
  %v958 = vsel %vm812, %v711, %v885
  %v959 = vsel %vm813, %v714, %v886
  %v960 = vsel %vm814, %v719, %v887
  %v961 = vsel %vm815, %v722, %v888
  %v962 = vsel %vm816, %v727, %v889
  %v963 = vsel %vm817, %v730, %v890
  %v964 = vsel %vm818, %v735, %v891
  %v965 = vsel %vm819, %v738, %v892
  %v966 = vsel %vm820, %v743, %v893
  %vm967 = vcmask 64512
  %968 = vst.msk [vmem:[%s5] sm:$0xff] %vm967, %v894
  %969 = vst.msk [vmem:[%s5 + $0x8] sm:$0xff] %vm967, %v895
  %970 = vst.msk [vmem:[%s5 + $0x10] sm:$0xff] %vm967, %v896
  %971 = vst.msk [vmem:[%s5 + $0x18] sm:$0xff] %vm967, %v897
  %972 = vst.msk [vmem:[%s5 + $0x20] sm:$0xff] %vm967, %v898
  %973 = vst.msk [vmem:[%s5 + $0x28] sm:$0xff] %vm967, %v899
  %974 = vst.msk [vmem:[%s5 + $0x30] sm:$0xff] %vm967, %v900
  %975 = vst.msk [vmem:[%s5 + $0x38] sm:$0xff] %vm967, %v901
  %976 = vst.msk [vmem:[%s5 + $0x40] sm:$0xff] %vm967, %v902
  %977 = vst.msk [vmem:[%s5 + $0x48] sm:$0xff] %vm967, %v903
  %978 = vst.msk [vmem:[%s5 + $0x50] sm:$0xff] %vm967, %v904
  %979 = vst.msk [vmem:[%s5 + $0x58] sm:$0xff] %vm967, %v905
  %980 = vst.msk [vmem:[%s5 + $0x60] sm:$0xff] %vm967, %v906
  %981 = vst.msk [vmem:[%s5 + $0x68] sm:$0xff] %vm967, %v907
  %982 = vst.msk [vmem:[%s5 + $0x70] sm:$0xff] %vm967, %v908
  %983 = vst.msk [vmem:[%s5 + $0x78] sm:$0xff] %vm967, %v909
  %984 = vst.msk [vmem:[%s5 + $0x80] sm:$0xff] %vm967, %v910
  %985 = vst.msk [vmem:[%s5 + $0x88] sm:$0xff] %vm967, %v911
  %986 = vst.msk [vmem:[%s5 + $0x90] sm:$0xff] %vm967, %v912
  %987 = vst.msk [vmem:[%s5 + $0x98] sm:$0xff] %vm967, %v913
  %988 = vst.msk [vmem:[%s5 + $0xa0] sm:$0xff] %vm967, %v914
  %989 = vst.msk [vmem:[%s5 + $0xa8] sm:$0xff] %vm967, %v915
  %990 = vst.msk [vmem:[%s5 + $0xb0] sm:$0xff] %vm967, %v916
  %991 = vst.msk [vmem:[%s5 + $0xb8] sm:$0xff] %vm967, %v917
  %992 = vst.msk [vmem:[%s5 + $0xc0] sm:$0xff] %vm967, %v918
  %993 = vst.msk [vmem:[%s5 + $0xc8] sm:$0xff] %vm967, %v919
  %994 = vst.msk [vmem:[%s5 + $0xd0] sm:$0xff] %vm967, %v920
  %995 = vst.msk [vmem:[%s5 + $0xd8] sm:$0xff] %vm967, %v921
  %996 = vst.msk [vmem:[%s5 + $0xe0] sm:$0xff] %vm967, %v922
  %997 = vst.msk [vmem:[%s5 + $0xe8] sm:$0xff] %vm967, %v923
  %998 = vst.msk [vmem:[%s5 + $0xf0] sm:$0xff] %vm967, %v924
  %999 = vst.msk [vmem:[%s5 + $0xf8] sm:$0xff] %vm967, %v925
  %1000 = vst.msk [vmem:[%s5 + $0x100] sm:$0xff] %vm967, %v926
  %1001 = vst.msk [vmem:[%s5 + $0x108] sm:$0xff] %vm967, %v927
  %1002 = vst.msk [vmem:[%s5 + $0x110] sm:$0xff] %vm967, %v928
  %1003 = vst.msk [vmem:[%s5 + $0x118] sm:$0xff] %vm967, %v929
  %1004 = vst.msk [vmem:[%s5 + $0x120] sm:$0xff] %vm967, %v930
  %1005 = vst.msk [vmem:[%s5 + $0x128] sm:$0xff] %vm967, %v931
  %1006 = vst.msk [vmem:[%s5 + $0x130] sm:$0xff] %vm967, %v932
  %1007 = vst.msk [vmem:[%s5 + $0x138] sm:$0xff] %vm967, %v933
  %1008 = vst.msk [vmem:[%s5 + $0x140] sm:$0xff] %vm967, %v934
  %1009 = vst.msk [vmem:[%s5 + $0x148] sm:$0xff] %vm967, %v935
  %1010 = vst.msk [vmem:[%s5 + $0x150] sm:$0xff] %vm967, %v936
  %1011 = vst.msk [vmem:[%s5 + $0x158] sm:$0xff] %vm967, %v937
  %1012 = vst.msk [vmem:[%s5 + $0x160] sm:$0xff] %vm967, %v938
  %1013 = vst.msk [vmem:[%s5 + $0x168] sm:$0xff] %vm967, %v939
  %1014 = vst.msk [vmem:[%s5 + $0x170] sm:$0xff] %vm967, %v940
  %1015 = vst.msk [vmem:[%s5 + $0x178] sm:$0xff] %vm967, %v941
  %1016 = vst.msk [vmem:[%s5 + $0x180] sm:$0xff] %vm967, %v942
  %1017 = vst.msk [vmem:[%s5 + $0x188] sm:$0xff] %vm967, %v943
  %1018 = vst.msk [vmem:[%s5 + $0x190] sm:$0xff] %vm967, %v944
  %1019 = vst.msk [vmem:[%s5 + $0x198] sm:$0xff] %vm967, %v945
  %1020 = vst.msk [vmem:[%s5 + $0x1a0] sm:$0xff] %vm967, %v946
  %1021 = vst.msk [vmem:[%s5 + $0x1a8] sm:$0xff] %vm967, %v947
  %1022 = vst.msk [vmem:[%s5 + $0x1b0] sm:$0xff] %vm967, %v948
  %1023 = vst.msk [vmem:[%s5 + $0x1b8] sm:$0xff] %vm967, %v949
  %1024 = vst.msk [vmem:[%s5 + $0x1c0] sm:$0xff] %vm967, %v950
  %1025 = vst.msk [vmem:[%s5 + $0x1c8] sm:$0xff] %vm967, %v951
  %1026 = vst.msk [vmem:[%s5 + $0x1d0] sm:$0xff] %vm967, %v952
  %1027 = vst.msk [vmem:[%s5 + $0x1d8] sm:$0xff] %vm967, %v953
  %1028 = vst.msk [vmem:[%s5 + $0x1e0] sm:$0xff] %vm967, %v954
  %1029 = vst.msk [vmem:[%s5 + $0x1e8] sm:$0xff] %vm967, %v955
  %1030 = vst.msk [vmem:[%s5 + $0x1f0] sm:$0xff] %vm967, %v956
  %1031 = vst.msk [vmem:[%s5 + $0x1f8] sm:$0xff] %vm967, %v957
  %1032 = vst.msk [vmem:[%s5 + $0x200] sm:$0xff] %vm967, %v958
  %1033 = vst.msk [vmem:[%s5 + $0x208] sm:$0xff] %vm967, %v959
  %1034 = vst.msk [vmem:[%s5 + $0x210] sm:$0xff] %vm967, %v960
  %1035 = vst.msk [vmem:[%s5 + $0x218] sm:$0xff] %vm967, %v961
  %1036 = vst.msk [vmem:[%s5 + $0x220] sm:$0xff] %vm967, %v962
  %1037 = vst.msk [vmem:[%s5 + $0x228] sm:$0xff] %vm967, %v963
  %1038 = vst.msk [vmem:[%s5 + $0x230] sm:$0xff] %vm967, %v964
  %1039 = vst.msk [vmem:[%s5 + $0x238] sm:$0xff] %vm967, %v965
  %vm1040 = vcmask 58368
  %1041 = vst.msk [vmem:[%s5 + $0x240] sm:$0x3] %vm1040, %v966
  // Predicated region
  $region22: #{multiscale_discriminator_forward.15} parent=0 // pred_check
    _
  $region23: #{multiscale_discriminator_forward.15} parent=0 // pred_check_branch
    %1043 = sbr.rel (0) target = $region25
  $region24: #{multiscale_discriminator_forward.15} parent=0 // pred_region
    _
  $region25: #{multiscale_discriminator_forward.15} parent=0 // pred_fallthru
    _
  // Predicated region
  $region26: #{multiscale_discriminator_forward.15} parent=0 // pred_check
    _
  $region27: #{multiscale_discriminator_forward.15} parent=0 // pred_check_branch
    %1045 = sbr.rel (0) target = $region29
  $region28: #{multiscale_discriminator_forward.15} parent=0 // pred_region
    _
  $region29: #{multiscale_discriminator_forward.15} parent=0 // pred_fallthru
    _

// kernel: multiscale_discriminator_forward.16
$region0: #{multiscale_discriminator_forward.16}
  #allocation0 [shape = 'u32[]', space=smem, size = 0x4, offset = 0x4, fixed_abs, tag = 'smem constant byte address 0x4 - core index']
  #allocation1 [shape = 'u32[144,128]{1,0:T(1,128)}', space=vmem, size = 0x12000, scoped, tag = 'internal scratch']
  %s0 = inlined_call_operand.vmem [shape: bf16[162,128], index: 0, kind: input, shape index: {}]
  %s1 = inlined_call_operand.vmem [shape: bf16[128,16], index: 1, kind: input, shape index: {}]
  %s2 = inlined_call_operand.vmem [shape: f32[1,16], index: 2, kind: input, shape index: {}]
  %s3 = inlined_call_operand.vmem [shape: f32[1,16], index: 3, kind: input, shape index: {}]
  %s4 = inlined_call_operand.vmem [shape: f32[1,16], index: 4, kind: input, shape index: {}]
  %s5 = inlined_call_operand.vmem [shape: f32[162,16], index: 5, kind: output, shape index: {}]
  %s6 = sld [smem:[#allocation0]]
  $region30: #{multiscale_discriminator_forward.16} parent=0
    _
  %s8 = ssub.s32 1, %s6
  %s9 = scalar_select 0, %s8, %s6
  // Predicated region
  $region2: #{multiscale_discriminator_forward.16} parent=0 // pred_check
    _
  $region3: #{multiscale_discriminator_forward.16} parent=0 // pred_check_branch
    %11 = sbr.rel (0) target = $region5
  $region4: #{multiscale_discriminator_forward.16} parent=0 // pred_region
    _
  $region5: #{multiscale_discriminator_forward.16} parent=0 // pred_fallthru
    _
  // Predicated region
  $region6: #{multiscale_discriminator_forward.16} parent=0 // pred_check
    _
  $region7: #{multiscale_discriminator_forward.16} parent=0 // pred_check_branch
    %13 = sbr.rel (0) target = $region9
  $region8: #{multiscale_discriminator_forward.16} parent=0 // pred_region
    _
  $region9: #{multiscale_discriminator_forward.16} parent=0 // pred_fallthru
    _
  // Predicated region
  $region10: #{multiscale_discriminator_forward.16} parent=0 // pred_check
    _
  $region11: #{multiscale_discriminator_forward.16} parent=0 // pred_check_branch
    %15 = sbr.rel (0) target = $region13
  $region12: #{multiscale_discriminator_forward.16} parent=0 // pred_region
    _
  $region13: #{multiscale_discriminator_forward.16} parent=0 // pred_fallthru
    _
  // Predicated region
  $region14: #{multiscale_discriminator_forward.16} parent=0 // pred_check
    _
  $region15: #{multiscale_discriminator_forward.16} parent=0 // pred_check_branch
    %17 = sbr.rel (0) target = $region17
  $region16: #{multiscale_discriminator_forward.16} parent=0 // pred_region
    _
  $region17: #{multiscale_discriminator_forward.16} parent=0 // pred_fallthru
    _
  // Predicated region
  $region18: #{multiscale_discriminator_forward.16} parent=0 // pred_check
    _
  $region19: #{multiscale_discriminator_forward.16} parent=0 // pred_check_branch
    %19 = sbr.rel (0) target = $region21
  $region20: #{multiscale_discriminator_forward.16} parent=0 // pred_region
    _
  $region21: #{multiscale_discriminator_forward.16} parent=0 // pred_fallthru
    _
  %v21 = vld [vmem:[%s0] sm:$0xf]
  %v22 = vld [vmem:[%s0 + $0x4] sm:$0xf]
  %v23 = vld [vmem:[%s0 + $0x8] sm:$0xf]
  %v24 = vld [vmem:[%s0 + $0xc] sm:$0xf]
  %v25 = vld [vmem:[%s0 + $0x10] sm:$0xf]
  %v26 = vld [vmem:[%s0 + $0x14] sm:$0xf]
  %v27 = vld [vmem:[%s0 + $0x18] sm:$0xf]
  %v28 = vld [vmem:[%s0 + $0x1c] sm:$0xf]
  %v29 = vld [vmem:[%s0 + $0x20] sm:$0xf]
  %v30 = vld [vmem:[%s0 + $0x24] sm:$0xf]
  %v31 = vld [vmem:[%s0 + $0x28] sm:$0xf]
  %v32 = vld [vmem:[%s0 + $0x2c] sm:$0xf]
  %v33 = vld [vmem:[%s0 + $0x30] sm:$0xf]
  %v34 = vld [vmem:[%s0 + $0x34] sm:$0xf]
  %v35 = vld [vmem:[%s0 + $0x38] sm:$0xf]
  %v36 = vld [vmem:[%s0 + $0x3c] sm:$0xf]
  %v37 = vld [vmem:[%s0 + $0x40] sm:$0xf]
  %v38 = vld [vmem:[%s0 + $0x44] sm:$0xf]
  %v39 = vld [vmem:[%s0 + $0x48] sm:$0xf]
  %v40 = vld [vmem:[%s0 + $0x4c] sm:$0xf]
  %v41 = vld [vmem:[%s0 + $0x50] sm:$0x1]
  %v42 = vld [vmem:[%s1] sm:$0xf]
  %v43 = vld [vmem:[%s1 + $0x4] sm:$0xf]
  %v44 = vld [vmem:[%s1 + $0x8] sm:$0xf]
  %v45 = vld [vmem:[%s1 + $0xc] sm:$0xf]
  %v46 = vld [vmem:[%s1 + $0x10] sm:$0xf]
  %v47 = vld [vmem:[%s1 + $0x14] sm:$0xf]
  %v48 = vld [vmem:[%s1 + $0x18] sm:$0xf]
  %v49 = vld [vmem:[%s1 + $0x1c] sm:$0xf]
  %v50 = vld [vmem:[%s1 + $0x20] sm:$0xf]
  %v51 = vld [vmem:[%s1 + $0x24] sm:$0xf]
  %v52 = vld [vmem:[%s1 + $0x28] sm:$0xf]
  %v53 = vld [vmem:[%s1 + $0x2c] sm:$0xf]
  %v54 = vld [vmem:[%s1 + $0x30] sm:$0xf]
  %v55 = vld [vmem:[%s1 + $0x34] sm:$0xf]
  %v56 = vld [vmem:[%s1 + $0x38] sm:$0xf]
  %v57 = vld [vmem:[%s1 + $0x3c] sm:$0xf]
  %v58 = vld [vmem:[%s2] sm:$0x1]
  %v60 = vlaneseq
  %v61 = vshrl.u32 %v60, 7
  %v62 = vsub.s32 0, %v61
  %v63 = vrot.slane %v58, %v62
  %v86 = vunpack.c.l.b16 %v21
  %v87 = vunpack.c.l.b16 %v22
  %v88 = vunpack.c.l.b16 %v23
  %v89 = vunpack.c.l.b16 %v24
  %v90 = vunpack.c.l.b16 %v25
  %v91 = vunpack.c.l.b16 %v26
  %v92 = vunpack.c.l.b16 %v27
  %v93 = vunpack.c.l.b16 %v28
  %v94 = vunpack.c.l.b16 %v29
  %v95 = vunpack.c.l.b16 %v30
  %v96 = vunpack.c.l.b16 %v31
  %v97 = vunpack.c.l.b16 %v32
  %v98 = vunpack.c.l.b16 %v33
  %v99 = vunpack.c.l.b16 %v34
  %v100 = vunpack.c.l.b16 %v35
  %v101 = vunpack.c.l.b16 %v36
  %v102 = vunpack.c.l.b16 %v37
  %v103 = vunpack.c.l.b16 %v38
  %v104 = vunpack.c.l.b16 %v39
  %v105 = vunpack.c.l.b16 %v40
  %v106 = vunpack.c.l.b16 %v41
  %v107 = vpack.c.b16 %v87, %v86
  %v108 = vpack.c.b16 %v89, %v88
  %v109 = vpack.c.b16 %v91, %v90
  %v110 = vpack.c.b16 %v93, %v92
  %v111 = vpack.c.b16 %v95, %v94
  %v112 = vpack.c.b16 %v97, %v96
  %v113 = vpack.c.b16 %v99, %v98
  %v114 = vpack.c.b16 %v101, %v100
  %v115 = vpack.c.b16 %v103, %v102
  %v116 = vpack.c.b16 %v105, %v104
  %v117 = vpack.c.b16 %v106, %v106
  %v145 = vunpack.c.l.b16 %v42
  %v146 = vunpack.c.l.b16 %v43
  %v147 = vunpack.c.l.b16 %v44
  %v148 = vunpack.c.l.b16 %v45
  %v149 = vunpack.c.l.b16 %v46
  %v150 = vunpack.c.l.b16 %v47
  %v151 = vunpack.c.l.b16 %v48
  %v152 = vunpack.c.l.b16 %v49
  %v153 = vunpack.c.l.b16 %v50
  %v154 = vunpack.c.l.b16 %v51
  %v155 = vunpack.c.l.b16 %v52
  %v156 = vunpack.c.l.b16 %v53
  %v157 = vunpack.c.l.b16 %v54
  %v158 = vunpack.c.l.b16 %v55
  %v159 = vunpack.c.l.b16 %v56
  %v160 = vunpack.c.l.b16 %v57
  %v161 = vpack.c.b16 %v146, %v145
  %v162 = vpack.c.b16 %v148, %v147
  %v163 = vpack.c.b16 %v150, %v149
  %v164 = vpack.c.b16 %v152, %v151
  %v165 = vpack.c.b16 %v154, %v153
  %v166 = vpack.c.b16 %v156, %v155
  %v167 = vpack.c.b16 %v158, %v157
  %v168 = vpack.c.b16 %v160, %v159
  %177 = vmatprep.subr.bf16.mxu0 0
  %178 = vmatpush1.bf16.msra.mxu0 %v161
  %179 = vmatprep.subr.bf16.mxu0 0
  %180 = vmatpush1.bf16.msra.mxu0 %v162
  %181 = vmatprep.subr.bf16.mxu0 0
  %182 = vmatpush1.bf16.msra.mxu0 %v163
  %183 = vmatprep.subr.bf16.mxu0 0
  %184 = vmatpush1.bf16.msra.mxu0 %v164
  %185 = vmatprep.subr.bf16.mxu0 0
  %186 = vmatpush1.bf16.msra.mxu0 %v165
  %187 = vmatprep.subr.bf16.mxu0 0
  %188 = vmatpush1.bf16.msra.mxu0 %v166
  %189 = vmatprep.subr.bf16.mxu0 0
  %190 = vmatpush1.bf16.msra.mxu0 %v167
  %191 = vmatprep.subr.bf16.mxu0 0
  %192 = vmatpush1.bf16.msra.mxu0 %v168
  %193 = vmatprep.subr.bf16.mxu0 0
  %194 = vmatpush1.bf16.msra.mxu0 0
  %195 = vmatprep.subr.bf16.mxu0 0
  %196 = vmatpush1.bf16.msra.mxu0 0
  %197 = vmatprep.subr.bf16.mxu0 0
  %198 = vmatpush1.bf16.msra.mxu0 0
  %199 = vmatprep.subr.bf16.mxu0 0
  %200 = vmatpush1.bf16.msra.mxu0 0
  %201 = vmatprep.subr.bf16.mxu0 0
  %202 = vmatpush1.bf16.msra.mxu0 0
  %203 = vmatprep.subr.bf16.mxu0 0
  %204 = vmatpush1.bf16.msra.mxu0 0
  %205 = vmatprep.subr.bf16.mxu0 0
  %206 = vmatpush1.bf16.msra.mxu0 0
  %207 = vmatprep.subr.bf16.mxu0 0
  %208 = vmatpush1.bf16.msra.mxu0 0
  %209 = vmatprep.mubr.bf16.mxu0 0
  %210 = vmatmul.mubr.bf16.gmra.mrb[0].mxu0 %v107
  %v211 = vpop.f32.mrb[0].mxu0
  %v212 = vadd.f32 %v63, %v211
  %v213 = vpop.f32.mrb[0].mxu0
  %v214 = vpop.f32.mrb[0].mxu0
  %v215 = vadd.f32 %v63, %v214
  %v216 = vpop.f32.mrb[0].mxu0
  %217 = vmatprep.mubr.bf16.mxu0 0
  %218 = vmatmul.mubr.bf16.gmra.mrb[0].mxu0 %v108
  %v219 = vpop.f32.mrb[0].mxu0
  %v220 = vadd.f32 %v63, %v219
  %v221 = vpop.f32.mrb[0].mxu0
  %v222 = vpop.f32.mrb[0].mxu0
  %v223 = vadd.f32 %v63, %v222
  %v224 = vpop.f32.mrb[0].mxu0
  %225 = vmatprep.mubr.bf16.mxu0 0
  %226 = vmatmul.mubr.bf16.gmra.mrb[0].mxu0 %v109
  %v227 = vpop.f32.mrb[0].mxu0
  %v228 = vadd.f32 %v63, %v227
  %v229 = vpop.f32.mrb[0].mxu0
  %v230 = vpop.f32.mrb[0].mxu0
  %v231 = vadd.f32 %v63, %v230
  %v232 = vpop.f32.mrb[0].mxu0
  %233 = vmatprep.mubr.bf16.mxu0 0
  %234 = vmatmul.mubr.bf16.gmra.mrb[0].mxu0 %v110
  %v235 = vpop.f32.mrb[0].mxu0
  %v236 = vadd.f32 %v63, %v235
  %v237 = vpop.f32.mrb[0].mxu0
  %v238 = vpop.f32.mrb[0].mxu0
  %v239 = vadd.f32 %v63, %v238
  %v240 = vpop.f32.mrb[0].mxu0
  %241 = vmatprep.mubr.bf16.mxu0 0
  %242 = vmatmul.mubr.bf16.gmra.mrb[0].mxu0 %v111
  %v243 = vpop.f32.mrb[0].mxu0
  %v244 = vadd.f32 %v63, %v243
  %v245 = vpop.f32.mrb[0].mxu0
  %v246 = vpop.f32.mrb[0].mxu0
  %v247 = vadd.f32 %v63, %v246
  %v248 = vpop.f32.mrb[0].mxu0
  %249 = vmatprep.mubr.bf16.mxu0 0
  %250 = vmatmul.mubr.bf16.gmra.mrb[0].mxu0 %v112
  %v251 = vpop.f32.mrb[0].mxu0
  %v252 = vadd.f32 %v63, %v251
  %v253 = vpop.f32.mrb[0].mxu0
  %v254 = vpop.f32.mrb[0].mxu0
  %v255 = vadd.f32 %v63, %v254
  %v256 = vpop.f32.mrb[0].mxu0
  %257 = vmatprep.mubr.bf16.mxu0 0
  %258 = vmatmul.mubr.bf16.gmra.mrb[0].mxu0 %v113
  %v259 = vpop.f32.mrb[0].mxu0
  %v260 = vadd.f32 %v63, %v259
  %v261 = vpop.f32.mrb[0].mxu0
  %v262 = vpop.f32.mrb[0].mxu0
  %v263 = vadd.f32 %v63, %v262
  %v264 = vpop.f32.mrb[0].mxu0
  %265 = vmatprep.mubr.bf16.mxu0 0
  %266 = vmatmul.mubr.bf16.gmra.mrb[0].mxu0 %v114
  %v267 = vpop.f32.mrb[0].mxu0
  %v268 = vadd.f32 %v63, %v267
  %v269 = vpop.f32.mrb[0].mxu0
  %v270 = vpop.f32.mrb[0].mxu0
  %v271 = vadd.f32 %v63, %v270
  %v272 = vpop.f32.mrb[0].mxu0
  %273 = vmatprep.mubr.bf16.mxu0 0
  %274 = vmatmul.mubr.bf16.gmra.mrb[0].mxu0 %v115
  %v275 = vpop.f32.mrb[0].mxu0
  %v276 = vadd.f32 %v63, %v275
  %v277 = vpop.f32.mrb[0].mxu0
  %v278 = vpop.f32.mrb[0].mxu0
  %v279 = vadd.f32 %v63, %v278
  %v280 = vpop.f32.mrb[0].mxu0
  %281 = vmatprep.mubr.bf16.mxu0 0
  %282 = vmatmul.mubr.bf16.gmra.mrb[0].mxu0 %v116
  %v283 = vpop.f32.mrb[0].mxu0
  %v284 = vadd.f32 %v63, %v283
  %v285 = vpop.f32.mrb[0].mxu0
  %v286 = vpop.f32.mrb[0].mxu0
  %v287 = vadd.f32 %v63, %v286
  %v288 = vpop.f32.mrb[0].mxu0
  %289 = vmatprep.mubr.bf16.mxu0 0
  %290 = vmatmul.mubr.bf16.gmra.mrb[0].mxu0 %v117
  %v291 = vpop.f32.mrb[0].mxu0
  %v292 = vadd.f32 %v63, %v291
  %v293 = vpop.f32.mrb[0].mxu0
  %v294 = vpop.f32.mrb[0].mxu0
  %v295 = vpop.f32.mrb[0].mxu0
  %296 = vdwg.mxu0
  %vm297 = vcmask 130048
  %v298 = vsel %vm297, %v212, 0.0
  %v299 = vsel %vm297, %v215, 0.0
  %v300 = vadd.f32 %v298, %v299
  %v301 = vsel %vm297, %v220, 0.0
  %v302 = vadd.f32 %v300, %v301
  %v303 = vsel %vm297, %v223, 0.0
  %v304 = vadd.f32 %v302, %v303
  %v305 = vsel %vm297, %v228, 0.0
  %v306 = vadd.f32 %v304, %v305
  %v307 = vsel %vm297, %v231, 0.0
  %v308 = vadd.f32 %v306, %v307
  %v309 = vsel %vm297, %v236, 0.0
  %v310 = vadd.f32 %v308, %v309
  %v311 = vsel %vm297, %v239, 0.0
  %v312 = vadd.f32 %v310, %v311
  %v313 = vsel %vm297, %v244, 0.0
  %v314 = vadd.f32 %v312, %v313
  %v315 = vsel %vm297, %v247, 0.0
  %v316 = vadd.f32 %v314, %v315
  %v317 = vsel %vm297, %v252, 0.0
  %v318 = vadd.f32 %v316, %v317
  %v319 = vsel %vm297, %v255, 0.0
  %v320 = vadd.f32 %v318, %v319
  %v321 = vsel %vm297, %v260, 0.0
  %v322 = vadd.f32 %v320, %v321
  %v323 = vsel %vm297, %v263, 0.0
  %v324 = vadd.f32 %v322, %v323
  %v325 = vsel %vm297, %v268, 0.0
  %v326 = vadd.f32 %v324, %v325
  %v327 = vsel %vm297, %v271, 0.0
  %v328 = vadd.f32 %v326, %v327
  %v329 = vsel %vm297, %v276, 0.0
  %v330 = vadd.f32 %v328, %v329
  %v331 = vsel %vm297, %v279, 0.0
  %v332 = vadd.f32 %v330, %v331
  %v333 = vsel %vm297, %v284, 0.0
  %v334 = vadd.f32 %v332, %v333
  %v335 = vsel %vm297, %v287, 0.0
  %v336 = vadd.f32 %v334, %v335
  %vm337 = vcmask 123904
  %v338 = vsel %vm337, %v292, 0.0
  %v339 = vadd.f32 %v336, %v338
  %v340 = vrot.slane %v339, 4
  %v341 = vadd.f32 %v339, %v340
  %v342 = vrot.slane %v341, 2
  %v343 = vadd.f32 %v341, %v342
  %v344 = vrot.slane %v343, 1
  %v345 = vadd.f32 %v343, %v344
  %v346 = vrcp.pop 162.0
  %v347 = vmul.f32 %v345, %v346
  %v348 = vsub.f32 %v212, %v347
  %v349 = vsub.f32 %v215, %v347
  %v350 = vsub.f32 %v220, %v347
  %v351 = vsub.f32 %v223, %v347
  %v352 = vsub.f32 %v228, %v347
  %v353 = vsub.f32 %v231, %v347
  %v354 = vsub.f32 %v236, %v347
  %v355 = vsub.f32 %v239, %v347
  %v356 = vsub.f32 %v244, %v347
  %v357 = vsub.f32 %v247, %v347
  %v358 = vsub.f32 %v252, %v347
  %v359 = vsub.f32 %v255, %v347
  %v360 = vsub.f32 %v260, %v347
  %v361 = vsub.f32 %v263, %v347
  %v362 = vsub.f32 %v268, %v347
  %v363 = vsub.f32 %v271, %v347
  %v364 = vsub.f32 %v276, %v347
  %v365 = vsub.f32 %v279, %v347
  %v366 = vsub.f32 %v284, %v347
  %v367 = vsub.f32 %v287, %v347
  %v368 = vsub.f32 %v292, %v347
  %v369 = vmul.f32 %v348, %v348
  %v370 = vmul.f32 %v349, %v349
  %v371 = vmul.f32 %v350, %v350
  %v372 = vmul.f32 %v351, %v351
  %v373 = vmul.f32 %v352, %v352
  %v374 = vmul.f32 %v353, %v353
  %v375 = vmul.f32 %v354, %v354
  %v376 = vmul.f32 %v355, %v355
  %v377 = vmul.f32 %v356, %v356
  %v378 = vmul.f32 %v357, %v357
  %v379 = vmul.f32 %v358, %v358
  %v380 = vmul.f32 %v359, %v359
  %v381 = vmul.f32 %v360, %v360
  %v382 = vmul.f32 %v361, %v361
  %v383 = vmul.f32 %v362, %v362
  %v384 = vmul.f32 %v363, %v363
  %v385 = vmul.f32 %v364, %v364
  %v386 = vmul.f32 %v365, %v365
  %v387 = vmul.f32 %v366, %v366
  %v388 = vmul.f32 %v367, %v367
  %v389 = vmul.f32 %v368, %v368
  %v390 = vsel %vm297, %v369, 0.0
  %v391 = vsel %vm297, %v370, 0.0
  %v392 = vadd.f32 %v390, %v391
  %v393 = vsel %vm297, %v371, 0.0
  %v394 = vadd.f32 %v392, %v393
  %v395 = vsel %vm297, %v372, 0.0
  %v396 = vadd.f32 %v394, %v395
  %v397 = vsel %vm297, %v373, 0.0
  %v398 = vadd.f32 %v396, %v397
  %v399 = vsel %vm297, %v374, 0.0
  %v400 = vadd.f32 %v398, %v399
  %v401 = vsel %vm297, %v375, 0.0
  %v402 = vadd.f32 %v400, %v401
  %v403 = vsel %vm297, %v376, 0.0
  %v404 = vadd.f32 %v402, %v403
  %v405 = vsel %vm297, %v377, 0.0
  %v406 = vadd.f32 %v404, %v405
  %v407 = vsel %vm297, %v378, 0.0
  %v408 = vadd.f32 %v406, %v407
  %v409 = vsel %vm297, %v379, 0.0
  %v410 = vadd.f32 %v408, %v409
  %v411 = vsel %vm297, %v380, 0.0
  %v412 = vadd.f32 %v410, %v411
  %v413 = vsel %vm297, %v381, 0.0
  %v414 = vadd.f32 %v412, %v413
  %v415 = vsel %vm297, %v382, 0.0
  %v416 = vadd.f32 %v414, %v415
  %v417 = vsel %vm297, %v383, 0.0
  %v418 = vadd.f32 %v416, %v417
  %v419 = vsel %vm297, %v384, 0.0
  %v420 = vadd.f32 %v418, %v419
  %v421 = vsel %vm297, %v385, 0.0
  %v422 = vadd.f32 %v420, %v421
  %v423 = vsel %vm297, %v386, 0.0
  %v424 = vadd.f32 %v422, %v423
  %v425 = vsel %vm297, %v387, 0.0
  %v426 = vadd.f32 %v424, %v425
  %v427 = vsel %vm297, %v388, 0.0
  %v428 = vadd.f32 %v426, %v427
  %v429 = vsel %vm337, %v389, 0.0
  %v430 = vadd.f32 %v428, %v429
  %v431 = vrot.slane %v430, 4
  %v432 = vadd.f32 %v430, %v431
  %v433 = vrot.slane %v432, 2
  %v434 = vadd.f32 %v432, %v433
  %v435 = vrot.slane %v434, 1
  %v436 = vadd.f32 %v434, %v435
  %v437 = vmul.f32 %v436, %v346
  %v438 = vadd.f32 %v437, 1e-05
  %v439 = vrsqrt.pop %v438
  %v440 = vmul.f32 %v348, %v439
  %v441 = vmul.f32 %v349, %v439
  %v442 = vmul.f32 %v350, %v439
  %v443 = vmul.f32 %v351, %v439
  %v444 = vmul.f32 %v352, %v439
  %v445 = vmul.f32 %v353, %v439
  %v446 = vmul.f32 %v354, %v439
  %v447 = vmul.f32 %v355, %v439
  %v448 = vmul.f32 %v356, %v439
  %v449 = vmul.f32 %v357, %v439
  %v450 = vmul.f32 %v358, %v439
  %v451 = vmul.f32 %v359, %v439
  %v452 = vmul.f32 %v360, %v439
  %v453 = vmul.f32 %v361, %v439
  %v454 = vmul.f32 %v362, %v439
  %v455 = vmul.f32 %v363, %v439
  %v456 = vmul.f32 %v364, %v439
  %v457 = vmul.f32 %v365, %v439
  %v458 = vmul.f32 %v366, %v439
  %v459 = vmul.f32 %v367, %v439
  %v460 = vmul.f32 %v368, %v439
  %v461 = vld [vmem:[%s3] sm:$0x1]
  %v463 = vlaneseq
  %v464 = vshrl.u32 %v463, 7
  %v465 = vsub.s32 0, %v464
  %v466 = vrot.slane %v461, %v465
  %v468 = vmul.f32 %v440, %v466
  %v469 = vmul.f32 %v441, %v466
  %v470 = vmul.f32 %v442, %v466
  %v471 = vmul.f32 %v443, %v466
  %v472 = vmul.f32 %v444, %v466
  %v473 = vmul.f32 %v445, %v466
  %v474 = vmul.f32 %v446, %v466
  %v475 = vmul.f32 %v447, %v466
  %v476 = vmul.f32 %v448, %v466
  %v477 = vmul.f32 %v449, %v466
  %v478 = vmul.f32 %v450, %v466
  %v479 = vmul.f32 %v451, %v466
  %v480 = vmul.f32 %v452, %v466
  %v481 = vmul.f32 %v453, %v466
  %v482 = vmul.f32 %v454, %v466
  %v483 = vmul.f32 %v455, %v466
  %v484 = vmul.f32 %v456, %v466
  %v485 = vmul.f32 %v457, %v466
  %v486 = vmul.f32 %v458, %v466
  %v487 = vmul.f32 %v459, %v466
  %v488 = vmul.f32 %v460, %v466
  %v489 = vld [vmem:[%s4] sm:$0x1]
  %v491 = vlaneseq
  %v492 = vshrl.u32 %v491, 7
  %v493 = vsub.s32 0, %v492
  %v494 = vrot.slane %v489, %v493
  %v496 = vadd.f32 %v468, %v494
  %v497 = vadd.f32 %v469, %v494
  %v498 = vadd.f32 %v470, %v494
  %v499 = vadd.f32 %v471, %v494
  %v500 = vadd.f32 %v472, %v494
  %v501 = vadd.f32 %v473, %v494
  %v502 = vadd.f32 %v474, %v494
  %v503 = vadd.f32 %v475, %v494
  %v504 = vadd.f32 %v476, %v494
  %v505 = vadd.f32 %v477, %v494
  %v506 = vadd.f32 %v478, %v494
  %v507 = vadd.f32 %v479, %v494
  %v508 = vadd.f32 %v480, %v494
  %v509 = vadd.f32 %v481, %v494
  %v510 = vadd.f32 %v482, %v494
  %v511 = vadd.f32 %v483, %v494
  %v512 = vadd.f32 %v484, %v494
  %v513 = vadd.f32 %v485, %v494
  %v514 = vadd.f32 %v486, %v494
  %v515 = vadd.f32 %v487, %v494
  %v516 = vadd.f32 %v488, %v494
  %vm517 = vcmp.ge.f32.partialorder %v496, 0.0
  %vm518 = vcmp.ge.f32.partialorder %v497, 0.0
  %vm519 = vcmp.ge.f32.partialorder %v498, 0.0
  %vm520 = vcmp.ge.f32.partialorder %v499, 0.0
  %vm521 = vcmp.ge.f32.partialorder %v500, 0.0
  %vm522 = vcmp.ge.f32.partialorder %v501, 0.0
  %vm523 = vcmp.ge.f32.partialorder %v502, 0.0
  %vm524 = vcmp.ge.f32.partialorder %v503, 0.0
  %vm525 = vcmp.ge.f32.partialorder %v504, 0.0
  %vm526 = vcmp.ge.f32.partialorder %v505, 0.0
  %vm527 = vcmp.ge.f32.partialorder %v506, 0.0
  %vm528 = vcmp.ge.f32.partialorder %v507, 0.0
  %vm529 = vcmp.ge.f32.partialorder %v508, 0.0
  %vm530 = vcmp.ge.f32.partialorder %v509, 0.0
  %vm531 = vcmp.ge.f32.partialorder %v510, 0.0
  %vm532 = vcmp.ge.f32.partialorder %v511, 0.0
  %vm533 = vcmp.ge.f32.partialorder %v512, 0.0
  %vm534 = vcmp.ge.f32.partialorder %v513, 0.0
  %vm535 = vcmp.ge.f32.partialorder %v514, 0.0
  %vm536 = vcmp.ge.f32.partialorder %v515, 0.0
  %vm537 = vcmp.ge.f32.partialorder %v516, 0.0
  %v538 = vmul.f32 %v496, 0.2
  %v539 = vmul.f32 %v497, 0.2
  %v540 = vmul.f32 %v498, 0.2
  %v541 = vmul.f32 %v499, 0.2
  %v542 = vmul.f32 %v500, 0.2
  %v543 = vmul.f32 %v501, 0.2
  %v544 = vmul.f32 %v502, 0.2
  %v545 = vmul.f32 %v503, 0.2
  %v546 = vmul.f32 %v504, 0.2
  %v547 = vmul.f32 %v505, 0.2
  %v548 = vmul.f32 %v506, 0.2
  %v549 = vmul.f32 %v507, 0.2
  %v550 = vmul.f32 %v508, 0.2
  %v551 = vmul.f32 %v509, 0.2
  %v552 = vmul.f32 %v510, 0.2
  %v553 = vmul.f32 %v511, 0.2
  %v554 = vmul.f32 %v512, 0.2
  %v555 = vmul.f32 %v513, 0.2
  %v556 = vmul.f32 %v514, 0.2
  %v557 = vmul.f32 %v515, 0.2
  %v558 = vmul.f32 %v516, 0.2
  %v559 = vsel %vm517, %v496, %v538
  %v560 = vsel %vm518, %v497, %v539
  %v561 = vsel %vm519, %v498, %v540
  %v562 = vsel %vm520, %v499, %v541
  %v563 = vsel %vm521, %v500, %v542
  %v564 = vsel %vm522, %v501, %v543
  %v565 = vsel %vm523, %v502, %v544
  %v566 = vsel %vm524, %v503, %v545
  %v567 = vsel %vm525, %v504, %v546
  %v568 = vsel %vm526, %v505, %v547
  %v569 = vsel %vm527, %v506, %v548
  %v570 = vsel %vm528, %v507, %v549
  %v571 = vsel %vm529, %v508, %v550
  %v572 = vsel %vm530, %v509, %v551
  %v573 = vsel %vm531, %v510, %v552
  %v574 = vsel %vm532, %v511, %v553
  %v575 = vsel %vm533, %v512, %v554
  %v576 = vsel %vm534, %v513, %v555
  %v577 = vsel %vm535, %v514, %v556
  %v578 = vsel %vm536, %v515, %v557
  %v579 = vsel %vm537, %v516, %v558
  %580 = vst.msk [vmem:[%s5] sm:$0xff] %vm297, %v559
  %581 = vst.msk [vmem:[%s5 + $0x8] sm:$0xff] %vm297, %v560
  %582 = vst.msk [vmem:[%s5 + $0x10] sm:$0xff] %vm297, %v561
  %583 = vst.msk [vmem:[%s5 + $0x18] sm:$0xff] %vm297, %v562
  %584 = vst.msk [vmem:[%s5 + $0x20] sm:$0xff] %vm297, %v563
  %585 = vst.msk [vmem:[%s5 + $0x28] sm:$0xff] %vm297, %v564
  %586 = vst.msk [vmem:[%s5 + $0x30] sm:$0xff] %vm297, %v565
  %587 = vst.msk [vmem:[%s5 + $0x38] sm:$0xff] %vm297, %v566
  %588 = vst.msk [vmem:[%s5 + $0x40] sm:$0xff] %vm297, %v567
  %589 = vst.msk [vmem:[%s5 + $0x48] sm:$0xff] %vm297, %v568
  %590 = vst.msk [vmem:[%s5 + $0x50] sm:$0xff] %vm297, %v569
  %591 = vst.msk [vmem:[%s5 + $0x58] sm:$0xff] %vm297, %v570
  %592 = vst.msk [vmem:[%s5 + $0x60] sm:$0xff] %vm297, %v571
  %593 = vst.msk [vmem:[%s5 + $0x68] sm:$0xff] %vm297, %v572
  %594 = vst.msk [vmem:[%s5 + $0x70] sm:$0xff] %vm297, %v573
  %595 = vst.msk [vmem:[%s5 + $0x78] sm:$0xff] %vm297, %v574
  %596 = vst.msk [vmem:[%s5 + $0x80] sm:$0xff] %vm297, %v575
  %597 = vst.msk [vmem:[%s5 + $0x88] sm:$0xff] %vm297, %v576
  %598 = vst.msk [vmem:[%s5 + $0x90] sm:$0xff] %vm297, %v577
  %599 = vst.msk [vmem:[%s5 + $0x98] sm:$0xff] %vm297, %v578
  %600 = vst.msk [vmem:[%s5 + $0xa0] sm:$0x3] %vm337, %v579
  // Predicated region
  $region22: #{multiscale_discriminator_forward.16} parent=0 // pred_check
    _
  $region23: #{multiscale_discriminator_forward.16} parent=0 // pred_check_branch
    %602 = sbr.rel (0) target = $region25
  $region24: #{multiscale_discriminator_forward.16} parent=0 // pred_region
    _
  $region25: #{multiscale_discriminator_forward.16} parent=0 // pred_fallthru
    _
  // Predicated region
  $region26: #{multiscale_discriminator_forward.16} parent=0 // pred_check
    _
  $region27: #{multiscale_discriminator_forward.16} parent=0 // pred_check_branch
    %604 = sbr.rel (0) target = $region29
  $region28: #{multiscale_discriminator_forward.16} parent=0 // pred_region
    _
  $region29: #{multiscale_discriminator_forward.16} parent=0 // pred_fallthru
    _

// kernel: multiscale_discriminator_forward.17
$region0: #{multiscale_discriminator_forward.17}
  #allocation0 [shape = 'u32[]', space=smem, size = 0x4, offset = 0x4, fixed_abs, tag = 'smem constant byte address 0x4 - core index']
  #allocation1 [shape = 'u32[144,128]{1,0:T(1,128)}', space=vmem, size = 0x12000, scoped, tag = 'internal scratch']
  %s0 = inlined_call_operand.vmem [shape: bf16[50,256], index: 0, kind: input, shape index: {}]
  %s1 = inlined_call_operand.vmem [shape: bf16[256,32], index: 1, kind: input, shape index: {}]
  %s2 = inlined_call_operand.vmem [shape: f32[1,32], index: 2, kind: input, shape index: {}]
  %s3 = inlined_call_operand.vmem [shape: f32[1,32], index: 3, kind: input, shape index: {}]
  %s4 = inlined_call_operand.vmem [shape: f32[1,32], index: 4, kind: input, shape index: {}]
  %s5 = inlined_call_operand.vmem [shape: f32[50,32], index: 5, kind: output, shape index: {}]
  %s6 = sld [smem:[#allocation0]]
  $region30: #{multiscale_discriminator_forward.17} parent=0
    _
  %s8 = ssub.s32 1, %s6
  %s9 = scalar_select 0, %s8, %s6
  // Predicated region
  $region2: #{multiscale_discriminator_forward.17} parent=0 // pred_check
    _
  $region3: #{multiscale_discriminator_forward.17} parent=0 // pred_check_branch
    %11 = sbr.rel (0) target = $region5
  $region4: #{multiscale_discriminator_forward.17} parent=0 // pred_region
    _
  $region5: #{multiscale_discriminator_forward.17} parent=0 // pred_fallthru
    _
  // Predicated region
  $region6: #{multiscale_discriminator_forward.17} parent=0 // pred_check
    _
  $region7: #{multiscale_discriminator_forward.17} parent=0 // pred_check_branch
    %13 = sbr.rel (0) target = $region9
  $region8: #{multiscale_discriminator_forward.17} parent=0 // pred_region
    _
  $region9: #{multiscale_discriminator_forward.17} parent=0 // pred_fallthru
    _
  // Predicated region
  $region10: #{multiscale_discriminator_forward.17} parent=0 // pred_check
    _
  $region11: #{multiscale_discriminator_forward.17} parent=0 // pred_check_branch
    %15 = sbr.rel (0) target = $region13
  $region12: #{multiscale_discriminator_forward.17} parent=0 // pred_region
    _
  $region13: #{multiscale_discriminator_forward.17} parent=0 // pred_fallthru
    _
  // Predicated region
  $region14: #{multiscale_discriminator_forward.17} parent=0 // pred_check
    _
  $region15: #{multiscale_discriminator_forward.17} parent=0 // pred_check_branch
    %17 = sbr.rel (0) target = $region17
  $region16: #{multiscale_discriminator_forward.17} parent=0 // pred_region
    _
  $region17: #{multiscale_discriminator_forward.17} parent=0 // pred_fallthru
    _
  // Predicated region
  $region18: #{multiscale_discriminator_forward.17} parent=0 // pred_check
    _
  $region19: #{multiscale_discriminator_forward.17} parent=0 // pred_check_branch
    %19 = sbr.rel (0) target = $region21
  $region20: #{multiscale_discriminator_forward.17} parent=0 // pred_region
    _
  $region21: #{multiscale_discriminator_forward.17} parent=0 // pred_fallthru
    _
  %v21 = vld [vmem:[%s0] sm:$0xff]
  %v22 = vld [vmem:[%s0 + $0x8] sm:$0xff]
  %v23 = vld [vmem:[%s0 + $0x10] sm:$0xff]
  %v24 = vld [vmem:[%s0 + $0x18] sm:$0xff]
  %v25 = vld [vmem:[%s0 + $0x20] sm:$0xff]
  %v26 = vld [vmem:[%s0 + $0x28] sm:$0xff]
  %v27 = vld [vmem:[%s0 + $0x30] sm:$0x11]
  %v28 = vld [vmem:[%s1] sm:$0xf]
  %v29 = vld [vmem:[%s1 + $0x4] sm:$0xf]
  %v30 = vld [vmem:[%s1 + $0x8] sm:$0xf]
  %v31 = vld [vmem:[%s1 + $0xc] sm:$0xf]
  %v32 = vld [vmem:[%s1 + $0x10] sm:$0xf]
  %v33 = vld [vmem:[%s1 + $0x14] sm:$0xf]
  %v34 = vld [vmem:[%s1 + $0x18] sm:$0xf]
  %v35 = vld [vmem:[%s1 + $0x1c] sm:$0xf]
  %v36 = vld [vmem:[%s1 + $0x20] sm:$0xf]
  %v37 = vld [vmem:[%s1 + $0x24] sm:$0xf]
  %v38 = vld [vmem:[%s1 + $0x28] sm:$0xf]
  %v39 = vld [vmem:[%s1 + $0x2c] sm:$0xf]
  %v40 = vld [vmem:[%s1 + $0x30] sm:$0xf]
  %v41 = vld [vmem:[%s1 + $0x34] sm:$0xf]
  %v42 = vld [vmem:[%s1 + $0x38] sm:$0xf]
  %v43 = vld [vmem:[%s1 + $0x3c] sm:$0xf]
  %v44 = vld [vmem:[%s1 + $0x40] sm:$0xf]
  %v45 = vld [vmem:[%s1 + $0x44] sm:$0xf]
  %v46 = vld [vmem:[%s1 + $0x48] sm:$0xf]
  %v47 = vld [vmem:[%s1 + $0x4c] sm:$0xf]
  %v48 = vld [vmem:[%s1 + $0x50] sm:$0xf]
  %v49 = vld [vmem:[%s1 + $0x54] sm:$0xf]
  %v50 = vld [vmem:[%s1 + $0x58] sm:$0xf]
  %v51 = vld [vmem:[%s1 + $0x5c] sm:$0xf]
  %v52 = vld [vmem:[%s1 + $0x60] sm:$0xf]
  %v53 = vld [vmem:[%s1 + $0x64] sm:$0xf]
  %v54 = vld [vmem:[%s1 + $0x68] sm:$0xf]
  %v55 = vld [vmem:[%s1 + $0x6c] sm:$0xf]
  %v56 = vld [vmem:[%s1 + $0x70] sm:$0xf]
  %v57 = vld [vmem:[%s1 + $0x74] sm:$0xf]
  %v58 = vld [vmem:[%s1 + $0x78] sm:$0xf]
  %v59 = vld [vmem:[%s1 + $0x7c] sm:$0xf]
  %v60 = vld [vmem:[%s2] sm:$0x1]
  %v62 = vlaneseq
  %v63 = vshrl.u32 %v62, 7
  %v64 = vsub.s32 0, %v63
  %v65 = vrot.slane %v60, %v64
  %v74 = vunpack.c.l.b16 %v21
  %v75 = vunpack.c.h.b16 %v21
  %v76 = vunpack.c.l.b16 %v22
  %v77 = vunpack.c.h.b16 %v22
  %v78 = vunpack.c.l.b16 %v23
  %v79 = vunpack.c.h.b16 %v23
  %v80 = vunpack.c.l.b16 %v24
  %v81 = vunpack.c.h.b16 %v24
  %v82 = vunpack.c.l.b16 %v25
  %v83 = vunpack.c.h.b16 %v25
  %v84 = vunpack.c.l.b16 %v26
  %v85 = vunpack.c.h.b16 %v26
  %v86 = vunpack.c.l.b16 %v27
  %v87 = vunpack.c.h.b16 %v27
  %v88 = vpack.c.b16 %v76, %v74
  %v89 = vpack.c.b16 %v77, %v75
  %v90 = vpack.c.b16 %v80, %v78
  %v91 = vpack.c.b16 %v81, %v79
  %v92 = vpack.c.b16 %v84, %v82
  %v93 = vpack.c.b16 %v85, %v83
  %v94 = vpack.c.b16 %v86, %v86
  %v95 = vpack.c.b16 %v87, %v87
  %v136 = vunpack.c.l.b16 %v28
  %v137 = vunpack.c.l.b16 %v29
  %v138 = vunpack.c.l.b16 %v30
  %v139 = vunpack.c.l.b16 %v31
  %v140 = vunpack.c.l.b16 %v32
  %v141 = vunpack.c.l.b16 %v33
  %v142 = vunpack.c.l.b16 %v34
  %v143 = vunpack.c.l.b16 %v35
  %v144 = vunpack.c.l.b16 %v36
  %v145 = vunpack.c.l.b16 %v37
  %v146 = vunpack.c.l.b16 %v38
  %v147 = vunpack.c.l.b16 %v39
  %v148 = vunpack.c.l.b16 %v40
  %v149 = vunpack.c.l.b16 %v41
  %v150 = vunpack.c.l.b16 %v42
  %v151 = vunpack.c.l.b16 %v43
  %v152 = vunpack.c.l.b16 %v44
  %v153 = vunpack.c.l.b16 %v45
  %v154 = vunpack.c.l.b16 %v46
  %v155 = vunpack.c.l.b16 %v47
  %v156 = vunpack.c.l.b16 %v48
  %v157 = vunpack.c.l.b16 %v49
  %v158 = vunpack.c.l.b16 %v50
  %v159 = vunpack.c.l.b16 %v51
  %v160 = vunpack.c.l.b16 %v52
  %v161 = vunpack.c.l.b16 %v53
  %v162 = vunpack.c.l.b16 %v54
  %v163 = vunpack.c.l.b16 %v55
  %v164 = vunpack.c.l.b16 %v56
  %v165 = vunpack.c.l.b16 %v57
  %v166 = vunpack.c.l.b16 %v58
  %v167 = vunpack.c.l.b16 %v59
  %v168 = vpack.c.b16 %v137, %v136
  %v169 = vpack.c.b16 %v139, %v138
  %v170 = vpack.c.b16 %v141, %v140
  %v171 = vpack.c.b16 %v143, %v142
  %v172 = vpack.c.b16 %v145, %v144
  %v173 = vpack.c.b16 %v147, %v146
  %v174 = vpack.c.b16 %v149, %v148
  %v175 = vpack.c.b16 %v151, %v150
  %v176 = vpack.c.b16 %v153, %v152
  %v177 = vpack.c.b16 %v155, %v154
  %v178 = vpack.c.b16 %v157, %v156
  %v179 = vpack.c.b16 %v159, %v158
  %v180 = vpack.c.b16 %v161, %v160
  %v181 = vpack.c.b16 %v163, %v162
  %v182 = vpack.c.b16 %v165, %v164
  %v183 = vpack.c.b16 %v167, %v166
  %200 = vmatprep.subr.bf16.mxu0 0
  %201 = vmatpush1.bf16.msra.mxu0 %v168
  %202 = vmatprep.subr.bf16.mxu0 0
  %203 = vmatpush1.bf16.msra.mxu0 %v169
  %204 = vmatprep.subr.bf16.mxu0 0
  %205 = vmatpush1.bf16.msra.mxu0 %v170
  %206 = vmatprep.subr.bf16.mxu0 0
  %207 = vmatpush1.bf16.msra.mxu0 %v171
  %208 = vmatprep.subr.bf16.mxu0 0
  %209 = vmatpush1.bf16.msra.mxu0 %v172
  %210 = vmatprep.subr.bf16.mxu0 0
  %211 = vmatpush1.bf16.msra.mxu0 %v173
  %212 = vmatprep.subr.bf16.mxu0 0
  %213 = vmatpush1.bf16.msra.mxu0 %v174
  %214 = vmatprep.subr.bf16.mxu0 0
  %215 = vmatpush1.bf16.msra.mxu0 %v175
  %216 = vmatprep.subr.bf16.mxu0 0
  %217 = vmatpush1.bf16.msra.mxu0 %v176
  %218 = vmatprep.subr.bf16.mxu0 0
  %219 = vmatpush1.bf16.msra.mxu0 %v177
  %220 = vmatprep.subr.bf16.mxu0 0
  %221 = vmatpush1.bf16.msra.mxu0 %v178
  %222 = vmatprep.subr.bf16.mxu0 0
  %223 = vmatpush1.bf16.msra.mxu0 %v179
  %224 = vmatprep.subr.bf16.mxu0 0
  %225 = vmatpush1.bf16.msra.mxu0 %v180
  %226 = vmatprep.subr.bf16.mxu0 0
  %227 = vmatpush1.bf16.msra.mxu0 %v181
  %228 = vmatprep.subr.bf16.mxu0 0
  %229 = vmatpush1.bf16.msra.mxu0 %v182
  %230 = vmatprep.subr.bf16.mxu0 0
  %231 = vmatpush1.bf16.msra.mxu0 %v183
  %232 = vmatprep.mubr.bf16.mxu0 %v89
  %233 = vmatmul.mubr.bf16.gmra.mrb[0].mxu0 %v88
  %v234 = vpop.f32.mrb[0].mxu0
  %v235 = vadd.f32 %v65, %v234
  %v236 = vpop.f32.mrb[0].mxu0
  %v237 = vpop.f32.mrb[0].mxu0
  %v238 = vadd.f32 %v65, %v237
  %v239 = vpop.f32.mrb[0].mxu0
  %240 = vmatprep.mubr.bf16.mxu0 %v91
  %241 = vmatmul.mubr.bf16.gmra.mrb[0].mxu0 %v90
  %v242 = vpop.f32.mrb[0].mxu0
  %v243 = vadd.f32 %v65, %v242
  %v244 = vpop.f32.mrb[0].mxu0
  %v245 = vpop.f32.mrb[0].mxu0
  %v246 = vadd.f32 %v65, %v245
  %v247 = vpop.f32.mrb[0].mxu0
  %248 = vmatprep.mubr.bf16.mxu0 %v93
  %249 = vmatmul.mubr.bf16.gmra.mrb[0].mxu0 %v92
  %v250 = vpop.f32.mrb[0].mxu0
  %v251 = vadd.f32 %v65, %v250
  %v252 = vpop.f32.mrb[0].mxu0
  %v253 = vpop.f32.mrb[0].mxu0
  %v254 = vadd.f32 %v65, %v253
  %v255 = vpop.f32.mrb[0].mxu0
  %256 = vmatprep.mubr.bf16.mxu0 %v95
  %257 = vmatmul.mubr.bf16.gmra.mrb[0].mxu0 %v94
  %v258 = vpop.f32.mrb[0].mxu0
  %v259 = vadd.f32 %v65, %v258
  %v260 = vpop.f32.mrb[0].mxu0
  %v261 = vpop.f32.mrb[0].mxu0
  %v262 = vpop.f32.mrb[0].mxu0
  %263 = vdwg.mxu0
  %vm264 = vcmask 261120
  %v265 = vsel %vm264, %v235, 0.0
  %v266 = vsel %vm264, %v238, 0.0
  %v267 = vadd.f32 %v265, %v266
  %v268 = vsel %vm264, %v243, 0.0
  %v269 = vadd.f32 %v267, %v268
  %v270 = vsel %vm264, %v246, 0.0
  %v271 = vadd.f32 %v269, %v270
  %v272 = vsel %vm264, %v251, 0.0
  %v273 = vadd.f32 %v271, %v272
  %v274 = vsel %vm264, %v254, 0.0
  %v275 = vadd.f32 %v273, %v274
  %vm276 = vcmask 254976
  %v277 = vsel %vm276, %v259, 0.0
  %v278 = vadd.f32 %v275, %v277
  %v279 = vrot.slane %v278, 4
  %v280 = vadd.f32 %v278, %v279
  %v281 = vrot.slane %v280, 2
  %v282 = vadd.f32 %v280, %v281
  %v283 = vrot.slane %v282, 1
  %v284 = vadd.f32 %v282, %v283
  %v285 = vrcp.pop 50.0
  %v286 = vmul.f32 %v284, %v285
  %v287 = vsub.f32 %v235, %v286
  %v288 = vsub.f32 %v238, %v286
  %v289 = vsub.f32 %v243, %v286
  %v290 = vsub.f32 %v246, %v286
  %v291 = vsub.f32 %v251, %v286
  %v292 = vsub.f32 %v254, %v286
  %v293 = vsub.f32 %v259, %v286
  %v294 = vmul.f32 %v287, %v287
  %v295 = vmul.f32 %v288, %v288
  %v296 = vmul.f32 %v289, %v289
  %v297 = vmul.f32 %v290, %v290
  %v298 = vmul.f32 %v291, %v291
  %v299 = vmul.f32 %v292, %v292
  %v300 = vmul.f32 %v293, %v293
  %v301 = vsel %vm264, %v294, 0.0
  %v302 = vsel %vm264, %v295, 0.0
  %v303 = vadd.f32 %v301, %v302
  %v304 = vsel %vm264, %v296, 0.0
  %v305 = vadd.f32 %v303, %v304
  %v306 = vsel %vm264, %v297, 0.0
  %v307 = vadd.f32 %v305, %v306
  %v308 = vsel %vm264, %v298, 0.0
  %v309 = vadd.f32 %v307, %v308
  %v310 = vsel %vm264, %v299, 0.0
  %v311 = vadd.f32 %v309, %v310
  %v312 = vsel %vm276, %v300, 0.0
  %v313 = vadd.f32 %v311, %v312
  %v314 = vrot.slane %v313, 4
  %v315 = vadd.f32 %v313, %v314
  %v316 = vrot.slane %v315, 2
  %v317 = vadd.f32 %v315, %v316
  %v318 = vrot.slane %v317, 1
  %v319 = vadd.f32 %v317, %v318
  %v320 = vmul.f32 %v319, %v285
  %v321 = vadd.f32 %v320, 1e-05
  %v322 = vrsqrt.pop %v321
  %v323 = vmul.f32 %v287, %v322
  %v324 = vmul.f32 %v288, %v322
  %v325 = vmul.f32 %v289, %v322
  %v326 = vmul.f32 %v290, %v322
  %v327 = vmul.f32 %v291, %v322
  %v328 = vmul.f32 %v292, %v322
  %v329 = vmul.f32 %v293, %v322
  %v330 = vld [vmem:[%s3] sm:$0x1]
  %v332 = vlaneseq
  %v333 = vshrl.u32 %v332, 7
  %v334 = vsub.s32 0, %v333
  %v335 = vrot.slane %v330, %v334
  %v337 = vmul.f32 %v323, %v335
  %v338 = vmul.f32 %v324, %v335
  %v339 = vmul.f32 %v325, %v335
  %v340 = vmul.f32 %v326, %v335
  %v341 = vmul.f32 %v327, %v335
  %v342 = vmul.f32 %v328, %v335
  %v343 = vmul.f32 %v329, %v335
  %v344 = vld [vmem:[%s4] sm:$0x1]
  %v346 = vlaneseq
  %v347 = vshrl.u32 %v346, 7
  %v348 = vsub.s32 0, %v347
  %v349 = vrot.slane %v344, %v348
  %v351 = vadd.f32 %v337, %v349
  %v352 = vadd.f32 %v338, %v349
  %v353 = vadd.f32 %v339, %v349
  %v354 = vadd.f32 %v340, %v349
  %v355 = vadd.f32 %v341, %v349
  %v356 = vadd.f32 %v342, %v349
  %v357 = vadd.f32 %v343, %v349
  %vm358 = vcmp.ge.f32.partialorder %v351, 0.0
  %vm359 = vcmp.ge.f32.partialorder %v352, 0.0
  %vm360 = vcmp.ge.f32.partialorder %v353, 0.0
  %vm361 = vcmp.ge.f32.partialorder %v354, 0.0
  %vm362 = vcmp.ge.f32.partialorder %v355, 0.0
  %vm363 = vcmp.ge.f32.partialorder %v356, 0.0
  %vm364 = vcmp.ge.f32.partialorder %v357, 0.0
  %v365 = vmul.f32 %v351, 0.2
  %v366 = vmul.f32 %v352, 0.2
  %v367 = vmul.f32 %v353, 0.2
  %v368 = vmul.f32 %v354, 0.2
  %v369 = vmul.f32 %v355, 0.2
  %v370 = vmul.f32 %v356, 0.2
  %v371 = vmul.f32 %v357, 0.2
  %v372 = vsel %vm358, %v351, %v365
  %v373 = vsel %vm359, %v352, %v366
  %v374 = vsel %vm360, %v353, %v367
  %v375 = vsel %vm361, %v354, %v368
  %v376 = vsel %vm362, %v355, %v369
  %v377 = vsel %vm363, %v356, %v370
  %v378 = vsel %vm364, %v357, %v371
  %379 = vst.msk [vmem:[%s5] sm:$0xff] %vm264, %v372
  %380 = vst.msk [vmem:[%s5 + $0x8] sm:$0xff] %vm264, %v373
  %381 = vst.msk [vmem:[%s5 + $0x10] sm:$0xff] %vm264, %v374
  %382 = vst.msk [vmem:[%s5 + $0x18] sm:$0xff] %vm264, %v375
  %383 = vst.msk [vmem:[%s5 + $0x20] sm:$0xff] %vm264, %v376
  %384 = vst.msk [vmem:[%s5 + $0x28] sm:$0xff] %vm264, %v377
  %385 = vst.msk [vmem:[%s5 + $0x30] sm:$0x3] %vm276, %v378
  // Predicated region
  $region22: #{multiscale_discriminator_forward.17} parent=0 // pred_check
    _
  $region23: #{multiscale_discriminator_forward.17} parent=0 // pred_check_branch
    %387 = sbr.rel (0) target = $region25
  $region24: #{multiscale_discriminator_forward.17} parent=0 // pred_region
    _
  $region25: #{multiscale_discriminator_forward.17} parent=0 // pred_fallthru
    _
  // Predicated region
  $region26: #{multiscale_discriminator_forward.17} parent=0 // pred_check
    _
  $region27: #{multiscale_discriminator_forward.17} parent=0 // pred_check_branch
    %389 = sbr.rel (0) target = $region29
  $region28: #{multiscale_discriminator_forward.17} parent=0 // pred_region
    _
  $region29: #{multiscale_discriminator_forward.17} parent=0 // pred_fallthru
    _

// kernel: multiscale_discriminator_forward.18
$region0: #{multiscale_discriminator_forward.18}
  #allocation0 [shape = 'u32[]', space=smem, size = 0x4, offset = 0x4, fixed_abs, tag = 'smem constant byte address 0x4 - core index']
  #allocation1 [shape = 'u32[144,128]{1,0:T(1,128)}', space=vmem, size = 0x12000, scoped, tag = 'internal scratch']
  %s0 = inlined_call_operand.vmem [shape: bf16[72,512], index: 0, kind: input, shape index: {}]
  %s1 = inlined_call_operand.vmem [shape: bf16[512,64], index: 1, kind: input, shape index: {}]
  %s2 = inlined_call_operand.vmem [shape: f32[1,64], index: 2, kind: input, shape index: {}]
  %s3 = inlined_call_operand.vmem [shape: f32[1,64], index: 3, kind: input, shape index: {}]
  %s4 = inlined_call_operand.vmem [shape: f32[1,64], index: 4, kind: input, shape index: {}]
  %s5 = inlined_call_operand.vmem [shape: f32[72,64], index: 5, kind: output, shape index: {}]
  %s6 = sld [smem:[#allocation0]]
  $region30: #{multiscale_discriminator_forward.18} parent=0
    _
  %s8 = ssub.s32 1, %s6
  %s9 = scalar_select 0, %s8, %s6
  // Predicated region
  $region2: #{multiscale_discriminator_forward.18} parent=0 // pred_check
    _
  $region3: #{multiscale_discriminator_forward.18} parent=0 // pred_check_branch
    %11 = sbr.rel (0) target = $region5
  $region4: #{multiscale_discriminator_forward.18} parent=0 // pred_region
    _
  $region5: #{multiscale_discriminator_forward.18} parent=0 // pred_fallthru
    _
  // Predicated region
  $region6: #{multiscale_discriminator_forward.18} parent=0 // pred_check
    _
  $region7: #{multiscale_discriminator_forward.18} parent=0 // pred_check_branch
    %13 = sbr.rel (0) target = $region9
  $region8: #{multiscale_discriminator_forward.18} parent=0 // pred_region
    _
  $region9: #{multiscale_discriminator_forward.18} parent=0 // pred_fallthru
    _
  // Predicated region
  $region10: #{multiscale_discriminator_forward.18} parent=0 // pred_check
    _
  $region11: #{multiscale_discriminator_forward.18} parent=0 // pred_check_branch
    %15 = sbr.rel (0) target = $region13
  $region12: #{multiscale_discriminator_forward.18} parent=0 // pred_region
    _
  $region13: #{multiscale_discriminator_forward.18} parent=0 // pred_fallthru
    _
  // Predicated region
  $region14: #{multiscale_discriminator_forward.18} parent=0 // pred_check
    _
  $region15: #{multiscale_discriminator_forward.18} parent=0 // pred_check_branch
    %17 = sbr.rel (0) target = $region17
  $region16: #{multiscale_discriminator_forward.18} parent=0 // pred_region
    _
  $region17: #{multiscale_discriminator_forward.18} parent=0 // pred_fallthru
    _
  // Predicated region
  $region18: #{multiscale_discriminator_forward.18} parent=0 // pred_check
    _
  $region19: #{multiscale_discriminator_forward.18} parent=0 // pred_check_branch
    %19 = sbr.rel (0) target = $region21
  $region20: #{multiscale_discriminator_forward.18} parent=0 // pred_region
    _
  $region21: #{multiscale_discriminator_forward.18} parent=0 // pred_fallthru
    _
  %v21 = vld [vmem:[%s0] sm:$0xff]
  %v22 = vld [vmem:[%s0 + $0x8] sm:$0xff]
  %v23 = vld [vmem:[%s0 + $0x10] sm:$0xff]
  %v24 = vld [vmem:[%s0 + $0x18] sm:$0xff]
  %v25 = vld [vmem:[%s0 + $0x20] sm:$0xff]
  %v26 = vld [vmem:[%s0 + $0x28] sm:$0xff]
  %v27 = vld [vmem:[%s0 + $0x30] sm:$0xff]
  %v28 = vld [vmem:[%s0 + $0x38] sm:$0xff]
  %v29 = vld [vmem:[%s0 + $0x40] sm:$0xff]
  %v30 = vld [vmem:[%s0 + $0x48] sm:$0xff]
  %v31 = vld [vmem:[%s0 + $0x50] sm:$0xff]
  %v32 = vld [vmem:[%s0 + $0x58] sm:$0xff]
  %v33 = vld [vmem:[%s0 + $0x60] sm:$0xff]
  %v34 = vld [vmem:[%s0 + $0x68] sm:$0xff]
  %v35 = vld [vmem:[%s0 + $0x70] sm:$0xff]
  %v36 = vld [vmem:[%s0 + $0x78] sm:$0xff]
  %v37 = vld [vmem:[%s0 + $0x80] sm:$0xff]
  %v38 = vld [vmem:[%s0 + $0x88] sm:$0xff]
  %v39 = vld [vmem:[%s1] sm:$0xf]
  %v40 = vld [vmem:[%s1 + $0x4] sm:$0xf]
  %v41 = vld [vmem:[%s1 + $0x8] sm:$0xf]
  %v42 = vld [vmem:[%s1 + $0xc] sm:$0xf]
  %v43 = vld [vmem:[%s1 + $0x10] sm:$0xf]
  %v44 = vld [vmem:[%s1 + $0x14] sm:$0xf]
  %v45 = vld [vmem:[%s1 + $0x18] sm:$0xf]
  %v46 = vld [vmem:[%s1 + $0x1c] sm:$0xf]
  %v47 = vld [vmem:[%s1 + $0x20] sm:$0xf]
  %v48 = vld [vmem:[%s1 + $0x24] sm:$0xf]
  %v49 = vld [vmem:[%s1 + $0x28] sm:$0xf]
  %v50 = vld [vmem:[%s1 + $0x2c] sm:$0xf]
  %v51 = vld [vmem:[%s1 + $0x30] sm:$0xf]
  %v52 = vld [vmem:[%s1 + $0x34] sm:$0xf]
  %v53 = vld [vmem:[%s1 + $0x38] sm:$0xf]
  %v54 = vld [vmem:[%s1 + $0x3c] sm:$0xf]
  %v55 = vld [vmem:[%s1 + $0x40] sm:$0xf]
  %v56 = vld [vmem:[%s1 + $0x44] sm:$0xf]
  %v57 = vld [vmem:[%s1 + $0x48] sm:$0xf]
  %v58 = vld [vmem:[%s1 + $0x4c] sm:$0xf]
  %v59 = vld [vmem:[%s1 + $0x50] sm:$0xf]
  %v60 = vld [vmem:[%s1 + $0x54] sm:$0xf]
  %v61 = vld [vmem:[%s1 + $0x58] sm:$0xf]
  %v62 = vld [vmem:[%s1 + $0x5c] sm:$0xf]
  %v63 = vld [vmem:[%s1 + $0x60] sm:$0xf]
  %v64 = vld [vmem:[%s1 + $0x64] sm:$0xf]
  %v65 = vld [vmem:[%s1 + $0x68] sm:$0xf]
  %v66 = vld [vmem:[%s1 + $0x6c] sm:$0xf]
  %v67 = vld [vmem:[%s1 + $0x70] sm:$0xf]
  %v68 = vld [vmem:[%s1 + $0x74] sm:$0xf]
  %v69 = vld [vmem:[%s1 + $0x78] sm:$0xf]
  %v70 = vld [vmem:[%s1 + $0x7c] sm:$0xf]
  %v71 = vld [vmem:[%s1 + $0x80] sm:$0xf]
  %v72 = vld [vmem:[%s1 + $0x84] sm:$0xf]
  %v73 = vld [vmem:[%s1 + $0x88] sm:$0xf]
  %v74 = vld [vmem:[%s1 + $0x8c] sm:$0xf]
  %v75 = vld [vmem:[%s1 + $0x90] sm:$0xf]
  %v76 = vld [vmem:[%s1 + $0x94] sm:$0xf]
  %v77 = vld [vmem:[%s1 + $0x98] sm:$0xf]
  %v78 = vld [vmem:[%s1 + $0x9c] sm:$0xf]
  %v79 = vld [vmem:[%s1 + $0xa0] sm:$0xf]
  %v80 = vld [vmem:[%s1 + $0xa4] sm:$0xf]
  %v81 = vld [vmem:[%s1 + $0xa8] sm:$0xf]
  %v82 = vld [vmem:[%s1 + $0xac] sm:$0xf]
  %v83 = vld [vmem:[%s1 + $0xb0] sm:$0xf]
  %v84 = vld [vmem:[%s1 + $0xb4] sm:$0xf]
  %v85 = vld [vmem:[%s1 + $0xb8] sm:$0xf]
  %v86 = vld [vmem:[%s1 + $0xbc] sm:$0xf]
  %v87 = vld [vmem:[%s1 + $0xc0] sm:$0xf]
  %v88 = vld [vmem:[%s1 + $0xc4] sm:$0xf]
  %v89 = vld [vmem:[%s1 + $0xc8] sm:$0xf]
  %v90 = vld [vmem:[%s1 + $0xcc] sm:$0xf]
  %v91 = vld [vmem:[%s1 + $0xd0] sm:$0xf]
  %v92 = vld [vmem:[%s1 + $0xd4] sm:$0xf]
  %v93 = vld [vmem:[%s1 + $0xd8] sm:$0xf]
  %v94 = vld [vmem:[%s1 + $0xdc] sm:$0xf]
  %v95 = vld [vmem:[%s1 + $0xe0] sm:$0xf]
  %v96 = vld [vmem:[%s1 + $0xe4] sm:$0xf]
  %v97 = vld [vmem:[%s1 + $0xe8] sm:$0xf]
  %v98 = vld [vmem:[%s1 + $0xec] sm:$0xf]
  %v99 = vld [vmem:[%s1 + $0xf0] sm:$0xf]
  %v100 = vld [vmem:[%s1 + $0xf4] sm:$0xf]
  %v101 = vld [vmem:[%s1 + $0xf8] sm:$0xf]
  %v102 = vld [vmem:[%s1 + $0xfc] sm:$0xf]
  %v103 = vld [vmem:[%s2] sm:$0x1]
  %v105 = vlaneseq
  %v106 = vshrl.u32 %v105, 7
  %v107 = vsub.s32 0, %v106
  %v108 = vrot.slane %v103, %v107
  %v128 = vunpack.c.l.b16 %v21
  %v129 = vunpack.c.h.b16 %v21
  %v130 = vunpack.c.l.b16 %v22
  %v131 = vunpack.c.h.b16 %v22
  %v132 = vunpack.c.l.b16 %v23
  %v133 = vunpack.c.h.b16 %v23
  %v134 = vunpack.c.l.b16 %v24
  %v135 = vunpack.c.h.b16 %v24
  %v136 = vunpack.c.l.b16 %v25
  %v137 = vunpack.c.h.b16 %v25
  %v138 = vunpack.c.l.b16 %v26
  %v139 = vunpack.c.h.b16 %v26
  %v140 = vunpack.c.l.b16 %v27
  %v141 = vunpack.c.h.b16 %v27
  %v142 = vunpack.c.l.b16 %v28
  %v143 = vunpack.c.h.b16 %v28
  %v144 = vunpack.c.l.b16 %v29
  %v145 = vunpack.c.h.b16 %v29
  %v146 = vunpack.c.l.b16 %v30
  %v147 = vunpack.c.h.b16 %v30
  %v148 = vunpack.c.l.b16 %v31
  %v149 = vunpack.c.h.b16 %v31
  %v150 = vunpack.c.l.b16 %v32
  %v151 = vunpack.c.h.b16 %v32
  %v152 = vunpack.c.l.b16 %v33
  %v153 = vunpack.c.h.b16 %v33
  %v154 = vunpack.c.l.b16 %v34
  %v155 = vunpack.c.h.b16 %v34
  %v156 = vunpack.c.l.b16 %v35
  %v157 = vunpack.c.h.b16 %v35
  %v158 = vunpack.c.l.b16 %v36
  %v159 = vunpack.c.h.b16 %v36
  %v160 = vunpack.c.l.b16 %v37
  %v161 = vunpack.c.h.b16 %v37
  %v162 = vunpack.c.l.b16 %v38
  %v163 = vunpack.c.h.b16 %v38
  %v164 = vpack.c.b16 %v132, %v128
  %v165 = vpack.c.b16 %v133, %v129
  %v166 = vpack.c.b16 %v134, %v130
  %v167 = vpack.c.b16 %v135, %v131
  %v168 = vpack.c.b16 %v140, %v136
  %v169 = vpack.c.b16 %v141, %v137
  %v170 = vpack.c.b16 %v142, %v138
  %v171 = vpack.c.b16 %v143, %v139
  %v172 = vpack.c.b16 %v148, %v144
  %v173 = vpack.c.b16 %v149, %v145
  %v174 = vpack.c.b16 %v150, %v146
  %v175 = vpack.c.b16 %v151, %v147
  %v176 = vpack.c.b16 %v156, %v152
  %v177 = vpack.c.b16 %v157, %v153
  %v178 = vpack.c.b16 %v158, %v154
  %v179 = vpack.c.b16 %v159, %v155
  %v180 = vpack.c.b16 %v160, %v160
  %v181 = vpack.c.b16 %v161, %v161
  %v182 = vpack.c.b16 %v162, %v162
  %v183 = vpack.c.b16 %v163, %v163
  %v268 = vunpack.c.l.b16 %v39
  %v269 = vunpack.c.l.b16 %v40
  %v270 = vunpack.c.l.b16 %v41
  %v271 = vunpack.c.l.b16 %v42
  %v272 = vunpack.c.l.b16 %v43
  %v273 = vunpack.c.l.b16 %v44
  %v274 = vunpack.c.l.b16 %v45
  %v275 = vunpack.c.l.b16 %v46
  %v276 = vunpack.c.l.b16 %v47
  %v277 = vunpack.c.l.b16 %v48
  %v278 = vunpack.c.l.b16 %v49
  %v279 = vunpack.c.l.b16 %v50
  %v280 = vunpack.c.l.b16 %v51
  %v281 = vunpack.c.l.b16 %v52
  %v282 = vunpack.c.l.b16 %v53
  %v283 = vunpack.c.l.b16 %v54
  %v284 = vunpack.c.l.b16 %v55
  %v285 = vunpack.c.l.b16 %v56
  %v286 = vunpack.c.l.b16 %v57
  %v287 = vunpack.c.l.b16 %v58
  %v288 = vunpack.c.l.b16 %v59
  %v289 = vunpack.c.l.b16 %v60
  %v290 = vunpack.c.l.b16 %v61
  %v291 = vunpack.c.l.b16 %v62
  %v292 = vunpack.c.l.b16 %v63
  %v293 = vunpack.c.l.b16 %v64
  %v294 = vunpack.c.l.b16 %v65
  %v295 = vunpack.c.l.b16 %v66
  %v296 = vunpack.c.l.b16 %v67
  %v297 = vunpack.c.l.b16 %v68
  %v298 = vunpack.c.l.b16 %v69
  %v299 = vunpack.c.l.b16 %v70
  %v300 = vunpack.c.l.b16 %v71
  %v301 = vunpack.c.l.b16 %v72
  %v302 = vunpack.c.l.b16 %v73
  %v303 = vunpack.c.l.b16 %v74
  %v304 = vunpack.c.l.b16 %v75
  %v305 = vunpack.c.l.b16 %v76
  %v306 = vunpack.c.l.b16 %v77
  %v307 = vunpack.c.l.b16 %v78
  %v308 = vunpack.c.l.b16 %v79
  %v309 = vunpack.c.l.b16 %v80
  %v310 = vunpack.c.l.b16 %v81
  %v311 = vunpack.c.l.b16 %v82
  %v312 = vunpack.c.l.b16 %v83
  %v313 = vunpack.c.l.b16 %v84
  %v314 = vunpack.c.l.b16 %v85
  %v315 = vunpack.c.l.b16 %v86
  %v316 = vunpack.c.l.b16 %v87
  %v317 = vunpack.c.l.b16 %v88
  %v318 = vunpack.c.l.b16 %v89
  %v319 = vunpack.c.l.b16 %v90
  %v320 = vunpack.c.l.b16 %v91
  %v321 = vunpack.c.l.b16 %v92
  %v322 = vunpack.c.l.b16 %v93
  %v323 = vunpack.c.l.b16 %v94
  %v324 = vunpack.c.l.b16 %v95
  %v325 = vunpack.c.l.b16 %v96
  %v326 = vunpack.c.l.b16 %v97
  %v327 = vunpack.c.l.b16 %v98
  %v328 = vunpack.c.l.b16 %v99
  %v329 = vunpack.c.l.b16 %v100
  %v330 = vunpack.c.l.b16 %v101
  %v331 = vunpack.c.l.b16 %v102
  %v332 = vpack.c.b16 %v269, %v268
  %v333 = vpack.c.b16 %v271, %v270
  %v334 = vpack.c.b16 %v273, %v272
  %v335 = vpack.c.b16 %v275, %v274
  %v336 = vpack.c.b16 %v277, %v276
  %v337 = vpack.c.b16 %v279, %v278
  %v338 = vpack.c.b16 %v281, %v280
  %v339 = vpack.c.b16 %v283, %v282
  %v340 = vpack.c.b16 %v285, %v284
  %v341 = vpack.c.b16 %v287, %v286
  %v342 = vpack.c.b16 %v289, %v288
  %v343 = vpack.c.b16 %v291, %v290
  %v344 = vpack.c.b16 %v293, %v292
  %v345 = vpack.c.b16 %v295, %v294
  %v346 = vpack.c.b16 %v297, %v296
  %v347 = vpack.c.b16 %v299, %v298
  %v348 = vpack.c.b16 %v301, %v300
  %v349 = vpack.c.b16 %v303, %v302
  %v350 = vpack.c.b16 %v305, %v304
  %v351 = vpack.c.b16 %v307, %v306
  %v352 = vpack.c.b16 %v309, %v308
  %v353 = vpack.c.b16 %v311, %v310
  %v354 = vpack.c.b16 %v313, %v312
  %v355 = vpack.c.b16 %v315, %v314
  %v356 = vpack.c.b16 %v317, %v316
  %v357 = vpack.c.b16 %v319, %v318
  %v358 = vpack.c.b16 %v321, %v320
  %v359 = vpack.c.b16 %v323, %v322
  %v360 = vpack.c.b16 %v325, %v324
  %v361 = vpack.c.b16 %v327, %v326
  %v362 = vpack.c.b16 %v329, %v328
  %v363 = vpack.c.b16 %v331, %v330
  %396 = vmatprep.subr.bf16.mxu0 0
  %397 = vmatpush1.bf16.msra.mxu0 %v332
  %398 = vmatprep.subr.bf16.mxu0 0
  %399 = vmatpush1.bf16.msra.mxu0 %v333
  %400 = vmatprep.subr.bf16.mxu0 0
  %401 = vmatpush1.bf16.msra.mxu0 %v334
  %402 = vmatprep.subr.bf16.mxu0 0
  %403 = vmatpush1.bf16.msra.mxu0 %v335
  %404 = vmatprep.subr.bf16.mxu0 0
  %405 = vmatpush1.bf16.msra.mxu0 %v336
  %406 = vmatprep.subr.bf16.mxu0 0
  %407 = vmatpush1.bf16.msra.mxu0 %v337
  %408 = vmatprep.subr.bf16.mxu0 0
  %409 = vmatpush1.bf16.msra.mxu0 %v338
  %410 = vmatprep.subr.bf16.mxu0 0
  %411 = vmatpush1.bf16.msra.mxu0 %v339
  %412 = vmatprep.subr.bf16.mxu0 0
  %413 = vmatpush1.bf16.msra.mxu0 %v340
  %414 = vmatprep.subr.bf16.mxu0 0
  %415 = vmatpush1.bf16.msra.mxu0 %v341
  %416 = vmatprep.subr.bf16.mxu0 0
  %417 = vmatpush1.bf16.msra.mxu0 %v342
  %418 = vmatprep.subr.bf16.mxu0 0
  %419 = vmatpush1.bf16.msra.mxu0 %v343
  %420 = vmatprep.subr.bf16.mxu0 0
  %421 = vmatpush1.bf16.msra.mxu0 %v344
  %422 = vmatprep.subr.bf16.mxu0 0
  %423 = vmatpush1.bf16.msra.mxu0 %v345
  %424 = vmatprep.subr.bf16.mxu0 0
  %425 = vmatpush1.bf16.msra.mxu0 %v346
  %426 = vmatprep.subr.bf16.mxu0 0
  %427 = vmatpush1.bf16.msra.mxu0 %v347
  %428 = vmatprep.mubr.bf16.mxu0 %v165
  %429 = vmatmul.mubr.bf16.gmra.mrb[0].mxu0 %v164
  %v430 = vpop.f32.mrb[0].mxu0
  %v431 = vadd.f32 %v108, %v430
  %v432 = vpop.f32.mrb[0].mxu0
  %v433 = vpop.f32.mrb[0].mxu0
  %v434 = vadd.f32 %v108, %v433
  %v435 = vpop.f32.mrb[0].mxu0
  %436 = vmatprep.mubr.bf16.mxu0 %v169
  %437 = vmatmul.mubr.bf16.gmra.mrb[0].mxu0 %v168
  %v438 = vpop.f32.mrb[0].mxu0
  %v439 = vadd.f32 %v108, %v438
  %v440 = vpop.f32.mrb[0].mxu0
  %v441 = vpop.f32.mrb[0].mxu0
  %v442 = vadd.f32 %v108, %v441
  %v443 = vpop.f32.mrb[0].mxu0
  %444 = vmatprep.mubr.bf16.mxu0 %v173
  %445 = vmatmul.mubr.bf16.gmra.mrb[0].mxu0 %v172
  %v446 = vpop.f32.mrb[0].mxu0
  %v447 = vadd.f32 %v108, %v446
  %v448 = vpop.f32.mrb[0].mxu0
  %v449 = vpop.f32.mrb[0].mxu0
  %v450 = vadd.f32 %v108, %v449
  %v451 = vpop.f32.mrb[0].mxu0
  %452 = vmatprep.mubr.bf16.mxu0 %v177
  %453 = vmatmul.mubr.bf16.gmra.mrb[0].mxu0 %v176
  %v454 = vpop.f32.mrb[0].mxu0
  %v455 = vadd.f32 %v108, %v454
  %v456 = vpop.f32.mrb[0].mxu0
  %v457 = vpop.f32.mrb[0].mxu0
  %v458 = vadd.f32 %v108, %v457
  %v459 = vpop.f32.mrb[0].mxu0
  %460 = vmatprep.mubr.bf16.mxu0 %v181
  %461 = vmatmul.mubr.bf16.gmra.mrb[0].mxu0 %v180
  %v462 = vpop.f32.mrb[0].mxu0
  %v463 = vadd.f32 %v108, %v462
  %v464 = vpop.f32.mrb[0].mxu0
  %v465 = vpop.f32.mrb[0].mxu0
  %v466 = vpop.f32.mrb[0].mxu0
  %467 = vdwg.mxu0
  %468 = vmatprep.subr.bf16.mxu0 0
  %469 = vmatpush1.bf16.msra.mxu0 %v348
  %470 = vmatprep.subr.bf16.mxu0 0
  %471 = vmatpush1.bf16.msra.mxu0 %v349
  %472 = vmatprep.subr.bf16.mxu0 0
  %473 = vmatpush1.bf16.msra.mxu0 %v350
  %474 = vmatprep.subr.bf16.mxu0 0
  %475 = vmatpush1.bf16.msra.mxu0 %v351
  %476 = vmatprep.subr.bf16.mxu0 0
  %477 = vmatpush1.bf16.msra.mxu0 %v352
  %478 = vmatprep.subr.bf16.mxu0 0
  %479 = vmatpush1.bf16.msra.mxu0 %v353
  %480 = vmatprep.subr.bf16.mxu0 0
  %481 = vmatpush1.bf16.msra.mxu0 %v354
  %482 = vmatprep.subr.bf16.mxu0 0
  %483 = vmatpush1.bf16.msra.mxu0 %v355
  %484 = vmatprep.subr.bf16.mxu0 0
  %485 = vmatpush1.bf16.msra.mxu0 %v356
  %486 = vmatprep.subr.bf16.mxu0 0
  %487 = vmatpush1.bf16.msra.mxu0 %v357
  %488 = vmatprep.subr.bf16.mxu0 0
  %489 = vmatpush1.bf16.msra.mxu0 %v358
  %490 = vmatprep.subr.bf16.mxu0 0
  %491 = vmatpush1.bf16.msra.mxu0 %v359
  %492 = vmatprep.subr.bf16.mxu0 0
  %493 = vmatpush1.bf16.msra.mxu0 %v360
  %494 = vmatprep.subr.bf16.mxu0 0
  %495 = vmatpush1.bf16.msra.mxu0 %v361
  %496 = vmatprep.subr.bf16.mxu0 0
  %497 = vmatpush1.bf16.msra.mxu0 %v362
  %498 = vmatprep.subr.bf16.mxu0 0
  %499 = vmatpush1.bf16.msra.mxu0 %v363
  %500 = vmatprep.mubr.bf16.mxu0 %v167
  %501 = vmatmul.mubr.bf16.gmra.mrb[0].mxu0 %v166
  %v502 = vpop.f32.mrb[0].mxu0
  %v503 = vadd.f32 %v431, %v502
  %v504 = vpop.f32.mrb[0].mxu0
  %v505 = vpop.f32.mrb[0].mxu0
  %v506 = vadd.f32 %v434, %v505
  %v507 = vpop.f32.mrb[0].mxu0
  %508 = vmatprep.mubr.bf16.mxu0 %v171
  %509 = vmatmul.mubr.bf16.gmra.mrb[0].mxu0 %v170
  %v510 = vpop.f32.mrb[0].mxu0
  %v511 = vadd.f32 %v439, %v510
  %v512 = vpop.f32.mrb[0].mxu0
  %v513 = vpop.f32.mrb[0].mxu0
  %v514 = vadd.f32 %v442, %v513
  %v515 = vpop.f32.mrb[0].mxu0
  %516 = vmatprep.mubr.bf16.mxu0 %v175
  %517 = vmatmul.mubr.bf16.gmra.mrb[0].mxu0 %v174
  %v518 = vpop.f32.mrb[0].mxu0
  %v519 = vadd.f32 %v447, %v518
  %v520 = vpop.f32.mrb[0].mxu0
  %v521 = vpop.f32.mrb[0].mxu0
  %v522 = vadd.f32 %v450, %v521
  %v523 = vpop.f32.mrb[0].mxu0
  %524 = vmatprep.mubr.bf16.mxu0 %v179
  %525 = vmatmul.mubr.bf16.gmra.mrb[0].mxu0 %v178
  %v526 = vpop.f32.mrb[0].mxu0
  %v527 = vadd.f32 %v455, %v526
  %v528 = vpop.f32.mrb[0].mxu0
  %v529 = vpop.f32.mrb[0].mxu0
  %v530 = vadd.f32 %v458, %v529
  %v531 = vpop.f32.mrb[0].mxu0
  %532 = vmatprep.mubr.bf16.mxu0 %v183
  %533 = vmatmul.mubr.bf16.gmra.mrb[0].mxu0 %v182
  %v534 = vpop.f32.mrb[0].mxu0
  %v535 = vadd.f32 %v463, %v534
  %v536 = vpop.f32.mrb[0].mxu0
  %v537 = vpop.f32.mrb[0].mxu0
  %v538 = vpop.f32.mrb[0].mxu0
  %539 = vdwg.mxu0
  %vm540 = vcmask 523264
  %v541 = vsel %vm540, %v503, 0.0
  %v542 = vsel %vm540, %v506, 0.0
  %v543 = vadd.f32 %v541, %v542
  %v544 = vsel %vm540, %v511, 0.0
  %v545 = vadd.f32 %v543, %v544
  %v546 = vsel %vm540, %v514, 0.0
  %v547 = vadd.f32 %v545, %v546
  %v548 = vsel %vm540, %v519, 0.0
  %v549 = vadd.f32 %v547, %v548
  %v550 = vsel %vm540, %v522, 0.0
  %v551 = vadd.f32 %v549, %v550
  %v552 = vsel %vm540, %v527, 0.0
  %v553 = vadd.f32 %v551, %v552
  %v554 = vsel %vm540, %v530, 0.0
  %v555 = vadd.f32 %v553, %v554
  %v556 = vsel %vm540, %v535, 0.0
  %v557 = vadd.f32 %v555, %v556
  %v558 = vrot.slane %v557, 4
  %v559 = vadd.f32 %v557, %v558
  %v560 = vrot.slane %v559, 2
  %v561 = vadd.f32 %v559, %v560
  %v562 = vrot.slane %v561, 1
  %v563 = vadd.f32 %v561, %v562
  %v564 = vrcp.pop 72.0
  %v565 = vmul.f32 %v563, %v564
  %v566 = vsub.f32 %v503, %v565
  %v567 = vsub.f32 %v506, %v565
  %v568 = vsub.f32 %v511, %v565
  %v569 = vsub.f32 %v514, %v565
  %v570 = vsub.f32 %v519, %v565
  %v571 = vsub.f32 %v522, %v565
  %v572 = vsub.f32 %v527, %v565
  %v573 = vsub.f32 %v530, %v565
  %v574 = vsub.f32 %v535, %v565
  %v575 = vmul.f32 %v566, %v566
  %v576 = vmul.f32 %v567, %v567
  %v577 = vmul.f32 %v568, %v568
  %v578 = vmul.f32 %v569, %v569
  %v579 = vmul.f32 %v570, %v570
  %v580 = vmul.f32 %v571, %v571
  %v581 = vmul.f32 %v572, %v572
  %v582 = vmul.f32 %v573, %v573
  %v583 = vmul.f32 %v574, %v574
  %v584 = vsel %vm540, %v575, 0.0
  %v585 = vsel %vm540, %v576, 0.0
  %v586 = vadd.f32 %v584, %v585
  %v587 = vsel %vm540, %v577, 0.0
  %v588 = vadd.f32 %v586, %v587
  %v589 = vsel %vm540, %v578, 0.0
  %v590 = vadd.f32 %v588, %v589
  %v591 = vsel %vm540, %v579, 0.0
  %v592 = vadd.f32 %v590, %v591
  %v593 = vsel %vm540, %v580, 0.0
  %v594 = vadd.f32 %v592, %v593
  %v595 = vsel %vm540, %v581, 0.0
  %v596 = vadd.f32 %v594, %v595
  %v597 = vsel %vm540, %v582, 0.0
  %v598 = vadd.f32 %v596, %v597
  %v599 = vsel %vm540, %v583, 0.0
  %v600 = vadd.f32 %v598, %v599
  %v601 = vrot.slane %v600, 4
  %v602 = vadd.f32 %v600, %v601
  %v603 = vrot.slane %v602, 2
  %v604 = vadd.f32 %v602, %v603
  %v605 = vrot.slane %v604, 1
  %v606 = vadd.f32 %v604, %v605
  %v607 = vmul.f32 %v606, %v564
  %v608 = vadd.f32 %v607, 1e-05
  %v609 = vrsqrt.pop %v608
  %v610 = vmul.f32 %v566, %v609
  %v611 = vmul.f32 %v567, %v609
  %v612 = vmul.f32 %v568, %v609
  %v613 = vmul.f32 %v569, %v609
  %v614 = vmul.f32 %v570, %v609
  %v615 = vmul.f32 %v571, %v609
  %v616 = vmul.f32 %v572, %v609
  %v617 = vmul.f32 %v573, %v609
  %v618 = vmul.f32 %v574, %v609
  %v619 = vld [vmem:[%s3] sm:$0x1]
  %v621 = vlaneseq
  %v622 = vshrl.u32 %v621, 7
  %v623 = vsub.s32 0, %v622
  %v624 = vrot.slane %v619, %v623
  %v626 = vmul.f32 %v610, %v624
  %v627 = vmul.f32 %v611, %v624
  %v628 = vmul.f32 %v612, %v624
  %v629 = vmul.f32 %v613, %v624
  %v630 = vmul.f32 %v614, %v624
  %v631 = vmul.f32 %v615, %v624
  %v632 = vmul.f32 %v616, %v624
  %v633 = vmul.f32 %v617, %v624
  %v634 = vmul.f32 %v618, %v624
  %v635 = vld [vmem:[%s4] sm:$0x1]
  %v637 = vlaneseq
  %v638 = vshrl.u32 %v637, 7
  %v639 = vsub.s32 0, %v638
  %v640 = vrot.slane %v635, %v639
  %v642 = vadd.f32 %v626, %v640
  %v643 = vadd.f32 %v627, %v640
  %v644 = vadd.f32 %v628, %v640
  %v645 = vadd.f32 %v629, %v640
  %v646 = vadd.f32 %v630, %v640
  %v647 = vadd.f32 %v631, %v640
  %v648 = vadd.f32 %v632, %v640
  %v649 = vadd.f32 %v633, %v640
  %v650 = vadd.f32 %v634, %v640
  %vm651 = vcmp.ge.f32.partialorder %v642, 0.0
  %vm652 = vcmp.ge.f32.partialorder %v643, 0.0
  %vm653 = vcmp.ge.f32.partialorder %v644, 0.0
  %vm654 = vcmp.ge.f32.partialorder %v645, 0.0
  %vm655 = vcmp.ge.f32.partialorder %v646, 0.0
  %vm656 = vcmp.ge.f32.partialorder %v647, 0.0
  %vm657 = vcmp.ge.f32.partialorder %v648, 0.0
  %vm658 = vcmp.ge.f32.partialorder %v649, 0.0
  %vm659 = vcmp.ge.f32.partialorder %v650, 0.0
  %v660 = vmul.f32 %v642, 0.2
  %v661 = vmul.f32 %v643, 0.2
  %v662 = vmul.f32 %v644, 0.2
  %v663 = vmul.f32 %v645, 0.2
  %v664 = vmul.f32 %v646, 0.2
  %v665 = vmul.f32 %v647, 0.2
  %v666 = vmul.f32 %v648, 0.2
  %v667 = vmul.f32 %v649, 0.2
  %v668 = vmul.f32 %v650, 0.2
  %v669 = vsel %vm651, %v642, %v660
  %v670 = vsel %vm652, %v643, %v661
  %v671 = vsel %vm653, %v644, %v662
  %v672 = vsel %vm654, %v645, %v663
  %v673 = vsel %vm655, %v646, %v664
  %v674 = vsel %vm656, %v647, %v665
  %v675 = vsel %vm657, %v648, %v666
  %v676 = vsel %vm658, %v649, %v667
  %v677 = vsel %vm659, %v650, %v668
  %678 = vst.msk [vmem:[%s5] sm:$0xff] %vm540, %v669
  %679 = vst.msk [vmem:[%s5 + $0x8] sm:$0xff] %vm540, %v670
  %680 = vst.msk [vmem:[%s5 + $0x10] sm:$0xff] %vm540, %v671
  %681 = vst.msk [vmem:[%s5 + $0x18] sm:$0xff] %vm540, %v672
  %682 = vst.msk [vmem:[%s5 + $0x20] sm:$0xff] %vm540, %v673
  %683 = vst.msk [vmem:[%s5 + $0x28] sm:$0xff] %vm540, %v674
  %684 = vst.msk [vmem:[%s5 + $0x30] sm:$0xff] %vm540, %v675
  %685 = vst.msk [vmem:[%s5 + $0x38] sm:$0xff] %vm540, %v676
  %686 = vst.msk [vmem:[%s5 + $0x40] sm:$0xff] %vm540, %v677
  // Predicated region
  $region22: #{multiscale_discriminator_forward.18} parent=0 // pred_check
    _
  $region23: #{multiscale_discriminator_forward.18} parent=0 // pred_check_branch
    %688 = sbr.rel (0) target = $region25
  $region24: #{multiscale_discriminator_forward.18} parent=0 // pred_region
    _
  $region25: #{multiscale_discriminator_forward.18} parent=0 // pred_fallthru
    _
  // Predicated region
  $region26: #{multiscale_discriminator_forward.18} parent=0 // pred_check
    _
  $region27: #{multiscale_discriminator_forward.18} parent=0 // pred_check_branch
    %690 = sbr.rel (0) target = $region29
  $region28: #{multiscale_discriminator_forward.18} parent=0 // pred_region
    _
  $region29: #{multiscale_discriminator_forward.18} parent=0 // pred_fallthru
    _

// kernel: multiscale_discriminator_forward.19
$region0: #{multiscale_discriminator_forward.19}
  #allocation0 [shape = 'u32[]', space=smem, size = 0x4, offset = 0x4, fixed_abs, tag = 'smem constant byte address 0x4 - core index']
  #allocation1 [shape = 'u32[144,128]{1,0:T(1,128)}', space=vmem, size = 0x12000, scoped, tag = 'internal scratch']
  #allocation2 [shape = 'f32[1,1]{1,0:T(1,128)S(1)}', space=vmem, size = 0x200, scoped, tag = 'scoped memory for multiscale_discriminator_forward.19']
  #allocation3 [shape = 'f32[1,1]{1,0:T(1,128)S(1)}', space=vmem, size = 0x200, scoped, tag = 'scoped memory for multiscale_discriminator_forward.19']
  #allocation4 [shape = 'f32[1,1]{1,0:T(1,128)S(1)}', space=vmem, size = 0x200, scoped, tag = 'scoped memory for multiscale_discriminator_forward.19']
  %s0 = inlined_call_operand.vmem [shape: bf16[98,1024], index: 0, kind: input, shape index: {}]
  %s1 = inlined_call_operand.vmem [shape: bf16[1024,1], index: 1, kind: input, shape index: {}]
  %s2 = inlined_call_operand.<no memory space> [shape: f32[1,1], index: 2, kind: input, shape index: {}]
  %s3 = inlined_call_operand.<no memory space> [shape: f32[1,1], index: 3, kind: input, shape index: {}]
  %s4 = inlined_call_operand.<no memory space> [shape: f32[1,1], index: 4, kind: input, shape index: {}]
  %s5 = inlined_call_operand.vmem [shape: f32[98,1], index: 5, kind: output, shape index: {}]
  %s6 = sld [smem:[#allocation0]]
  $region30: #{multiscale_discriminator_forward.19} parent=0
    _
  %s8 = ssub.s32 1, %s6
  %s9 = scalar_select 0, %s8, %s6
  %v10 = vstv %s2
  %11 = vst [vmem:[#allocation2] sm:$0x1] %v10
  %v12 = vstv %s3
  %13 = vst [vmem:[#allocation3] sm:$0x1] %v12
  %v14 = vstv %s4
  %15 = vst [vmem:[#allocation4] sm:$0x1] %v14
  // Predicated region
  $region2: #{multiscale_discriminator_forward.19} parent=0 // pred_check
    _
  $region3: #{multiscale_discriminator_forward.19} parent=0 // pred_check_branch
    %17 = sbr.rel (0) target = $region5
  $region4: #{multiscale_discriminator_forward.19} parent=0 // pred_region
    _
  $region5: #{multiscale_discriminator_forward.19} parent=0 // pred_fallthru
    _
  // Predicated region
  $region6: #{multiscale_discriminator_forward.19} parent=0 // pred_check
    _
  $region7: #{multiscale_discriminator_forward.19} parent=0 // pred_check_branch
    %19 = sbr.rel (0) target = $region9
  $region8: #{multiscale_discriminator_forward.19} parent=0 // pred_region
    _
  $region9: #{multiscale_discriminator_forward.19} parent=0 // pred_fallthru
    _
  // Predicated region
  $region10: #{multiscale_discriminator_forward.19} parent=0 // pred_check
    _
  $region11: #{multiscale_discriminator_forward.19} parent=0 // pred_check_branch
    %21 = sbr.rel (0) target = $region13
  $region12: #{multiscale_discriminator_forward.19} parent=0 // pred_region
    _
  $region13: #{multiscale_discriminator_forward.19} parent=0 // pred_fallthru
    _
  // Predicated region
  $region14: #{multiscale_discriminator_forward.19} parent=0 // pred_check
    _
  $region15: #{multiscale_discriminator_forward.19} parent=0 // pred_check_branch
    %23 = sbr.rel (0) target = $region17
  $region16: #{multiscale_discriminator_forward.19} parent=0 // pred_region
    _
  $region17: #{multiscale_discriminator_forward.19} parent=0 // pred_fallthru
    _
  // Predicated region
  $region18: #{multiscale_discriminator_forward.19} parent=0 // pred_check
    _
  $region19: #{multiscale_discriminator_forward.19} parent=0 // pred_check_branch
    %25 = sbr.rel (0) target = $region21
  $region20: #{multiscale_discriminator_forward.19} parent=0 // pred_region
    _
  $region21: #{multiscale_discriminator_forward.19} parent=0 // pred_fallthru
    _
  %v27 = vld [vmem:[%s0] sm:$0xff]
  %v28 = vld [vmem:[%s0 + $0x8] sm:$0xff]
  %v29 = vld [vmem:[%s0 + $0x10] sm:$0xff]
  %v30 = vld [vmem:[%s0 + $0x18] sm:$0xff]
  %v31 = vld [vmem:[%s0 + $0x20] sm:$0xff]
  %v32 = vld [vmem:[%s0 + $0x28] sm:$0xff]
  %v33 = vld [vmem:[%s0 + $0x30] sm:$0xff]
  %v34 = vld [vmem:[%s0 + $0x38] sm:$0xff]
  %v35 = vld [vmem:[%s0 + $0x40] sm:$0xff]
  %v36 = vld [vmem:[%s0 + $0x48] sm:$0xff]
  %v37 = vld [vmem:[%s0 + $0x50] sm:$0xff]
  %v38 = vld [vmem:[%s0 + $0x58] sm:$0xff]
  %v39 = vld [vmem:[%s0 + $0x60] sm:$0xff]
  %v40 = vld [vmem:[%s0 + $0x68] sm:$0xff]
  %v41 = vld [vmem:[%s0 + $0x70] sm:$0xff]
  %v42 = vld [vmem:[%s0 + $0x78] sm:$0xff]
  %v43 = vld [vmem:[%s0 + $0x80] sm:$0xff]
  %v44 = vld [vmem:[%s0 + $0x88] sm:$0xff]
  %v45 = vld [vmem:[%s0 + $0x90] sm:$0xff]
  %v46 = vld [vmem:[%s0 + $0x98] sm:$0xff]
  %v47 = vld [vmem:[%s0 + $0xa0] sm:$0xff]
  %v48 = vld [vmem:[%s0 + $0xa8] sm:$0xff]
  %v49 = vld [vmem:[%s0 + $0xb0] sm:$0xff]
  %v50 = vld [vmem:[%s0 + $0xb8] sm:$0xff]
  %v51 = vld [vmem:[%s0 + $0xc0] sm:$0xff]
  %v52 = vld [vmem:[%s0 + $0xc8] sm:$0xff]
  %v53 = vld [vmem:[%s0 + $0xd0] sm:$0xff]
  %v54 = vld [vmem:[%s0 + $0xd8] sm:$0xff]
  %v55 = vld [vmem:[%s0 + $0xe0] sm:$0xff]
  %v56 = vld [vmem:[%s0 + $0xe8] sm:$0xff]
  %v57 = vld [vmem:[%s0 + $0xf0] sm:$0xff]
  %v58 = vld [vmem:[%s0 + $0xf8] sm:$0xff]
  %v59 = vld [vmem:[%s0 + $0x100] sm:$0xff]
  %v60 = vld [vmem:[%s0 + $0x108] sm:$0xff]
  %v61 = vld [vmem:[%s0 + $0x110] sm:$0xff]
  %v62 = vld [vmem:[%s0 + $0x118] sm:$0xff]
  %v63 = vld [vmem:[%s0 + $0x120] sm:$0xff]
  %v64 = vld [vmem:[%s0 + $0x128] sm:$0xff]
  %v65 = vld [vmem:[%s0 + $0x130] sm:$0xff]
  %v66 = vld [vmem:[%s0 + $0x138] sm:$0xff]
  %v67 = vld [vmem:[%s0 + $0x140] sm:$0xff]
  %v68 = vld [vmem:[%s0 + $0x148] sm:$0xff]
  %v69 = vld [vmem:[%s0 + $0x150] sm:$0xff]
  %v70 = vld [vmem:[%s0 + $0x158] sm:$0xff]
  %v71 = vld [vmem:[%s0 + $0x160] sm:$0xff]
  %v72 = vld [vmem:[%s0 + $0x168] sm:$0xff]
  %v73 = vld [vmem:[%s0 + $0x170] sm:$0xff]
  %v74 = vld [vmem:[%s0 + $0x178] sm:$0xff]
  %v75 = vld [vmem:[%s0 + $0x180] sm:$0x11]
  %v76 = vld [vmem:[%s0 + $0x188] sm:$0x11]
  %v77 = vld [vmem:[%s0 + $0x190] sm:$0x11]
  %v78 = vld [vmem:[%s0 + $0x198] sm:$0x11]
  %v79 = vld [vmem:[%s1] sm:$0xf]
  %v80 = vld [vmem:[%s1 + $0x4] sm:$0xf]
  %v81 = vld [vmem:[%s1 + $0x8] sm:$0xf]
  %v82 = vld [vmem:[%s1 + $0xc] sm:$0xf]
  %v83 = vld [vmem:[%s1 + $0x10] sm:$0xf]
  %v84 = vld [vmem:[%s1 + $0x14] sm:$0xf]
  %v85 = vld [vmem:[%s1 + $0x18] sm:$0xf]
  %v86 = vld [vmem:[%s1 + $0x1c] sm:$0xf]
  %v87 = vld [vmem:[%s1 + $0x20] sm:$0xf]
  %v88 = vld [vmem:[%s1 + $0x24] sm:$0xf]
  %v89 = vld [vmem:[%s1 + $0x28] sm:$0xf]
  %v90 = vld [vmem:[%s1 + $0x2c] sm:$0xf]
  %v91 = vld [vmem:[%s1 + $0x30] sm:$0xf]
  %v92 = vld [vmem:[%s1 + $0x34] sm:$0xf]
  %v93 = vld [vmem:[%s1 + $0x38] sm:$0xf]
  %v94 = vld [vmem:[%s1 + $0x3c] sm:$0xf]
  %v95 = vld [vmem:[%s1 + $0x40] sm:$0xf]
  %v96 = vld [vmem:[%s1 + $0x44] sm:$0xf]
  %v97 = vld [vmem:[%s1 + $0x48] sm:$0xf]
  %v98 = vld [vmem:[%s1 + $0x4c] sm:$0xf]
  %v99 = vld [vmem:[%s1 + $0x50] sm:$0xf]
  %v100 = vld [vmem:[%s1 + $0x54] sm:$0xf]
  %v101 = vld [vmem:[%s1 + $0x58] sm:$0xf]
  %v102 = vld [vmem:[%s1 + $0x5c] sm:$0xf]
  %v103 = vld [vmem:[%s1 + $0x60] sm:$0xf]
  %v104 = vld [vmem:[%s1 + $0x64] sm:$0xf]
  %v105 = vld [vmem:[%s1 + $0x68] sm:$0xf]
  %v106 = vld [vmem:[%s1 + $0x6c] sm:$0xf]
  %v107 = vld [vmem:[%s1 + $0x70] sm:$0xf]
  %v108 = vld [vmem:[%s1 + $0x74] sm:$0xf]
  %v109 = vld [vmem:[%s1 + $0x78] sm:$0xf]
  %v110 = vld [vmem:[%s1 + $0x7c] sm:$0xf]
  %v111 = vld [vmem:[%s1 + $0x80] sm:$0xf]
  %v112 = vld [vmem:[%s1 + $0x84] sm:$0xf]
  %v113 = vld [vmem:[%s1 + $0x88] sm:$0xf]
  %v114 = vld [vmem:[%s1 + $0x8c] sm:$0xf]
  %v115 = vld [vmem:[%s1 + $0x90] sm:$0xf]
  %v116 = vld [vmem:[%s1 + $0x94] sm:$0xf]
  %v117 = vld [vmem:[%s1 + $0x98] sm:$0xf]
  %v118 = vld [vmem:[%s1 + $0x9c] sm:$0xf]
  %v119 = vld [vmem:[%s1 + $0xa0] sm:$0xf]
  %v120 = vld [vmem:[%s1 + $0xa4] sm:$0xf]
  %v121 = vld [vmem:[%s1 + $0xa8] sm:$0xf]
  %v122 = vld [vmem:[%s1 + $0xac] sm:$0xf]
  %v123 = vld [vmem:[%s1 + $0xb0] sm:$0xf]
  %v124 = vld [vmem:[%s1 + $0xb4] sm:$0xf]
  %v125 = vld [vmem:[%s1 + $0xb8] sm:$0xf]
  %v126 = vld [vmem:[%s1 + $0xbc] sm:$0xf]
  %v127 = vld [vmem:[%s1 + $0xc0] sm:$0xf]
  %v128 = vld [vmem:[%s1 + $0xc4] sm:$0xf]
  %v129 = vld [vmem:[%s1 + $0xc8] sm:$0xf]
  %v130 = vld [vmem:[%s1 + $0xcc] sm:$0xf]
  %v131 = vld [vmem:[%s1 + $0xd0] sm:$0xf]
  %v132 = vld [vmem:[%s1 + $0xd4] sm:$0xf]
  %v133 = vld [vmem:[%s1 + $0xd8] sm:$0xf]
  %v134 = vld [vmem:[%s1 + $0xdc] sm:$0xf]
  %v135 = vld [vmem:[%s1 + $0xe0] sm:$0xf]
  %v136 = vld [vmem:[%s1 + $0xe4] sm:$0xf]
  %v137 = vld [vmem:[%s1 + $0xe8] sm:$0xf]
  %v138 = vld [vmem:[%s1 + $0xec] sm:$0xf]
  %v139 = vld [vmem:[%s1 + $0xf0] sm:$0xf]
  %v140 = vld [vmem:[%s1 + $0xf4] sm:$0xf]
  %v141 = vld [vmem:[%s1 + $0xf8] sm:$0xf]
  %v142 = vld [vmem:[%s1 + $0xfc] sm:$0xf]
  %v143 = vld [vmem:[%s1 + $0x100] sm:$0xf]
  %v144 = vld [vmem:[%s1 + $0x104] sm:$0xf]
  %v145 = vld [vmem:[%s1 + $0x108] sm:$0xf]
  %v146 = vld [vmem:[%s1 + $0x10c] sm:$0xf]
  %v147 = vld [vmem:[%s1 + $0x110] sm:$0xf]
  %v148 = vld [vmem:[%s1 + $0x114] sm:$0xf]
  %v149 = vld [vmem:[%s1 + $0x118] sm:$0xf]
  %v150 = vld [vmem:[%s1 + $0x11c] sm:$0xf]
  %v151 = vld [vmem:[%s1 + $0x120] sm:$0xf]
  %v152 = vld [vmem:[%s1 + $0x124] sm:$0xf]
  %v153 = vld [vmem:[%s1 + $0x128] sm:$0xf]
  %v154 = vld [vmem:[%s1 + $0x12c] sm:$0xf]
  %v155 = vld [vmem:[%s1 + $0x130] sm:$0xf]
  %v156 = vld [vmem:[%s1 + $0x134] sm:$0xf]
  %v157 = vld [vmem:[%s1 + $0x138] sm:$0xf]
  %v158 = vld [vmem:[%s1 + $0x13c] sm:$0xf]
  %v159 = vld [vmem:[%s1 + $0x140] sm:$0xf]
  %v160 = vld [vmem:[%s1 + $0x144] sm:$0xf]
  %v161 = vld [vmem:[%s1 + $0x148] sm:$0xf]
  %v162 = vld [vmem:[%s1 + $0x14c] sm:$0xf]
  %v163 = vld [vmem:[%s1 + $0x150] sm:$0xf]
  %v164 = vld [vmem:[%s1 + $0x154] sm:$0xf]
  %v165 = vld [vmem:[%s1 + $0x158] sm:$0xf]
  %v166 = vld [vmem:[%s1 + $0x15c] sm:$0xf]
  %v167 = vld [vmem:[%s1 + $0x160] sm:$0xf]
  %v168 = vld [vmem:[%s1 + $0x164] sm:$0xf]
  %v169 = vld [vmem:[%s1 + $0x168] sm:$0xf]
  %v170 = vld [vmem:[%s1 + $0x16c] sm:$0xf]
  %v171 = vld [vmem:[%s1 + $0x170] sm:$0xf]
  %v172 = vld [vmem:[%s1 + $0x174] sm:$0xf]
  %v173 = vld [vmem:[%s1 + $0x178] sm:$0xf]
  %v174 = vld [vmem:[%s1 + $0x17c] sm:$0xf]
  %v175 = vld [vmem:[%s1 + $0x180] sm:$0xf]
  %v176 = vld [vmem:[%s1 + $0x184] sm:$0xf]
  %v177 = vld [vmem:[%s1 + $0x188] sm:$0xf]
  %v178 = vld [vmem:[%s1 + $0x18c] sm:$0xf]
  %v179 = vld [vmem:[%s1 + $0x190] sm:$0xf]
  %v180 = vld [vmem:[%s1 + $0x194] sm:$0xf]
  %v181 = vld [vmem:[%s1 + $0x198] sm:$0xf]
  %v182 = vld [vmem:[%s1 + $0x19c] sm:$0xf]
  %v183 = vld [vmem:[%s1 + $0x1a0] sm:$0xf]
  %v184 = vld [vmem:[%s1 + $0x1a4] sm:$0xf]
  %v185 = vld [vmem:[%s1 + $0x1a8] sm:$0xf]
  %v186 = vld [vmem:[%s1 + $0x1ac] sm:$0xf]
  %v187 = vld [vmem:[%s1 + $0x1b0] sm:$0xf]
  %v188 = vld [vmem:[%s1 + $0x1b4] sm:$0xf]
  %v189 = vld [vmem:[%s1 + $0x1b8] sm:$0xf]
  %v190 = vld [vmem:[%s1 + $0x1bc] sm:$0xf]
  %v191 = vld [vmem:[%s1 + $0x1c0] sm:$0xf]
  %v192 = vld [vmem:[%s1 + $0x1c4] sm:$0xf]
  %v193 = vld [vmem:[%s1 + $0x1c8] sm:$0xf]
  %v194 = vld [vmem:[%s1 + $0x1cc] sm:$0xf]
  %v195 = vld [vmem:[%s1 + $0x1d0] sm:$0xf]
  %v196 = vld [vmem:[%s1 + $0x1d4] sm:$0xf]
  %v197 = vld [vmem:[%s1 + $0x1d8] sm:$0xf]
  %v198 = vld [vmem:[%s1 + $0x1dc] sm:$0xf]
  %v199 = vld [vmem:[%s1 + $0x1e0] sm:$0xf]
  %v200 = vld [vmem:[%s1 + $0x1e4] sm:$0xf]
  %v201 = vld [vmem:[%s1 + $0x1e8] sm:$0xf]
  %v202 = vld [vmem:[%s1 + $0x1ec] sm:$0xf]
  %v203 = vld [vmem:[%s1 + $0x1f0] sm:$0xf]
  %v204 = vld [vmem:[%s1 + $0x1f4] sm:$0xf]
  %v205 = vld [vmem:[%s1 + $0x1f8] sm:$0xf]
  %v206 = vld [vmem:[%s1 + $0x1fc] sm:$0xf]
  %v207 = vld [vmem:[#allocation2] sm:$0x1]
  %v209 = vlaneseq
  %v210 = vshrl.u32 %v209, 7
  %v211 = vsub.s32 0, %v210
  %v212 = vrot.slane %v207, %v211
  %v266 = vunpack.c.l.b16 %v27
  %v267 = vunpack.c.h.b16 %v27
  %v268 = vunpack.c.l.b16 %v28
  %v269 = vunpack.c.h.b16 %v28
  %v270 = vunpack.c.l.b16 %v29
  %v271 = vunpack.c.h.b16 %v29
  %v272 = vunpack.c.l.b16 %v30
  %v273 = vunpack.c.h.b16 %v30
  %v274 = vunpack.c.l.b16 %v31
  %v275 = vunpack.c.h.b16 %v31
  %v276 = vunpack.c.l.b16 %v32
  %v277 = vunpack.c.h.b16 %v32
  %v278 = vunpack.c.l.b16 %v33
  %v279 = vunpack.c.h.b16 %v33
  %v280 = vunpack.c.l.b16 %v34
  %v281 = vunpack.c.h.b16 %v34
  %v282 = vunpack.c.l.b16 %v35
  %v283 = vunpack.c.h.b16 %v35
  %v284 = vunpack.c.l.b16 %v36
  %v285 = vunpack.c.h.b16 %v36
  %v286 = vunpack.c.l.b16 %v37
  %v287 = vunpack.c.h.b16 %v37
  %v288 = vunpack.c.l.b16 %v38
  %v289 = vunpack.c.h.b16 %v38
  %v290 = vunpack.c.l.b16 %v39
  %v291 = vunpack.c.h.b16 %v39
  %v292 = vunpack.c.l.b16 %v40
  %v293 = vunpack.c.h.b16 %v40
  %v294 = vunpack.c.l.b16 %v41
  %v295 = vunpack.c.h.b16 %v41
  %v296 = vunpack.c.l.b16 %v42
  %v297 = vunpack.c.h.b16 %v42
  %v298 = vunpack.c.l.b16 %v43
  %v299 = vunpack.c.h.b16 %v43
  %v300 = vunpack.c.l.b16 %v44
  %v301 = vunpack.c.h.b16 %v44
  %v302 = vunpack.c.l.b16 %v45
  %v303 = vunpack.c.h.b16 %v45
  %v304 = vunpack.c.l.b16 %v46
  %v305 = vunpack.c.h.b16 %v46
  %v306 = vunpack.c.l.b16 %v47
  %v307 = vunpack.c.h.b16 %v47
  %v308 = vunpack.c.l.b16 %v48
  %v309 = vunpack.c.h.b16 %v48
  %v310 = vunpack.c.l.b16 %v49
  %v311 = vunpack.c.h.b16 %v49
  %v312 = vunpack.c.l.b16 %v50
  %v313 = vunpack.c.h.b16 %v50
  %v314 = vunpack.c.l.b16 %v51
  %v315 = vunpack.c.h.b16 %v51
  %v316 = vunpack.c.l.b16 %v52
  %v317 = vunpack.c.h.b16 %v52
  %v318 = vunpack.c.l.b16 %v53
  %v319 = vunpack.c.h.b16 %v53
  %v320 = vunpack.c.l.b16 %v54
  %v321 = vunpack.c.h.b16 %v54
  %v322 = vunpack.c.l.b16 %v55
  %v323 = vunpack.c.h.b16 %v55
  %v324 = vunpack.c.l.b16 %v56
  %v325 = vunpack.c.h.b16 %v56
  %v326 = vunpack.c.l.b16 %v57
  %v327 = vunpack.c.h.b16 %v57
  %v328 = vunpack.c.l.b16 %v58
  %v329 = vunpack.c.h.b16 %v58
  %v330 = vunpack.c.l.b16 %v59
  %v331 = vunpack.c.h.b16 %v59
  %v332 = vunpack.c.l.b16 %v60
  %v333 = vunpack.c.h.b16 %v60
  %v334 = vunpack.c.l.b16 %v61
  %v335 = vunpack.c.h.b16 %v61
  %v336 = vunpack.c.l.b16 %v62
  %v337 = vunpack.c.h.b16 %v62
  %v338 = vunpack.c.l.b16 %v63
  %v339 = vunpack.c.h.b16 %v63
  %v340 = vunpack.c.l.b16 %v64
  %v341 = vunpack.c.h.b16 %v64
  %v342 = vunpack.c.l.b16 %v65
  %v343 = vunpack.c.h.b16 %v65
  %v344 = vunpack.c.l.b16 %v66
  %v345 = vunpack.c.h.b16 %v66
  %v346 = vunpack.c.l.b16 %v67
  %v347 = vunpack.c.h.b16 %v67
  %v348 = vunpack.c.l.b16 %v68
  %v349 = vunpack.c.h.b16 %v68
  %v350 = vunpack.c.l.b16 %v69
  %v351 = vunpack.c.h.b16 %v69
  %v352 = vunpack.c.l.b16 %v70
  %v353 = vunpack.c.h.b16 %v70
  %v354 = vunpack.c.l.b16 %v71
  %v355 = vunpack.c.h.b16 %v71
  %v356 = vunpack.c.l.b16 %v72
  %v357 = vunpack.c.h.b16 %v72
  %v358 = vunpack.c.l.b16 %v73
  %v359 = vunpack.c.h.b16 %v73
  %v360 = vunpack.c.l.b16 %v74
  %v361 = vunpack.c.h.b16 %v74
  %v362 = vunpack.c.l.b16 %v75
  %v363 = vunpack.c.h.b16 %v75
  %v364 = vunpack.c.l.b16 %v76
  %v365 = vunpack.c.h.b16 %v76
  %v366 = vunpack.c.l.b16 %v77
  %v367 = vunpack.c.h.b16 %v77
  %v368 = vunpack.c.l.b16 %v78
  %v369 = vunpack.c.h.b16 %v78
  %v370 = vpack.c.b16 %v274, %v266
  %v371 = vpack.c.b16 %v275, %v267
  %v372 = vpack.c.b16 %v276, %v268
  %v373 = vpack.c.b16 %v277, %v269
  %v374 = vpack.c.b16 %v278, %v270
  %v375 = vpack.c.b16 %v279, %v271
  %v376 = vpack.c.b16 %v280, %v272
  %v377 = vpack.c.b16 %v281, %v273
  %v378 = vpack.c.b16 %v290, %v282
  %v379 = vpack.c.b16 %v291, %v283
  %v380 = vpack.c.b16 %v292, %v284
  %v381 = vpack.c.b16 %v293, %v285
  %v382 = vpack.c.b16 %v294, %v286
  %v383 = vpack.c.b16 %v295, %v287
  %v384 = vpack.c.b16 %v296, %v288
  %v385 = vpack.c.b16 %v297, %v289
  %v386 = vpack.c.b16 %v306, %v298
  %v387 = vpack.c.b16 %v307, %v299
  %v388 = vpack.c.b16 %v308, %v300
  %v389 = vpack.c.b16 %v309, %v301
  %v390 = vpack.c.b16 %v310, %v302
  %v391 = vpack.c.b16 %v311, %v303
  %v392 = vpack.c.b16 %v312, %v304
  %v393 = vpack.c.b16 %v313, %v305
  %v394 = vpack.c.b16 %v322, %v314
  %v395 = vpack.c.b16 %v323, %v315
  %v396 = vpack.c.b16 %v324, %v316
  %v397 = vpack.c.b16 %v325, %v317
  %v398 = vpack.c.b16 %v326, %v318
  %v399 = vpack.c.b16 %v327, %v319
  %v400 = vpack.c.b16 %v328, %v320
  %v401 = vpack.c.b16 %v329, %v321
  %v402 = vpack.c.b16 %v338, %v330
  %v403 = vpack.c.b16 %v339, %v331
  %v404 = vpack.c.b16 %v340, %v332
  %v405 = vpack.c.b16 %v341, %v333
  %v406 = vpack.c.b16 %v342, %v334
  %v407 = vpack.c.b16 %v343, %v335
  %v408 = vpack.c.b16 %v344, %v336
  %v409 = vpack.c.b16 %v345, %v337
  %v410 = vpack.c.b16 %v354, %v346
  %v411 = vpack.c.b16 %v355, %v347
  %v412 = vpack.c.b16 %v356, %v348
  %v413 = vpack.c.b16 %v357, %v349
  %v414 = vpack.c.b16 %v358, %v350
  %v415 = vpack.c.b16 %v359, %v351
  %v416 = vpack.c.b16 %v360, %v352
  %v417 = vpack.c.b16 %v361, %v353
  %v418 = vpack.c.b16 %v362, %v362
  %v419 = vpack.c.b16 %v363, %v363
  %v420 = vpack.c.b16 %v364, %v364
  %v421 = vpack.c.b16 %v365, %v365
  %v422 = vpack.c.b16 %v366, %v366
  %v423 = vpack.c.b16 %v367, %v367
  %v424 = vpack.c.b16 %v368, %v368
  %v425 = vpack.c.b16 %v369, %v369
  %v610 = vunpack.c.l.b16 %v79
  %v611 = vunpack.c.l.b16 %v80
  %v612 = vunpack.c.l.b16 %v81
  %v613 = vunpack.c.l.b16 %v82
  %v614 = vunpack.c.l.b16 %v83
  %v615 = vunpack.c.l.b16 %v84
  %v616 = vunpack.c.l.b16 %v85
  %v617 = vunpack.c.l.b16 %v86
  %v618 = vunpack.c.l.b16 %v87
  %v619 = vunpack.c.l.b16 %v88
  %v620 = vunpack.c.l.b16 %v89
  %v621 = vunpack.c.l.b16 %v90
  %v622 = vunpack.c.l.b16 %v91
  %v623 = vunpack.c.l.b16 %v92
  %v624 = vunpack.c.l.b16 %v93
  %v625 = vunpack.c.l.b16 %v94
  %v626 = vunpack.c.l.b16 %v95
  %v627 = vunpack.c.l.b16 %v96
  %v628 = vunpack.c.l.b16 %v97
  %v629 = vunpack.c.l.b16 %v98
  %v630 = vunpack.c.l.b16 %v99
  %v631 = vunpack.c.l.b16 %v100
  %v632 = vunpack.c.l.b16 %v101
  %v633 = vunpack.c.l.b16 %v102
  %v634 = vunpack.c.l.b16 %v103
  %v635 = vunpack.c.l.b16 %v104
  %v636 = vunpack.c.l.b16 %v105
  %v637 = vunpack.c.l.b16 %v106
  %v638 = vunpack.c.l.b16 %v107
  %v639 = vunpack.c.l.b16 %v108
  %v640 = vunpack.c.l.b16 %v109
  %v641 = vunpack.c.l.b16 %v110
  %v642 = vunpack.c.l.b16 %v111
  %v643 = vunpack.c.l.b16 %v112
  %v644 = vunpack.c.l.b16 %v113
  %v645 = vunpack.c.l.b16 %v114
  %v646 = vunpack.c.l.b16 %v115
  %v647 = vunpack.c.l.b16 %v116
  %v648 = vunpack.c.l.b16 %v117
  %v649 = vunpack.c.l.b16 %v118
  %v650 = vunpack.c.l.b16 %v119
  %v651 = vunpack.c.l.b16 %v120
  %v652 = vunpack.c.l.b16 %v121
  %v653 = vunpack.c.l.b16 %v122
  %v654 = vunpack.c.l.b16 %v123
  %v655 = vunpack.c.l.b16 %v124
  %v656 = vunpack.c.l.b16 %v125
  %v657 = vunpack.c.l.b16 %v126
  %v658 = vunpack.c.l.b16 %v127
  %v659 = vunpack.c.l.b16 %v128
  %v660 = vunpack.c.l.b16 %v129
  %v661 = vunpack.c.l.b16 %v130
  %v662 = vunpack.c.l.b16 %v131
  %v663 = vunpack.c.l.b16 %v132
  %v664 = vunpack.c.l.b16 %v133
  %v665 = vunpack.c.l.b16 %v134
  %v666 = vunpack.c.l.b16 %v135
  %v667 = vunpack.c.l.b16 %v136
  %v668 = vunpack.c.l.b16 %v137
  %v669 = vunpack.c.l.b16 %v138
  %v670 = vunpack.c.l.b16 %v139
  %v671 = vunpack.c.l.b16 %v140
  %v672 = vunpack.c.l.b16 %v141
  %v673 = vunpack.c.l.b16 %v142
  %v674 = vunpack.c.l.b16 %v143
  %v675 = vunpack.c.l.b16 %v144
  %v676 = vunpack.c.l.b16 %v145
  %v677 = vunpack.c.l.b16 %v146
  %v678 = vunpack.c.l.b16 %v147
  %v679 = vunpack.c.l.b16 %v148
  %v680 = vunpack.c.l.b16 %v149
  %v681 = vunpack.c.l.b16 %v150
  %v682 = vunpack.c.l.b16 %v151
  %v683 = vunpack.c.l.b16 %v152
  %v684 = vunpack.c.l.b16 %v153
  %v685 = vunpack.c.l.b16 %v154
  %v686 = vunpack.c.l.b16 %v155
  %v687 = vunpack.c.l.b16 %v156
  %v688 = vunpack.c.l.b16 %v157
  %v689 = vunpack.c.l.b16 %v158
  %v690 = vunpack.c.l.b16 %v159
  %v691 = vunpack.c.l.b16 %v160
  %v692 = vunpack.c.l.b16 %v161
  %v693 = vunpack.c.l.b16 %v162
  %v694 = vunpack.c.l.b16 %v163
  %v695 = vunpack.c.l.b16 %v164
  %v696 = vunpack.c.l.b16 %v165
  %v697 = vunpack.c.l.b16 %v166
  %v698 = vunpack.c.l.b16 %v167
  %v699 = vunpack.c.l.b16 %v168
  %v700 = vunpack.c.l.b16 %v169
  %v701 = vunpack.c.l.b16 %v170
  %v702 = vunpack.c.l.b16 %v171
  %v703 = vunpack.c.l.b16 %v172
  %v704 = vunpack.c.l.b16 %v173
  %v705 = vunpack.c.l.b16 %v174
  %v706 = vunpack.c.l.b16 %v175
  %v707 = vunpack.c.l.b16 %v176
  %v708 = vunpack.c.l.b16 %v177
  %v709 = vunpack.c.l.b16 %v178
  %v710 = vunpack.c.l.b16 %v179
  %v711 = vunpack.c.l.b16 %v180
  %v712 = vunpack.c.l.b16 %v181
  %v713 = vunpack.c.l.b16 %v182
  %v714 = vunpack.c.l.b16 %v183
  %v715 = vunpack.c.l.b16 %v184
  %v716 = vunpack.c.l.b16 %v185
  %v717 = vunpack.c.l.b16 %v186
  %v718 = vunpack.c.l.b16 %v187
  %v719 = vunpack.c.l.b16 %v188
  %v720 = vunpack.c.l.b16 %v189
  %v721 = vunpack.c.l.b16 %v190
  %v722 = vunpack.c.l.b16 %v191
  %v723 = vunpack.c.l.b16 %v192
  %v724 = vunpack.c.l.b16 %v193
  %v725 = vunpack.c.l.b16 %v194
  %v726 = vunpack.c.l.b16 %v195
  %v727 = vunpack.c.l.b16 %v196
  %v728 = vunpack.c.l.b16 %v197
  %v729 = vunpack.c.l.b16 %v198
  %v730 = vunpack.c.l.b16 %v199
  %v731 = vunpack.c.l.b16 %v200
  %v732 = vunpack.c.l.b16 %v201
  %v733 = vunpack.c.l.b16 %v202
  %v734 = vunpack.c.l.b16 %v203
  %v735 = vunpack.c.l.b16 %v204
  %v736 = vunpack.c.l.b16 %v205
  %v737 = vunpack.c.l.b16 %v206
  %v738 = vpack.c.b16 %v611, %v610
  %v739 = vpack.c.b16 %v613, %v612
  %v740 = vpack.c.b16 %v615, %v614
  %v741 = vpack.c.b16 %v617, %v616
  %v742 = vpack.c.b16 %v619, %v618
  %v743 = vpack.c.b16 %v621, %v620
  %v744 = vpack.c.b16 %v623, %v622
  %v745 = vpack.c.b16 %v625, %v624
  %v746 = vpack.c.b16 %v627, %v626
  %v747 = vpack.c.b16 %v629, %v628
  %v748 = vpack.c.b16 %v631, %v630
  %v749 = vpack.c.b16 %v633, %v632
  %v750 = vpack.c.b16 %v635, %v634
  %v751 = vpack.c.b16 %v637, %v636
  %v752 = vpack.c.b16 %v639, %v638
  %v753 = vpack.c.b16 %v641, %v640
  %v754 = vpack.c.b16 %v643, %v642
  %v755 = vpack.c.b16 %v645, %v644
  %v756 = vpack.c.b16 %v647, %v646
  %v757 = vpack.c.b16 %v649, %v648
  %v758 = vpack.c.b16 %v651, %v650
  %v759 = vpack.c.b16 %v653, %v652
  %v760 = vpack.c.b16 %v655, %v654
  %v761 = vpack.c.b16 %v657, %v656
  %v762 = vpack.c.b16 %v659, %v658
  %v763 = vpack.c.b16 %v661, %v660
  %v764 = vpack.c.b16 %v663, %v662
  %v765 = vpack.c.b16 %v665, %v664
  %v766 = vpack.c.b16 %v667, %v666
  %v767 = vpack.c.b16 %v669, %v668
  %v768 = vpack.c.b16 %v671, %v670
  %v769 = vpack.c.b16 %v673, %v672
  %v770 = vpack.c.b16 %v675, %v674
  %v771 = vpack.c.b16 %v677, %v676
  %v772 = vpack.c.b16 %v679, %v678
  %v773 = vpack.c.b16 %v681, %v680
  %v774 = vpack.c.b16 %v683, %v682
  %v775 = vpack.c.b16 %v685, %v684
  %v776 = vpack.c.b16 %v687, %v686
  %v777 = vpack.c.b16 %v689, %v688
  %v778 = vpack.c.b16 %v691, %v690
  %v779 = vpack.c.b16 %v693, %v692
  %v780 = vpack.c.b16 %v695, %v694
  %v781 = vpack.c.b16 %v697, %v696
  %v782 = vpack.c.b16 %v699, %v698
  %v783 = vpack.c.b16 %v701, %v700
  %v784 = vpack.c.b16 %v703, %v702
  %v785 = vpack.c.b16 %v705, %v704
  %v786 = vpack.c.b16 %v707, %v706
  %v787 = vpack.c.b16 %v709, %v708
  %v788 = vpack.c.b16 %v711, %v710
  %v789 = vpack.c.b16 %v713, %v712
  %v790 = vpack.c.b16 %v715, %v714
  %v791 = vpack.c.b16 %v717, %v716
  %v792 = vpack.c.b16 %v719, %v718
  %v793 = vpack.c.b16 %v721, %v720
  %v794 = vpack.c.b16 %v723, %v722
  %v795 = vpack.c.b16 %v725, %v724
  %v796 = vpack.c.b16 %v727, %v726
  %v797 = vpack.c.b16 %v729, %v728
  %v798 = vpack.c.b16 %v731, %v730
  %v799 = vpack.c.b16 %v733, %v732
  %v800 = vpack.c.b16 %v735, %v734
  %v801 = vpack.c.b16 %v737, %v736
  %866 = vmatprep.subr.bf16.mxu0 0
  %867 = vmatpush1.bf16.msra.mxu0 %v738
  %868 = vmatprep.subr.bf16.mxu0 0
  %869 = vmatpush1.bf16.msra.mxu0 %v739
  %870 = vmatprep.subr.bf16.mxu0 0
  %871 = vmatpush1.bf16.msra.mxu0 %v740
  %872 = vmatprep.subr.bf16.mxu0 0
  %873 = vmatpush1.bf16.msra.mxu0 %v741
  %874 = vmatprep.subr.bf16.mxu0 0
  %875 = vmatpush1.bf16.msra.mxu0 %v742
  %876 = vmatprep.subr.bf16.mxu0 0
  %877 = vmatpush1.bf16.msra.mxu0 %v743
  %878 = vmatprep.subr.bf16.mxu0 0
  %879 = vmatpush1.bf16.msra.mxu0 %v744
  %880 = vmatprep.subr.bf16.mxu0 0
  %881 = vmatpush1.bf16.msra.mxu0 %v745
  %882 = vmatprep.subr.bf16.mxu0 0
  %883 = vmatpush1.bf16.msra.mxu0 %v746
  %884 = vmatprep.subr.bf16.mxu0 0
  %885 = vmatpush1.bf16.msra.mxu0 %v747
  %886 = vmatprep.subr.bf16.mxu0 0
  %887 = vmatpush1.bf16.msra.mxu0 %v748
  %888 = vmatprep.subr.bf16.mxu0 0
  %889 = vmatpush1.bf16.msra.mxu0 %v749
  %890 = vmatprep.subr.bf16.mxu0 0
  %891 = vmatpush1.bf16.msra.mxu0 %v750
  %892 = vmatprep.subr.bf16.mxu0 0
  %893 = vmatpush1.bf16.msra.mxu0 %v751
  %894 = vmatprep.subr.bf16.mxu0 0
  %895 = vmatpush1.bf16.msra.mxu0 %v752
  %896 = vmatprep.subr.bf16.mxu0 0
  %897 = vmatpush1.bf16.msra.mxu0 %v753
  %898 = vmatprep.mubr.bf16.mxu0 %v371
  %899 = vmatmul.mubr.bf16.gmra.mrb[0].mxu0 %v370
  %v900 = vpop.f32.mrb[0].mxu0
  %v901 = vadd.f32 %v212, %v900
  %v902 = vpop.f32.mrb[0].mxu0
  %v903 = vpop.f32.mrb[0].mxu0
  %v904 = vadd.f32 %v212, %v903
  %v905 = vpop.f32.mrb[0].mxu0
  %906 = vmatprep.mubr.bf16.mxu0 %v379
  %907 = vmatmul.mubr.bf16.gmra.mrb[0].mxu0 %v378
  %v908 = vpop.f32.mrb[0].mxu0
  %v909 = vadd.f32 %v212, %v908
  %v910 = vpop.f32.mrb[0].mxu0
  %v911 = vpop.f32.mrb[0].mxu0
  %v912 = vadd.f32 %v212, %v911
  %v913 = vpop.f32.mrb[0].mxu0
  %914 = vmatprep.mubr.bf16.mxu0 %v387
  %915 = vmatmul.mubr.bf16.gmra.mrb[0].mxu0 %v386
  %v916 = vpop.f32.mrb[0].mxu0
  %v917 = vadd.f32 %v212, %v916
  %v918 = vpop.f32.mrb[0].mxu0
  %v919 = vpop.f32.mrb[0].mxu0
  %v920 = vadd.f32 %v212, %v919
  %v921 = vpop.f32.mrb[0].mxu0
  %922 = vmatprep.mubr.bf16.mxu0 %v395
  %923 = vmatmul.mubr.bf16.gmra.mrb[0].mxu0 %v394
  %v924 = vpop.f32.mrb[0].mxu0
  %v925 = vadd.f32 %v212, %v924
  %v926 = vpop.f32.mrb[0].mxu0
  %v927 = vpop.f32.mrb[0].mxu0
  %v928 = vadd.f32 %v212, %v927
  %v929 = vpop.f32.mrb[0].mxu0
  %930 = vmatprep.mubr.bf16.mxu0 %v403
  %931 = vmatmul.mubr.bf16.gmra.mrb[0].mxu0 %v402
  %v932 = vpop.f32.mrb[0].mxu0
  %v933 = vadd.f32 %v212, %v932
  %v934 = vpop.f32.mrb[0].mxu0
  %v935 = vpop.f32.mrb[0].mxu0
  %v936 = vadd.f32 %v212, %v935
  %v937 = vpop.f32.mrb[0].mxu0
  %938 = vmatprep.mubr.bf16.mxu0 %v411
  %939 = vmatmul.mubr.bf16.gmra.mrb[0].mxu0 %v410
  %v940 = vpop.f32.mrb[0].mxu0
  %v941 = vadd.f32 %v212, %v940
  %v942 = vpop.f32.mrb[0].mxu0
  %v943 = vpop.f32.mrb[0].mxu0
  %v944 = vadd.f32 %v212, %v943
  %v945 = vpop.f32.mrb[0].mxu0
  %946 = vmatprep.mubr.bf16.mxu0 %v419
  %947 = vmatmul.mubr.bf16.gmra.mrb[0].mxu0 %v418
  %v948 = vpop.f32.mrb[0].mxu0
  %v949 = vadd.f32 %v212, %v948
  %v950 = vpop.f32.mrb[0].mxu0
  %v951 = vpop.f32.mrb[0].mxu0
  %v952 = vpop.f32.mrb[0].mxu0
  %953 = vdwg.mxu0
  %954 = vmatprep.subr.bf16.mxu0 0
  %955 = vmatpush1.bf16.msra.mxu0 %v754
  %956 = vmatprep.subr.bf16.mxu0 0
  %957 = vmatpush1.bf16.msra.mxu0 %v755
  %958 = vmatprep.subr.bf16.mxu0 0
  %959 = vmatpush1.bf16.msra.mxu0 %v756
  %960 = vmatprep.subr.bf16.mxu0 0
  %961 = vmatpush1.bf16.msra.mxu0 %v757
  %962 = vmatprep.subr.bf16.mxu0 0
  %963 = vmatpush1.bf16.msra.mxu0 %v758
  %964 = vmatprep.subr.bf16.mxu0 0
  %965 = vmatpush1.bf16.msra.mxu0 %v759
  %966 = vmatprep.subr.bf16.mxu0 0
  %967 = vmatpush1.bf16.msra.mxu0 %v760
  %968 = vmatprep.subr.bf16.mxu0 0
  %969 = vmatpush1.bf16.msra.mxu0 %v761
  %970 = vmatprep.subr.bf16.mxu0 0
  %971 = vmatpush1.bf16.msra.mxu0 %v762
  %972 = vmatprep.subr.bf16.mxu0 0
  %973 = vmatpush1.bf16.msra.mxu0 %v763
  %974 = vmatprep.subr.bf16.mxu0 0
  %975 = vmatpush1.bf16.msra.mxu0 %v764
  %976 = vmatprep.subr.bf16.mxu0 0
  %977 = vmatpush1.bf16.msra.mxu0 %v765
  %978 = vmatprep.subr.bf16.mxu0 0
  %979 = vmatpush1.bf16.msra.mxu0 %v766
  %980 = vmatprep.subr.bf16.mxu0 0
  %981 = vmatpush1.bf16.msra.mxu0 %v767
  %982 = vmatprep.subr.bf16.mxu0 0
  %983 = vmatpush1.bf16.msra.mxu0 %v768
  %984 = vmatprep.subr.bf16.mxu0 0
  %985 = vmatpush1.bf16.msra.mxu0 %v769
  %986 = vmatprep.mubr.bf16.mxu0 %v373
  %987 = vmatmul.mubr.bf16.gmra.mrb[0].mxu0 %v372
  %v988 = vpop.f32.mrb[0].mxu0
  %v989 = vadd.f32 %v901, %v988
  %v990 = vpop.f32.mrb[0].mxu0
  %v991 = vpop.f32.mrb[0].mxu0
  %v992 = vadd.f32 %v904, %v991
  %v993 = vpop.f32.mrb[0].mxu0
  %994 = vmatprep.mubr.bf16.mxu0 %v381
  %995 = vmatmul.mubr.bf16.gmra.mrb[0].mxu0 %v380
  %v996 = vpop.f32.mrb[0].mxu0
  %v997 = vadd.f32 %v909, %v996
  %v998 = vpop.f32.mrb[0].mxu0
  %v999 = vpop.f32.mrb[0].mxu0
  %v1000 = vadd.f32 %v912, %v999
  %v1001 = vpop.f32.mrb[0].mxu0
  %1002 = vmatprep.mubr.bf16.mxu0 %v389
  %1003 = vmatmul.mubr.bf16.gmra.mrb[0].mxu0 %v388
  %v1004 = vpop.f32.mrb[0].mxu0
  %v1005 = vadd.f32 %v917, %v1004
  %v1006 = vpop.f32.mrb[0].mxu0
  %v1007 = vpop.f32.mrb[0].mxu0
  %v1008 = vadd.f32 %v920, %v1007
  %v1009 = vpop.f32.mrb[0].mxu0
  %1010 = vmatprep.mubr.bf16.mxu0 %v397
  %1011 = vmatmul.mubr.bf16.gmra.mrb[0].mxu0 %v396
  %v1012 = vpop.f32.mrb[0].mxu0
  %v1013 = vadd.f32 %v925, %v1012
  %v1014 = vpop.f32.mrb[0].mxu0
  %v1015 = vpop.f32.mrb[0].mxu0
  %v1016 = vadd.f32 %v928, %v1015
  %v1017 = vpop.f32.mrb[0].mxu0
  %1018 = vmatprep.mubr.bf16.mxu0 %v405
  %1019 = vmatmul.mubr.bf16.gmra.mrb[0].mxu0 %v404
  %v1020 = vpop.f32.mrb[0].mxu0
  %v1021 = vadd.f32 %v933, %v1020
  %v1022 = vpop.f32.mrb[0].mxu0
  %v1023 = vpop.f32.mrb[0].mxu0
  %v1024 = vadd.f32 %v936, %v1023
  %v1025 = vpop.f32.mrb[0].mxu0
  %1026 = vmatprep.mubr.bf16.mxu0 %v413
  %1027 = vmatmul.mubr.bf16.gmra.mrb[0].mxu0 %v412
  %v1028 = vpop.f32.mrb[0].mxu0
  %v1029 = vadd.f32 %v941, %v1028
  %v1030 = vpop.f32.mrb[0].mxu0
  %v1031 = vpop.f32.mrb[0].mxu0
  %v1032 = vadd.f32 %v944, %v1031
  %v1033 = vpop.f32.mrb[0].mxu0
  %1034 = vmatprep.mubr.bf16.mxu0 %v421
  %1035 = vmatmul.mubr.bf16.gmra.mrb[0].mxu0 %v420
  %v1036 = vpop.f32.mrb[0].mxu0
  %v1037 = vadd.f32 %v949, %v1036
  %v1038 = vpop.f32.mrb[0].mxu0
  %v1039 = vpop.f32.mrb[0].mxu0
  %v1040 = vpop.f32.mrb[0].mxu0
  %1041 = vdwg.mxu0
  %1042 = vmatprep.subr.bf16.mxu0 0
  %1043 = vmatpush1.bf16.msra.mxu0 %v770
  %1044 = vmatprep.subr.bf16.mxu0 0
  %1045 = vmatpush1.bf16.msra.mxu0 %v771
  %1046 = vmatprep.subr.bf16.mxu0 0
  %1047 = vmatpush1.bf16.msra.mxu0 %v772
  %1048 = vmatprep.subr.bf16.mxu0 0
  %1049 = vmatpush1.bf16.msra.mxu0 %v773
  %1050 = vmatprep.subr.bf16.mxu0 0
  %1051 = vmatpush1.bf16.msra.mxu0 %v774
  %1052 = vmatprep.subr.bf16.mxu0 0
  %1053 = vmatpush1.bf16.msra.mxu0 %v775
  %1054 = vmatprep.subr.bf16.mxu0 0
  %1055 = vmatpush1.bf16.msra.mxu0 %v776
  %1056 = vmatprep.subr.bf16.mxu0 0
  %1057 = vmatpush1.bf16.msra.mxu0 %v777
  %1058 = vmatprep.subr.bf16.mxu0 0
  %1059 = vmatpush1.bf16.msra.mxu0 %v778
  %1060 = vmatprep.subr.bf16.mxu0 0
  %1061 = vmatpush1.bf16.msra.mxu0 %v779
  %1062 = vmatprep.subr.bf16.mxu0 0
  %1063 = vmatpush1.bf16.msra.mxu0 %v780
  %1064 = vmatprep.subr.bf16.mxu0 0
  %1065 = vmatpush1.bf16.msra.mxu0 %v781
  %1066 = vmatprep.subr.bf16.mxu0 0
  %1067 = vmatpush1.bf16.msra.mxu0 %v782
  %1068 = vmatprep.subr.bf16.mxu0 0
  %1069 = vmatpush1.bf16.msra.mxu0 %v783
  %1070 = vmatprep.subr.bf16.mxu0 0
  %1071 = vmatpush1.bf16.msra.mxu0 %v784
  %1072 = vmatprep.subr.bf16.mxu0 0
  %1073 = vmatpush1.bf16.msra.mxu0 %v785
  %1074 = vmatprep.mubr.bf16.mxu0 %v375
  %1075 = vmatmul.mubr.bf16.gmra.mrb[0].mxu0 %v374
  %v1076 = vpop.f32.mrb[0].mxu0
  %v1077 = vadd.f32 %v989, %v1076
  %v1078 = vpop.f32.mrb[0].mxu0
  %v1079 = vpop.f32.mrb[0].mxu0
  %v1080 = vadd.f32 %v992, %v1079
  %v1081 = vpop.f32.mrb[0].mxu0
  %1082 = vmatprep.mubr.bf16.mxu0 %v383
  %1083 = vmatmul.mubr.bf16.gmra.mrb[0].mxu0 %v382
  %v1084 = vpop.f32.mrb[0].mxu0
  %v1085 = vadd.f32 %v997, %v1084
  %v1086 = vpop.f32.mrb[0].mxu0
  %v1087 = vpop.f32.mrb[0].mxu0
  %v1088 = vadd.f32 %v1000, %v1087
  %v1089 = vpop.f32.mrb[0].mxu0
  %1090 = vmatprep.mubr.bf16.mxu0 %v391
  %1091 = vmatmul.mubr.bf16.gmra.mrb[0].mxu0 %v390
  %v1092 = vpop.f32.mrb[0].mxu0
  %v1093 = vadd.f32 %v1005, %v1092
  %v1094 = vpop.f32.mrb[0].mxu0
  %v1095 = vpop.f32.mrb[0].mxu0
  %v1096 = vadd.f32 %v1008, %v1095
  %v1097 = vpop.f32.mrb[0].mxu0
  %1098 = vmatprep.mubr.bf16.mxu0 %v399
  %1099 = vmatmul.mubr.bf16.gmra.mrb[0].mxu0 %v398
  %v1100 = vpop.f32.mrb[0].mxu0
  %v1101 = vadd.f32 %v1013, %v1100
  %v1102 = vpop.f32.mrb[0].mxu0
  %v1103 = vpop.f32.mrb[0].mxu0
  %v1104 = vadd.f32 %v1016, %v1103
  %v1105 = vpop.f32.mrb[0].mxu0
  %1106 = vmatprep.mubr.bf16.mxu0 %v407
  %1107 = vmatmul.mubr.bf16.gmra.mrb[0].mxu0 %v406
  %v1108 = vpop.f32.mrb[0].mxu0
  %v1109 = vadd.f32 %v1021, %v1108
  %v1110 = vpop.f32.mrb[0].mxu0
  %v1111 = vpop.f32.mrb[0].mxu0
  %v1112 = vadd.f32 %v1024, %v1111
  %v1113 = vpop.f32.mrb[0].mxu0
  %1114 = vmatprep.mubr.bf16.mxu0 %v415
  %1115 = vmatmul.mubr.bf16.gmra.mrb[0].mxu0 %v414
  %v1116 = vpop.f32.mrb[0].mxu0
  %v1117 = vadd.f32 %v1029, %v1116
  %v1118 = vpop.f32.mrb[0].mxu0
  %v1119 = vpop.f32.mrb[0].mxu0
  %v1120 = vadd.f32 %v1032, %v1119
  %v1121 = vpop.f32.mrb[0].mxu0
  %1122 = vmatprep.mubr.bf16.mxu0 %v423
  %1123 = vmatmul.mubr.bf16.gmra.mrb[0].mxu0 %v422
  %v1124 = vpop.f32.mrb[0].mxu0
  %v1125 = vadd.f32 %v1037, %v1124
  %v1126 = vpop.f32.mrb[0].mxu0
  %v1127 = vpop.f32.mrb[0].mxu0
  %v1128 = vpop.f32.mrb[0].mxu0
  %1129 = vdwg.mxu0
  %1130 = vmatprep.subr.bf16.mxu0 0
  %1131 = vmatpush1.bf16.msra.mxu0 %v786
  %1132 = vmatprep.subr.bf16.mxu0 0
  %1133 = vmatpush1.bf16.msra.mxu0 %v787
  %1134 = vmatprep.subr.bf16.mxu0 0
  %1135 = vmatpush1.bf16.msra.mxu0 %v788
  %1136 = vmatprep.subr.bf16.mxu0 0
  %1137 = vmatpush1.bf16.msra.mxu0 %v789
  %1138 = vmatprep.subr.bf16.mxu0 0
  %1139 = vmatpush1.bf16.msra.mxu0 %v790
  %1140 = vmatprep.subr.bf16.mxu0 0
  %1141 = vmatpush1.bf16.msra.mxu0 %v791
  %1142 = vmatprep.subr.bf16.mxu0 0
  %1143 = vmatpush1.bf16.msra.mxu0 %v792
  %1144 = vmatprep.subr.bf16.mxu0 0
  %1145 = vmatpush1.bf16.msra.mxu0 %v793
  %1146 = vmatprep.subr.bf16.mxu0 0
  %1147 = vmatpush1.bf16.msra.mxu0 %v794
  %1148 = vmatprep.subr.bf16.mxu0 0
  %1149 = vmatpush1.bf16.msra.mxu0 %v795
  %1150 = vmatprep.subr.bf16.mxu0 0
  %1151 = vmatpush1.bf16.msra.mxu0 %v796
  %1152 = vmatprep.subr.bf16.mxu0 0
  %1153 = vmatpush1.bf16.msra.mxu0 %v797
  %1154 = vmatprep.subr.bf16.mxu0 0
  %1155 = vmatpush1.bf16.msra.mxu0 %v798
  %1156 = vmatprep.subr.bf16.mxu0 0
  %1157 = vmatpush1.bf16.msra.mxu0 %v799
  %1158 = vmatprep.subr.bf16.mxu0 0
  %1159 = vmatpush1.bf16.msra.mxu0 %v800
  %1160 = vmatprep.subr.bf16.mxu0 0
  %1161 = vmatpush1.bf16.msra.mxu0 %v801
  %1162 = vmatprep.mubr.bf16.mxu0 %v377
  %1163 = vmatmul.mubr.bf16.gmra.mrb[0].mxu0 %v376
  %v1164 = vpop.f32.mrb[0].mxu0
  %v1165 = vadd.f32 %v1077, %v1164
  %v1166 = vpop.f32.mrb[0].mxu0
  %v1167 = vpop.f32.mrb[0].mxu0
  %v1168 = vadd.f32 %v1080, %v1167
  %v1169 = vpop.f32.mrb[0].mxu0
  %1170 = vmatprep.mubr.bf16.mxu0 %v385
  %1171 = vmatmul.mubr.bf16.gmra.mrb[0].mxu0 %v384
  %v1172 = vpop.f32.mrb[0].mxu0
  %v1173 = vadd.f32 %v1085, %v1172
  %v1174 = vpop.f32.mrb[0].mxu0
  %v1175 = vpop.f32.mrb[0].mxu0
  %v1176 = vadd.f32 %v1088, %v1175
  %v1177 = vpop.f32.mrb[0].mxu0
  %1178 = vmatprep.mubr.bf16.mxu0 %v393
  %1179 = vmatmul.mubr.bf16.gmra.mrb[0].mxu0 %v392
  %v1180 = vpop.f32.mrb[0].mxu0
  %v1181 = vadd.f32 %v1093, %v1180
  %v1182 = vpop.f32.mrb[0].mxu0
  %v1183 = vpop.f32.mrb[0].mxu0
  %v1184 = vadd.f32 %v1096, %v1183
  %v1185 = vpop.f32.mrb[0].mxu0
  %1186 = vmatprep.mubr.bf16.mxu0 %v401
  %1187 = vmatmul.mubr.bf16.gmra.mrb[0].mxu0 %v400
  %v1188 = vpop.f32.mrb[0].mxu0
  %v1189 = vadd.f32 %v1101, %v1188
  %v1190 = vpop.f32.mrb[0].mxu0
  %v1191 = vpop.f32.mrb[0].mxu0
  %v1192 = vadd.f32 %v1104, %v1191
  %v1193 = vpop.f32.mrb[0].mxu0
  %1194 = vmatprep.mubr.bf16.mxu0 %v409
  %1195 = vmatmul.mubr.bf16.gmra.mrb[0].mxu0 %v408
  %v1196 = vpop.f32.mrb[0].mxu0
  %v1197 = vadd.f32 %v1109, %v1196
  %v1198 = vpop.f32.mrb[0].mxu0
  %v1199 = vpop.f32.mrb[0].mxu0
  %v1200 = vadd.f32 %v1112, %v1199
  %v1201 = vpop.f32.mrb[0].mxu0
  %1202 = vmatprep.mubr.bf16.mxu0 %v417
  %1203 = vmatmul.mubr.bf16.gmra.mrb[0].mxu0 %v416
  %v1204 = vpop.f32.mrb[0].mxu0
  %v1205 = vadd.f32 %v1117, %v1204
  %v1206 = vpop.f32.mrb[0].mxu0
  %v1207 = vpop.f32.mrb[0].mxu0
  %v1208 = vadd.f32 %v1120, %v1207
  %v1209 = vpop.f32.mrb[0].mxu0
  %1210 = vmatprep.mubr.bf16.mxu0 %v425
  %1211 = vmatmul.mubr.bf16.gmra.mrb[0].mxu0 %v424
  %v1212 = vpop.f32.mrb[0].mxu0
  %v1213 = vadd.f32 %v1125, %v1212
  %v1214 = vpop.f32.mrb[0].mxu0
  %v1215 = vpop.f32.mrb[0].mxu0
  %v1216 = vpop.f32.mrb[0].mxu0
  %1217 = vdwg.mxu0
  %vm1218 = vcmask 7168
  %1219 = vst.msk [vmem:[%s5] sm:$0xff] %vm1218, %v1165
  %1220 = vst.msk [vmem:[%s5 + $0x8] sm:$0xff] %vm1218, %v1168
  %1221 = vst.msk [vmem:[%s5 + $0x10] sm:$0xff] %vm1218, %v1173
  %1222 = vst.msk [vmem:[%s5 + $0x18] sm:$0xff] %vm1218, %v1176
  %1223 = vst.msk [vmem:[%s5 + $0x20] sm:$0xff] %vm1218, %v1181
  %1224 = vst.msk [vmem:[%s5 + $0x28] sm:$0xff] %vm1218, %v1184
  %1225 = vst.msk [vmem:[%s5 + $0x30] sm:$0xff] %vm1218, %v1189
  %1226 = vst.msk [vmem:[%s5 + $0x38] sm:$0xff] %vm1218, %v1192
  %1227 = vst.msk [vmem:[%s5 + $0x40] sm:$0xff] %vm1218, %v1197
  %1228 = vst.msk [vmem:[%s5 + $0x48] sm:$0xff] %vm1218, %v1200
  %1229 = vst.msk [vmem:[%s5 + $0x50] sm:$0xff] %vm1218, %v1205
  %1230 = vst.msk [vmem:[%s5 + $0x58] sm:$0xff] %vm1218, %v1208
  %vm1231 = vcmask 1024
  %1232 = vst.msk [vmem:[%s5 + $0x60] sm:$0x3] %vm1231, %v1213
  // Predicated region
  $region22: #{multiscale_discriminator_forward.19} parent=0 // pred_check
    _
  $region23: #{multiscale_discriminator_forward.19} parent=0 // pred_check_branch
    %1234 = sbr.rel (0) target = $region25
  $region24: #{multiscale_discriminator_forward.19} parent=0 // pred_region
    _
  $region25: #{multiscale_discriminator_forward.19} parent=0 // pred_fallthru
    _
  // Predicated region
  $region26: #{multiscale_discriminator_forward.19} parent=0 // pred_check
    _
  $region27: #{multiscale_discriminator_forward.19} parent=0 // pred_check_branch
    %1236 = sbr.rel (0) target = $region29
  $region28: #{multiscale_discriminator_forward.19} parent=0 // pred_region
    _
  $region29: #{multiscale_discriminator_forward.19} parent=0 // pred_fallthru
    _

</llo_original>
